<compile_context>
chip_gen: v7x
topology: tpu7x:2x2x1
jax: 0.10.0
libtpu: 0.0.40
codegen_flags: <defaults>
</compile_context>

<pallas_src>
import functools

import jax
import jax.numpy as jnp
from jax import lax
from jax.experimental import pallas as pl
from jax.experimental.pallas import tpu as pltpu


def _fused_kernel(x_ref, w_ref, p_ref, o_ref, *, eps, groups_per_tile):
    # --- GEMM (Linear): bf16 x bf16 -> f32 on the MXU ---
    x = x_ref[...].astype(jnp.bfloat16)
    y = jnp.dot(x, w_ref[...], preferred_element_type=jnp.float32)   # (tm, tn) f32

    bias = p_ref[0:1, :]     # (1, tn) f32
    gamma = p_ref[1:2, :]
    beta = p_ref[2:3, :]
    mw = p_ref[3:4, :]
    y = y + bias

    tm, tn = y.shape
    gt = groups_per_tile
    gs = tn // gt

    # --- GroupNorm statistics on the VPU/XLU (exact f32, zero MXU work) ---
    yg = y.reshape(tm, gt, gs)
    mean = jnp.mean(yg, axis=-1, keepdims=True)              # (tm, gt, 1)
    mean_sq = jnp.mean(yg * yg, axis=-1, keepdims=True)      # (tm, gt, 1)
    var = jnp.maximum(mean_sq - mean * mean, 0.0)            # clamp rounding
    inv_std = lax.rsqrt(var + eps)
    norm = ((yg - mean) * inv_std).reshape(tm, tn)           # exact broadcast back

    # --- Affine + Swish -> multiply -> Swish (f32 epilogue on VPU/EUP) ---
    yn = norm * gamma + beta
    s1 = yn * jax.nn.sigmoid(yn)
    z = s1 * mw
    o_ref[...] = (z * jax.nn.sigmoid(z)).astype(o_ref.dtype)


def prepare_weights(w, bias, gamma, beta, mweight):
    """One-time weight prep (amortized): transpose + bf16-cast W, fuse the four
    per-feature vectors into a single (4, N) f32 array."""
    w_t_bf16 = jnp.asarray(w).T.astype(jnp.bfloat16)                     # (K, N)
    params = jnp.stack([bias, gamma, beta, mweight]).astype(jnp.float32)  # (4, N)
    return w_t_bf16, params


def fused_gemm_groupnorm_swish(x, w_t_bf16, params, num_groups, eps=1e-5,
                               tm=None, tn=None):
    B, K = x.shape
    K2, N = w_t_bf16.shape
    assert K == K2 and N % num_groups == 0
    assert params.shape == (4, N)
    gs = N // num_groups

    # Row tile: as large as reasonable (feeds the MXU, amortizes per-step cost).
    if tm is None:
        tm = min(B, 256)
    assert B % tm == 0 and tm % 8 == 0
    # Feature tile: multiple of the group size (each group stays in one tile) and
    # of 128 lanes.  tn=512 keeps a 2-step serial pipeline on single-TC chips and
    # a clean 2-way megacore split on v7x.
    if tn is None:
        tn = min(N, 512)
    assert N % tn == 0 and tn % gs == 0 and tn % 128 == 0
    gt = tn // gs   # groups per feature tile

    kernel = functools.partial(_fused_kernel, eps=float(eps), groups_per_tile=gt)

    return pl.pallas_call(
        kernel,
        out_shape=jax.ShapeDtypeStruct((B, N), x.dtype),
        grid_spec=pltpu.PrefetchScalarGridSpec(
            num_scalar_prefetch=0,
            grid=(B // tm, N // tn),
            in_specs=[
                pl.BlockSpec((tm, K), lambda i, j: (i, 0)),   # x tile (f32)
                pl.BlockSpec((K, tn), lambda i, j: (0, j)),   # W tile (bf16)
                pl.BlockSpec((4, tn), lambda i, j: (0, j)),   # [bias;gamma;beta;mw]
            ],
            out_specs=pl.BlockSpec((tm, tn), lambda i, j: (i, j)),
        ),
        compiler_params=pltpu.CompilerParams(
            dimension_semantics=("parallel", "parallel")),
    )(x, w_t_bf16, params)


def reference(x, w_t, bias, gamma, beta, mweight, num_groups, eps=1e-5,
              bf16_gemm=True):
    if bf16_gemm:
        y = jnp.dot(x.astype(jnp.bfloat16), w_t.astype(jnp.bfloat16),
                    preferred_element_type=jnp.float32)
    else:
        y = jnp.dot(x, w_t, preferred_element_type=jnp.float32,
                    precision=lax.Precision.HIGHEST)
    y = y + bias
    B, N = y.shape
    gs = N // num_groups
    yg = y.reshape(B, num_groups, gs)
    mean = yg.mean(axis=-1, keepdims=True)
    var = yg.var(axis=-1, keepdims=True)
    norm = ((yg - mean) * lax.rsqrt(var + eps)).reshape(B, N)
    yn = norm * gamma + beta
    s1 = yn * jax.nn.sigmoid(yn)
    z = s1 * mweight
    return z * jax.nn.sigmoid(z)


if __name__ == "__main__":
    # Shapes implied by the module: (128, 512) -> Linear(512, 1024) -> GroupNorm(16).
    batch_size = 128
    in_features = 512
    out_features = 1024
    num_groups = 16

    key = jax.random.PRNGKey(0)
    k_x, k_w, k_b, k_m = jax.random.split(key, 4)

    x = jax.random.normal(k_x, (batch_size, in_features), dtype=jnp.float32)
    # nn.Linear-style deterministic init: weight (out, in), uniform(-1/sqrt(K), 1/sqrt(K)).
    bound = 1.0 / (in_features ** 0.5)
    w = jax.random.uniform(k_w, (out_features, in_features),
                           minval=-bound, maxval=bound, dtype=jnp.float32)
    bias = jax.random.uniform(k_b, (out_features,),
                              minval=-bound, maxval=bound, dtype=jnp.float32)
    gamma = jnp.ones((out_features,), dtype=jnp.float32)    # GroupNorm affine defaults
    beta = jnp.zeros((out_features,), dtype=jnp.float32)
    mweight = jax.random.normal(k_m, (out_features,), dtype=jnp.float32)

    # One-time weight prep (outside the hot path).
    w_t_bf, params = prepare_weights(w, bias, gamma, beta, mweight)
    w_t_bf, params = jax.block_until_ready((w_t_bf, params))

    run = jax.jit(functools.partial(fused_gemm_groupnorm_swish,
                                    num_groups=num_groups))
    out = jax.block_until_ready(run(x, w_t_bf, params))
    assert out.shape == (batch_size, out_features)
    assert out.dtype == x.dtype

    w_t = w.T
    # Tight check vs. a reference using the same bf16 GEMM + f32 GroupNorm/epilogue.
    ref_same = reference(x, w_t, bias, gamma, beta, mweight, num_groups,
                         bf16_gemm=True)
    err_same = float(jnp.max(jnp.abs(out - ref_same)))
    assert jnp.allclose(out, ref_same, atol=2e-3, rtol=2e-3), err_same

    # Loose check vs. full-f32 module semantics (bounds the bf16 GEMM approximation).
    ref_f32 = reference(x, w_t, bias, gamma, beta, mweight, num_groups,
                        bf16_gemm=False)
    err_f32 = float(jnp.max(jnp.abs(out - ref_f32)))
    assert jnp.allclose(out, ref_f32, atol=1e-1, rtol=1e-1), err_f32

    print("KERNEL_OK")
</pallas_src>

<mosaic_0001>
module attributes {stable_mosaic.version = 11 : i64} {
  func.func @_fused_kernel(%arg0: i32, %arg1: i32, %arg2: memref<128x512xf32, #tpu.memory_space<vmem>>, %arg3: memref<512x512xbf16, #tpu.memory_space<vmem>>, %arg4: memref<4x512xf32, #tpu.memory_space<vmem>>, %arg5: memref<128x512xf32, #tpu.memory_space<vmem>>) attributes {dimension_semantics = [#tpu.dimension_semantics<parallel>, #tpu.dimension_semantics<parallel>], iteration_bounds = array<i64: 1, 2>, scalar_prefetch = 0 : i64, scratch_operands = 0 : i64, tpu.core_type = #tpu.core_type<tc>, window_params = [{transform_indices = @transform_0, window_bounds = array<i64: 128, 512>}, {transform_indices = @transform_1, window_bounds = array<i64: 512, 512>}, {transform_indices = @transform_2, window_bounds = array<i64: 4, 512>}, {transform_indices = @transform_3, window_bounds = array<i64: 128, 512>}]} {
    %c0 = arith.constant 0 : index
    %c0_0 = arith.constant 0 : index
    %0 = vector.load %arg2[%c0, %c0_0] : memref<128x512xf32, #tpu.memory_space<vmem>>, vector<128x512xf32>
    %1 = arith.truncf %0 : vector<128x512xf32> to vector<128x512xbf16>
    %c0_1 = arith.constant 0 : index
    %c0_2 = arith.constant 0 : index
    %2 = vector.load %arg3[%c0_1, %c0_2] : memref<512x512xbf16, #tpu.memory_space<vmem>>, vector<512x512xbf16>
    %cst = arith.constant dense<0.000000e+00> : vector<128x512xf32>
    %3 = tpu.matmul %1, %2, %cst {dimension_numbers = #tpu.dot_dimension_numbers<[1], [0], [0], [1], [0, 0, 1, 1], [], []>} : vector<128x512xbf16>, vector<512x512xbf16>, vector<128x512xf32> -> vector<128x512xf32>
    %c0_3 = arith.constant 0 : index
    %c0_4 = arith.constant 0 : index
    %4 = vector.load %arg4[%c0_3, %c0_4] : memref<4x512xf32, #tpu.memory_space<vmem>>, vector<1x512xf32>
    %c1 = arith.constant 1 : index
    %c0_5 = arith.constant 0 : index
    %5 = vector.load %arg4[%c1, %c0_5] : memref<4x512xf32, #tpu.memory_space<vmem>>, vector<1x512xf32>
    %c2 = arith.constant 2 : index
    %c0_6 = arith.constant 0 : index
    %6 = vector.load %arg4[%c2, %c0_6] : memref<4x512xf32, #tpu.memory_space<vmem>>, vector<1x512xf32>
    %c3 = arith.constant 3 : index
    %c0_7 = arith.constant 0 : index
    %7 = vector.load %arg4[%c3, %c0_7] : memref<4x512xf32, #tpu.memory_space<vmem>>, vector<1x512xf32>
    %8 = vector.broadcast %4 : vector<1x512xf32> to vector<128x512xf32>
    %9 = arith.addf %3, %8 : vector<128x512xf32>
    %10 = vector.shape_cast %9 : vector<128x512xf32> to vector<128x8x64xf32>
    %cst_8 = arith.constant dense<0.000000e+00> : vector<128x8xf32>
    %11 = vector.multi_reduction <add>, %10, %cst_8 [2] : vector<128x8x64xf32> to vector<128x8xf32>
    %12 = vector.shape_cast %11 : vector<128x8xf32> to vector<128x8x1xf32>
    %cst_9 = arith.constant 6.400000e+01 : f32
    %13 = vector.broadcast %cst_9 : f32 to vector<128x8x1xf32>
    %14 = arith.divf %12, %13 : vector<128x8x1xf32>
    %15 = arith.mulf %10, %10 : vector<128x8x64xf32>
    %cst_10 = arith.constant dense<0.000000e+00> : vector<128x8xf32>
    %16 = vector.multi_reduction <add>, %15, %cst_10 [2] : vector<128x8x64xf32> to vector<128x8xf32>
    %17 = vector.shape_cast %16 : vector<128x8xf32> to vector<128x8x1xf32>
    %cst_11 = arith.constant 6.400000e+01 : f32
    %18 = vector.broadcast %cst_11 : f32 to vector<128x8x1xf32>
    %19 = arith.divf %17, %18 : vector<128x8x1xf32>
    %20 = arith.mulf %14, %14 : vector<128x8x1xf32>
    %21 = arith.subf %19, %20 : vector<128x8x1xf32>
    %cst_12 = arith.constant 0.000000e+00 : f32
    %22 = vector.broadcast %cst_12 : f32 to vector<128x8x1xf32>
    %23 = arith.maximumf %21, %22 : vector<128x8x1xf32>
    %cst_13 = arith.constant 9.99999974E-6 : f32
    %24 = vector.broadcast %cst_13 : f32 to vector<128x8x1xf32>
    %25 = arith.addf %23, %24 : vector<128x8x1xf32>
    %26 = math.rsqrt %25 : vector<128x8x1xf32>
    %27 = vector.broadcast %14 : vector<128x8x1xf32> to vector<128x8x64xf32>
    %28 = arith.subf %10, %27 : vector<128x8x64xf32>
    %29 = vector.broadcast %26 : vector<128x8x1xf32> to vector<128x8x64xf32>
    %30 = arith.mulf %28, %29 : vector<128x8x64xf32>
    %31 = vector.shape_cast %30 : vector<128x8x64xf32> to vector<128x512xf32>
    %32 = vector.broadcast %5 : vector<1x512xf32> to vector<128x512xf32>
    %33 = arith.mulf %31, %32 : vector<128x512xf32>
    %34 = vector.broadcast %6 : vector<1x512xf32> to vector<128x512xf32>
    %35 = arith.addf %33, %34 : vector<128x512xf32>
    %36 = arith.negf %35 : vector<128x512xf32>
    %37 = math.exp %36 : vector<128x512xf32>
    %cst_14 = arith.constant 1.000000e+00 : f32
    %38 = vector.broadcast %cst_14 : f32 to vector<128x512xf32>
    %39 = arith.addf %38, %37 : vector<128x512xf32>
    %40 = arith.divf %38, %39 : vector<128x512xf32>
    %41 = arith.mulf %35, %40 : vector<128x512xf32>
    %42 = vector.broadcast %7 : vector<1x512xf32> to vector<128x512xf32>
    %43 = arith.mulf %41, %42 : vector<128x512xf32>
    %44 = arith.negf %43 : vector<128x512xf32>
    %45 = math.exp %44 : vector<128x512xf32>
    %cst_15 = arith.constant 1.000000e+00 : f32
    %46 = vector.broadcast %cst_15 : f32 to vector<128x512xf32>
    %47 = arith.addf %46, %45 : vector<128x512xf32>
    %48 = arith.divf %46, %47 : vector<128x512xf32>
    %49 = arith.mulf %43, %48 : vector<128x512xf32>
    %c0_16 = arith.constant 0 : index
    %c0_17 = arith.constant 0 : index
    %50 = vector.load %arg5[%c0_16, %c0_17] : memref<128x512xf32, #tpu.memory_space<vmem>>, vector<128x512xf32>
    tpu.vector_store %arg5[%c0_16, %c0_17], %49 {strides = array<i32>} : memref<128x512xf32, #tpu.memory_space<vmem>>, vector<128x512xf32>,
    return
  }
  func.func @transform_0(%arg0: i32, %arg1: i32) -> (i32, i32) {
    %c0_i32 = arith.constant 0 : i32
    %c0_i32_0 = arith.constant 0 : i32
    return %arg0, %c0_i32 : i32, i32
  }
  func.func @transform_1(%arg0: i32, %arg1: i32) -> (i32, i32) {
    %c0_i32 = arith.constant 0 : i32
    %c0_i32_0 = arith.constant 0 : i32
    return %c0_i32, %arg1 : i32, i32
  }
  func.func @transform_2(%arg0: i32, %arg1: i32) -> (i32, i32) {
    %c0_i32 = arith.constant 0 : i32
    %c0_i32_0 = arith.constant 0 : i32
    return %c0_i32, %arg1 : i32, i32
  }
  func.func @transform_3(%arg0: i32, %arg1: i32) -> (i32, i32) {
    %c0_i32 = arith.constant 0 : i32
    return %arg0, %arg1 : i32, i32
  }
}

</mosaic_0001>

<llo_original>
// kernel: fused_gemm_groupnorm_swish.1
$region0: #{fused_gemm_groupnorm_swish.1}
  #allocation0 [shape = 'u32[]', space=smem, size = 0x4, offset = 0x4, fixed_abs, tag = 'smem constant byte address 0x4 - core index']
  #allocation1 [shape = 'u32[144,128]{1,0:T(1,128)}', space=vmem, size = 0x12000, scoped, tag = 'internal scratch']
  %s0 = inlined_call_operand.hbm [shape: f32[128,512], index: 0, kind: input, shape index: {}]
  %s1 = inlined_call_operand.hbm [shape: bf16[512,1024], index: 1, kind: input, shape index: {}]
  %s2 = inlined_call_operand.hbm [shape: f32[4,1024], index: 2, kind: input, shape index: {}]
  %s3 = inlined_call_operand.hbm [shape: f32[128,1024], index: 3, kind: output, shape index: {}]
  %s4 = sld [smem:[#allocation0]]
  $region57: #{fused_gemm_groupnorm_swish.1} parent=0
    _
  %s6 = ssub.s32 1, %s4
  %s7 = scalar_select 0, %s6, %s4
  $region1: #{fused_gemm_groupnorm_swish.1} parent=0
    #allocation2 [shape = 'u8[262144]{0}', space=vmem, size = 0x40000, scoped, tag = 'input window, operand 0, single buffered']
    #allocation3 [shape = 's32[2]{0}', space=sflag, size = 0x8, scoped, tag = 'scoped memory for fused_gemm_groupnorm_swish.1']
    #allocation4 [shape = 's32[2]{0}', space=sflag, size = 0x8, scoped, tag = 'scoped memory for fused_gemm_groupnorm_swish.1']
    #allocation5 [shape = 'u8[1048576]{0}', space=vmem, size = 0x100000, scoped, tag = 'input window, operand 1']
    #allocation6 [shape = 's32[2]{0}', space=sflag, size = 0x8, scoped, tag = 'scoped memory for fused_gemm_groupnorm_swish.1']
    #allocation7 [shape = 'u8[16384]{0}', space=vmem, size = 0x4000, scoped, tag = 'input window, operand 2']
    #allocation8 [shape = 'u8[524288]{0}', space=vmem, size = 0x80000, scoped, tag = 'output window, operand 0']
    %8 = vsyncpa [#allocation3], 0
    %9 = vsyncpa [#allocation6], 0
    %s10 = scalar_lea.sflag [#allocation6], 1
    %11 = vsyncpa %s10, 0
    %12 = vsyncpa [#allocation4], 0
    %s13 = scalar_lea.sflag [#allocation4], 1
    %14 = vsyncpa %s13, 0
    loop: start=0, step=1, limit=4
    $region2: #{fused_gemm_groupnorm_swish.1} parent=1 // loop_pre_header
      _
    $region3: #{fused_gemm_groupnorm_swish.1} parent=1 // loop_header
      %s16 = sphi 0, %s20
      %p17 = scmp.ge.s32.totalorder %s16, 4
      %s23 = sphi 0, %s35
      %s24 = sphi 0, %s31
      %s25 = sphi 0, %s23
      %s26 = sphi 0, %s24
      %s27 = sphi 0, %s25
      %s28 = sphi 0, %s26
      %s38 = sphi 0, %s40
      %s41 = sphi 0, %s38
      %s42 = sphi 0, %s41
      %s58 = sphi 0, %s42
      %s64 = sphi 0, %s66
      %s67 = sphi 0, %s64
      %s68 = sphi 0, %s67
      %s84 = sphi 0, %s68
      %s90 = sphi 0, %s92
      %s93 = sphi 0, %s90
      %s94 = sphi 0, %s93
      %s110 = sphi 0, %s94
      %s118 = sphi 0, %s120
      %s121 = sphi 0, %s118
      %s122 = sphi 0, %s121
      %s138 = sphi 0, %s122
    $region4: #{fused_gemm_groupnorm_swish.1} parent=1 // loop_header_branch
      %19 = sbr.rel (%p17) target = $region8
    $region5: #{fused_gemm_groupnorm_swish.1} parent=1 // loop_body
      %s21 = ssub.s32 %s16, 1
      %s22 = ssub.s32 %s16, 2
      %s29 = sadd.s32 1, %s24
      %p30 = scmp.ge.s32.totalorder %s29, 2
      %s31 = scalar_select %p30, 0, %s29
      %s32 = sadd.s32 1, %s23
      %s33 = scalar_select %p30, %s32, %s23
      %p34 = scmp.ge.s32.totalorder %s33, 1
      %s35 = scalar_select %p34, 0, %s33
      %s36 = ssub.s32 %s23, %s35
      %p37 = scmp.eq.s32.totalorder %s36, 0
      %s39 = sadd.s32 %s38, 1
      %s40 = scalar_select %p37, %s38, %s39
      %p43 = pneg %p37
      %p44 = scmp.eq.s32.totalorder %s16, 1
      %p45 = por %p43, %p44
      %p46 = scmp.ne.s32.totalorder %s38, %s41
      %p47 = scmp.eq.s32.totalorder %s16, 0
      %p48 = por %p46, %p47
      %p49 = scmp.ne.s32.totalorder %s38, %s41
      %p50 = scmp.eq.s32.totalorder %s21, 1
      %p51 = por %p49, %p50
      %p52 = scmp.ne.s32.totalorder %s41, %s42
      %p53 = scmp.eq.s32.totalorder %s21, 0
      %p54 = por %p52, %p53
      %p55 = scmp.ne.s32.totalorder %s41, %s42
      %p56 = scmp.eq.s32.totalorder %s22, 1
      %p57 = por %p55, %p56
      %p59 = scmp.ne.s32.totalorder %s42, %s58
      %p60 = scmp.eq.s32.totalorder %s22, 0
      %p61 = por %p59, %p60
      %s62 = ssub.s32 %s24, %s31
      %p63 = scmp.eq.s32.totalorder %s62, 0
      %s65 = sadd.s32 %s64, 1
      %s66 = scalar_select %p63, %s64, %s65
      %p69 = pneg %p63
      %p70 = scmp.eq.s32.totalorder %s16, 1
      %p71 = por %p69, %p70
      %p72 = scmp.ne.s32.totalorder %s64, %s67
      %p73 = scmp.eq.s32.totalorder %s16, 0
      %p74 = por %p72, %p73
      %p75 = scmp.ne.s32.totalorder %s64, %s67
      %p76 = scmp.eq.s32.totalorder %s21, 1
      %p77 = por %p75, %p76
      %p78 = scmp.ne.s32.totalorder %s67, %s68
      %p79 = scmp.eq.s32.totalorder %s21, 0
      %p80 = por %p78, %p79
      %p81 = scmp.ne.s32.totalorder %s67, %s68
      %p82 = scmp.eq.s32.totalorder %s22, 1
      %p83 = por %p81, %p82
      %p85 = scmp.ne.s32.totalorder %s68, %s84
      %p86 = scmp.eq.s32.totalorder %s22, 0
      %p87 = por %p85, %p86
      %s88 = ssub.s32 %s24, %s31
      %p89 = scmp.eq.s32.totalorder %s88, 0
      %s91 = sadd.s32 %s90, 1
      %s92 = scalar_select %p89, %s90, %s91
      %p95 = pneg %p89
      %p96 = scmp.eq.s32.totalorder %s16, 1
      %p97 = por %p95, %p96
      %p98 = scmp.ne.s32.totalorder %s90, %s93
      %p99 = scmp.eq.s32.totalorder %s16, 0
      %p100 = por %p98, %p99
      %p101 = scmp.ne.s32.totalorder %s90, %s93
      %p102 = scmp.eq.s32.totalorder %s21, 1
      %p103 = por %p101, %p102
      %p104 = scmp.ne.s32.totalorder %s93, %s94
      %p105 = scmp.eq.s32.totalorder %s21, 0
      %p106 = por %p104, %p105
      %p107 = scmp.ne.s32.totalorder %s93, %s94
      %p108 = scmp.eq.s32.totalorder %s22, 1
      %p109 = por %p107, %p108
      %p111 = scmp.ne.s32.totalorder %s94, %s110
      %p112 = scmp.eq.s32.totalorder %s22, 0
      %p113 = por %p111, %p112
      %s114 = ssub.s32 %s23, %s35
      %s115 = ssub.s32 %s24, %s31
      %s116 = sor.u32 %s114, %s115
      %p117 = scmp.eq.s32.totalorder %s116, 0
      %s119 = sadd.s32 %s118, 1
      %s120 = scalar_select %p117, %s118, %s119
      %p123 = pneg %p117
      %p124 = scmp.eq.s32.totalorder %s16, 1
      %p125 = por %p123, %p124
      %p126 = scmp.ne.s32.totalorder %s118, %s121
      %p127 = scmp.eq.s32.totalorder %s16, 0
      %p128 = por %p126, %p127
      %p129 = scmp.ne.s32.totalorder %s118, %s121
      %p130 = scmp.eq.s32.totalorder %s21, 1
      %p131 = por %p129, %p130
      %p132 = scmp.ne.s32.totalorder %s121, %s122
      %p133 = scmp.eq.s32.totalorder %s21, 0
      %p134 = por %p132, %p133
      %p135 = scmp.ne.s32.totalorder %s121, %s122
      %p136 = scmp.eq.s32.totalorder %s22, 1
      %p137 = por %p135, %p136
      %p139 = scmp.ne.s32.totalorder %s122, %s138
      %p140 = scmp.eq.s32.totalorder %s22, 0
      %p141 = por %p139, %p140
      %p142 = scmp.le.s32.totalorder 1, %s16
      %p143 = scmp.lt.s32.totalorder %s16, 3
      %p144 = pnand %p142, %p143
      %p145 = pneg %p144
      // Predicated region
      $region9: #{fused_gemm_groupnorm_swish.1} parent=5 // pred_check
        _
      $region10: #{fused_gemm_groupnorm_swish.1} parent=5 // pred_check_branch
        %147 = sbr.rel (%p144) target = $region12
      $region11: #{fused_gemm_groupnorm_swish.1} parent=5 // pred_region
        %s148 = ssub.s32 %s16, 1
        // Predicated region
        $region13: #{fused_gemm_groupnorm_swish.1} parent=11 // pred_check
          %p149 = pneg %p54
        $region14: #{fused_gemm_groupnorm_swish.1} parent=11 // pred_check_branch
          %151 = sbr.rel (%p149) target = $region16
        $region15: #{fused_gemm_groupnorm_swish.1} parent=11 // pred_region
          %s152 = smul.u32 16, %s25
          %s154 = ssub.s32 8192, 8192
          %155 = vsyncadd [#allocation3], %s154
          %s156 = smul.addr %s152, 4
          %s157 = smul.addr %s156, 128
          %s158 = scalar_lea.hbm %s0, %s157
          %s159 = sshll.u32 [#allocation2], 4
          %s160 = int_to_ptr.vmem [resolvable:$true] %s159
          %165 = dma.hbm_to_vmem [thread:$0]  %s158, 8192, %s160, [#allocation3], 512, 512, 32
        $region16: #{fused_gemm_groupnorm_swish.1} parent=11 // pred_fallthru
          _
      $region12: #{fused_gemm_groupnorm_swish.1} parent=5 // pred_fallthru
        _
      %p166 = scmp.lt.s32.totalorder %s16, 2
      // Predicated region
      $region17: #{fused_gemm_groupnorm_swish.1} parent=5 // pred_check
        %p167 = pneg %p166
      $region18: #{fused_gemm_groupnorm_swish.1} parent=5 // pred_check_branch
        %169 = sbr.rel (%p167) target = $region20
      $region19: #{fused_gemm_groupnorm_swish.1} parent=5 // pred_region
        // Predicated region
        $region21: #{fused_gemm_groupnorm_swish.1} parent=19 // pred_check
          %p170 = pneg %p74
        $region22: #{fused_gemm_groupnorm_swish.1} parent=19 // pred_check_branch
          %172 = sbr.rel (%p170) target = $region24
        $region23: #{fused_gemm_groupnorm_swish.1} parent=19 // pred_region
          %s173 = sand.u32 %s16, 1
          %s174 = scalar_lea.sflag [#allocation6], %s173
          %s175 = sand.u32 %s64, 1
          %s176 = smul.addr %s175, 1024
          %s177 = scalar_lea.vmem [#allocation5], %s176
          %s178 = smul.u32 4, %s24
          %s180 = ssub.s32 16384, 16384
          %181 = vsyncadd %s174, %s180
          %s182 = smul.addr %s178, 64
          %s183 = scalar_lea.hbm %s1, %s182
          %s184 = sshll.u32 %s177, 4
          %s185 = int_to_ptr.vmem [resolvable:$true] %s184
          %190 = dma.hbm_to_vmem [thread:$0]  %s183, 16384, %s185, %s174, 512, 256, 16
        $region24: #{fused_gemm_groupnorm_swish.1} parent=19 // pred_fallthru
          _
        // Predicated region
        $region25: #{fused_gemm_groupnorm_swish.1} parent=19 // pred_check
          %p191 = pneg %p100
        $region26: #{fused_gemm_groupnorm_swish.1} parent=19 // pred_check_branch
          %193 = sbr.rel (%p191) target = $region28
        $region27: #{fused_gemm_groupnorm_swish.1} parent=19 // pred_region
          %s194 = sand.u32 %s16, 1
          %s195 = scalar_lea.sflag [#allocation6], %s194
          %s196 = sand.u32 %s90, 1
          %s197 = smul.addr %s196, 16
          %s198 = scalar_lea.vmem [#allocation7], %s197
          %s199 = smul.u32 4, %s24
          %s201 = ssub.s32 256, 256
          %202 = vsyncadd %s195, %s201
          %s203 = smul.addr %s199, 64
          %s204 = scalar_lea.hbm %s2, %s203
          %s206 = sshll.u32 %s198, 4
          %s207 = int_to_ptr.vmem [resolvable:$true] %s206
          %209 = dma.hbm_to_vmem [thread:$0]  %s204, 256, %s207, %s195
        $region28: #{fused_gemm_groupnorm_swish.1} parent=19 // pred_fallthru
          _
      $region20: #{fused_gemm_groupnorm_swish.1} parent=5 // pred_fallthru
        _
      %p210 = scmp.le.s32.totalorder 1, %s16
      %p211 = scmp.lt.s32.totalorder %s16, 3
      %p212 = pnand %p210, %p211
      %p213 = pneg %p212
      // Predicated region
      $region29: #{fused_gemm_groupnorm_swish.1} parent=5 // pred_check
        _
      $region30: #{fused_gemm_groupnorm_swish.1} parent=5 // pred_check_branch
        %215 = sbr.rel (%p212) target = $region32
      $region31: #{fused_gemm_groupnorm_swish.1} parent=5 // pred_region
        %s216 = ssub.s32 %s16, 1
        // Predicated region
        $region33: #{fused_gemm_groupnorm_swish.1} parent=31 // pred_check
          %p217 = pneg %p54
        $region34: #{fused_gemm_groupnorm_swish.1} parent=31 // pred_check_branch
          %219 = sbr.rel (%p217) target = $region36
        $region35: #{fused_gemm_groupnorm_swish.1} parent=31 // pred_region
          %220 = dma.done [#allocation3], 8192
        $region36: #{fused_gemm_groupnorm_swish.1} parent=31 // pred_fallthru
          _
        %s221 = sand.u32 %s21, 1
        %s222 = scalar_lea.sflag [#allocation6], %s221
        %s223 = sand.u32 %s67, 1
        %s224 = smul.addr %s223, 1024
        %s225 = scalar_lea.vmem [#allocation5], %s224
        // Predicated region
        $region37: #{fused_gemm_groupnorm_swish.1} parent=31 // pred_check
          %p226 = pneg %p80
        $region38: #{fused_gemm_groupnorm_swish.1} parent=31 // pred_check_branch
          %228 = sbr.rel (%p226) target = $region40
        $region39: #{fused_gemm_groupnorm_swish.1} parent=31 // pred_region
          %229 = dma.done %s222, 16384
        $region40: #{fused_gemm_groupnorm_swish.1} parent=31 // pred_fallthru
          _
        %s230 = sand.u32 %s21, 1
        %s231 = scalar_lea.sflag [#allocation6], %s230
        %s232 = sand.u32 %s93, 1
        %s233 = smul.addr %s232, 16
        %s234 = scalar_lea.vmem [#allocation7], %s233
        // Predicated region
        $region41: #{fused_gemm_groupnorm_swish.1} parent=31 // pred_check
          %p235 = pneg %p106
        $region42: #{fused_gemm_groupnorm_swish.1} parent=31 // pred_check_branch
          %237 = sbr.rel (%p235) target = $region44
        $region43: #{fused_gemm_groupnorm_swish.1} parent=31 // pred_region
          %238 = dma.done %s231, 256
        $region44: #{fused_gemm_groupnorm_swish.1} parent=31 // pred_fallthru
          _
        %p239 = pneg %p54
        %p240 = pneg %p51
        %s241 = sand.u32 %s21, 1
        %s242 = scalar_lea.sflag [#allocation6], %s241
        %s243 = sand.u32 %s67, 1
        %s244 = smul.addr %s243, 1024
        %s245 = scalar_lea.vmem [#allocation5], %s244
        %p246 = pneg %p80
        %p247 = pneg %p77
        %s248 = sand.u32 %s21, 1
        %s249 = scalar_lea.sflag [#allocation6], %s248
        %s250 = sand.u32 %s93, 1
        %s251 = smul.addr %s250, 16
        %s252 = scalar_lea.vmem [#allocation7], %s251
        %p253 = pneg %p106
        %p254 = pneg %p103
        %p255 = pneg %p134
        %p256 = pneg %p131
        %s257 = sand.u32 %s121, 1
        %s258 = scalar_lea.sflag [#allocation4], %s257
        %s259 = sand.u32 %s121, 1
        %s260 = smul.addr %s259, 512
        %s261 = scalar_lea.vmem [#allocation8], %s260
        %s262 = smul.u32 16, %s25
        %s263 = smul.u32 4, %s26
        %s264 = smul.u32 4, %s26
        %s265 = smul.u32 16, %s25
        %s266 = smul.u32 4, %s26
        %v267 = vld [vmem:[#allocation2] sm:$0xff]
        %v268 = vld [vmem:[#allocation2 + $0x8] sm:$0xff]
        %v269 = vld [vmem:[#allocation2 + $0x10] sm:$0xff]
        %v270 = vld [vmem:[#allocation2 + $0x18] sm:$0xff]
        %v271 = vld [vmem:[#allocation2 + $0x20] sm:$0xff]
        %v272 = vld [vmem:[#allocation2 + $0x28] sm:$0xff]
        %v273 = vld [vmem:[#allocation2 + $0x30] sm:$0xff]
        %v274 = vld [vmem:[#allocation2 + $0x38] sm:$0xff]
        %v275 = vld [vmem:[#allocation2 + $0x40] sm:$0xff]
        %v276 = vld [vmem:[#allocation2 + $0x48] sm:$0xff]
        %v277 = vld [vmem:[#allocation2 + $0x50] sm:$0xff]
        %v278 = vld [vmem:[#allocation2 + $0x58] sm:$0xff]
        %v279 = vld [vmem:[#allocation2 + $0x60] sm:$0xff]
        %v280 = vld [vmem:[#allocation2 + $0x68] sm:$0xff]
        %v281 = vld [vmem:[#allocation2 + $0x70] sm:$0xff]
        %v282 = vld [vmem:[#allocation2 + $0x78] sm:$0xff]
        %v283 = vld [vmem:[#allocation2 + $0x80] sm:$0xff]
        %v284 = vld [vmem:[#allocation2 + $0x88] sm:$0xff]
        %v285 = vld [vmem:[#allocation2 + $0x90] sm:$0xff]
        %v286 = vld [vmem:[#allocation2 + $0x98] sm:$0xff]
        %v287 = vld [vmem:[#allocation2 + $0xa0] sm:$0xff]
        %v288 = vld [vmem:[#allocation2 + $0xa8] sm:$0xff]
        %v289 = vld [vmem:[#allocation2 + $0xb0] sm:$0xff]
        %v290 = vld [vmem:[#allocation2 + $0xb8] sm:$0xff]
        %v291 = vld [vmem:[#allocation2 + $0xc0] sm:$0xff]
        %v292 = vld [vmem:[#allocation2 + $0xc8] sm:$0xff]
        %v293 = vld [vmem:[#allocation2 + $0xd0] sm:$0xff]
        %v294 = vld [vmem:[#allocation2 + $0xd8] sm:$0xff]
        %v295 = vld [vmem:[#allocation2 + $0xe0] sm:$0xff]
        %v296 = vld [vmem:[#allocation2 + $0xe8] sm:$0xff]
        %v297 = vld [vmem:[#allocation2 + $0xf0] sm:$0xff]
        %v298 = vld [vmem:[#allocation2 + $0xf8] sm:$0xff]
        %v299 = vld [vmem:[#allocation2 + $0x100] sm:$0xff]
        %v300 = vld [vmem:[#allocation2 + $0x108] sm:$0xff]
        %v301 = vld [vmem:[#allocation2 + $0x110] sm:$0xff]
        %v302 = vld [vmem:[#allocation2 + $0x118] sm:$0xff]
        %v303 = vld [vmem:[#allocation2 + $0x120] sm:$0xff]
        %v304 = vld [vmem:[#allocation2 + $0x128] sm:$0xff]
        %v305 = vld [vmem:[#allocation2 + $0x130] sm:$0xff]
        %v306 = vld [vmem:[#allocation2 + $0x138] sm:$0xff]
        %v307 = vld [vmem:[#allocation2 + $0x140] sm:$0xff]
        %v308 = vld [vmem:[#allocation2 + $0x148] sm:$0xff]
        %v309 = vld [vmem:[#allocation2 + $0x150] sm:$0xff]
        %v310 = vld [vmem:[#allocation2 + $0x158] sm:$0xff]
        %v311 = vld [vmem:[#allocation2 + $0x160] sm:$0xff]
        %v312 = vld [vmem:[#allocation2 + $0x168] sm:$0xff]
        %v313 = vld [vmem:[#allocation2 + $0x170] sm:$0xff]
        %v314 = vld [vmem:[#allocation2 + $0x178] sm:$0xff]
        %v315 = vld [vmem:[#allocation2 + $0x180] sm:$0xff]
        %v316 = vld [vmem:[#allocation2 + $0x188] sm:$0xff]
        %v317 = vld [vmem:[#allocation2 + $0x190] sm:$0xff]
        %v318 = vld [vmem:[#allocation2 + $0x198] sm:$0xff]
        %v319 = vld [vmem:[#allocation2 + $0x1a0] sm:$0xff]
        %v320 = vld [vmem:[#allocation2 + $0x1a8] sm:$0xff]
        %v321 = vld [vmem:[#allocation2 + $0x1b0] sm:$0xff]
        %v322 = vld [vmem:[#allocation2 + $0x1b8] sm:$0xff]
        %v323 = vld [vmem:[#allocation2 + $0x1c0] sm:$0xff]
        %v324 = vld [vmem:[#allocation2 + $0x1c8] sm:$0xff]
        %v325 = vld [vmem:[#allocation2 + $0x1d0] sm:$0xff]
        %v326 = vld [vmem:[#allocation2 + $0x1d8] sm:$0xff]
        %v327 = vld [vmem:[#allocation2 + $0x1e0] sm:$0xff]
        %v328 = vld [vmem:[#allocation2 + $0x1e8] sm:$0xff]
        %v329 = vld [vmem:[#allocation2 + $0x1f0] sm:$0xff]
        %v330 = vld [vmem:[#allocation2 + $0x1f8] sm:$0xff]
        %v331 = vpack.c.bf16 %v271, %v267
        %v332 = vpack.c.bf16 %v272, %v268
        %v333 = vpack.c.bf16 %v273, %v269
        %v334 = vpack.c.bf16 %v274, %v270
        %v335 = vpack.c.bf16 %v279, %v275
        %v336 = vpack.c.bf16 %v280, %v276
        %v337 = vpack.c.bf16 %v281, %v277
        %v338 = vpack.c.bf16 %v282, %v278
        %v339 = vpack.c.bf16 %v287, %v283
        %v340 = vpack.c.bf16 %v288, %v284
        %v341 = vpack.c.bf16 %v289, %v285
        %v342 = vpack.c.bf16 %v290, %v286
        %v343 = vpack.c.bf16 %v295, %v291
        %v344 = vpack.c.bf16 %v296, %v292
        %v345 = vpack.c.bf16 %v297, %v293
        %v346 = vpack.c.bf16 %v298, %v294
        %v347 = vpack.c.bf16 %v303, %v299
        %v348 = vpack.c.bf16 %v304, %v300
        %v349 = vpack.c.bf16 %v305, %v301
        %v350 = vpack.c.bf16 %v306, %v302
        %v351 = vpack.c.bf16 %v311, %v307
        %v352 = vpack.c.bf16 %v312, %v308
        %v353 = vpack.c.bf16 %v313, %v309
        %v354 = vpack.c.bf16 %v314, %v310
        %v355 = vpack.c.bf16 %v319, %v315
        %v356 = vpack.c.bf16 %v320, %v316
        %v357 = vpack.c.bf16 %v321, %v317
        %v358 = vpack.c.bf16 %v322, %v318
        %v359 = vpack.c.bf16 %v327, %v323
        %v360 = vpack.c.bf16 %v328, %v324
        %v361 = vpack.c.bf16 %v329, %v325
        %v362 = vpack.c.bf16 %v330, %v326
        %v363 = vld [vmem:[%s225] sm:$0xff]
        %v364 = vld [vmem:[%s225 + $0x8] sm:$0xff]
        %v365 = vld [vmem:[%s225 + $0x10] sm:$0xff]
        %v366 = vld [vmem:[%s225 + $0x18] sm:$0xff]
        %v367 = vld [vmem:[%s225 + $0x20] sm:$0xff]
        %v368 = vld [vmem:[%s225 + $0x28] sm:$0xff]
        %v369 = vld [vmem:[%s225 + $0x30] sm:$0xff]
        %v370 = vld [vmem:[%s225 + $0x38] sm:$0xff]
        %v371 = vld [vmem:[%s225 + $0x40] sm:$0xff]
        %v372 = vld [vmem:[%s225 + $0x48] sm:$0xff]
        %v373 = vld [vmem:[%s225 + $0x50] sm:$0xff]
        %v374 = vld [vmem:[%s225 + $0x58] sm:$0xff]
        %v375 = vld [vmem:[%s225 + $0x60] sm:$0xff]
        %v376 = vld [vmem:[%s225 + $0x68] sm:$0xff]
        %v377 = vld [vmem:[%s225 + $0x70] sm:$0xff]
        %v378 = vld [vmem:[%s225 + $0x78] sm:$0xff]
        %v379 = vld [vmem:[%s225 + $0x80] sm:$0xff]
        %v380 = vld [vmem:[%s225 + $0x88] sm:$0xff]
        %v381 = vld [vmem:[%s225 + $0x90] sm:$0xff]
        %v382 = vld [vmem:[%s225 + $0x98] sm:$0xff]
        %v383 = vld [vmem:[%s225 + $0xa0] sm:$0xff]
        %v384 = vld [vmem:[%s225 + $0xa8] sm:$0xff]
        %v385 = vld [vmem:[%s225 + $0xb0] sm:$0xff]
        %v386 = vld [vmem:[%s225 + $0xb8] sm:$0xff]
        %v387 = vld [vmem:[%s225 + $0xc0] sm:$0xff]
        %v388 = vld [vmem:[%s225 + $0xc8] sm:$0xff]
        %v389 = vld [vmem:[%s225 + $0xd0] sm:$0xff]
        %v390 = vld [vmem:[%s225 + $0xd8] sm:$0xff]
        %v391 = vld [vmem:[%s225 + $0xe0] sm:$0xff]
        %v392 = vld [vmem:[%s225 + $0xe8] sm:$0xff]
        %v393 = vld [vmem:[%s225 + $0xf0] sm:$0xff]
        %v394 = vld [vmem:[%s225 + $0xf8] sm:$0xff]
        %v395 = vld [vmem:[%s225 + $0x100] sm:$0xff]
        %v396 = vld [vmem:[%s225 + $0x108] sm:$0xff]
        %v397 = vld [vmem:[%s225 + $0x110] sm:$0xff]
        %v398 = vld [vmem:[%s225 + $0x118] sm:$0xff]
        %v399 = vld [vmem:[%s225 + $0x120] sm:$0xff]
        %v400 = vld [vmem:[%s225 + $0x128] sm:$0xff]
        %v401 = vld [vmem:[%s225 + $0x130] sm:$0xff]
        %v402 = vld [vmem:[%s225 + $0x138] sm:$0xff]
        %v403 = vld [vmem:[%s225 + $0x140] sm:$0xff]
        %v404 = vld [vmem:[%s225 + $0x148] sm:$0xff]
        %v405 = vld [vmem:[%s225 + $0x150] sm:$0xff]
        %v406 = vld [vmem:[%s225 + $0x158] sm:$0xff]
        %v407 = vld [vmem:[%s225 + $0x160] sm:$0xff]
        %v408 = vld [vmem:[%s225 + $0x168] sm:$0xff]
        %v409 = vld [vmem:[%s225 + $0x170] sm:$0xff]
        %v410 = vld [vmem:[%s225 + $0x178] sm:$0xff]
        %v411 = vld [vmem:[%s225 + $0x180] sm:$0xff]
        %v412 = vld [vmem:[%s225 + $0x188] sm:$0xff]
        %v413 = vld [vmem:[%s225 + $0x190] sm:$0xff]
        %v414 = vld [vmem:[%s225 + $0x198] sm:$0xff]
        %v415 = vld [vmem:[%s225 + $0x1a0] sm:$0xff]
        %v416 = vld [vmem:[%s225 + $0x1a8] sm:$0xff]
        %v417 = vld [vmem:[%s225 + $0x1b0] sm:$0xff]
        %v418 = vld [vmem:[%s225 + $0x1b8] sm:$0xff]
        %v419 = vld [vmem:[%s225 + $0x1c0] sm:$0xff]
        %v420 = vld [vmem:[%s225 + $0x1c8] sm:$0xff]
        %v421 = vld [vmem:[%s225 + $0x1d0] sm:$0xff]
        %v422 = vld [vmem:[%s225 + $0x1d8] sm:$0xff]
        %v423 = vld [vmem:[%s225 + $0x1e0] sm:$0xff]
        %v424 = vld [vmem:[%s225 + $0x1e8] sm:$0xff]
        %v425 = vld [vmem:[%s225 + $0x1f0] sm:$0xff]
        %v426 = vld [vmem:[%s225 + $0x1f8] sm:$0xff]
        %v427 = vld [vmem:[%s225 + $0x200] sm:$0xff]
        %v428 = vld [vmem:[%s225 + $0x208] sm:$0xff]
        %v429 = vld [vmem:[%s225 + $0x210] sm:$0xff]
        %v430 = vld [vmem:[%s225 + $0x218] sm:$0xff]
        %v431 = vld [vmem:[%s225 + $0x220] sm:$0xff]
        %v432 = vld [vmem:[%s225 + $0x228] sm:$0xff]
        %v433 = vld [vmem:[%s225 + $0x230] sm:$0xff]
        %v434 = vld [vmem:[%s225 + $0x238] sm:$0xff]
        %v435 = vld [vmem:[%s225 + $0x240] sm:$0xff]
        %v436 = vld [vmem:[%s225 + $0x248] sm:$0xff]
        %v437 = vld [vmem:[%s225 + $0x250] sm:$0xff]
        %v438 = vld [vmem:[%s225 + $0x258] sm:$0xff]
        %v439 = vld [vmem:[%s225 + $0x260] sm:$0xff]
        %v440 = vld [vmem:[%s225 + $0x268] sm:$0xff]
        %v441 = vld [vmem:[%s225 + $0x270] sm:$0xff]
        %v442 = vld [vmem:[%s225 + $0x278] sm:$0xff]
        %v443 = vld [vmem:[%s225 + $0x280] sm:$0xff]
        %v444 = vld [vmem:[%s225 + $0x288] sm:$0xff]
        %v445 = vld [vmem:[%s225 + $0x290] sm:$0xff]
        %v446 = vld [vmem:[%s225 + $0x298] sm:$0xff]
        %v447 = vld [vmem:[%s225 + $0x2a0] sm:$0xff]
        %v448 = vld [vmem:[%s225 + $0x2a8] sm:$0xff]
        %v449 = vld [vmem:[%s225 + $0x2b0] sm:$0xff]
        %v450 = vld [vmem:[%s225 + $0x2b8] sm:$0xff]
        %v451 = vld [vmem:[%s225 + $0x2c0] sm:$0xff]
        %v452 = vld [vmem:[%s225 + $0x2c8] sm:$0xff]
        %v453 = vld [vmem:[%s225 + $0x2d0] sm:$0xff]
        %v454 = vld [vmem:[%s225 + $0x2d8] sm:$0xff]
        %v455 = vld [vmem:[%s225 + $0x2e0] sm:$0xff]
        %v456 = vld [vmem:[%s225 + $0x2e8] sm:$0xff]
        %v457 = vld [vmem:[%s225 + $0x2f0] sm:$0xff]
        %v458 = vld [vmem:[%s225 + $0x2f8] sm:$0xff]
        %v459 = vld [vmem:[%s225 + $0x300] sm:$0xff]
        %v460 = vld [vmem:[%s225 + $0x308] sm:$0xff]
        %v461 = vld [vmem:[%s225 + $0x310] sm:$0xff]
        %v462 = vld [vmem:[%s225 + $0x318] sm:$0xff]
        %v463 = vld [vmem:[%s225 + $0x320] sm:$0xff]
        %v464 = vld [vmem:[%s225 + $0x328] sm:$0xff]
        %v465 = vld [vmem:[%s225 + $0x330] sm:$0xff]
        %v466 = vld [vmem:[%s225 + $0x338] sm:$0xff]
        %v467 = vld [vmem:[%s225 + $0x340] sm:$0xff]
        %v468 = vld [vmem:[%s225 + $0x348] sm:$0xff]
        %v469 = vld [vmem:[%s225 + $0x350] sm:$0xff]
        %v470 = vld [vmem:[%s225 + $0x358] sm:$0xff]
        %v471 = vld [vmem:[%s225 + $0x360] sm:$0xff]
        %v472 = vld [vmem:[%s225 + $0x368] sm:$0xff]
        %v473 = vld [vmem:[%s225 + $0x370] sm:$0xff]
        %v474 = vld [vmem:[%s225 + $0x378] sm:$0xff]
        %v475 = vld [vmem:[%s225 + $0x380] sm:$0xff]
        %v476 = vld [vmem:[%s225 + $0x388] sm:$0xff]
        %v477 = vld [vmem:[%s225 + $0x390] sm:$0xff]
        %v478 = vld [vmem:[%s225 + $0x398] sm:$0xff]
        %v479 = vld [vmem:[%s225 + $0x3a0] sm:$0xff]
        %v480 = vld [vmem:[%s225 + $0x3a8] sm:$0xff]
        %v481 = vld [vmem:[%s225 + $0x3b0] sm:$0xff]
        %v482 = vld [vmem:[%s225 + $0x3b8] sm:$0xff]
        %v483 = vld [vmem:[%s225 + $0x3c0] sm:$0xff]
        %v484 = vld [vmem:[%s225 + $0x3c8] sm:$0xff]
        %v485 = vld [vmem:[%s225 + $0x3d0] sm:$0xff]
        %v486 = vld [vmem:[%s225 + $0x3d8] sm:$0xff]
        %v487 = vld [vmem:[%s225 + $0x3e0] sm:$0xff]
        %v488 = vld [vmem:[%s225 + $0x3e8] sm:$0xff]
        %v489 = vld [vmem:[%s225 + $0x3f0] sm:$0xff]
        %v490 = vld [vmem:[%s225 + $0x3f8] sm:$0xff]
        %v491 = vld [vmem:[%s234] ss:$4 sm:$0xf]
        %s492 = scalar_lea.vmem %s234, 1 [#allocation7]
        %v493 = vld [vmem:[%s492] ss:$4 sm:$0xf]
        %s494 = scalar_lea.vmem %s234, 2 [#allocation7]
        %v495 = vld [vmem:[%s494] ss:$4 sm:$0xf]
        %s496 = scalar_lea.vmem %s234, 3 [#allocation7]
        %v497 = vld [vmem:[%s496] ss:$4 sm:$0xf]
        %v499 = vlaneseq
        %v500 = vshrl.u32 %v499, 7
        %v501 = vsub.s32 0, %v500
        %v502 = vrot.slane %v491, %v501
        %v503 = vlaneseq
        %v504 = vshrl.u32 %v503, 7
        %v505 = vsub.s32 1, %v504
        %v506 = vrot.slane %v491, %v505
        %v507 = vlaneseq
        %v508 = vshrl.u32 %v507, 7
        %v509 = vsub.s32 2, %v508
        %v510 = vrot.slane %v491, %v509
        %v511 = vlaneseq
        %v512 = vshrl.u32 %v511, 7
        %v513 = vsub.s32 3, %v512
        %v514 = vrot.slane %v491, %v513
        %v647 = vunpack.c.l.b16 %v363
        %v648 = vunpack.c.h.b16 %v363
        %v649 = vunpack.c.l.b16 %v364
        %v650 = vunpack.c.h.b16 %v364
        %v651 = vunpack.c.l.b16 %v365
        %v652 = vunpack.c.h.b16 %v365
        %v653 = vunpack.c.l.b16 %v366
        %v654 = vunpack.c.h.b16 %v366
        %v655 = vunpack.c.l.b16 %v367
        %v656 = vunpack.c.h.b16 %v367
        %v657 = vunpack.c.l.b16 %v368
        %v658 = vunpack.c.h.b16 %v368
        %v659 = vunpack.c.l.b16 %v369
        %v660 = vunpack.c.h.b16 %v369
        %v661 = vunpack.c.l.b16 %v370
        %v662 = vunpack.c.h.b16 %v370
        %v663 = vunpack.c.l.b16 %v371
        %v664 = vunpack.c.h.b16 %v371
        %v665 = vunpack.c.l.b16 %v372
        %v666 = vunpack.c.h.b16 %v372
        %v667 = vunpack.c.l.b16 %v373
        %v668 = vunpack.c.h.b16 %v373
        %v669 = vunpack.c.l.b16 %v374
        %v670 = vunpack.c.h.b16 %v374
        %v671 = vunpack.c.l.b16 %v375
        %v672 = vunpack.c.h.b16 %v375
        %v673 = vunpack.c.l.b16 %v376
        %v674 = vunpack.c.h.b16 %v376
        %v675 = vunpack.c.l.b16 %v377
        %v676 = vunpack.c.h.b16 %v377
        %v677 = vunpack.c.l.b16 %v378
        %v678 = vunpack.c.h.b16 %v378
        %v679 = vunpack.c.l.b16 %v379
        %v680 = vunpack.c.h.b16 %v379
        %v681 = vunpack.c.l.b16 %v380
        %v682 = vunpack.c.h.b16 %v380
        %v683 = vunpack.c.l.b16 %v381
        %v684 = vunpack.c.h.b16 %v381
        %v685 = vunpack.c.l.b16 %v382
        %v686 = vunpack.c.h.b16 %v382
        %v687 = vunpack.c.l.b16 %v383
        %v688 = vunpack.c.h.b16 %v383
        %v689 = vunpack.c.l.b16 %v384
        %v690 = vunpack.c.h.b16 %v384
        %v691 = vunpack.c.l.b16 %v385
        %v692 = vunpack.c.h.b16 %v385
        %v693 = vunpack.c.l.b16 %v386
        %v694 = vunpack.c.h.b16 %v386
        %v695 = vunpack.c.l.b16 %v387
        %v696 = vunpack.c.h.b16 %v387
        %v697 = vunpack.c.l.b16 %v388
        %v698 = vunpack.c.h.b16 %v388
        %v699 = vunpack.c.l.b16 %v389
        %v700 = vunpack.c.h.b16 %v389
        %v701 = vunpack.c.l.b16 %v390
        %v702 = vunpack.c.h.b16 %v390
        %v703 = vunpack.c.l.b16 %v391
        %v704 = vunpack.c.h.b16 %v391
        %v705 = vunpack.c.l.b16 %v392
        %v706 = vunpack.c.h.b16 %v392
        %v707 = vunpack.c.l.b16 %v393
        %v708 = vunpack.c.h.b16 %v393
        %v709 = vunpack.c.l.b16 %v394
        %v710 = vunpack.c.h.b16 %v394
        %v711 = vunpack.c.l.b16 %v395
        %v712 = vunpack.c.h.b16 %v395
        %v713 = vunpack.c.l.b16 %v396
        %v714 = vunpack.c.h.b16 %v396
        %v715 = vunpack.c.l.b16 %v397
        %v716 = vunpack.c.h.b16 %v397
        %v717 = vunpack.c.l.b16 %v398
        %v718 = vunpack.c.h.b16 %v398
        %v719 = vunpack.c.l.b16 %v399
        %v720 = vunpack.c.h.b16 %v399
        %v721 = vunpack.c.l.b16 %v400
        %v722 = vunpack.c.h.b16 %v400
        %v723 = vunpack.c.l.b16 %v401
        %v724 = vunpack.c.h.b16 %v401
        %v725 = vunpack.c.l.b16 %v402
        %v726 = vunpack.c.h.b16 %v402
        %v727 = vunpack.c.l.b16 %v403
        %v728 = vunpack.c.h.b16 %v403
        %v729 = vunpack.c.l.b16 %v404
        %v730 = vunpack.c.h.b16 %v404
        %v731 = vunpack.c.l.b16 %v405
        %v732 = vunpack.c.h.b16 %v405
        %v733 = vunpack.c.l.b16 %v406
        %v734 = vunpack.c.h.b16 %v406
        %v735 = vunpack.c.l.b16 %v407
        %v736 = vunpack.c.h.b16 %v407
        %v737 = vunpack.c.l.b16 %v408
        %v738 = vunpack.c.h.b16 %v408
        %v739 = vunpack.c.l.b16 %v409
        %v740 = vunpack.c.h.b16 %v409
        %v741 = vunpack.c.l.b16 %v410
        %v742 = vunpack.c.h.b16 %v410
        %v743 = vunpack.c.l.b16 %v411
        %v744 = vunpack.c.h.b16 %v411
        %v745 = vunpack.c.l.b16 %v412
        %v746 = vunpack.c.h.b16 %v412
        %v747 = vunpack.c.l.b16 %v413
        %v748 = vunpack.c.h.b16 %v413
        %v749 = vunpack.c.l.b16 %v414
        %v750 = vunpack.c.h.b16 %v414
        %v751 = vunpack.c.l.b16 %v415
        %v752 = vunpack.c.h.b16 %v415
        %v753 = vunpack.c.l.b16 %v416
        %v754 = vunpack.c.h.b16 %v416
        %v755 = vunpack.c.l.b16 %v417
        %v756 = vunpack.c.h.b16 %v417
        %v757 = vunpack.c.l.b16 %v418
        %v758 = vunpack.c.h.b16 %v418
        %v759 = vunpack.c.l.b16 %v419
        %v760 = vunpack.c.h.b16 %v419
        %v761 = vunpack.c.l.b16 %v420
        %v762 = vunpack.c.h.b16 %v420
        %v763 = vunpack.c.l.b16 %v421
        %v764 = vunpack.c.h.b16 %v421
        %v765 = vunpack.c.l.b16 %v422
        %v766 = vunpack.c.h.b16 %v422
        %v767 = vunpack.c.l.b16 %v423
        %v768 = vunpack.c.h.b16 %v423
        %v769 = vunpack.c.l.b16 %v424
        %v770 = vunpack.c.h.b16 %v424
        %v771 = vunpack.c.l.b16 %v425
        %v772 = vunpack.c.h.b16 %v425
        %v773 = vunpack.c.l.b16 %v426
        %v774 = vunpack.c.h.b16 %v426
        %v775 = vunpack.c.l.b16 %v427
        %v776 = vunpack.c.h.b16 %v427
        %v777 = vunpack.c.l.b16 %v428
        %v778 = vunpack.c.h.b16 %v428
        %v779 = vunpack.c.l.b16 %v429
        %v780 = vunpack.c.h.b16 %v429
        %v781 = vunpack.c.l.b16 %v430
        %v782 = vunpack.c.h.b16 %v430
        %v783 = vunpack.c.l.b16 %v431
        %v784 = vunpack.c.h.b16 %v431
        %v785 = vunpack.c.l.b16 %v432
        %v786 = vunpack.c.h.b16 %v432
        %v787 = vunpack.c.l.b16 %v433
        %v788 = vunpack.c.h.b16 %v433
        %v789 = vunpack.c.l.b16 %v434
        %v790 = vunpack.c.h.b16 %v434
        %v791 = vunpack.c.l.b16 %v435
        %v792 = vunpack.c.h.b16 %v435
        %v793 = vunpack.c.l.b16 %v436
        %v794 = vunpack.c.h.b16 %v436
        %v795 = vunpack.c.l.b16 %v437
        %v796 = vunpack.c.h.b16 %v437
        %v797 = vunpack.c.l.b16 %v438
        %v798 = vunpack.c.h.b16 %v438
        %v799 = vunpack.c.l.b16 %v439
        %v800 = vunpack.c.h.b16 %v439
        %v801 = vunpack.c.l.b16 %v440
        %v802 = vunpack.c.h.b16 %v440
        %v803 = vunpack.c.l.b16 %v441
        %v804 = vunpack.c.h.b16 %v441
        %v805 = vunpack.c.l.b16 %v442
        %v806 = vunpack.c.h.b16 %v442
        %v807 = vunpack.c.l.b16 %v443
        %v808 = vunpack.c.h.b16 %v443
        %v809 = vunpack.c.l.b16 %v444
        %v810 = vunpack.c.h.b16 %v444
        %v811 = vunpack.c.l.b16 %v445
        %v812 = vunpack.c.h.b16 %v445
        %v813 = vunpack.c.l.b16 %v446
        %v814 = vunpack.c.h.b16 %v446
        %v815 = vunpack.c.l.b16 %v447
        %v816 = vunpack.c.h.b16 %v447
        %v817 = vunpack.c.l.b16 %v448
        %v818 = vunpack.c.h.b16 %v448
        %v819 = vunpack.c.l.b16 %v449
        %v820 = vunpack.c.h.b16 %v449
        %v821 = vunpack.c.l.b16 %v450
        %v822 = vunpack.c.h.b16 %v450
        %v823 = vunpack.c.l.b16 %v451
        %v824 = vunpack.c.h.b16 %v451
        %v825 = vunpack.c.l.b16 %v452
        %v826 = vunpack.c.h.b16 %v452
        %v827 = vunpack.c.l.b16 %v453
        %v828 = vunpack.c.h.b16 %v453
        %v829 = vunpack.c.l.b16 %v454
        %v830 = vunpack.c.h.b16 %v454
        %v831 = vunpack.c.l.b16 %v455
        %v832 = vunpack.c.h.b16 %v455
        %v833 = vunpack.c.l.b16 %v456
        %v834 = vunpack.c.h.b16 %v456
        %v835 = vunpack.c.l.b16 %v457
        %v836 = vunpack.c.h.b16 %v457
        %v837 = vunpack.c.l.b16 %v458
        %v838 = vunpack.c.h.b16 %v458
        %v839 = vunpack.c.l.b16 %v459
        %v840 = vunpack.c.h.b16 %v459
        %v841 = vunpack.c.l.b16 %v460
        %v842 = vunpack.c.h.b16 %v460
        %v843 = vunpack.c.l.b16 %v461
        %v844 = vunpack.c.h.b16 %v461
        %v845 = vunpack.c.l.b16 %v462
        %v846 = vunpack.c.h.b16 %v462
        %v847 = vunpack.c.l.b16 %v463
        %v848 = vunpack.c.h.b16 %v463
        %v849 = vunpack.c.l.b16 %v464
        %v850 = vunpack.c.h.b16 %v464
        %v851 = vunpack.c.l.b16 %v465
        %v852 = vunpack.c.h.b16 %v465
        %v853 = vunpack.c.l.b16 %v466
        %v854 = vunpack.c.h.b16 %v466
        %v855 = vunpack.c.l.b16 %v467
        %v856 = vunpack.c.h.b16 %v467
        %v857 = vunpack.c.l.b16 %v468
        %v858 = vunpack.c.h.b16 %v468
        %v859 = vunpack.c.l.b16 %v469
        %v860 = vunpack.c.h.b16 %v469
        %v861 = vunpack.c.l.b16 %v470
        %v862 = vunpack.c.h.b16 %v470
        %v863 = vunpack.c.l.b16 %v471
        %v864 = vunpack.c.h.b16 %v471
        %v865 = vunpack.c.l.b16 %v472
        %v866 = vunpack.c.h.b16 %v472
        %v867 = vunpack.c.l.b16 %v473
        %v868 = vunpack.c.h.b16 %v473
        %v869 = vunpack.c.l.b16 %v474
        %v870 = vunpack.c.h.b16 %v474
        %v871 = vunpack.c.l.b16 %v475
        %v872 = vunpack.c.h.b16 %v475
        %v873 = vunpack.c.l.b16 %v476
        %v874 = vunpack.c.h.b16 %v476
        %v875 = vunpack.c.l.b16 %v477
        %v876 = vunpack.c.h.b16 %v477
        %v877 = vunpack.c.l.b16 %v478
        %v878 = vunpack.c.h.b16 %v478
        %v879 = vunpack.c.l.b16 %v479
        %v880 = vunpack.c.h.b16 %v479
        %v881 = vunpack.c.l.b16 %v480
        %v882 = vunpack.c.h.b16 %v480
        %v883 = vunpack.c.l.b16 %v481
        %v884 = vunpack.c.h.b16 %v481
        %v885 = vunpack.c.l.b16 %v482
        %v886 = vunpack.c.h.b16 %v482
        %v887 = vunpack.c.l.b16 %v483
        %v888 = vunpack.c.h.b16 %v483
        %v889 = vunpack.c.l.b16 %v484
        %v890 = vunpack.c.h.b16 %v484
        %v891 = vunpack.c.l.b16 %v485
        %v892 = vunpack.c.h.b16 %v485
        %v893 = vunpack.c.l.b16 %v486
        %v894 = vunpack.c.h.b16 %v486
        %v895 = vunpack.c.l.b16 %v487
        %v896 = vunpack.c.h.b16 %v487
        %v897 = vunpack.c.l.b16 %v488
        %v898 = vunpack.c.h.b16 %v488
        %v899 = vunpack.c.l.b16 %v489
        %v900 = vunpack.c.h.b16 %v489
        %v901 = vunpack.c.l.b16 %v490
        %v902 = vunpack.c.h.b16 %v490
        %v903 = vpack.c.b16 %v651, %v647
        %v904 = vpack.c.b16 %v652, %v648
        %v905 = vpack.c.b16 %v653, %v649
        %v906 = vpack.c.b16 %v654, %v650
        %v907 = vpack.c.b16 %v659, %v655
        %v908 = vpack.c.b16 %v660, %v656
        %v909 = vpack.c.b16 %v661, %v657
        %v910 = vpack.c.b16 %v662, %v658
        %v911 = vpack.c.b16 %v667, %v663
        %v912 = vpack.c.b16 %v668, %v664
        %v913 = vpack.c.b16 %v669, %v665
        %v914 = vpack.c.b16 %v670, %v666
        %v915 = vpack.c.b16 %v675, %v671
        %v916 = vpack.c.b16 %v676, %v672
        %v917 = vpack.c.b16 %v677, %v673
        %v918 = vpack.c.b16 %v678, %v674
        %v919 = vpack.c.b16 %v683, %v679
        %v920 = vpack.c.b16 %v684, %v680
        %v921 = vpack.c.b16 %v685, %v681
        %v922 = vpack.c.b16 %v686, %v682
        %v923 = vpack.c.b16 %v691, %v687
        %v924 = vpack.c.b16 %v692, %v688
        %v925 = vpack.c.b16 %v693, %v689
        %v926 = vpack.c.b16 %v694, %v690
        %v927 = vpack.c.b16 %v699, %v695
        %v928 = vpack.c.b16 %v700, %v696
        %v929 = vpack.c.b16 %v701, %v697
        %v930 = vpack.c.b16 %v702, %v698
        %v931 = vpack.c.b16 %v707, %v703
        %v932 = vpack.c.b16 %v708, %v704
        %v933 = vpack.c.b16 %v709, %v705
        %v934 = vpack.c.b16 %v710, %v706
        %v935 = vpack.c.b16 %v715, %v711
        %v936 = vpack.c.b16 %v716, %v712
        %v937 = vpack.c.b16 %v717, %v713
        %v938 = vpack.c.b16 %v718, %v714
        %v939 = vpack.c.b16 %v723, %v719
        %v940 = vpack.c.b16 %v724, %v720
        %v941 = vpack.c.b16 %v725, %v721
        %v942 = vpack.c.b16 %v726, %v722
        %v943 = vpack.c.b16 %v731, %v727
        %v944 = vpack.c.b16 %v732, %v728
        %v945 = vpack.c.b16 %v733, %v729
        %v946 = vpack.c.b16 %v734, %v730
        %v947 = vpack.c.b16 %v739, %v735
        %v948 = vpack.c.b16 %v740, %v736
        %v949 = vpack.c.b16 %v741, %v737
        %v950 = vpack.c.b16 %v742, %v738
        %v951 = vpack.c.b16 %v747, %v743
        %v952 = vpack.c.b16 %v748, %v744
        %v953 = vpack.c.b16 %v749, %v745
        %v954 = vpack.c.b16 %v750, %v746
        %v955 = vpack.c.b16 %v755, %v751
        %v956 = vpack.c.b16 %v756, %v752
        %v957 = vpack.c.b16 %v757, %v753
        %v958 = vpack.c.b16 %v758, %v754
        %v959 = vpack.c.b16 %v763, %v759
        %v960 = vpack.c.b16 %v764, %v760
        %v961 = vpack.c.b16 %v765, %v761
        %v962 = vpack.c.b16 %v766, %v762
        %v963 = vpack.c.b16 %v771, %v767
        %v964 = vpack.c.b16 %v772, %v768
        %v965 = vpack.c.b16 %v773, %v769
        %v966 = vpack.c.b16 %v774, %v770
        %v967 = vpack.c.b16 %v779, %v775
        %v968 = vpack.c.b16 %v780, %v776
        %v969 = vpack.c.b16 %v781, %v777
        %v970 = vpack.c.b16 %v782, %v778
        %v971 = vpack.c.b16 %v787, %v783
        %v972 = vpack.c.b16 %v788, %v784
        %v973 = vpack.c.b16 %v789, %v785
        %v974 = vpack.c.b16 %v790, %v786
        %v975 = vpack.c.b16 %v795, %v791
        %v976 = vpack.c.b16 %v796, %v792
        %v977 = vpack.c.b16 %v797, %v793
        %v978 = vpack.c.b16 %v798, %v794
        %v979 = vpack.c.b16 %v803, %v799
        %v980 = vpack.c.b16 %v804, %v800
        %v981 = vpack.c.b16 %v805, %v801
        %v982 = vpack.c.b16 %v806, %v802
        %v983 = vpack.c.b16 %v811, %v807
        %v984 = vpack.c.b16 %v812, %v808
        %v985 = vpack.c.b16 %v813, %v809
        %v986 = vpack.c.b16 %v814, %v810
        %v987 = vpack.c.b16 %v819, %v815
        %v988 = vpack.c.b16 %v820, %v816
        %v989 = vpack.c.b16 %v821, %v817
        %v990 = vpack.c.b16 %v822, %v818
        %v991 = vpack.c.b16 %v827, %v823
        %v992 = vpack.c.b16 %v828, %v824
        %v993 = vpack.c.b16 %v829, %v825
        %v994 = vpack.c.b16 %v830, %v826
        %v995 = vpack.c.b16 %v835, %v831
        %v996 = vpack.c.b16 %v836, %v832
        %v997 = vpack.c.b16 %v837, %v833
        %v998 = vpack.c.b16 %v838, %v834
        %v999 = vpack.c.b16 %v843, %v839
        %v1000 = vpack.c.b16 %v844, %v840
        %v1001 = vpack.c.b16 %v845, %v841
        %v1002 = vpack.c.b16 %v846, %v842
        %v1003 = vpack.c.b16 %v851, %v847
        %v1004 = vpack.c.b16 %v852, %v848
        %v1005 = vpack.c.b16 %v853, %v849
        %v1006 = vpack.c.b16 %v854, %v850
        %v1007 = vpack.c.b16 %v859, %v855
        %v1008 = vpack.c.b16 %v860, %v856
        %v1009 = vpack.c.b16 %v861, %v857
        %v1010 = vpack.c.b16 %v862, %v858
        %v1011 = vpack.c.b16 %v867, %v863
        %v1012 = vpack.c.b16 %v868, %v864
        %v1013 = vpack.c.b16 %v869, %v865
        %v1014 = vpack.c.b16 %v870, %v866
        %v1015 = vpack.c.b16 %v875, %v871
        %v1016 = vpack.c.b16 %v876, %v872
        %v1017 = vpack.c.b16 %v877, %v873
        %v1018 = vpack.c.b16 %v878, %v874
        %v1019 = vpack.c.b16 %v883, %v879
        %v1020 = vpack.c.b16 %v884, %v880
        %v1021 = vpack.c.b16 %v885, %v881
        %v1022 = vpack.c.b16 %v886, %v882
        %v1023 = vpack.c.b16 %v891, %v887
        %v1024 = vpack.c.b16 %v892, %v888
        %v1025 = vpack.c.b16 %v893, %v889
        %v1026 = vpack.c.b16 %v894, %v890
        %v1027 = vpack.c.b16 %v899, %v895
        %v1028 = vpack.c.b16 %v900, %v896
        %v1029 = vpack.c.b16 %v901, %v897
        %v1030 = vpack.c.b16 %v902, %v898
        %1159 = vmatprep.subr.bf16.mxu0 %v904
        %1160 = vmatpush1.bf16.msra.mxu0 %v903
        %1161 = vmatprep.subr.bf16.mxu0 %v908
        %1162 = vmatpush1.bf16.msra.mxu0 %v907
        %1163 = vmatprep.subr.bf16.mxu0 %v912
        %1164 = vmatpush1.bf16.msra.mxu0 %v911
        %1165 = vmatprep.subr.bf16.mxu0 %v916
        %1166 = vmatpush1.bf16.msra.mxu0 %v915
        %1167 = vmatprep.subr.bf16.mxu0 %v920
        %1168 = vmatpush1.bf16.msra.mxu0 %v919
        %1169 = vmatprep.subr.bf16.mxu0 %v924
        %1170 = vmatpush1.bf16.msra.mxu0 %v923
        %1171 = vmatprep.subr.bf16.mxu0 %v928
        %1172 = vmatpush1.bf16.msra.mxu0 %v927
        %1173 = vmatprep.subr.bf16.mxu0 %v932
        %1174 = vmatpush1.bf16.msra.mxu0 %v931
        %1175 = vmatprep.subr.bf16.mxu0 %v936
        %1176 = vmatpush1.bf16.msra.mxu0 %v935
        %1177 = vmatprep.subr.bf16.mxu0 %v940
        %1178 = vmatpush1.bf16.msra.mxu0 %v939
        %1179 = vmatprep.subr.bf16.mxu0 %v944
        %1180 = vmatpush1.bf16.msra.mxu0 %v943
        %1181 = vmatprep.subr.bf16.mxu0 %v948
        %1182 = vmatpush1.bf16.msra.mxu0 %v947
        %1183 = vmatprep.subr.bf16.mxu0 %v952
        %1184 = vmatpush1.bf16.msra.mxu0 %v951
        %1185 = vmatprep.subr.bf16.mxu0 %v956
        %1186 = vmatpush1.bf16.msra.mxu0 %v955
        %1187 = vmatprep.subr.bf16.mxu0 %v960
        %1188 = vmatpush1.bf16.msra.mxu0 %v959
        %1189 = vmatprep.subr.bf16.mxu0 %v964
        %1190 = vmatpush1.bf16.msra.mxu0 %v963
        %1191 = vmatprep.mubr.bf16.mxu0 %v332
        %1192 = vmatmul.mubr.bf16.gmra.mrb[0].mxu0 %v331
        %v1193 = vpop.f32.mrb[0].mxu0
        %v1194 = vadd.f32 %v502, %v1193
        %v1195 = vpop.f32.mrb[0].mxu0
        %v1196 = vadd.f32 %v506, %v1195
        %v1197 = vpop.f32.mrb[0].mxu0
        %v1198 = vadd.f32 %v502, %v1197
        %v1199 = vpop.f32.mrb[0].mxu0
        %v1200 = vadd.f32 %v506, %v1199
        %1201 = vmatprep.mubr.bf16.mxu0 %v336
        %1202 = vmatmul.mubr.bf16.gmra.mrb[0].mxu0 %v335
        %v1203 = vpop.f32.mrb[0].mxu0
        %v1204 = vadd.f32 %v502, %v1203
        %v1205 = vpop.f32.mrb[0].mxu0
        %v1206 = vadd.f32 %v506, %v1205
        %v1207 = vpop.f32.mrb[0].mxu0
        %v1208 = vadd.f32 %v502, %v1207
        %v1209 = vpop.f32.mrb[0].mxu0
        %v1210 = vadd.f32 %v506, %v1209
        %1211 = vmatprep.mubr.bf16.mxu0 %v340
        %1212 = vmatmul.mubr.bf16.gmra.mrb[0].mxu0 %v339
        %v1213 = vpop.f32.mrb[0].mxu0
        %v1214 = vadd.f32 %v502, %v1213
        %v1215 = vpop.f32.mrb[0].mxu0
        %v1216 = vadd.f32 %v506, %v1215
        %v1217 = vpop.f32.mrb[0].mxu0
        %v1218 = vadd.f32 %v502, %v1217
        %v1219 = vpop.f32.mrb[0].mxu0
        %v1220 = vadd.f32 %v506, %v1219
        %1221 = vmatprep.mubr.bf16.mxu0 %v344
        %1222 = vmatmul.mubr.bf16.gmra.mrb[0].mxu0 %v343
        %v1223 = vpop.f32.mrb[0].mxu0
        %v1224 = vadd.f32 %v502, %v1223
        %v1225 = vpop.f32.mrb[0].mxu0
        %v1226 = vadd.f32 %v506, %v1225
        %v1227 = vpop.f32.mrb[0].mxu0
        %v1228 = vadd.f32 %v502, %v1227
        %v1229 = vpop.f32.mrb[0].mxu0
        %v1230 = vadd.f32 %v506, %v1229
        %1231 = vmatprep.mubr.bf16.mxu0 %v348
        %1232 = vmatmul.mubr.bf16.gmra.mrb[0].mxu0 %v347
        %v1233 = vpop.f32.mrb[0].mxu0
        %v1234 = vadd.f32 %v502, %v1233
        %v1235 = vpop.f32.mrb[0].mxu0
        %v1236 = vadd.f32 %v506, %v1235
        %v1237 = vpop.f32.mrb[0].mxu0
        %v1238 = vadd.f32 %v502, %v1237
        %v1239 = vpop.f32.mrb[0].mxu0
        %v1240 = vadd.f32 %v506, %v1239
        %1241 = vmatprep.mubr.bf16.mxu0 %v352
        %1242 = vmatmul.mubr.bf16.gmra.mrb[0].mxu0 %v351
        %v1243 = vpop.f32.mrb[0].mxu0
        %v1244 = vadd.f32 %v502, %v1243
        %v1245 = vpop.f32.mrb[0].mxu0
        %v1246 = vadd.f32 %v506, %v1245
        %v1247 = vpop.f32.mrb[0].mxu0
        %v1248 = vadd.f32 %v502, %v1247
        %v1249 = vpop.f32.mrb[0].mxu0
        %v1250 = vadd.f32 %v506, %v1249
        %1251 = vmatprep.mubr.bf16.mxu0 %v356
        %1252 = vmatmul.mubr.bf16.gmra.mrb[0].mxu0 %v355
        %v1253 = vpop.f32.mrb[0].mxu0
        %v1254 = vadd.f32 %v502, %v1253
        %v1255 = vpop.f32.mrb[0].mxu0
        %v1256 = vadd.f32 %v506, %v1255
        %v1257 = vpop.f32.mrb[0].mxu0
        %v1258 = vadd.f32 %v502, %v1257
        %v1259 = vpop.f32.mrb[0].mxu0
        %v1260 = vadd.f32 %v506, %v1259
        %1261 = vmatprep.mubr.bf16.mxu0 %v360
        %1262 = vmatmul.mubr.bf16.gmra.mrb[0].mxu0 %v359
        %v1263 = vpop.f32.mrb[0].mxu0
        %v1264 = vadd.f32 %v502, %v1263
        %v1265 = vpop.f32.mrb[0].mxu0
        %v1266 = vadd.f32 %v506, %v1265
        %v1267 = vpop.f32.mrb[0].mxu0
        %v1268 = vadd.f32 %v502, %v1267
        %v1269 = vpop.f32.mrb[0].mxu0
        %v1270 = vadd.f32 %v506, %v1269
        %1271 = vdwg.mxu0
        %1272 = vmatprep.subr.bf16.mxu0 %v968
        %1273 = vmatpush1.bf16.msra.mxu0 %v967
        %1274 = vmatprep.subr.bf16.mxu0 %v972
        %1275 = vmatpush1.bf16.msra.mxu0 %v971
        %1276 = vmatprep.subr.bf16.mxu0 %v976
        %1277 = vmatpush1.bf16.msra.mxu0 %v975
        %1278 = vmatprep.subr.bf16.mxu0 %v980
        %1279 = vmatpush1.bf16.msra.mxu0 %v979
        %1280 = vmatprep.subr.bf16.mxu0 %v984
        %1281 = vmatpush1.bf16.msra.mxu0 %v983
        %1282 = vmatprep.subr.bf16.mxu0 %v988
        %1283 = vmatpush1.bf16.msra.mxu0 %v987
        %1284 = vmatprep.subr.bf16.mxu0 %v992
        %1285 = vmatpush1.bf16.msra.mxu0 %v991
        %1286 = vmatprep.subr.bf16.mxu0 %v996
        %1287 = vmatpush1.bf16.msra.mxu0 %v995
        %1288 = vmatprep.subr.bf16.mxu0 %v1000
        %1289 = vmatpush1.bf16.msra.mxu0 %v999
        %1290 = vmatprep.subr.bf16.mxu0 %v1004
        %1291 = vmatpush1.bf16.msra.mxu0 %v1003
        %1292 = vmatprep.subr.bf16.mxu0 %v1008
        %1293 = vmatpush1.bf16.msra.mxu0 %v1007
        %1294 = vmatprep.subr.bf16.mxu0 %v1012
        %1295 = vmatpush1.bf16.msra.mxu0 %v1011
        %1296 = vmatprep.subr.bf16.mxu0 %v1016
        %1297 = vmatpush1.bf16.msra.mxu0 %v1015
        %1298 = vmatprep.subr.bf16.mxu0 %v1020
        %1299 = vmatpush1.bf16.msra.mxu0 %v1019
        %1300 = vmatprep.subr.bf16.mxu0 %v1024
        %1301 = vmatpush1.bf16.msra.mxu0 %v1023
        %1302 = vmatprep.subr.bf16.mxu0 %v1028
        %1303 = vmatpush1.bf16.msra.mxu0 %v1027
        %1304 = vmatprep.mubr.bf16.mxu0 %v334
        %1305 = vmatmul.mubr.bf16.gmra.mrb[0].mxu0 %v333
        %v1306 = vpop.f32.mrb[0].mxu0
        %v1307 = vadd.f32 %v1194, %v1306
        %v1308 = vpop.f32.mrb[0].mxu0
        %v1309 = vadd.f32 %v1196, %v1308
        %v1310 = vpop.f32.mrb[0].mxu0
        %v1311 = vadd.f32 %v1198, %v1310
        %v1312 = vpop.f32.mrb[0].mxu0
        %v1313 = vadd.f32 %v1200, %v1312
        %1314 = vmatprep.mubr.bf16.mxu0 %v338
        %1315 = vmatmul.mubr.bf16.gmra.mrb[0].mxu0 %v337
        %v1316 = vpop.f32.mrb[0].mxu0
        %v1317 = vadd.f32 %v1204, %v1316
        %v1318 = vpop.f32.mrb[0].mxu0
        %v1319 = vadd.f32 %v1206, %v1318
        %v1320 = vpop.f32.mrb[0].mxu0
        %v1321 = vadd.f32 %v1208, %v1320
        %v1322 = vpop.f32.mrb[0].mxu0
        %v1323 = vadd.f32 %v1210, %v1322
        %1324 = vmatprep.mubr.bf16.mxu0 %v342
        %1325 = vmatmul.mubr.bf16.gmra.mrb[0].mxu0 %v341
        %v1326 = vpop.f32.mrb[0].mxu0
        %v1327 = vadd.f32 %v1214, %v1326
        %v1328 = vpop.f32.mrb[0].mxu0
        %v1329 = vadd.f32 %v1216, %v1328
        %v1330 = vpop.f32.mrb[0].mxu0
        %v1331 = vadd.f32 %v1218, %v1330
        %v1332 = vpop.f32.mrb[0].mxu0
        %v1333 = vadd.f32 %v1220, %v1332
        %1334 = vmatprep.mubr.bf16.mxu0 %v346
        %1335 = vmatmul.mubr.bf16.gmra.mrb[0].mxu0 %v345
        %v1336 = vpop.f32.mrb[0].mxu0
        %v1337 = vadd.f32 %v1224, %v1336
        %v1338 = vpop.f32.mrb[0].mxu0
        %v1339 = vadd.f32 %v1226, %v1338
        %v1340 = vpop.f32.mrb[0].mxu0
        %v1341 = vadd.f32 %v1228, %v1340
        %v1342 = vpop.f32.mrb[0].mxu0
        %v1343 = vadd.f32 %v1230, %v1342
        %1344 = vmatprep.mubr.bf16.mxu0 %v350
        %1345 = vmatmul.mubr.bf16.gmra.mrb[0].mxu0 %v349
        %v1346 = vpop.f32.mrb[0].mxu0
        %v1347 = vadd.f32 %v1234, %v1346
        %v1348 = vpop.f32.mrb[0].mxu0
        %v1349 = vadd.f32 %v1236, %v1348
        %v1350 = vpop.f32.mrb[0].mxu0
        %v1351 = vadd.f32 %v1238, %v1350
        %v1352 = vpop.f32.mrb[0].mxu0
        %v1353 = vadd.f32 %v1240, %v1352
        %1354 = vmatprep.mubr.bf16.mxu0 %v354
        %1355 = vmatmul.mubr.bf16.gmra.mrb[0].mxu0 %v353
        %v1356 = vpop.f32.mrb[0].mxu0
        %v1357 = vadd.f32 %v1244, %v1356
        %v1358 = vpop.f32.mrb[0].mxu0
        %v1359 = vadd.f32 %v1246, %v1358
        %v1360 = vpop.f32.mrb[0].mxu0
        %v1361 = vadd.f32 %v1248, %v1360
        %v1362 = vpop.f32.mrb[0].mxu0
        %v1363 = vadd.f32 %v1250, %v1362
        %1364 = vmatprep.mubr.bf16.mxu0 %v358
        %1365 = vmatmul.mubr.bf16.gmra.mrb[0].mxu0 %v357
        %v1366 = vpop.f32.mrb[0].mxu0
        %v1367 = vadd.f32 %v1254, %v1366
        %v1368 = vpop.f32.mrb[0].mxu0
        %v1369 = vadd.f32 %v1256, %v1368
        %v1370 = vpop.f32.mrb[0].mxu0
        %v1371 = vadd.f32 %v1258, %v1370
        %v1372 = vpop.f32.mrb[0].mxu0
        %v1373 = vadd.f32 %v1260, %v1372
        %1374 = vmatprep.mubr.bf16.mxu0 %v362
        %1375 = vmatmul.mubr.bf16.gmra.mrb[0].mxu0 %v361
        %v1376 = vpop.f32.mrb[0].mxu0
        %v1377 = vadd.f32 %v1264, %v1376
        %v1378 = vpop.f32.mrb[0].mxu0
        %v1379 = vadd.f32 %v1266, %v1378
        %v1380 = vpop.f32.mrb[0].mxu0
        %v1381 = vadd.f32 %v1268, %v1380
        %v1382 = vpop.f32.mrb[0].mxu0
        %v1383 = vadd.f32 %v1270, %v1382
        %1384 = vdwg.mxu0
        %1385 = vmatprep.subr.bf16.mxu0 %v906
        %1386 = vmatpush1.bf16.msra.mxu0 %v905
        %1387 = vmatprep.subr.bf16.mxu0 %v910
        %1388 = vmatpush1.bf16.msra.mxu0 %v909
        %1389 = vmatprep.subr.bf16.mxu0 %v914
        %1390 = vmatpush1.bf16.msra.mxu0 %v913
        %1391 = vmatprep.subr.bf16.mxu0 %v918
        %1392 = vmatpush1.bf16.msra.mxu0 %v917
        %1393 = vmatprep.subr.bf16.mxu0 %v922
        %1394 = vmatpush1.bf16.msra.mxu0 %v921
        %1395 = vmatprep.subr.bf16.mxu0 %v926
        %1396 = vmatpush1.bf16.msra.mxu0 %v925
        %1397 = vmatprep.subr.bf16.mxu0 %v930
        %1398 = vmatpush1.bf16.msra.mxu0 %v929
        %1399 = vmatprep.subr.bf16.mxu0 %v934
        %1400 = vmatpush1.bf16.msra.mxu0 %v933
        %1401 = vmatprep.subr.bf16.mxu0 %v938
        %1402 = vmatpush1.bf16.msra.mxu0 %v937
        %1403 = vmatprep.subr.bf16.mxu0 %v942
        %1404 = vmatpush1.bf16.msra.mxu0 %v941
        %1405 = vmatprep.subr.bf16.mxu0 %v946
        %1406 = vmatpush1.bf16.msra.mxu0 %v945
        %1407 = vmatprep.subr.bf16.mxu0 %v950
        %1408 = vmatpush1.bf16.msra.mxu0 %v949
        %1409 = vmatprep.subr.bf16.mxu0 %v954
        %1410 = vmatpush1.bf16.msra.mxu0 %v953
        %1411 = vmatprep.subr.bf16.mxu0 %v958
        %1412 = vmatpush1.bf16.msra.mxu0 %v957
        %1413 = vmatprep.subr.bf16.mxu0 %v962
        %1414 = vmatpush1.bf16.msra.mxu0 %v961
        %1415 = vmatprep.subr.bf16.mxu0 %v966
        %1416 = vmatpush1.bf16.msra.mxu0 %v965
        %1417 = vmatprep.mubr.bf16.mxu0 %v332
        %1418 = vmatmul.mubr.bf16.gmra.mrb[0].mxu0 %v331
        %v1419 = vpop.f32.mrb[0].mxu0
        %v1420 = vadd.f32 %v510, %v1419
        %v1421 = vpop.f32.mrb[0].mxu0
        %v1422 = vadd.f32 %v514, %v1421
        %v1423 = vpop.f32.mrb[0].mxu0
        %v1424 = vadd.f32 %v510, %v1423
        %v1425 = vpop.f32.mrb[0].mxu0
        %v1426 = vadd.f32 %v514, %v1425
        %1427 = vmatprep.mubr.bf16.mxu0 %v336
        %1428 = vmatmul.mubr.bf16.gmra.mrb[0].mxu0 %v335
        %v1429 = vpop.f32.mrb[0].mxu0
        %v1430 = vadd.f32 %v510, %v1429
        %v1431 = vpop.f32.mrb[0].mxu0
        %v1432 = vadd.f32 %v514, %v1431
        %v1433 = vpop.f32.mrb[0].mxu0
        %v1434 = vadd.f32 %v510, %v1433
        %v1435 = vpop.f32.mrb[0].mxu0
        %v1436 = vadd.f32 %v514, %v1435
        %1437 = vmatprep.mubr.bf16.mxu0 %v340
        %1438 = vmatmul.mubr.bf16.gmra.mrb[0].mxu0 %v339
        %v1439 = vpop.f32.mrb[0].mxu0
        %v1440 = vadd.f32 %v510, %v1439
        %v1441 = vpop.f32.mrb[0].mxu0
        %v1442 = vadd.f32 %v514, %v1441
        %v1443 = vpop.f32.mrb[0].mxu0
        %v1444 = vadd.f32 %v510, %v1443
        %v1445 = vpop.f32.mrb[0].mxu0
        %v1446 = vadd.f32 %v514, %v1445
        %1447 = vmatprep.mubr.bf16.mxu0 %v344
        %1448 = vmatmul.mubr.bf16.gmra.mrb[0].mxu0 %v343
        %v1449 = vpop.f32.mrb[0].mxu0
        %v1450 = vadd.f32 %v510, %v1449
        %v1451 = vpop.f32.mrb[0].mxu0
        %v1452 = vadd.f32 %v514, %v1451
        %v1453 = vpop.f32.mrb[0].mxu0
        %v1454 = vadd.f32 %v510, %v1453
        %v1455 = vpop.f32.mrb[0].mxu0
        %v1456 = vadd.f32 %v514, %v1455
        %1457 = vmatprep.mubr.bf16.mxu0 %v348
        %1458 = vmatmul.mubr.bf16.gmra.mrb[0].mxu0 %v347
        %v1459 = vpop.f32.mrb[0].mxu0
        %v1460 = vadd.f32 %v510, %v1459
        %v1461 = vpop.f32.mrb[0].mxu0
        %v1462 = vadd.f32 %v514, %v1461
        %v1463 = vpop.f32.mrb[0].mxu0
        %v1464 = vadd.f32 %v510, %v1463
        %v1465 = vpop.f32.mrb[0].mxu0
        %v1466 = vadd.f32 %v514, %v1465
        %1467 = vmatprep.mubr.bf16.mxu0 %v352
        %1468 = vmatmul.mubr.bf16.gmra.mrb[0].mxu0 %v351
        %v1469 = vpop.f32.mrb[0].mxu0
        %v1470 = vadd.f32 %v510, %v1469
        %v1471 = vpop.f32.mrb[0].mxu0
        %v1472 = vadd.f32 %v514, %v1471
        %v1473 = vpop.f32.mrb[0].mxu0
        %v1474 = vadd.f32 %v510, %v1473
        %v1475 = vpop.f32.mrb[0].mxu0
        %v1476 = vadd.f32 %v514, %v1475
        %1477 = vmatprep.mubr.bf16.mxu0 %v356
        %1478 = vmatmul.mubr.bf16.gmra.mrb[0].mxu0 %v355
        %v1479 = vpop.f32.mrb[0].mxu0
        %v1480 = vadd.f32 %v510, %v1479
        %v1481 = vpop.f32.mrb[0].mxu0
        %v1482 = vadd.f32 %v514, %v1481
        %v1483 = vpop.f32.mrb[0].mxu0
        %v1484 = vadd.f32 %v510, %v1483
        %v1485 = vpop.f32.mrb[0].mxu0
        %v1486 = vadd.f32 %v514, %v1485
        %1487 = vmatprep.mubr.bf16.mxu0 %v360
        %1488 = vmatmul.mubr.bf16.gmra.mrb[0].mxu0 %v359
        %v1489 = vpop.f32.mrb[0].mxu0
        %v1490 = vadd.f32 %v510, %v1489
        %v1491 = vpop.f32.mrb[0].mxu0
        %v1492 = vadd.f32 %v514, %v1491
        %v1493 = vpop.f32.mrb[0].mxu0
        %v1494 = vadd.f32 %v510, %v1493
        %v1495 = vpop.f32.mrb[0].mxu0
        %v1496 = vadd.f32 %v514, %v1495
        %1497 = vdwg.mxu0
        %1498 = vmatprep.subr.bf16.mxu0 %v970
        %1499 = vmatpush1.bf16.msra.mxu0 %v969
        %1500 = vmatprep.subr.bf16.mxu0 %v974
        %1501 = vmatpush1.bf16.msra.mxu0 %v973
        %1502 = vmatprep.subr.bf16.mxu0 %v978
        %1503 = vmatpush1.bf16.msra.mxu0 %v977
        %1504 = vmatprep.subr.bf16.mxu0 %v982
        %1505 = vmatpush1.bf16.msra.mxu0 %v981
        %1506 = vmatprep.subr.bf16.mxu0 %v986
        %1507 = vmatpush1.bf16.msra.mxu0 %v985
        %1508 = vmatprep.subr.bf16.mxu0 %v990
        %1509 = vmatpush1.bf16.msra.mxu0 %v989
        %1510 = vmatprep.subr.bf16.mxu0 %v994
        %1511 = vmatpush1.bf16.msra.mxu0 %v993
        %1512 = vmatprep.subr.bf16.mxu0 %v998
        %1513 = vmatpush1.bf16.msra.mxu0 %v997
        %1514 = vmatprep.subr.bf16.mxu0 %v1002
        %1515 = vmatpush1.bf16.msra.mxu0 %v1001
        %1516 = vmatprep.subr.bf16.mxu0 %v1006
        %1517 = vmatpush1.bf16.msra.mxu0 %v1005
        %1518 = vmatprep.subr.bf16.mxu0 %v1010
        %1519 = vmatpush1.bf16.msra.mxu0 %v1009
        %1520 = vmatprep.subr.bf16.mxu0 %v1014
        %1521 = vmatpush1.bf16.msra.mxu0 %v1013
        %1522 = vmatprep.subr.bf16.mxu0 %v1018
        %1523 = vmatpush1.bf16.msra.mxu0 %v1017
        %1524 = vmatprep.subr.bf16.mxu0 %v1022
        %1525 = vmatpush1.bf16.msra.mxu0 %v1021
        %1526 = vmatprep.subr.bf16.mxu0 %v1026
        %1527 = vmatpush1.bf16.msra.mxu0 %v1025
        %1528 = vmatprep.subr.bf16.mxu0 %v1030
        %1529 = vmatpush1.bf16.msra.mxu0 %v1029
        %1530 = vmatprep.mubr.bf16.mxu0 %v334
        %1531 = vmatmul.mubr.bf16.gmra.mrb[0].mxu0 %v333
        %v1532 = vpop.f32.mrb[0].mxu0
        %v1533 = vadd.f32 %v1420, %v1532
        %v1534 = vpop.f32.mrb[0].mxu0
        %v1535 = vadd.f32 %v1422, %v1534
        %v1536 = vpop.f32.mrb[0].mxu0
        %v1537 = vadd.f32 %v1424, %v1536
        %v1538 = vpop.f32.mrb[0].mxu0
        %v1539 = vadd.f32 %v1426, %v1538
        %1540 = vmatprep.mubr.bf16.mxu0 %v338
        %1541 = vmatmul.mubr.bf16.gmra.mrb[0].mxu0 %v337
        %v1542 = vpop.f32.mrb[0].mxu0
        %v1543 = vadd.f32 %v1430, %v1542
        %v1544 = vpop.f32.mrb[0].mxu0
        %v1545 = vadd.f32 %v1432, %v1544
        %v1546 = vpop.f32.mrb[0].mxu0
        %v1547 = vadd.f32 %v1434, %v1546
        %v1548 = vpop.f32.mrb[0].mxu0
        %v1549 = vadd.f32 %v1436, %v1548
        %1550 = vmatprep.mubr.bf16.mxu0 %v342
        %1551 = vmatmul.mubr.bf16.gmra.mrb[0].mxu0 %v341
        %v1552 = vpop.f32.mrb[0].mxu0
        %v1553 = vadd.f32 %v1440, %v1552
        %v1554 = vpop.f32.mrb[0].mxu0
        %v1555 = vadd.f32 %v1442, %v1554
        %v1556 = vpop.f32.mrb[0].mxu0
        %v1557 = vadd.f32 %v1444, %v1556
        %v1558 = vpop.f32.mrb[0].mxu0
        %v1559 = vadd.f32 %v1446, %v1558
        %1560 = vmatprep.mubr.bf16.mxu0 %v346
        %1561 = vmatmul.mubr.bf16.gmra.mrb[0].mxu0 %v345
        %v1562 = vpop.f32.mrb[0].mxu0
        %v1563 = vadd.f32 %v1450, %v1562
        %v1564 = vpop.f32.mrb[0].mxu0
        %v1565 = vadd.f32 %v1452, %v1564
        %v1566 = vpop.f32.mrb[0].mxu0
        %v1567 = vadd.f32 %v1454, %v1566
        %v1568 = vpop.f32.mrb[0].mxu0
        %v1569 = vadd.f32 %v1456, %v1568
        %1570 = vmatprep.mubr.bf16.mxu0 %v350
        %1571 = vmatmul.mubr.bf16.gmra.mrb[0].mxu0 %v349
        %v1572 = vpop.f32.mrb[0].mxu0
        %v1573 = vadd.f32 %v1460, %v1572
        %v1574 = vpop.f32.mrb[0].mxu0
        %v1575 = vadd.f32 %v1462, %v1574
        %v1576 = vpop.f32.mrb[0].mxu0
        %v1577 = vadd.f32 %v1464, %v1576
        %v1578 = vpop.f32.mrb[0].mxu0
        %v1579 = vadd.f32 %v1466, %v1578
        %1580 = vmatprep.mubr.bf16.mxu0 %v354
        %1581 = vmatmul.mubr.bf16.gmra.mrb[0].mxu0 %v353
        %v1582 = vpop.f32.mrb[0].mxu0
        %v1583 = vadd.f32 %v1470, %v1582
        %v1584 = vpop.f32.mrb[0].mxu0
        %v1585 = vadd.f32 %v1472, %v1584
        %v1586 = vpop.f32.mrb[0].mxu0
        %v1587 = vadd.f32 %v1474, %v1586
        %v1588 = vpop.f32.mrb[0].mxu0
        %v1589 = vadd.f32 %v1476, %v1588
        %1590 = vmatprep.mubr.bf16.mxu0 %v358
        %1591 = vmatmul.mubr.bf16.gmra.mrb[0].mxu0 %v357
        %v1592 = vpop.f32.mrb[0].mxu0
        %v1593 = vadd.f32 %v1480, %v1592
        %v1594 = vpop.f32.mrb[0].mxu0
        %v1595 = vadd.f32 %v1482, %v1594
        %v1596 = vpop.f32.mrb[0].mxu0
        %v1597 = vadd.f32 %v1484, %v1596
        %v1598 = vpop.f32.mrb[0].mxu0
        %v1599 = vadd.f32 %v1486, %v1598
        %1600 = vmatprep.mubr.bf16.mxu0 %v362
        %1601 = vmatmul.mubr.bf16.gmra.mrb[0].mxu0 %v361
        %v1602 = vpop.f32.mrb[0].mxu0
        %v1603 = vadd.f32 %v1490, %v1602
        %v1604 = vpop.f32.mrb[0].mxu0
        %v1605 = vadd.f32 %v1492, %v1604
        %v1606 = vpop.f32.mrb[0].mxu0
        %v1607 = vadd.f32 %v1494, %v1606
        %v1608 = vpop.f32.mrb[0].mxu0
        %v1609 = vadd.f32 %v1496, %v1608
        %1610 = vdwg.mxu0
        %1627 = vrot.lane.b32.xlu0 %v1307, 64
        %v1628 = vpop.permute.xlu0 %1627
        %1629 = vrot.lane.b32.xlu0 %v1311, 64
        %v1630 = vpop.permute.xlu0 %1629
        %1631 = vrot.lane.b32.xlu0 %v1317, 64
        %v1632 = vpop.permute.xlu0 %1631
        %1633 = vrot.lane.b32.xlu0 %v1321, 64
        %v1634 = vpop.permute.xlu0 %1633
        %1635 = vrot.lane.b32.xlu0 %v1327, 64
        %v1636 = vpop.permute.xlu0 %1635
        %1637 = vrot.lane.b32.xlu0 %v1331, 64
        %v1638 = vpop.permute.xlu0 %1637
        %1639 = vrot.lane.b32.xlu0 %v1337, 64
        %v1640 = vpop.permute.xlu0 %1639
        %1641 = vrot.lane.b32.xlu0 %v1341, 64
        %v1642 = vpop.permute.xlu0 %1641
        %1643 = vrot.lane.b32.xlu0 %v1347, 64
        %v1644 = vpop.permute.xlu0 %1643
        %1645 = vrot.lane.b32.xlu0 %v1351, 64
        %v1646 = vpop.permute.xlu0 %1645
        %1647 = vrot.lane.b32.xlu0 %v1357, 64
        %v1648 = vpop.permute.xlu0 %1647
        %1649 = vrot.lane.b32.xlu0 %v1361, 64
        %v1650 = vpop.permute.xlu0 %1649
        %1651 = vrot.lane.b32.xlu0 %v1367, 64
        %v1652 = vpop.permute.xlu0 %1651
        %1653 = vrot.lane.b32.xlu0 %v1371, 64
        %v1654 = vpop.permute.xlu0 %1653
        %1655 = vrot.lane.b32.xlu0 %v1377, 64
        %v1656 = vpop.permute.xlu0 %1655
        %1657 = vrot.lane.b32.xlu0 %v1381, 64
        %v1658 = vpop.permute.xlu0 %1657
        %1691 = vrot.lane.b32.xlu0 %v1309, 64
        %v1692 = vpop.permute.xlu0 %1691
        %1693 = vrot.lane.b32.xlu0 %v1313, 64
        %v1694 = vpop.permute.xlu0 %1693
        %1695 = vrot.lane.b32.xlu0 %v1319, 64
        %v1696 = vpop.permute.xlu0 %1695
        %1697 = vrot.lane.b32.xlu0 %v1323, 64
        %v1698 = vpop.permute.xlu0 %1697
        %1699 = vrot.lane.b32.xlu0 %v1329, 64
        %v1700 = vpop.permute.xlu0 %1699
        %1701 = vrot.lane.b32.xlu0 %v1333, 64
        %v1702 = vpop.permute.xlu0 %1701
        %1703 = vrot.lane.b32.xlu0 %v1339, 64
        %v1704 = vpop.permute.xlu0 %1703
        %1705 = vrot.lane.b32.xlu0 %v1343, 64
        %v1706 = vpop.permute.xlu0 %1705
        %1707 = vrot.lane.b32.xlu0 %v1349, 64
        %v1708 = vpop.permute.xlu0 %1707
        %1709 = vrot.lane.b32.xlu0 %v1353, 64
        %v1710 = vpop.permute.xlu0 %1709
        %1711 = vrot.lane.b32.xlu0 %v1359, 64
        %v1712 = vpop.permute.xlu0 %1711
        %1713 = vrot.lane.b32.xlu0 %v1363, 64
        %v1714 = vpop.permute.xlu0 %1713
        %1715 = vrot.lane.b32.xlu0 %v1369, 64
        %v1716 = vpop.permute.xlu0 %1715
        %1717 = vrot.lane.b32.xlu0 %v1373, 64
        %v1718 = vpop.permute.xlu0 %1717
        %1719 = vrot.lane.b32.xlu0 %v1379, 64
        %v1720 = vpop.permute.xlu0 %1719
        %1721 = vrot.lane.b32.xlu0 %v1383, 64
        %v1722 = vpop.permute.xlu0 %1721
        %1755 = vrot.lane.b32.xlu0 %v1533, 64
        %v1756 = vpop.permute.xlu0 %1755
        %1757 = vrot.lane.b32.xlu0 %v1537, 64
        %v1758 = vpop.permute.xlu0 %1757
        %1759 = vrot.lane.b32.xlu0 %v1543, 64
        %v1760 = vpop.permute.xlu0 %1759
        %1761 = vrot.lane.b32.xlu0 %v1547, 64
        %v1762 = vpop.permute.xlu0 %1761
        %1763 = vrot.lane.b32.xlu0 %v1553, 64
        %v1764 = vpop.permute.xlu0 %1763
        %1765 = vrot.lane.b32.xlu0 %v1557, 64
        %v1766 = vpop.permute.xlu0 %1765
        %1767 = vrot.lane.b32.xlu0 %v1563, 64
        %v1768 = vpop.permute.xlu0 %1767
        %1769 = vrot.lane.b32.xlu0 %v1567, 64
        %v1770 = vpop.permute.xlu0 %1769
        %1771 = vrot.lane.b32.xlu0 %v1573, 64
        %v1772 = vpop.permute.xlu0 %1771
        %1773 = vrot.lane.b32.xlu0 %v1577, 64
        %v1774 = vpop.permute.xlu0 %1773
        %1775 = vrot.lane.b32.xlu0 %v1583, 64
        %v1776 = vpop.permute.xlu0 %1775
        %1777 = vrot.lane.b32.xlu0 %v1587, 64
        %v1778 = vpop.permute.xlu0 %1777
        %1779 = vrot.lane.b32.xlu0 %v1593, 64
        %v1780 = vpop.permute.xlu0 %1779
        %1781 = vrot.lane.b32.xlu0 %v1597, 64
        %v1782 = vpop.permute.xlu0 %1781
        %1783 = vrot.lane.b32.xlu0 %v1603, 64
        %v1784 = vpop.permute.xlu0 %1783
        %1785 = vrot.lane.b32.xlu0 %v1607, 64
        %v1786 = vpop.permute.xlu0 %1785
        %1819 = vrot.lane.b32.xlu0 %v1535, 64
        %v1820 = vpop.permute.xlu0 %1819
        %1821 = vrot.lane.b32.xlu0 %v1539, 64
        %v1822 = vpop.permute.xlu0 %1821
        %1823 = vrot.lane.b32.xlu0 %v1545, 64
        %v1824 = vpop.permute.xlu0 %1823
        %1825 = vrot.lane.b32.xlu0 %v1549, 64
        %v1826 = vpop.permute.xlu0 %1825
        %1827 = vrot.lane.b32.xlu0 %v1555, 64
        %v1828 = vpop.permute.xlu0 %1827
        %1829 = vrot.lane.b32.xlu0 %v1559, 64
        %v1830 = vpop.permute.xlu0 %1829
        %1831 = vrot.lane.b32.xlu0 %v1565, 64
        %v1832 = vpop.permute.xlu0 %1831
        %1833 = vrot.lane.b32.xlu0 %v1569, 64
        %v1834 = vpop.permute.xlu0 %1833
        %1835 = vrot.lane.b32.xlu0 %v1575, 64
        %v1836 = vpop.permute.xlu0 %1835
        %1837 = vrot.lane.b32.xlu0 %v1579, 64
        %v1838 = vpop.permute.xlu0 %1837
        %1839 = vrot.lane.b32.xlu0 %v1585, 64
        %v1840 = vpop.permute.xlu0 %1839
        %1841 = vrot.lane.b32.xlu0 %v1589, 64
        %v1842 = vpop.permute.xlu0 %1841
        %1843 = vrot.lane.b32.xlu0 %v1595, 64
        %v1844 = vpop.permute.xlu0 %1843
        %1845 = vrot.lane.b32.xlu0 %v1599, 64
        %v1846 = vpop.permute.xlu0 %1845
        %1847 = vrot.lane.b32.xlu0 %v1605, 64
        %v1848 = vpop.permute.xlu0 %1847
        %1849 = vrot.lane.b32.xlu0 %v1609, 64
        %v1850 = vpop.permute.xlu0 %1849
        %v1867 = vcombine.low %v1307, %v1309
        %v1868 = vcombine.high %v1307, %v1309
        %v1870 = vunpack.c.l.s4 1983009808
        %v1871 = vunpack.c.0.s8 %v1870
        %v1872 = vlaneseq
        %v1873 = vshrl.u32 %v1872, 7
        %v1874 = vsub.s32 %v1871, %v1873
        %v1875 = vrot.slane %v1867, %v1874
        %v1877 = vunpack.c.l.s4 1983009808
        %v1878 = vunpack.c.0.s8 %v1877
        %v1879 = vlaneseq
        %v1880 = vshrl.u32 %v1879, 7
        %v1881 = vsub.s32 %v1878, %v1880
        %v1882 = vrot.slane %v1868, %v1881
        %v1883 = vcombine.low %v1628, %v1692
        %v1884 = vcombine.high %v1628, %v1692
        %v1886 = vunpack.c.l.s4 1983009808
        %v1887 = vunpack.c.0.s8 %v1886
        %v1888 = vlaneseq
        %v1889 = vshrl.u32 %v1888, 7
        %v1890 = vsub.s32 %v1887, %v1889
        %v1891 = vrot.slane %v1883, %v1890
        %v1893 = vunpack.c.l.s4 1983009808
        %v1894 = vunpack.c.0.s8 %v1893
        %v1895 = vlaneseq
        %v1896 = vshrl.u32 %v1895, 7
        %v1897 = vsub.s32 %v1894, %v1896
        %v1898 = vrot.slane %v1884, %v1897
        %v1899 = vcombine.low %v1533, %v1535
        %v1900 = vcombine.high %v1533, %v1535
        %v1902 = vunpack.c.l.s4 1983009808
        %v1903 = vunpack.c.0.s8 %v1902
        %v1904 = vlaneseq
        %v1905 = vshrl.u32 %v1904, 7
        %v1906 = vsub.s32 %v1903, %v1905
        %v1907 = vrot.slane %v1899, %v1906
        %v1909 = vunpack.c.l.s4 1983009808
        %v1910 = vunpack.c.0.s8 %v1909
        %v1911 = vlaneseq
        %v1912 = vshrl.u32 %v1911, 7
        %v1913 = vsub.s32 %v1910, %v1912
        %v1914 = vrot.slane %v1900, %v1913
        %v1915 = vcombine.low %v1756, %v1820
        %v1916 = vcombine.high %v1756, %v1820
        %v1918 = vunpack.c.l.s4 1983009808
        %v1919 = vunpack.c.0.s8 %v1918
        %v1920 = vlaneseq
        %v1921 = vshrl.u32 %v1920, 7
        %v1922 = vsub.s32 %v1919, %v1921
        %v1923 = vrot.slane %v1915, %v1922
        %v1925 = vunpack.c.l.s4 1983009808
        %v1926 = vunpack.c.0.s8 %v1925
        %v1927 = vlaneseq
        %v1928 = vshrl.u32 %v1927, 7
        %v1929 = vsub.s32 %v1926, %v1928
        %v1930 = vrot.slane %v1916, %v1929
        %v1931 = vcombine.low %v1875, %v1891
        %v1932 = vcombine.high %v1875, %v1891
        %v1934 = vunpack.c.l.s4 1934713408
        %v1935 = vunpack.c.0.s8 %v1934
        %v1936 = vlaneseq
        %v1937 = vshrl.u32 %v1936, 7
        %v1938 = vsub.s32 %v1935, %v1937
        %v1939 = vrot.slane %v1931, %v1938
        %v1941 = vunpack.c.l.s4 1934713408
        %v1942 = vunpack.c.0.s8 %v1941
        %v1943 = vlaneseq
        %v1944 = vshrl.u32 %v1943, 7
        %v1945 = vsub.s32 %v1942, %v1944
        %v1946 = vrot.slane %v1932, %v1945
        %v1947 = vcombine.low %v1882, %v1898
        %v1948 = vcombine.high %v1882, %v1898
        %v1950 = vunpack.c.l.s4 1934713408
        %v1951 = vunpack.c.0.s8 %v1950
        %v1952 = vlaneseq
        %v1953 = vshrl.u32 %v1952, 7
        %v1954 = vsub.s32 %v1951, %v1953
        %v1955 = vrot.slane %v1947, %v1954
        %v1957 = vunpack.c.l.s4 1934713408
        %v1958 = vunpack.c.0.s8 %v1957
        %v1959 = vlaneseq
        %v1960 = vshrl.u32 %v1959, 7
        %v1961 = vsub.s32 %v1958, %v1960
        %v1962 = vrot.slane %v1948, %v1961
        %v1963 = vcombine.low %v1907, %v1923
        %v1964 = vcombine.high %v1907, %v1923
        %v1966 = vunpack.c.l.s4 1934713408
        %v1967 = vunpack.c.0.s8 %v1966
        %v1968 = vlaneseq
        %v1969 = vshrl.u32 %v1968, 7
        %v1970 = vsub.s32 %v1967, %v1969
        %v1971 = vrot.slane %v1963, %v1970
        %v1973 = vunpack.c.l.s4 1934713408
        %v1974 = vunpack.c.0.s8 %v1973
        %v1975 = vlaneseq
        %v1976 = vshrl.u32 %v1975, 7
        %v1977 = vsub.s32 %v1974, %v1976
        %v1978 = vrot.slane %v1964, %v1977
        %v1979 = vcombine.low %v1914, %v1930
        %v1980 = vcombine.high %v1914, %v1930
        %v1982 = vunpack.c.l.s4 1934713408
        %v1983 = vunpack.c.0.s8 %v1982
        %v1984 = vlaneseq
        %v1985 = vshrl.u32 %v1984, 7
        %v1986 = vsub.s32 %v1983, %v1985
        %v1987 = vrot.slane %v1979, %v1986
        %v1989 = vunpack.c.l.s4 1934713408
        %v1990 = vunpack.c.0.s8 %v1989
        %v1991 = vlaneseq
        %v1992 = vshrl.u32 %v1991, 7
        %v1993 = vsub.s32 %v1990, %v1992
        %v1994 = vrot.slane %v1980, %v1993
        %v1995 = vcombine.low %v1939, %v1971
        %v1996 = vcombine.high %v1939, %v1971
        %v1997 = vcombine.low %v1946, %v1978
        %v1998 = vcombine.high %v1946, %v1978
        %v1999 = vcombine.low %v1955, %v1987
        %v2000 = vcombine.high %v1955, %v1987
        %v2001 = vcombine.low %v1962, %v1994
        %v2002 = vcombine.high %v1962, %v1994
        %v2003 = vcombine.low %v1311, %v1313
        %v2004 = vcombine.high %v1311, %v1313
        %v2006 = vunpack.c.l.s4 1983009808
        %v2007 = vunpack.c.0.s8 %v2006
        %v2008 = vlaneseq
        %v2009 = vshrl.u32 %v2008, 7
        %v2010 = vsub.s32 %v2007, %v2009
        %v2011 = vrot.slane %v2003, %v2010
        %v2013 = vunpack.c.l.s4 1983009808
        %v2014 = vunpack.c.0.s8 %v2013
        %v2015 = vlaneseq
        %v2016 = vshrl.u32 %v2015, 7
        %v2017 = vsub.s32 %v2014, %v2016
        %v2018 = vrot.slane %v2004, %v2017
        %v2019 = vcombine.low %v1630, %v1694
        %v2020 = vcombine.high %v1630, %v1694
        %v2022 = vunpack.c.l.s4 1983009808
        %v2023 = vunpack.c.0.s8 %v2022
        %v2024 = vlaneseq
        %v2025 = vshrl.u32 %v2024, 7
        %v2026 = vsub.s32 %v2023, %v2025
        %v2027 = vrot.slane %v2019, %v2026
        %v2029 = vunpack.c.l.s4 1983009808
        %v2030 = vunpack.c.0.s8 %v2029
        %v2031 = vlaneseq
        %v2032 = vshrl.u32 %v2031, 7
        %v2033 = vsub.s32 %v2030, %v2032
        %v2034 = vrot.slane %v2020, %v2033
        %v2035 = vcombine.low %v1537, %v1539
        %v2036 = vcombine.high %v1537, %v1539
        %v2038 = vunpack.c.l.s4 1983009808
        %v2039 = vunpack.c.0.s8 %v2038
        %v2040 = vlaneseq
        %v2041 = vshrl.u32 %v2040, 7
        %v2042 = vsub.s32 %v2039, %v2041
        %v2043 = vrot.slane %v2035, %v2042
        %v2045 = vunpack.c.l.s4 1983009808
        %v2046 = vunpack.c.0.s8 %v2045
        %v2047 = vlaneseq
        %v2048 = vshrl.u32 %v2047, 7
        %v2049 = vsub.s32 %v2046, %v2048
        %v2050 = vrot.slane %v2036, %v2049
        %v2051 = vcombine.low %v1758, %v1822
        %v2052 = vcombine.high %v1758, %v1822
        %v2054 = vunpack.c.l.s4 1983009808
        %v2055 = vunpack.c.0.s8 %v2054
        %v2056 = vlaneseq
        %v2057 = vshrl.u32 %v2056, 7
        %v2058 = vsub.s32 %v2055, %v2057
        %v2059 = vrot.slane %v2051, %v2058
        %v2061 = vunpack.c.l.s4 1983009808
        %v2062 = vunpack.c.0.s8 %v2061
        %v2063 = vlaneseq
        %v2064 = vshrl.u32 %v2063, 7
        %v2065 = vsub.s32 %v2062, %v2064
        %v2066 = vrot.slane %v2052, %v2065
        %v2067 = vcombine.low %v2011, %v2027
        %v2068 = vcombine.high %v2011, %v2027
        %v2070 = vunpack.c.l.s4 1934713408
        %v2071 = vunpack.c.0.s8 %v2070
        %v2072 = vlaneseq
        %v2073 = vshrl.u32 %v2072, 7
        %v2074 = vsub.s32 %v2071, %v2073
        %v2075 = vrot.slane %v2067, %v2074
        %v2077 = vunpack.c.l.s4 1934713408
        %v2078 = vunpack.c.0.s8 %v2077
        %v2079 = vlaneseq
        %v2080 = vshrl.u32 %v2079, 7
        %v2081 = vsub.s32 %v2078, %v2080
        %v2082 = vrot.slane %v2068, %v2081
        %v2083 = vcombine.low %v2018, %v2034
        %v2084 = vcombine.high %v2018, %v2034
        %v2086 = vunpack.c.l.s4 1934713408
        %v2087 = vunpack.c.0.s8 %v2086
        %v2088 = vlaneseq
        %v2089 = vshrl.u32 %v2088, 7
        %v2090 = vsub.s32 %v2087, %v2089
        %v2091 = vrot.slane %v2083, %v2090
        %v2093 = vunpack.c.l.s4 1934713408
        %v2094 = vunpack.c.0.s8 %v2093
        %v2095 = vlaneseq
        %v2096 = vshrl.u32 %v2095, 7
        %v2097 = vsub.s32 %v2094, %v2096
        %v2098 = vrot.slane %v2084, %v2097
        %v2099 = vcombine.low %v2043, %v2059
        %v2100 = vcombine.high %v2043, %v2059
        %v2102 = vunpack.c.l.s4 1934713408
        %v2103 = vunpack.c.0.s8 %v2102
        %v2104 = vlaneseq
        %v2105 = vshrl.u32 %v2104, 7
        %v2106 = vsub.s32 %v2103, %v2105
        %v2107 = vrot.slane %v2099, %v2106
        %v2109 = vunpack.c.l.s4 1934713408
        %v2110 = vunpack.c.0.s8 %v2109
        %v2111 = vlaneseq
        %v2112 = vshrl.u32 %v2111, 7
        %v2113 = vsub.s32 %v2110, %v2112
        %v2114 = vrot.slane %v2100, %v2113
        %v2115 = vcombine.low %v2050, %v2066
        %v2116 = vcombine.high %v2050, %v2066
        %v2118 = vunpack.c.l.s4 1934713408
        %v2119 = vunpack.c.0.s8 %v2118
        %v2120 = vlaneseq
        %v2121 = vshrl.u32 %v2120, 7
        %v2122 = vsub.s32 %v2119, %v2121
        %v2123 = vrot.slane %v2115, %v2122
        %v2125 = vunpack.c.l.s4 1934713408
        %v2126 = vunpack.c.0.s8 %v2125
        %v2127 = vlaneseq
        %v2128 = vshrl.u32 %v2127, 7
        %v2129 = vsub.s32 %v2126, %v2128
        %v2130 = vrot.slane %v2116, %v2129
        %v2131 = vcombine.low %v2075, %v2107
        %v2132 = vcombine.high %v2075, %v2107
        %v2133 = vcombine.low %v2082, %v2114
        %v2134 = vcombine.high %v2082, %v2114
        %v2135 = vcombine.low %v2091, %v2123
        %v2136 = vcombine.high %v2091, %v2123
        %v2137 = vcombine.low %v2098, %v2130
        %v2138 = vcombine.high %v2098, %v2130
        %v2139 = vcombine.low %v1317, %v1319
        %v2140 = vcombine.high %v1317, %v1319
        %v2142 = vunpack.c.l.s4 1983009808
        %v2143 = vunpack.c.0.s8 %v2142
        %v2144 = vlaneseq
        %v2145 = vshrl.u32 %v2144, 7
        %v2146 = vsub.s32 %v2143, %v2145
        %v2147 = vrot.slane %v2139, %v2146
        %v2149 = vunpack.c.l.s4 1983009808
        %v2150 = vunpack.c.0.s8 %v2149
        %v2151 = vlaneseq
        %v2152 = vshrl.u32 %v2151, 7
        %v2153 = vsub.s32 %v2150, %v2152
        %v2154 = vrot.slane %v2140, %v2153
        %v2155 = vcombine.low %v1632, %v1696
        %v2156 = vcombine.high %v1632, %v1696
        %v2158 = vunpack.c.l.s4 1983009808
        %v2159 = vunpack.c.0.s8 %v2158
        %v2160 = vlaneseq
        %v2161 = vshrl.u32 %v2160, 7
        %v2162 = vsub.s32 %v2159, %v2161
        %v2163 = vrot.slane %v2155, %v2162
        %v2165 = vunpack.c.l.s4 1983009808
        %v2166 = vunpack.c.0.s8 %v2165
        %v2167 = vlaneseq
        %v2168 = vshrl.u32 %v2167, 7
        %v2169 = vsub.s32 %v2166, %v2168
        %v2170 = vrot.slane %v2156, %v2169
        %v2171 = vcombine.low %v1543, %v1545
        %v2172 = vcombine.high %v1543, %v1545
        %v2174 = vunpack.c.l.s4 1983009808
        %v2175 = vunpack.c.0.s8 %v2174
        %v2176 = vlaneseq
        %v2177 = vshrl.u32 %v2176, 7
        %v2178 = vsub.s32 %v2175, %v2177
        %v2179 = vrot.slane %v2171, %v2178
        %v2181 = vunpack.c.l.s4 1983009808
        %v2182 = vunpack.c.0.s8 %v2181
        %v2183 = vlaneseq
        %v2184 = vshrl.u32 %v2183, 7
        %v2185 = vsub.s32 %v2182, %v2184
        %v2186 = vrot.slane %v2172, %v2185
        %v2187 = vcombine.low %v1760, %v1824
        %v2188 = vcombine.high %v1760, %v1824
        %v2190 = vunpack.c.l.s4 1983009808
        %v2191 = vunpack.c.0.s8 %v2190
        %v2192 = vlaneseq
        %v2193 = vshrl.u32 %v2192, 7
        %v2194 = vsub.s32 %v2191, %v2193
        %v2195 = vrot.slane %v2187, %v2194
        %v2197 = vunpack.c.l.s4 1983009808
        %v2198 = vunpack.c.0.s8 %v2197
        %v2199 = vlaneseq
        %v2200 = vshrl.u32 %v2199, 7
        %v2201 = vsub.s32 %v2198, %v2200
        %v2202 = vrot.slane %v2188, %v2201
        %v2203 = vcombine.low %v2147, %v2163
        %v2204 = vcombine.high %v2147, %v2163
        %v2206 = vunpack.c.l.s4 1934713408
        %v2207 = vunpack.c.0.s8 %v2206
        %v2208 = vlaneseq
        %v2209 = vshrl.u32 %v2208, 7
        %v2210 = vsub.s32 %v2207, %v2209
        %v2211 = vrot.slane %v2203, %v2210
        %v2213 = vunpack.c.l.s4 1934713408
        %v2214 = vunpack.c.0.s8 %v2213
        %v2215 = vlaneseq
        %v2216 = vshrl.u32 %v2215, 7
        %v2217 = vsub.s32 %v2214, %v2216
        %v2218 = vrot.slane %v2204, %v2217
        %v2219 = vcombine.low %v2154, %v2170
        %v2220 = vcombine.high %v2154, %v2170
        %v2222 = vunpack.c.l.s4 1934713408
        %v2223 = vunpack.c.0.s8 %v2222
        %v2224 = vlaneseq
        %v2225 = vshrl.u32 %v2224, 7
        %v2226 = vsub.s32 %v2223, %v2225
        %v2227 = vrot.slane %v2219, %v2226
        %v2229 = vunpack.c.l.s4 1934713408
        %v2230 = vunpack.c.0.s8 %v2229
        %v2231 = vlaneseq
        %v2232 = vshrl.u32 %v2231, 7
        %v2233 = vsub.s32 %v2230, %v2232
        %v2234 = vrot.slane %v2220, %v2233
        %v2235 = vcombine.low %v2179, %v2195
        %v2236 = vcombine.high %v2179, %v2195
        %v2238 = vunpack.c.l.s4 1934713408
        %v2239 = vunpack.c.0.s8 %v2238
        %v2240 = vlaneseq
        %v2241 = vshrl.u32 %v2240, 7
        %v2242 = vsub.s32 %v2239, %v2241
        %v2243 = vrot.slane %v2235, %v2242
        %v2245 = vunpack.c.l.s4 1934713408
        %v2246 = vunpack.c.0.s8 %v2245
        %v2247 = vlaneseq
        %v2248 = vshrl.u32 %v2247, 7
        %v2249 = vsub.s32 %v2246, %v2248
        %v2250 = vrot.slane %v2236, %v2249
        %v2251 = vcombine.low %v2186, %v2202
        %v2252 = vcombine.high %v2186, %v2202
        %v2254 = vunpack.c.l.s4 1934713408
        %v2255 = vunpack.c.0.s8 %v2254
        %v2256 = vlaneseq
        %v2257 = vshrl.u32 %v2256, 7
        %v2258 = vsub.s32 %v2255, %v2257
        %v2259 = vrot.slane %v2251, %v2258
        %v2261 = vunpack.c.l.s4 1934713408
        %v2262 = vunpack.c.0.s8 %v2261
        %v2263 = vlaneseq
        %v2264 = vshrl.u32 %v2263, 7
        %v2265 = vsub.s32 %v2262, %v2264
        %v2266 = vrot.slane %v2252, %v2265
        %v2267 = vcombine.low %v2211, %v2243
        %v2268 = vcombine.high %v2211, %v2243
        %v2269 = vcombine.low %v2218, %v2250
        %v2270 = vcombine.high %v2218, %v2250
        %v2271 = vcombine.low %v2227, %v2259
        %v2272 = vcombine.high %v2227, %v2259
        %v2273 = vcombine.low %v2234, %v2266
        %v2274 = vcombine.high %v2234, %v2266
        %v2275 = vcombine.low %v1321, %v1323
        %v2276 = vcombine.high %v1321, %v1323
        %v2278 = vunpack.c.l.s4 1983009808
        %v2279 = vunpack.c.0.s8 %v2278
        %v2280 = vlaneseq
        %v2281 = vshrl.u32 %v2280, 7
        %v2282 = vsub.s32 %v2279, %v2281
        %v2283 = vrot.slane %v2275, %v2282
        %v2285 = vunpack.c.l.s4 1983009808
        %v2286 = vunpack.c.0.s8 %v2285
        %v2287 = vlaneseq
        %v2288 = vshrl.u32 %v2287, 7
        %v2289 = vsub.s32 %v2286, %v2288
        %v2290 = vrot.slane %v2276, %v2289
        %v2291 = vcombine.low %v1634, %v1698
        %v2292 = vcombine.high %v1634, %v1698
        %v2294 = vunpack.c.l.s4 1983009808
        %v2295 = vunpack.c.0.s8 %v2294
        %v2296 = vlaneseq
        %v2297 = vshrl.u32 %v2296, 7
        %v2298 = vsub.s32 %v2295, %v2297
        %v2299 = vrot.slane %v2291, %v2298
        %v2301 = vunpack.c.l.s4 1983009808
        %v2302 = vunpack.c.0.s8 %v2301
        %v2303 = vlaneseq
        %v2304 = vshrl.u32 %v2303, 7
        %v2305 = vsub.s32 %v2302, %v2304
        %v2306 = vrot.slane %v2292, %v2305
        %v2307 = vcombine.low %v1547, %v1549
        %v2308 = vcombine.high %v1547, %v1549
        %v2310 = vunpack.c.l.s4 1983009808
        %v2311 = vunpack.c.0.s8 %v2310
        %v2312 = vlaneseq
        %v2313 = vshrl.u32 %v2312, 7
        %v2314 = vsub.s32 %v2311, %v2313
        %v2315 = vrot.slane %v2307, %v2314
        %v2317 = vunpack.c.l.s4 1983009808
        %v2318 = vunpack.c.0.s8 %v2317
        %v2319 = vlaneseq
        %v2320 = vshrl.u32 %v2319, 7
        %v2321 = vsub.s32 %v2318, %v2320
        %v2322 = vrot.slane %v2308, %v2321
        %v2323 = vcombine.low %v1762, %v1826
        %v2324 = vcombine.high %v1762, %v1826
        %v2326 = vunpack.c.l.s4 1983009808
        %v2327 = vunpack.c.0.s8 %v2326
        %v2328 = vlaneseq
        %v2329 = vshrl.u32 %v2328, 7
        %v2330 = vsub.s32 %v2327, %v2329
        %v2331 = vrot.slane %v2323, %v2330
        %v2333 = vunpack.c.l.s4 1983009808
        %v2334 = vunpack.c.0.s8 %v2333
        %v2335 = vlaneseq
        %v2336 = vshrl.u32 %v2335, 7
        %v2337 = vsub.s32 %v2334, %v2336
        %v2338 = vrot.slane %v2324, %v2337
        %v2339 = vcombine.low %v2283, %v2299
        %v2340 = vcombine.high %v2283, %v2299
        %v2342 = vunpack.c.l.s4 1934713408
        %v2343 = vunpack.c.0.s8 %v2342
        %v2344 = vlaneseq
        %v2345 = vshrl.u32 %v2344, 7
        %v2346 = vsub.s32 %v2343, %v2345
        %v2347 = vrot.slane %v2339, %v2346
        %v2349 = vunpack.c.l.s4 1934713408
        %v2350 = vunpack.c.0.s8 %v2349
        %v2351 = vlaneseq
        %v2352 = vshrl.u32 %v2351, 7
        %v2353 = vsub.s32 %v2350, %v2352
        %v2354 = vrot.slane %v2340, %v2353
        %v2355 = vcombine.low %v2290, %v2306
        %v2356 = vcombine.high %v2290, %v2306
        %v2358 = vunpack.c.l.s4 1934713408
        %v2359 = vunpack.c.0.s8 %v2358
        %v2360 = vlaneseq
        %v2361 = vshrl.u32 %v2360, 7
        %v2362 = vsub.s32 %v2359, %v2361
        %v2363 = vrot.slane %v2355, %v2362
        %v2365 = vunpack.c.l.s4 1934713408
        %v2366 = vunpack.c.0.s8 %v2365
        %v2367 = vlaneseq
        %v2368 = vshrl.u32 %v2367, 7
        %v2369 = vsub.s32 %v2366, %v2368
        %v2370 = vrot.slane %v2356, %v2369
        %v2371 = vcombine.low %v2315, %v2331
        %v2372 = vcombine.high %v2315, %v2331
        %v2374 = vunpack.c.l.s4 1934713408
        %v2375 = vunpack.c.0.s8 %v2374
        %v2376 = vlaneseq
        %v2377 = vshrl.u32 %v2376, 7
        %v2378 = vsub.s32 %v2375, %v2377
        %v2379 = vrot.slane %v2371, %v2378
        %v2381 = vunpack.c.l.s4 1934713408
        %v2382 = vunpack.c.0.s8 %v2381
        %v2383 = vlaneseq
        %v2384 = vshrl.u32 %v2383, 7
        %v2385 = vsub.s32 %v2382, %v2384
        %v2386 = vrot.slane %v2372, %v2385
        %v2387 = vcombine.low %v2322, %v2338
        %v2388 = vcombine.high %v2322, %v2338
        %v2390 = vunpack.c.l.s4 1934713408
        %v2391 = vunpack.c.0.s8 %v2390
        %v2392 = vlaneseq
        %v2393 = vshrl.u32 %v2392, 7
        %v2394 = vsub.s32 %v2391, %v2393
        %v2395 = vrot.slane %v2387, %v2394
        %v2397 = vunpack.c.l.s4 1934713408
        %v2398 = vunpack.c.0.s8 %v2397
        %v2399 = vlaneseq
        %v2400 = vshrl.u32 %v2399, 7
        %v2401 = vsub.s32 %v2398, %v2400
        %v2402 = vrot.slane %v2388, %v2401
        %v2403 = vcombine.low %v2347, %v2379
        %v2404 = vcombine.high %v2347, %v2379
        %v2405 = vcombine.low %v2354, %v2386
        %v2406 = vcombine.high %v2354, %v2386
        %v2407 = vcombine.low %v2363, %v2395
        %v2408 = vcombine.high %v2363, %v2395
        %v2409 = vcombine.low %v2370, %v2402
        %v2410 = vcombine.high %v2370, %v2402
        %v2411 = vcombine.low %v1327, %v1329
        %v2412 = vcombine.high %v1327, %v1329
        %v2414 = vunpack.c.l.s4 1983009808
        %v2415 = vunpack.c.0.s8 %v2414
        %v2416 = vlaneseq
        %v2417 = vshrl.u32 %v2416, 7
        %v2418 = vsub.s32 %v2415, %v2417
        %v2419 = vrot.slane %v2411, %v2418
        %v2421 = vunpack.c.l.s4 1983009808
        %v2422 = vunpack.c.0.s8 %v2421
        %v2423 = vlaneseq
        %v2424 = vshrl.u32 %v2423, 7
        %v2425 = vsub.s32 %v2422, %v2424
        %v2426 = vrot.slane %v2412, %v2425
        %v2427 = vcombine.low %v1636, %v1700
        %v2428 = vcombine.high %v1636, %v1700
        %v2430 = vunpack.c.l.s4 1983009808
        %v2431 = vunpack.c.0.s8 %v2430
        %v2432 = vlaneseq
        %v2433 = vshrl.u32 %v2432, 7
        %v2434 = vsub.s32 %v2431, %v2433
        %v2435 = vrot.slane %v2427, %v2434
        %v2437 = vunpack.c.l.s4 1983009808
        %v2438 = vunpack.c.0.s8 %v2437
        %v2439 = vlaneseq
        %v2440 = vshrl.u32 %v2439, 7
        %v2441 = vsub.s32 %v2438, %v2440
        %v2442 = vrot.slane %v2428, %v2441
        %v2443 = vcombine.low %v1553, %v1555
        %v2444 = vcombine.high %v1553, %v1555
        %v2446 = vunpack.c.l.s4 1983009808
        %v2447 = vunpack.c.0.s8 %v2446
        %v2448 = vlaneseq
        %v2449 = vshrl.u32 %v2448, 7
        %v2450 = vsub.s32 %v2447, %v2449
        %v2451 = vrot.slane %v2443, %v2450
        %v2453 = vunpack.c.l.s4 1983009808
        %v2454 = vunpack.c.0.s8 %v2453
        %v2455 = vlaneseq
        %v2456 = vshrl.u32 %v2455, 7
        %v2457 = vsub.s32 %v2454, %v2456
        %v2458 = vrot.slane %v2444, %v2457
        %v2459 = vcombine.low %v1764, %v1828
        %v2460 = vcombine.high %v1764, %v1828
        %v2462 = vunpack.c.l.s4 1983009808
        %v2463 = vunpack.c.0.s8 %v2462
        %v2464 = vlaneseq
        %v2465 = vshrl.u32 %v2464, 7
        %v2466 = vsub.s32 %v2463, %v2465
        %v2467 = vrot.slane %v2459, %v2466
        %v2469 = vunpack.c.l.s4 1983009808
        %v2470 = vunpack.c.0.s8 %v2469
        %v2471 = vlaneseq
        %v2472 = vshrl.u32 %v2471, 7
        %v2473 = vsub.s32 %v2470, %v2472
        %v2474 = vrot.slane %v2460, %v2473
        %v2475 = vcombine.low %v2419, %v2435
        %v2476 = vcombine.high %v2419, %v2435
        %v2478 = vunpack.c.l.s4 1934713408
        %v2479 = vunpack.c.0.s8 %v2478
        %v2480 = vlaneseq
        %v2481 = vshrl.u32 %v2480, 7
        %v2482 = vsub.s32 %v2479, %v2481
        %v2483 = vrot.slane %v2475, %v2482
        %v2485 = vunpack.c.l.s4 1934713408
        %v2486 = vunpack.c.0.s8 %v2485
        %v2487 = vlaneseq
        %v2488 = vshrl.u32 %v2487, 7
        %v2489 = vsub.s32 %v2486, %v2488
        %v2490 = vrot.slane %v2476, %v2489
        %v2491 = vcombine.low %v2426, %v2442
        %v2492 = vcombine.high %v2426, %v2442
        %v2494 = vunpack.c.l.s4 1934713408
        %v2495 = vunpack.c.0.s8 %v2494
        %v2496 = vlaneseq
        %v2497 = vshrl.u32 %v2496, 7
        %v2498 = vsub.s32 %v2495, %v2497
        %v2499 = vrot.slane %v2491, %v2498
        %v2501 = vunpack.c.l.s4 1934713408
        %v2502 = vunpack.c.0.s8 %v2501
        %v2503 = vlaneseq
        %v2504 = vshrl.u32 %v2503, 7
        %v2505 = vsub.s32 %v2502, %v2504
        %v2506 = vrot.slane %v2492, %v2505
        %v2507 = vcombine.low %v2451, %v2467
        %v2508 = vcombine.high %v2451, %v2467
        %v2510 = vunpack.c.l.s4 1934713408
        %v2511 = vunpack.c.0.s8 %v2510
        %v2512 = vlaneseq
        %v2513 = vshrl.u32 %v2512, 7
        %v2514 = vsub.s32 %v2511, %v2513
        %v2515 = vrot.slane %v2507, %v2514
        %v2517 = vunpack.c.l.s4 1934713408
        %v2518 = vunpack.c.0.s8 %v2517
        %v2519 = vlaneseq
        %v2520 = vshrl.u32 %v2519, 7
        %v2521 = vsub.s32 %v2518, %v2520
        %v2522 = vrot.slane %v2508, %v2521
        %v2523 = vcombine.low %v2458, %v2474
        %v2524 = vcombine.high %v2458, %v2474
        %v2526 = vunpack.c.l.s4 1934713408
        %v2527 = vunpack.c.0.s8 %v2526
        %v2528 = vlaneseq
        %v2529 = vshrl.u32 %v2528, 7
        %v2530 = vsub.s32 %v2527, %v2529
        %v2531 = vrot.slane %v2523, %v2530
        %v2533 = vunpack.c.l.s4 1934713408
        %v2534 = vunpack.c.0.s8 %v2533
        %v2535 = vlaneseq
        %v2536 = vshrl.u32 %v2535, 7
        %v2537 = vsub.s32 %v2534, %v2536
        %v2538 = vrot.slane %v2524, %v2537
        %v2539 = vcombine.low %v2483, %v2515
        %v2540 = vcombine.high %v2483, %v2515
        %v2541 = vcombine.low %v2490, %v2522
        %v2542 = vcombine.high %v2490, %v2522
        %v2543 = vcombine.low %v2499, %v2531
        %v2544 = vcombine.high %v2499, %v2531
        %v2545 = vcombine.low %v2506, %v2538
        %v2546 = vcombine.high %v2506, %v2538
        %v2547 = vcombine.low %v1331, %v1333
        %v2548 = vcombine.high %v1331, %v1333
        %v2550 = vunpack.c.l.s4 1983009808
        %v2551 = vunpack.c.0.s8 %v2550
        %v2552 = vlaneseq
        %v2553 = vshrl.u32 %v2552, 7
        %v2554 = vsub.s32 %v2551, %v2553
        %v2555 = vrot.slane %v2547, %v2554
        %v2557 = vunpack.c.l.s4 1983009808
        %v2558 = vunpack.c.0.s8 %v2557
        %v2559 = vlaneseq
        %v2560 = vshrl.u32 %v2559, 7
        %v2561 = vsub.s32 %v2558, %v2560
        %v2562 = vrot.slane %v2548, %v2561
        %v2563 = vcombine.low %v1638, %v1702
        %v2564 = vcombine.high %v1638, %v1702
        %v2566 = vunpack.c.l.s4 1983009808
        %v2567 = vunpack.c.0.s8 %v2566
        %v2568 = vlaneseq
        %v2569 = vshrl.u32 %v2568, 7
        %v2570 = vsub.s32 %v2567, %v2569
        %v2571 = vrot.slane %v2563, %v2570
        %v2573 = vunpack.c.l.s4 1983009808
        %v2574 = vunpack.c.0.s8 %v2573
        %v2575 = vlaneseq
        %v2576 = vshrl.u32 %v2575, 7
        %v2577 = vsub.s32 %v2574, %v2576
        %v2578 = vrot.slane %v2564, %v2577
        %v2579 = vcombine.low %v1557, %v1559
        %v2580 = vcombine.high %v1557, %v1559
        %v2582 = vunpack.c.l.s4 1983009808
        %v2583 = vunpack.c.0.s8 %v2582
        %v2584 = vlaneseq
        %v2585 = vshrl.u32 %v2584, 7
        %v2586 = vsub.s32 %v2583, %v2585
        %v2587 = vrot.slane %v2579, %v2586
        %v2589 = vunpack.c.l.s4 1983009808
        %v2590 = vunpack.c.0.s8 %v2589
        %v2591 = vlaneseq
        %v2592 = vshrl.u32 %v2591, 7
        %v2593 = vsub.s32 %v2590, %v2592
        %v2594 = vrot.slane %v2580, %v2593
        %v2595 = vcombine.low %v1766, %v1830
        %v2596 = vcombine.high %v1766, %v1830
        %v2598 = vunpack.c.l.s4 1983009808
        %v2599 = vunpack.c.0.s8 %v2598
        %v2600 = vlaneseq
        %v2601 = vshrl.u32 %v2600, 7
        %v2602 = vsub.s32 %v2599, %v2601
        %v2603 = vrot.slane %v2595, %v2602
        %v2605 = vunpack.c.l.s4 1983009808
        %v2606 = vunpack.c.0.s8 %v2605
        %v2607 = vlaneseq
        %v2608 = vshrl.u32 %v2607, 7
        %v2609 = vsub.s32 %v2606, %v2608
        %v2610 = vrot.slane %v2596, %v2609
        %v2611 = vcombine.low %v2555, %v2571
        %v2612 = vcombine.high %v2555, %v2571
        %v2614 = vunpack.c.l.s4 1934713408
        %v2615 = vunpack.c.0.s8 %v2614
        %v2616 = vlaneseq
        %v2617 = vshrl.u32 %v2616, 7
        %v2618 = vsub.s32 %v2615, %v2617
        %v2619 = vrot.slane %v2611, %v2618
        %v2621 = vunpack.c.l.s4 1934713408
        %v2622 = vunpack.c.0.s8 %v2621
        %v2623 = vlaneseq
        %v2624 = vshrl.u32 %v2623, 7
        %v2625 = vsub.s32 %v2622, %v2624
        %v2626 = vrot.slane %v2612, %v2625
        %v2627 = vcombine.low %v2562, %v2578
        %v2628 = vcombine.high %v2562, %v2578
        %v2630 = vunpack.c.l.s4 1934713408
        %v2631 = vunpack.c.0.s8 %v2630
        %v2632 = vlaneseq
        %v2633 = vshrl.u32 %v2632, 7
        %v2634 = vsub.s32 %v2631, %v2633
        %v2635 = vrot.slane %v2627, %v2634
        %v2637 = vunpack.c.l.s4 1934713408
        %v2638 = vunpack.c.0.s8 %v2637
        %v2639 = vlaneseq
        %v2640 = vshrl.u32 %v2639, 7
        %v2641 = vsub.s32 %v2638, %v2640
        %v2642 = vrot.slane %v2628, %v2641
        %v2643 = vcombine.low %v2587, %v2603
        %v2644 = vcombine.high %v2587, %v2603
        %v2646 = vunpack.c.l.s4 1934713408
        %v2647 = vunpack.c.0.s8 %v2646
        %v2648 = vlaneseq
        %v2649 = vshrl.u32 %v2648, 7
        %v2650 = vsub.s32 %v2647, %v2649
        %v2651 = vrot.slane %v2643, %v2650
        %v2653 = vunpack.c.l.s4 1934713408
        %v2654 = vunpack.c.0.s8 %v2653
        %v2655 = vlaneseq
        %v2656 = vshrl.u32 %v2655, 7
        %v2657 = vsub.s32 %v2654, %v2656
        %v2658 = vrot.slane %v2644, %v2657
        %v2659 = vcombine.low %v2594, %v2610
        %v2660 = vcombine.high %v2594, %v2610
        %v2662 = vunpack.c.l.s4 1934713408
        %v2663 = vunpack.c.0.s8 %v2662
        %v2664 = vlaneseq
        %v2665 = vshrl.u32 %v2664, 7
        %v2666 = vsub.s32 %v2663, %v2665
        %v2667 = vrot.slane %v2659, %v2666
        %v2669 = vunpack.c.l.s4 1934713408
        %v2670 = vunpack.c.0.s8 %v2669
        %v2671 = vlaneseq
        %v2672 = vshrl.u32 %v2671, 7
        %v2673 = vsub.s32 %v2670, %v2672
        %v2674 = vrot.slane %v2660, %v2673
        %v2675 = vcombine.low %v2619, %v2651
        %v2676 = vcombine.high %v2619, %v2651
        %v2677 = vcombine.low %v2626, %v2658
        %v2678 = vcombine.high %v2626, %v2658
        %v2679 = vcombine.low %v2635, %v2667
        %v2680 = vcombine.high %v2635, %v2667
        %v2681 = vcombine.low %v2642, %v2674
        %v2682 = vcombine.high %v2642, %v2674
        %v2683 = vcombine.low %v1337, %v1339
        %v2684 = vcombine.high %v1337, %v1339
        %v2686 = vunpack.c.l.s4 1983009808
        %v2687 = vunpack.c.0.s8 %v2686
        %v2688 = vlaneseq
        %v2689 = vshrl.u32 %v2688, 7
        %v2690 = vsub.s32 %v2687, %v2689
        %v2691 = vrot.slane %v2683, %v2690
        %v2693 = vunpack.c.l.s4 1983009808
        %v2694 = vunpack.c.0.s8 %v2693
        %v2695 = vlaneseq
        %v2696 = vshrl.u32 %v2695, 7
        %v2697 = vsub.s32 %v2694, %v2696
        %v2698 = vrot.slane %v2684, %v2697
        %v2699 = vcombine.low %v1640, %v1704
        %v2700 = vcombine.high %v1640, %v1704
        %v2702 = vunpack.c.l.s4 1983009808
        %v2703 = vunpack.c.0.s8 %v2702
        %v2704 = vlaneseq
        %v2705 = vshrl.u32 %v2704, 7
        %v2706 = vsub.s32 %v2703, %v2705
        %v2707 = vrot.slane %v2699, %v2706
        %v2709 = vunpack.c.l.s4 1983009808
        %v2710 = vunpack.c.0.s8 %v2709
        %v2711 = vlaneseq
        %v2712 = vshrl.u32 %v2711, 7
        %v2713 = vsub.s32 %v2710, %v2712
        %v2714 = vrot.slane %v2700, %v2713
        %v2715 = vcombine.low %v1563, %v1565
        %v2716 = vcombine.high %v1563, %v1565
        %v2718 = vunpack.c.l.s4 1983009808
        %v2719 = vunpack.c.0.s8 %v2718
        %v2720 = vlaneseq
        %v2721 = vshrl.u32 %v2720, 7
        %v2722 = vsub.s32 %v2719, %v2721
        %v2723 = vrot.slane %v2715, %v2722
        %v2725 = vunpack.c.l.s4 1983009808
        %v2726 = vunpack.c.0.s8 %v2725
        %v2727 = vlaneseq
        %v2728 = vshrl.u32 %v2727, 7
        %v2729 = vsub.s32 %v2726, %v2728
        %v2730 = vrot.slane %v2716, %v2729
        %v2731 = vcombine.low %v1768, %v1832
        %v2732 = vcombine.high %v1768, %v1832
        %v2734 = vunpack.c.l.s4 1983009808
        %v2735 = vunpack.c.0.s8 %v2734
        %v2736 = vlaneseq
        %v2737 = vshrl.u32 %v2736, 7
        %v2738 = vsub.s32 %v2735, %v2737
        %v2739 = vrot.slane %v2731, %v2738
        %v2741 = vunpack.c.l.s4 1983009808
        %v2742 = vunpack.c.0.s8 %v2741
        %v2743 = vlaneseq
        %v2744 = vshrl.u32 %v2743, 7
        %v2745 = vsub.s32 %v2742, %v2744
        %v2746 = vrot.slane %v2732, %v2745
        %v2747 = vcombine.low %v2691, %v2707
        %v2748 = vcombine.high %v2691, %v2707
        %v2750 = vunpack.c.l.s4 1934713408
        %v2751 = vunpack.c.0.s8 %v2750
        %v2752 = vlaneseq
        %v2753 = vshrl.u32 %v2752, 7
        %v2754 = vsub.s32 %v2751, %v2753
        %v2755 = vrot.slane %v2747, %v2754
        %v2757 = vunpack.c.l.s4 1934713408
        %v2758 = vunpack.c.0.s8 %v2757
        %v2759 = vlaneseq
        %v2760 = vshrl.u32 %v2759, 7
        %v2761 = vsub.s32 %v2758, %v2760
        %v2762 = vrot.slane %v2748, %v2761
        %v2763 = vcombine.low %v2698, %v2714
        %v2764 = vcombine.high %v2698, %v2714
        %v2766 = vunpack.c.l.s4 1934713408
        %v2767 = vunpack.c.0.s8 %v2766
        %v2768 = vlaneseq
        %v2769 = vshrl.u32 %v2768, 7
        %v2770 = vsub.s32 %v2767, %v2769
        %v2771 = vrot.slane %v2763, %v2770
        %v2773 = vunpack.c.l.s4 1934713408
        %v2774 = vunpack.c.0.s8 %v2773
        %v2775 = vlaneseq
        %v2776 = vshrl.u32 %v2775, 7
        %v2777 = vsub.s32 %v2774, %v2776
        %v2778 = vrot.slane %v2764, %v2777
        %v2779 = vcombine.low %v2723, %v2739
        %v2780 = vcombine.high %v2723, %v2739
        %v2782 = vunpack.c.l.s4 1934713408
        %v2783 = vunpack.c.0.s8 %v2782
        %v2784 = vlaneseq
        %v2785 = vshrl.u32 %v2784, 7
        %v2786 = vsub.s32 %v2783, %v2785
        %v2787 = vrot.slane %v2779, %v2786
        %v2789 = vunpack.c.l.s4 1934713408
        %v2790 = vunpack.c.0.s8 %v2789
        %v2791 = vlaneseq
        %v2792 = vshrl.u32 %v2791, 7
        %v2793 = vsub.s32 %v2790, %v2792
        %v2794 = vrot.slane %v2780, %v2793
        %v2795 = vcombine.low %v2730, %v2746
        %v2796 = vcombine.high %v2730, %v2746
        %v2798 = vunpack.c.l.s4 1934713408
        %v2799 = vunpack.c.0.s8 %v2798
        %v2800 = vlaneseq
        %v2801 = vshrl.u32 %v2800, 7
        %v2802 = vsub.s32 %v2799, %v2801
        %v2803 = vrot.slane %v2795, %v2802
        %v2805 = vunpack.c.l.s4 1934713408
        %v2806 = vunpack.c.0.s8 %v2805
        %v2807 = vlaneseq
        %v2808 = vshrl.u32 %v2807, 7
        %v2809 = vsub.s32 %v2806, %v2808
        %v2810 = vrot.slane %v2796, %v2809
        %v2811 = vcombine.low %v2755, %v2787
        %v2812 = vcombine.high %v2755, %v2787
        %v2813 = vcombine.low %v2762, %v2794
        %v2814 = vcombine.high %v2762, %v2794
        %v2815 = vcombine.low %v2771, %v2803
        %v2816 = vcombine.high %v2771, %v2803
        %v2817 = vcombine.low %v2778, %v2810
        %v2818 = vcombine.high %v2778, %v2810
        %v2819 = vcombine.low %v1341, %v1343
        %v2820 = vcombine.high %v1341, %v1343
        %v2822 = vunpack.c.l.s4 1983009808
        %v2823 = vunpack.c.0.s8 %v2822
        %v2824 = vlaneseq
        %v2825 = vshrl.u32 %v2824, 7
        %v2826 = vsub.s32 %v2823, %v2825
        %v2827 = vrot.slane %v2819, %v2826
        %v2829 = vunpack.c.l.s4 1983009808
        %v2830 = vunpack.c.0.s8 %v2829
        %v2831 = vlaneseq
        %v2832 = vshrl.u32 %v2831, 7
        %v2833 = vsub.s32 %v2830, %v2832
        %v2834 = vrot.slane %v2820, %v2833
        %v2835 = vcombine.low %v1642, %v1706
        %v2836 = vcombine.high %v1642, %v1706
        %v2838 = vunpack.c.l.s4 1983009808
        %v2839 = vunpack.c.0.s8 %v2838
        %v2840 = vlaneseq
        %v2841 = vshrl.u32 %v2840, 7
        %v2842 = vsub.s32 %v2839, %v2841
        %v2843 = vrot.slane %v2835, %v2842
        %v2845 = vunpack.c.l.s4 1983009808
        %v2846 = vunpack.c.0.s8 %v2845
        %v2847 = vlaneseq
        %v2848 = vshrl.u32 %v2847, 7
        %v2849 = vsub.s32 %v2846, %v2848
        %v2850 = vrot.slane %v2836, %v2849
        %v2851 = vcombine.low %v1567, %v1569
        %v2852 = vcombine.high %v1567, %v1569
        %v2854 = vunpack.c.l.s4 1983009808
        %v2855 = vunpack.c.0.s8 %v2854
        %v2856 = vlaneseq
        %v2857 = vshrl.u32 %v2856, 7
        %v2858 = vsub.s32 %v2855, %v2857
        %v2859 = vrot.slane %v2851, %v2858
        %v2861 = vunpack.c.l.s4 1983009808
        %v2862 = vunpack.c.0.s8 %v2861
        %v2863 = vlaneseq
        %v2864 = vshrl.u32 %v2863, 7
        %v2865 = vsub.s32 %v2862, %v2864
        %v2866 = vrot.slane %v2852, %v2865
        %v2867 = vcombine.low %v1770, %v1834
        %v2868 = vcombine.high %v1770, %v1834
        %v2870 = vunpack.c.l.s4 1983009808
        %v2871 = vunpack.c.0.s8 %v2870
        %v2872 = vlaneseq
        %v2873 = vshrl.u32 %v2872, 7
        %v2874 = vsub.s32 %v2871, %v2873
        %v2875 = vrot.slane %v2867, %v2874
        %v2877 = vunpack.c.l.s4 1983009808
        %v2878 = vunpack.c.0.s8 %v2877
        %v2879 = vlaneseq
        %v2880 = vshrl.u32 %v2879, 7
        %v2881 = vsub.s32 %v2878, %v2880
        %v2882 = vrot.slane %v2868, %v2881
        %v2883 = vcombine.low %v2827, %v2843
        %v2884 = vcombine.high %v2827, %v2843
        %v2886 = vunpack.c.l.s4 1934713408
        %v2887 = vunpack.c.0.s8 %v2886
        %v2888 = vlaneseq
        %v2889 = vshrl.u32 %v2888, 7
        %v2890 = vsub.s32 %v2887, %v2889
        %v2891 = vrot.slane %v2883, %v2890
        %v2893 = vunpack.c.l.s4 1934713408
        %v2894 = vunpack.c.0.s8 %v2893
        %v2895 = vlaneseq
        %v2896 = vshrl.u32 %v2895, 7
        %v2897 = vsub.s32 %v2894, %v2896
        %v2898 = vrot.slane %v2884, %v2897
        %v2899 = vcombine.low %v2834, %v2850
        %v2900 = vcombine.high %v2834, %v2850
        %v2902 = vunpack.c.l.s4 1934713408
        %v2903 = vunpack.c.0.s8 %v2902
        %v2904 = vlaneseq
        %v2905 = vshrl.u32 %v2904, 7
        %v2906 = vsub.s32 %v2903, %v2905
        %v2907 = vrot.slane %v2899, %v2906
        %v2909 = vunpack.c.l.s4 1934713408
        %v2910 = vunpack.c.0.s8 %v2909
        %v2911 = vlaneseq
        %v2912 = vshrl.u32 %v2911, 7
        %v2913 = vsub.s32 %v2910, %v2912
        %v2914 = vrot.slane %v2900, %v2913
        %v2915 = vcombine.low %v2859, %v2875
        %v2916 = vcombine.high %v2859, %v2875
        %v2918 = vunpack.c.l.s4 1934713408
        %v2919 = vunpack.c.0.s8 %v2918
        %v2920 = vlaneseq
        %v2921 = vshrl.u32 %v2920, 7
        %v2922 = vsub.s32 %v2919, %v2921
        %v2923 = vrot.slane %v2915, %v2922
        %v2925 = vunpack.c.l.s4 1934713408
        %v2926 = vunpack.c.0.s8 %v2925
        %v2927 = vlaneseq
        %v2928 = vshrl.u32 %v2927, 7
        %v2929 = vsub.s32 %v2926, %v2928
        %v2930 = vrot.slane %v2916, %v2929
        %v2931 = vcombine.low %v2866, %v2882
        %v2932 = vcombine.high %v2866, %v2882
        %v2934 = vunpack.c.l.s4 1934713408
        %v2935 = vunpack.c.0.s8 %v2934
        %v2936 = vlaneseq
        %v2937 = vshrl.u32 %v2936, 7
        %v2938 = vsub.s32 %v2935, %v2937
        %v2939 = vrot.slane %v2931, %v2938
        %v2941 = vunpack.c.l.s4 1934713408
        %v2942 = vunpack.c.0.s8 %v2941
        %v2943 = vlaneseq
        %v2944 = vshrl.u32 %v2943, 7
        %v2945 = vsub.s32 %v2942, %v2944
        %v2946 = vrot.slane %v2932, %v2945
        %v2947 = vcombine.low %v2891, %v2923
        %v2948 = vcombine.high %v2891, %v2923
        %v2949 = vcombine.low %v2898, %v2930
        %v2950 = vcombine.high %v2898, %v2930
        %v2951 = vcombine.low %v2907, %v2939
        %v2952 = vcombine.high %v2907, %v2939
        %v2953 = vcombine.low %v2914, %v2946
        %v2954 = vcombine.high %v2914, %v2946
        %v2955 = vcombine.low %v1347, %v1349
        %v2956 = vcombine.high %v1347, %v1349
        %v2958 = vunpack.c.l.s4 1983009808
        %v2959 = vunpack.c.0.s8 %v2958
        %v2960 = vlaneseq
        %v2961 = vshrl.u32 %v2960, 7
        %v2962 = vsub.s32 %v2959, %v2961
        %v2963 = vrot.slane %v2955, %v2962
        %v2965 = vunpack.c.l.s4 1983009808
        %v2966 = vunpack.c.0.s8 %v2965
        %v2967 = vlaneseq
        %v2968 = vshrl.u32 %v2967, 7
        %v2969 = vsub.s32 %v2966, %v2968
        %v2970 = vrot.slane %v2956, %v2969
        %v2971 = vcombine.low %v1644, %v1708
        %v2972 = vcombine.high %v1644, %v1708
        %v2974 = vunpack.c.l.s4 1983009808
        %v2975 = vunpack.c.0.s8 %v2974
        %v2976 = vlaneseq
        %v2977 = vshrl.u32 %v2976, 7
        %v2978 = vsub.s32 %v2975, %v2977
        %v2979 = vrot.slane %v2971, %v2978
        %v2981 = vunpack.c.l.s4 1983009808
        %v2982 = vunpack.c.0.s8 %v2981
        %v2983 = vlaneseq
        %v2984 = vshrl.u32 %v2983, 7
        %v2985 = vsub.s32 %v2982, %v2984
        %v2986 = vrot.slane %v2972, %v2985
        %v2987 = vcombine.low %v1573, %v1575
        %v2988 = vcombine.high %v1573, %v1575
        %v2990 = vunpack.c.l.s4 1983009808
        %v2991 = vunpack.c.0.s8 %v2990
        %v2992 = vlaneseq
        %v2993 = vshrl.u32 %v2992, 7
        %v2994 = vsub.s32 %v2991, %v2993
        %v2995 = vrot.slane %v2987, %v2994
        %v2997 = vunpack.c.l.s4 1983009808
        %v2998 = vunpack.c.0.s8 %v2997
        %v2999 = vlaneseq
        %v3000 = vshrl.u32 %v2999, 7
        %v3001 = vsub.s32 %v2998, %v3000
        %v3002 = vrot.slane %v2988, %v3001
        %v3003 = vcombine.low %v1772, %v1836
        %v3004 = vcombine.high %v1772, %v1836
        %v3006 = vunpack.c.l.s4 1983009808
        %v3007 = vunpack.c.0.s8 %v3006
        %v3008 = vlaneseq
        %v3009 = vshrl.u32 %v3008, 7
        %v3010 = vsub.s32 %v3007, %v3009
        %v3011 = vrot.slane %v3003, %v3010
        %v3013 = vunpack.c.l.s4 1983009808
        %v3014 = vunpack.c.0.s8 %v3013
        %v3015 = vlaneseq
        %v3016 = vshrl.u32 %v3015, 7
        %v3017 = vsub.s32 %v3014, %v3016
        %v3018 = vrot.slane %v3004, %v3017
        %v3019 = vcombine.low %v2963, %v2979
        %v3020 = vcombine.high %v2963, %v2979
        %v3022 = vunpack.c.l.s4 1934713408
        %v3023 = vunpack.c.0.s8 %v3022
        %v3024 = vlaneseq
        %v3025 = vshrl.u32 %v3024, 7
        %v3026 = vsub.s32 %v3023, %v3025
        %v3027 = vrot.slane %v3019, %v3026
        %v3029 = vunpack.c.l.s4 1934713408
        %v3030 = vunpack.c.0.s8 %v3029
        %v3031 = vlaneseq
        %v3032 = vshrl.u32 %v3031, 7
        %v3033 = vsub.s32 %v3030, %v3032
        %v3034 = vrot.slane %v3020, %v3033
        %v3035 = vcombine.low %v2970, %v2986
        %v3036 = vcombine.high %v2970, %v2986
        %v3038 = vunpack.c.l.s4 1934713408
        %v3039 = vunpack.c.0.s8 %v3038
        %v3040 = vlaneseq
        %v3041 = vshrl.u32 %v3040, 7
        %v3042 = vsub.s32 %v3039, %v3041
        %v3043 = vrot.slane %v3035, %v3042
        %v3045 = vunpack.c.l.s4 1934713408
        %v3046 = vunpack.c.0.s8 %v3045
        %v3047 = vlaneseq
        %v3048 = vshrl.u32 %v3047, 7
        %v3049 = vsub.s32 %v3046, %v3048
        %v3050 = vrot.slane %v3036, %v3049
        %v3051 = vcombine.low %v2995, %v3011
        %v3052 = vcombine.high %v2995, %v3011
        %v3054 = vunpack.c.l.s4 1934713408
        %v3055 = vunpack.c.0.s8 %v3054
        %v3056 = vlaneseq
        %v3057 = vshrl.u32 %v3056, 7
        %v3058 = vsub.s32 %v3055, %v3057
        %v3059 = vrot.slane %v3051, %v3058
        %v3061 = vunpack.c.l.s4 1934713408
        %v3062 = vunpack.c.0.s8 %v3061
        %v3063 = vlaneseq
        %v3064 = vshrl.u32 %v3063, 7
        %v3065 = vsub.s32 %v3062, %v3064
        %v3066 = vrot.slane %v3052, %v3065
        %v3067 = vcombine.low %v3002, %v3018
        %v3068 = vcombine.high %v3002, %v3018
        %v3070 = vunpack.c.l.s4 1934713408
        %v3071 = vunpack.c.0.s8 %v3070
        %v3072 = vlaneseq
        %v3073 = vshrl.u32 %v3072, 7
        %v3074 = vsub.s32 %v3071, %v3073
        %v3075 = vrot.slane %v3067, %v3074
        %v3077 = vunpack.c.l.s4 1934713408
        %v3078 = vunpack.c.0.s8 %v3077
        %v3079 = vlaneseq
        %v3080 = vshrl.u32 %v3079, 7
        %v3081 = vsub.s32 %v3078, %v3080
        %v3082 = vrot.slane %v3068, %v3081
        %v3083 = vcombine.low %v3027, %v3059
        %v3084 = vcombine.high %v3027, %v3059
        %v3085 = vcombine.low %v3034, %v3066
        %v3086 = vcombine.high %v3034, %v3066
        %v3087 = vcombine.low %v3043, %v3075
        %v3088 = vcombine.high %v3043, %v3075
        %v3089 = vcombine.low %v3050, %v3082
        %v3090 = vcombine.high %v3050, %v3082
        %v3091 = vcombine.low %v1351, %v1353
        %v3092 = vcombine.high %v1351, %v1353
        %v3094 = vunpack.c.l.s4 1983009808
        %v3095 = vunpack.c.0.s8 %v3094
        %v3096 = vlaneseq
        %v3097 = vshrl.u32 %v3096, 7
        %v3098 = vsub.s32 %v3095, %v3097
        %v3099 = vrot.slane %v3091, %v3098
        %v3101 = vunpack.c.l.s4 1983009808
        %v3102 = vunpack.c.0.s8 %v3101
        %v3103 = vlaneseq
        %v3104 = vshrl.u32 %v3103, 7
        %v3105 = vsub.s32 %v3102, %v3104
        %v3106 = vrot.slane %v3092, %v3105
        %v3107 = vcombine.low %v1646, %v1710
        %v3108 = vcombine.high %v1646, %v1710
        %v3110 = vunpack.c.l.s4 1983009808
        %v3111 = vunpack.c.0.s8 %v3110
        %v3112 = vlaneseq
        %v3113 = vshrl.u32 %v3112, 7
        %v3114 = vsub.s32 %v3111, %v3113
        %v3115 = vrot.slane %v3107, %v3114
        %v3117 = vunpack.c.l.s4 1983009808
        %v3118 = vunpack.c.0.s8 %v3117
        %v3119 = vlaneseq
        %v3120 = vshrl.u32 %v3119, 7
        %v3121 = vsub.s32 %v3118, %v3120
        %v3122 = vrot.slane %v3108, %v3121
        %v3123 = vcombine.low %v1577, %v1579
        %v3124 = vcombine.high %v1577, %v1579
        %v3126 = vunpack.c.l.s4 1983009808
        %v3127 = vunpack.c.0.s8 %v3126
        %v3128 = vlaneseq
        %v3129 = vshrl.u32 %v3128, 7
        %v3130 = vsub.s32 %v3127, %v3129
        %v3131 = vrot.slane %v3123, %v3130
        %v3133 = vunpack.c.l.s4 1983009808
        %v3134 = vunpack.c.0.s8 %v3133
        %v3135 = vlaneseq
        %v3136 = vshrl.u32 %v3135, 7
        %v3137 = vsub.s32 %v3134, %v3136
        %v3138 = vrot.slane %v3124, %v3137
        %v3139 = vcombine.low %v1774, %v1838
        %v3140 = vcombine.high %v1774, %v1838
        %v3142 = vunpack.c.l.s4 1983009808
        %v3143 = vunpack.c.0.s8 %v3142
        %v3144 = vlaneseq
        %v3145 = vshrl.u32 %v3144, 7
        %v3146 = vsub.s32 %v3143, %v3145
        %v3147 = vrot.slane %v3139, %v3146
        %v3149 = vunpack.c.l.s4 1983009808
        %v3150 = vunpack.c.0.s8 %v3149
        %v3151 = vlaneseq
        %v3152 = vshrl.u32 %v3151, 7
        %v3153 = vsub.s32 %v3150, %v3152
        %v3154 = vrot.slane %v3140, %v3153
        %v3155 = vcombine.low %v3099, %v3115
        %v3156 = vcombine.high %v3099, %v3115
        %v3158 = vunpack.c.l.s4 1934713408
        %v3159 = vunpack.c.0.s8 %v3158
        %v3160 = vlaneseq
        %v3161 = vshrl.u32 %v3160, 7
        %v3162 = vsub.s32 %v3159, %v3161
        %v3163 = vrot.slane %v3155, %v3162
        %v3165 = vunpack.c.l.s4 1934713408
        %v3166 = vunpack.c.0.s8 %v3165
        %v3167 = vlaneseq
        %v3168 = vshrl.u32 %v3167, 7
        %v3169 = vsub.s32 %v3166, %v3168
        %v3170 = vrot.slane %v3156, %v3169
        %v3171 = vcombine.low %v3106, %v3122
        %v3172 = vcombine.high %v3106, %v3122
        %v3174 = vunpack.c.l.s4 1934713408
        %v3175 = vunpack.c.0.s8 %v3174
        %v3176 = vlaneseq
        %v3177 = vshrl.u32 %v3176, 7
        %v3178 = vsub.s32 %v3175, %v3177
        %v3179 = vrot.slane %v3171, %v3178
        %v3181 = vunpack.c.l.s4 1934713408
        %v3182 = vunpack.c.0.s8 %v3181
        %v3183 = vlaneseq
        %v3184 = vshrl.u32 %v3183, 7
        %v3185 = vsub.s32 %v3182, %v3184
        %v3186 = vrot.slane %v3172, %v3185
        %v3187 = vcombine.low %v3131, %v3147
        %v3188 = vcombine.high %v3131, %v3147
        %v3190 = vunpack.c.l.s4 1934713408
        %v3191 = vunpack.c.0.s8 %v3190
        %v3192 = vlaneseq
        %v3193 = vshrl.u32 %v3192, 7
        %v3194 = vsub.s32 %v3191, %v3193
        %v3195 = vrot.slane %v3187, %v3194
        %v3197 = vunpack.c.l.s4 1934713408
        %v3198 = vunpack.c.0.s8 %v3197
        %v3199 = vlaneseq
        %v3200 = vshrl.u32 %v3199, 7
        %v3201 = vsub.s32 %v3198, %v3200
        %v3202 = vrot.slane %v3188, %v3201
        %v3203 = vcombine.low %v3138, %v3154
        %v3204 = vcombine.high %v3138, %v3154
        %v3206 = vunpack.c.l.s4 1934713408
        %v3207 = vunpack.c.0.s8 %v3206
        %v3208 = vlaneseq
        %v3209 = vshrl.u32 %v3208, 7
        %v3210 = vsub.s32 %v3207, %v3209
        %v3211 = vrot.slane %v3203, %v3210
        %v3213 = vunpack.c.l.s4 1934713408
        %v3214 = vunpack.c.0.s8 %v3213
        %v3215 = vlaneseq
        %v3216 = vshrl.u32 %v3215, 7
        %v3217 = vsub.s32 %v3214, %v3216
        %v3218 = vrot.slane %v3204, %v3217
        %v3219 = vcombine.low %v3163, %v3195
        %v3220 = vcombine.high %v3163, %v3195
        %v3221 = vcombine.low %v3170, %v3202
        %v3222 = vcombine.high %v3170, %v3202
        %v3223 = vcombine.low %v3179, %v3211
        %v3224 = vcombine.high %v3179, %v3211
        %v3225 = vcombine.low %v3186, %v3218
        %v3226 = vcombine.high %v3186, %v3218
        %v3227 = vcombine.low %v1357, %v1359
        %v3228 = vcombine.high %v1357, %v1359
        %v3230 = vunpack.c.l.s4 1983009808
        %v3231 = vunpack.c.0.s8 %v3230
        %v3232 = vlaneseq
        %v3233 = vshrl.u32 %v3232, 7
        %v3234 = vsub.s32 %v3231, %v3233
        %v3235 = vrot.slane %v3227, %v3234
        %v3237 = vunpack.c.l.s4 1983009808
        %v3238 = vunpack.c.0.s8 %v3237
        %v3239 = vlaneseq
        %v3240 = vshrl.u32 %v3239, 7
        %v3241 = vsub.s32 %v3238, %v3240
        %v3242 = vrot.slane %v3228, %v3241
        %v3243 = vcombine.low %v1648, %v1712
        %v3244 = vcombine.high %v1648, %v1712
        %v3246 = vunpack.c.l.s4 1983009808
        %v3247 = vunpack.c.0.s8 %v3246
        %v3248 = vlaneseq
        %v3249 = vshrl.u32 %v3248, 7
        %v3250 = vsub.s32 %v3247, %v3249
        %v3251 = vrot.slane %v3243, %v3250
        %v3253 = vunpack.c.l.s4 1983009808
        %v3254 = vunpack.c.0.s8 %v3253
        %v3255 = vlaneseq
        %v3256 = vshrl.u32 %v3255, 7
        %v3257 = vsub.s32 %v3254, %v3256
        %v3258 = vrot.slane %v3244, %v3257
        %v3259 = vcombine.low %v1583, %v1585
        %v3260 = vcombine.high %v1583, %v1585
        %v3262 = vunpack.c.l.s4 1983009808
        %v3263 = vunpack.c.0.s8 %v3262
        %v3264 = vlaneseq
        %v3265 = vshrl.u32 %v3264, 7
        %v3266 = vsub.s32 %v3263, %v3265
        %v3267 = vrot.slane %v3259, %v3266
        %v3269 = vunpack.c.l.s4 1983009808
        %v3270 = vunpack.c.0.s8 %v3269
        %v3271 = vlaneseq
        %v3272 = vshrl.u32 %v3271, 7
        %v3273 = vsub.s32 %v3270, %v3272
        %v3274 = vrot.slane %v3260, %v3273
        %v3275 = vcombine.low %v1776, %v1840
        %v3276 = vcombine.high %v1776, %v1840
        %v3278 = vunpack.c.l.s4 1983009808
        %v3279 = vunpack.c.0.s8 %v3278
        %v3280 = vlaneseq
        %v3281 = vshrl.u32 %v3280, 7
        %v3282 = vsub.s32 %v3279, %v3281
        %v3283 = vrot.slane %v3275, %v3282
        %v3285 = vunpack.c.l.s4 1983009808
        %v3286 = vunpack.c.0.s8 %v3285
        %v3287 = vlaneseq
        %v3288 = vshrl.u32 %v3287, 7
        %v3289 = vsub.s32 %v3286, %v3288
        %v3290 = vrot.slane %v3276, %v3289
        %v3291 = vcombine.low %v3235, %v3251
        %v3292 = vcombine.high %v3235, %v3251
        %v3294 = vunpack.c.l.s4 1934713408
        %v3295 = vunpack.c.0.s8 %v3294
        %v3296 = vlaneseq
        %v3297 = vshrl.u32 %v3296, 7
        %v3298 = vsub.s32 %v3295, %v3297
        %v3299 = vrot.slane %v3291, %v3298
        %v3301 = vunpack.c.l.s4 1934713408
        %v3302 = vunpack.c.0.s8 %v3301
        %v3303 = vlaneseq
        %v3304 = vshrl.u32 %v3303, 7
        %v3305 = vsub.s32 %v3302, %v3304
        %v3306 = vrot.slane %v3292, %v3305
        %v3307 = vcombine.low %v3242, %v3258
        %v3308 = vcombine.high %v3242, %v3258
        %v3310 = vunpack.c.l.s4 1934713408
        %v3311 = vunpack.c.0.s8 %v3310
        %v3312 = vlaneseq
        %v3313 = vshrl.u32 %v3312, 7
        %v3314 = vsub.s32 %v3311, %v3313
        %v3315 = vrot.slane %v3307, %v3314
        %v3317 = vunpack.c.l.s4 1934713408
        %v3318 = vunpack.c.0.s8 %v3317
        %v3319 = vlaneseq
        %v3320 = vshrl.u32 %v3319, 7
        %v3321 = vsub.s32 %v3318, %v3320
        %v3322 = vrot.slane %v3308, %v3321
        %v3323 = vcombine.low %v3267, %v3283
        %v3324 = vcombine.high %v3267, %v3283
        %v3326 = vunpack.c.l.s4 1934713408
        %v3327 = vunpack.c.0.s8 %v3326
        %v3328 = vlaneseq
        %v3329 = vshrl.u32 %v3328, 7
        %v3330 = vsub.s32 %v3327, %v3329
        %v3331 = vrot.slane %v3323, %v3330
        %v3333 = vunpack.c.l.s4 1934713408
        %v3334 = vunpack.c.0.s8 %v3333
        %v3335 = vlaneseq
        %v3336 = vshrl.u32 %v3335, 7
        %v3337 = vsub.s32 %v3334, %v3336
        %v3338 = vrot.slane %v3324, %v3337
        %v3339 = vcombine.low %v3274, %v3290
        %v3340 = vcombine.high %v3274, %v3290
        %v3342 = vunpack.c.l.s4 1934713408
        %v3343 = vunpack.c.0.s8 %v3342
        %v3344 = vlaneseq
        %v3345 = vshrl.u32 %v3344, 7
        %v3346 = vsub.s32 %v3343, %v3345
        %v3347 = vrot.slane %v3339, %v3346
        %v3349 = vunpack.c.l.s4 1934713408
        %v3350 = vunpack.c.0.s8 %v3349
        %v3351 = vlaneseq
        %v3352 = vshrl.u32 %v3351, 7
        %v3353 = vsub.s32 %v3350, %v3352
        %v3354 = vrot.slane %v3340, %v3353
        %v3355 = vcombine.low %v3299, %v3331
        %v3356 = vcombine.high %v3299, %v3331
        %v3357 = vcombine.low %v3306, %v3338
        %v3358 = vcombine.high %v3306, %v3338
        %v3359 = vcombine.low %v3315, %v3347
        %v3360 = vcombine.high %v3315, %v3347
        %v3361 = vcombine.low %v3322, %v3354
        %v3362 = vcombine.high %v3322, %v3354
        %v3363 = vcombine.low %v1361, %v1363
        %v3364 = vcombine.high %v1361, %v1363
        %v3366 = vunpack.c.l.s4 1983009808
        %v3367 = vunpack.c.0.s8 %v3366
        %v3368 = vlaneseq
        %v3369 = vshrl.u32 %v3368, 7
        %v3370 = vsub.s32 %v3367, %v3369
        %v3371 = vrot.slane %v3363, %v3370
        %v3373 = vunpack.c.l.s4 1983009808
        %v3374 = vunpack.c.0.s8 %v3373
        %v3375 = vlaneseq
        %v3376 = vshrl.u32 %v3375, 7
        %v3377 = vsub.s32 %v3374, %v3376
        %v3378 = vrot.slane %v3364, %v3377
        %v3379 = vcombine.low %v1650, %v1714
        %v3380 = vcombine.high %v1650, %v1714
        %v3382 = vunpack.c.l.s4 1983009808
        %v3383 = vunpack.c.0.s8 %v3382
        %v3384 = vlaneseq
        %v3385 = vshrl.u32 %v3384, 7
        %v3386 = vsub.s32 %v3383, %v3385
        %v3387 = vrot.slane %v3379, %v3386
        %v3389 = vunpack.c.l.s4 1983009808
        %v3390 = vunpack.c.0.s8 %v3389
        %v3391 = vlaneseq
        %v3392 = vshrl.u32 %v3391, 7
        %v3393 = vsub.s32 %v3390, %v3392
        %v3394 = vrot.slane %v3380, %v3393
        %v3395 = vcombine.low %v1587, %v1589
        %v3396 = vcombine.high %v1587, %v1589
        %v3398 = vunpack.c.l.s4 1983009808
        %v3399 = vunpack.c.0.s8 %v3398
        %v3400 = vlaneseq
        %v3401 = vshrl.u32 %v3400, 7
        %v3402 = vsub.s32 %v3399, %v3401
        %v3403 = vrot.slane %v3395, %v3402
        %v3405 = vunpack.c.l.s4 1983009808
        %v3406 = vunpack.c.0.s8 %v3405
        %v3407 = vlaneseq
        %v3408 = vshrl.u32 %v3407, 7
        %v3409 = vsub.s32 %v3406, %v3408
        %v3410 = vrot.slane %v3396, %v3409
        %v3411 = vcombine.low %v1778, %v1842
        %v3412 = vcombine.high %v1778, %v1842
        %v3414 = vunpack.c.l.s4 1983009808
        %v3415 = vunpack.c.0.s8 %v3414
        %v3416 = vlaneseq
        %v3417 = vshrl.u32 %v3416, 7
        %v3418 = vsub.s32 %v3415, %v3417
        %v3419 = vrot.slane %v3411, %v3418
        %v3421 = vunpack.c.l.s4 1983009808
        %v3422 = vunpack.c.0.s8 %v3421
        %v3423 = vlaneseq
        %v3424 = vshrl.u32 %v3423, 7
        %v3425 = vsub.s32 %v3422, %v3424
        %v3426 = vrot.slane %v3412, %v3425
        %v3427 = vcombine.low %v3371, %v3387
        %v3428 = vcombine.high %v3371, %v3387
        %v3430 = vunpack.c.l.s4 1934713408
        %v3431 = vunpack.c.0.s8 %v3430
        %v3432 = vlaneseq
        %v3433 = vshrl.u32 %v3432, 7
        %v3434 = vsub.s32 %v3431, %v3433
        %v3435 = vrot.slane %v3427, %v3434
        %v3437 = vunpack.c.l.s4 1934713408
        %v3438 = vunpack.c.0.s8 %v3437
        %v3439 = vlaneseq
        %v3440 = vshrl.u32 %v3439, 7
        %v3441 = vsub.s32 %v3438, %v3440
        %v3442 = vrot.slane %v3428, %v3441
        %v3443 = vcombine.low %v3378, %v3394
        %v3444 = vcombine.high %v3378, %v3394
        %v3446 = vunpack.c.l.s4 1934713408
        %v3447 = vunpack.c.0.s8 %v3446
        %v3448 = vlaneseq
        %v3449 = vshrl.u32 %v3448, 7
        %v3450 = vsub.s32 %v3447, %v3449
        %v3451 = vrot.slane %v3443, %v3450
        %v3453 = vunpack.c.l.s4 1934713408
        %v3454 = vunpack.c.0.s8 %v3453
        %v3455 = vlaneseq
        %v3456 = vshrl.u32 %v3455, 7
        %v3457 = vsub.s32 %v3454, %v3456
        %v3458 = vrot.slane %v3444, %v3457
        %v3459 = vcombine.low %v3403, %v3419
        %v3460 = vcombine.high %v3403, %v3419
        %v3462 = vunpack.c.l.s4 1934713408
        %v3463 = vunpack.c.0.s8 %v3462
        %v3464 = vlaneseq
        %v3465 = vshrl.u32 %v3464, 7
        %v3466 = vsub.s32 %v3463, %v3465
        %v3467 = vrot.slane %v3459, %v3466
        %v3469 = vunpack.c.l.s4 1934713408
        %v3470 = vunpack.c.0.s8 %v3469
        %v3471 = vlaneseq
        %v3472 = vshrl.u32 %v3471, 7
        %v3473 = vsub.s32 %v3470, %v3472
        %v3474 = vrot.slane %v3460, %v3473
        %v3475 = vcombine.low %v3410, %v3426
        %v3476 = vcombine.high %v3410, %v3426
        %v3478 = vunpack.c.l.s4 1934713408
        %v3479 = vunpack.c.0.s8 %v3478
        %v3480 = vlaneseq
        %v3481 = vshrl.u32 %v3480, 7
        %v3482 = vsub.s32 %v3479, %v3481
        %v3483 = vrot.slane %v3475, %v3482
        %v3485 = vunpack.c.l.s4 1934713408
        %v3486 = vunpack.c.0.s8 %v3485
        %v3487 = vlaneseq
        %v3488 = vshrl.u32 %v3487, 7
        %v3489 = vsub.s32 %v3486, %v3488
        %v3490 = vrot.slane %v3476, %v3489
        %v3491 = vcombine.low %v3435, %v3467
        %v3492 = vcombine.high %v3435, %v3467
        %v3493 = vcombine.low %v3442, %v3474
        %v3494 = vcombine.high %v3442, %v3474
        %v3495 = vcombine.low %v3451, %v3483
        %v3496 = vcombine.high %v3451, %v3483
        %v3497 = vcombine.low %v3458, %v3490
        %v3498 = vcombine.high %v3458, %v3490
        %v3499 = vcombine.low %v1367, %v1369
        %v3500 = vcombine.high %v1367, %v1369
        %v3502 = vunpack.c.l.s4 1983009808
        %v3503 = vunpack.c.0.s8 %v3502
        %v3504 = vlaneseq
        %v3505 = vshrl.u32 %v3504, 7
        %v3506 = vsub.s32 %v3503, %v3505
        %v3507 = vrot.slane %v3499, %v3506
        %v3509 = vunpack.c.l.s4 1983009808
        %v3510 = vunpack.c.0.s8 %v3509
        %v3511 = vlaneseq
        %v3512 = vshrl.u32 %v3511, 7
        %v3513 = vsub.s32 %v3510, %v3512
        %v3514 = vrot.slane %v3500, %v3513
        %v3515 = vcombine.low %v1652, %v1716
        %v3516 = vcombine.high %v1652, %v1716
        %v3518 = vunpack.c.l.s4 1983009808
        %v3519 = vunpack.c.0.s8 %v3518
        %v3520 = vlaneseq
        %v3521 = vshrl.u32 %v3520, 7
        %v3522 = vsub.s32 %v3519, %v3521
        %v3523 = vrot.slane %v3515, %v3522
        %v3525 = vunpack.c.l.s4 1983009808
        %v3526 = vunpack.c.0.s8 %v3525
        %v3527 = vlaneseq
        %v3528 = vshrl.u32 %v3527, 7
        %v3529 = vsub.s32 %v3526, %v3528
        %v3530 = vrot.slane %v3516, %v3529
        %v3531 = vcombine.low %v1593, %v1595
        %v3532 = vcombine.high %v1593, %v1595
        %v3534 = vunpack.c.l.s4 1983009808
        %v3535 = vunpack.c.0.s8 %v3534
        %v3536 = vlaneseq
        %v3537 = vshrl.u32 %v3536, 7
        %v3538 = vsub.s32 %v3535, %v3537
        %v3539 = vrot.slane %v3531, %v3538
        %v3541 = vunpack.c.l.s4 1983009808
        %v3542 = vunpack.c.0.s8 %v3541
        %v3543 = vlaneseq
        %v3544 = vshrl.u32 %v3543, 7
        %v3545 = vsub.s32 %v3542, %v3544
        %v3546 = vrot.slane %v3532, %v3545
        %v3547 = vcombine.low %v1780, %v1844
        %v3548 = vcombine.high %v1780, %v1844
        %v3550 = vunpack.c.l.s4 1983009808
        %v3551 = vunpack.c.0.s8 %v3550
        %v3552 = vlaneseq
        %v3553 = vshrl.u32 %v3552, 7
        %v3554 = vsub.s32 %v3551, %v3553
        %v3555 = vrot.slane %v3547, %v3554
        %v3557 = vunpack.c.l.s4 1983009808
        %v3558 = vunpack.c.0.s8 %v3557
        %v3559 = vlaneseq
        %v3560 = vshrl.u32 %v3559, 7
        %v3561 = vsub.s32 %v3558, %v3560
        %v3562 = vrot.slane %v3548, %v3561
        %v3563 = vcombine.low %v3507, %v3523
        %v3564 = vcombine.high %v3507, %v3523
        %v3566 = vunpack.c.l.s4 1934713408
        %v3567 = vunpack.c.0.s8 %v3566
        %v3568 = vlaneseq
        %v3569 = vshrl.u32 %v3568, 7
        %v3570 = vsub.s32 %v3567, %v3569
        %v3571 = vrot.slane %v3563, %v3570
        %v3573 = vunpack.c.l.s4 1934713408
        %v3574 = vunpack.c.0.s8 %v3573
        %v3575 = vlaneseq
        %v3576 = vshrl.u32 %v3575, 7
        %v3577 = vsub.s32 %v3574, %v3576
        %v3578 = vrot.slane %v3564, %v3577
        %v3579 = vcombine.low %v3514, %v3530
        %v3580 = vcombine.high %v3514, %v3530
        %v3582 = vunpack.c.l.s4 1934713408
        %v3583 = vunpack.c.0.s8 %v3582
        %v3584 = vlaneseq
        %v3585 = vshrl.u32 %v3584, 7
        %v3586 = vsub.s32 %v3583, %v3585
        %v3587 = vrot.slane %v3579, %v3586
        %v3589 = vunpack.c.l.s4 1934713408
        %v3590 = vunpack.c.0.s8 %v3589
        %v3591 = vlaneseq
        %v3592 = vshrl.u32 %v3591, 7
        %v3593 = vsub.s32 %v3590, %v3592
        %v3594 = vrot.slane %v3580, %v3593
        %v3595 = vcombine.low %v3539, %v3555
        %v3596 = vcombine.high %v3539, %v3555
        %v3598 = vunpack.c.l.s4 1934713408
        %v3599 = vunpack.c.0.s8 %v3598
        %v3600 = vlaneseq
        %v3601 = vshrl.u32 %v3600, 7
        %v3602 = vsub.s32 %v3599, %v3601
        %v3603 = vrot.slane %v3595, %v3602
        %v3605 = vunpack.c.l.s4 1934713408
        %v3606 = vunpack.c.0.s8 %v3605
        %v3607 = vlaneseq
        %v3608 = vshrl.u32 %v3607, 7
        %v3609 = vsub.s32 %v3606, %v3608
        %v3610 = vrot.slane %v3596, %v3609
        %v3611 = vcombine.low %v3546, %v3562
        %v3612 = vcombine.high %v3546, %v3562
        %v3614 = vunpack.c.l.s4 1934713408
        %v3615 = vunpack.c.0.s8 %v3614
        %v3616 = vlaneseq
        %v3617 = vshrl.u32 %v3616, 7
        %v3618 = vsub.s32 %v3615, %v3617
        %v3619 = vrot.slane %v3611, %v3618
        %v3621 = vunpack.c.l.s4 1934713408
        %v3622 = vunpack.c.0.s8 %v3621
        %v3623 = vlaneseq
        %v3624 = vshrl.u32 %v3623, 7
        %v3625 = vsub.s32 %v3622, %v3624
        %v3626 = vrot.slane %v3612, %v3625
        %v3627 = vcombine.low %v3571, %v3603
        %v3628 = vcombine.high %v3571, %v3603
        %v3629 = vcombine.low %v3578, %v3610
        %v3630 = vcombine.high %v3578, %v3610
        %v3631 = vcombine.low %v3587, %v3619
        %v3632 = vcombine.high %v3587, %v3619
        %v3633 = vcombine.low %v3594, %v3626
        %v3634 = vcombine.high %v3594, %v3626
        %v3635 = vcombine.low %v1371, %v1373
        %v3636 = vcombine.high %v1371, %v1373
        %v3638 = vunpack.c.l.s4 1983009808
        %v3639 = vunpack.c.0.s8 %v3638
        %v3640 = vlaneseq
        %v3641 = vshrl.u32 %v3640, 7
        %v3642 = vsub.s32 %v3639, %v3641
        %v3643 = vrot.slane %v3635, %v3642
        %v3645 = vunpack.c.l.s4 1983009808
        %v3646 = vunpack.c.0.s8 %v3645
        %v3647 = vlaneseq
        %v3648 = vshrl.u32 %v3647, 7
        %v3649 = vsub.s32 %v3646, %v3648
        %v3650 = vrot.slane %v3636, %v3649
        %v3651 = vcombine.low %v1654, %v1718
        %v3652 = vcombine.high %v1654, %v1718
        %v3654 = vunpack.c.l.s4 1983009808
        %v3655 = vunpack.c.0.s8 %v3654
        %v3656 = vlaneseq
        %v3657 = vshrl.u32 %v3656, 7
        %v3658 = vsub.s32 %v3655, %v3657
        %v3659 = vrot.slane %v3651, %v3658
        %v3661 = vunpack.c.l.s4 1983009808
        %v3662 = vunpack.c.0.s8 %v3661
        %v3663 = vlaneseq
        %v3664 = vshrl.u32 %v3663, 7
        %v3665 = vsub.s32 %v3662, %v3664
        %v3666 = vrot.slane %v3652, %v3665
        %v3667 = vcombine.low %v1597, %v1599
        %v3668 = vcombine.high %v1597, %v1599
        %v3670 = vunpack.c.l.s4 1983009808
        %v3671 = vunpack.c.0.s8 %v3670
        %v3672 = vlaneseq
        %v3673 = vshrl.u32 %v3672, 7
        %v3674 = vsub.s32 %v3671, %v3673
        %v3675 = vrot.slane %v3667, %v3674
        %v3677 = vunpack.c.l.s4 1983009808
        %v3678 = vunpack.c.0.s8 %v3677
        %v3679 = vlaneseq
        %v3680 = vshrl.u32 %v3679, 7
        %v3681 = vsub.s32 %v3678, %v3680
        %v3682 = vrot.slane %v3668, %v3681
        %v3683 = vcombine.low %v1782, %v1846
        %v3684 = vcombine.high %v1782, %v1846
        %v3686 = vunpack.c.l.s4 1983009808
        %v3687 = vunpack.c.0.s8 %v3686
        %v3688 = vlaneseq
        %v3689 = vshrl.u32 %v3688, 7
        %v3690 = vsub.s32 %v3687, %v3689
        %v3691 = vrot.slane %v3683, %v3690
        %v3693 = vunpack.c.l.s4 1983009808
        %v3694 = vunpack.c.0.s8 %v3693
        %v3695 = vlaneseq
        %v3696 = vshrl.u32 %v3695, 7
        %v3697 = vsub.s32 %v3694, %v3696
        %v3698 = vrot.slane %v3684, %v3697
        %v3699 = vcombine.low %v3643, %v3659
        %v3700 = vcombine.high %v3643, %v3659
        %v3702 = vunpack.c.l.s4 1934713408
        %v3703 = vunpack.c.0.s8 %v3702
        %v3704 = vlaneseq
        %v3705 = vshrl.u32 %v3704, 7
        %v3706 = vsub.s32 %v3703, %v3705
        %v3707 = vrot.slane %v3699, %v3706
        %v3709 = vunpack.c.l.s4 1934713408
        %v3710 = vunpack.c.0.s8 %v3709
        %v3711 = vlaneseq
        %v3712 = vshrl.u32 %v3711, 7
        %v3713 = vsub.s32 %v3710, %v3712
        %v3714 = vrot.slane %v3700, %v3713
        %v3715 = vcombine.low %v3650, %v3666
        %v3716 = vcombine.high %v3650, %v3666
        %v3718 = vunpack.c.l.s4 1934713408
        %v3719 = vunpack.c.0.s8 %v3718
        %v3720 = vlaneseq
        %v3721 = vshrl.u32 %v3720, 7
        %v3722 = vsub.s32 %v3719, %v3721
        %v3723 = vrot.slane %v3715, %v3722
        %v3725 = vunpack.c.l.s4 1934713408
        %v3726 = vunpack.c.0.s8 %v3725
        %v3727 = vlaneseq
        %v3728 = vshrl.u32 %v3727, 7
        %v3729 = vsub.s32 %v3726, %v3728
        %v3730 = vrot.slane %v3716, %v3729
        %v3731 = vcombine.low %v3675, %v3691
        %v3732 = vcombine.high %v3675, %v3691
        %v3734 = vunpack.c.l.s4 1934713408
        %v3735 = vunpack.c.0.s8 %v3734
        %v3736 = vlaneseq
        %v3737 = vshrl.u32 %v3736, 7
        %v3738 = vsub.s32 %v3735, %v3737
        %v3739 = vrot.slane %v3731, %v3738
        %v3741 = vunpack.c.l.s4 1934713408
        %v3742 = vunpack.c.0.s8 %v3741
        %v3743 = vlaneseq
        %v3744 = vshrl.u32 %v3743, 7
        %v3745 = vsub.s32 %v3742, %v3744
        %v3746 = vrot.slane %v3732, %v3745
        %v3747 = vcombine.low %v3682, %v3698
        %v3748 = vcombine.high %v3682, %v3698
        %v3750 = vunpack.c.l.s4 1934713408
        %v3751 = vunpack.c.0.s8 %v3750
        %v3752 = vlaneseq
        %v3753 = vshrl.u32 %v3752, 7
        %v3754 = vsub.s32 %v3751, %v3753
        %v3755 = vrot.slane %v3747, %v3754
        %v3757 = vunpack.c.l.s4 1934713408
        %v3758 = vunpack.c.0.s8 %v3757
        %v3759 = vlaneseq
        %v3760 = vshrl.u32 %v3759, 7
        %v3761 = vsub.s32 %v3758, %v3760
        %v3762 = vrot.slane %v3748, %v3761
        %v3763 = vcombine.low %v3707, %v3739
        %v3764 = vcombine.high %v3707, %v3739
        %v3765 = vcombine.low %v3714, %v3746
        %v3766 = vcombine.high %v3714, %v3746
        %v3767 = vcombine.low %v3723, %v3755
        %v3768 = vcombine.high %v3723, %v3755
        %v3769 = vcombine.low %v3730, %v3762
        %v3770 = vcombine.high %v3730, %v3762
        %v3771 = vcombine.low %v1377, %v1379
        %v3772 = vcombine.high %v1377, %v1379
        %v3774 = vunpack.c.l.s4 1983009808
        %v3775 = vunpack.c.0.s8 %v3774
        %v3776 = vlaneseq
        %v3777 = vshrl.u32 %v3776, 7
        %v3778 = vsub.s32 %v3775, %v3777
        %v3779 = vrot.slane %v3771, %v3778
        %v3781 = vunpack.c.l.s4 1983009808
        %v3782 = vunpack.c.0.s8 %v3781
        %v3783 = vlaneseq
        %v3784 = vshrl.u32 %v3783, 7
        %v3785 = vsub.s32 %v3782, %v3784
        %v3786 = vrot.slane %v3772, %v3785
        %v3787 = vcombine.low %v1656, %v1720
        %v3788 = vcombine.high %v1656, %v1720
        %v3790 = vunpack.c.l.s4 1983009808
        %v3791 = vunpack.c.0.s8 %v3790
        %v3792 = vlaneseq
        %v3793 = vshrl.u32 %v3792, 7
        %v3794 = vsub.s32 %v3791, %v3793
        %v3795 = vrot.slane %v3787, %v3794
        %v3797 = vunpack.c.l.s4 1983009808
        %v3798 = vunpack.c.0.s8 %v3797
        %v3799 = vlaneseq
        %v3800 = vshrl.u32 %v3799, 7
        %v3801 = vsub.s32 %v3798, %v3800
        %v3802 = vrot.slane %v3788, %v3801
        %v3803 = vcombine.low %v1603, %v1605
        %v3804 = vcombine.high %v1603, %v1605
        %v3806 = vunpack.c.l.s4 1983009808
        %v3807 = vunpack.c.0.s8 %v3806
        %v3808 = vlaneseq
        %v3809 = vshrl.u32 %v3808, 7
        %v3810 = vsub.s32 %v3807, %v3809
        %v3811 = vrot.slane %v3803, %v3810
        %v3813 = vunpack.c.l.s4 1983009808
        %v3814 = vunpack.c.0.s8 %v3813
        %v3815 = vlaneseq
        %v3816 = vshrl.u32 %v3815, 7
        %v3817 = vsub.s32 %v3814, %v3816
        %v3818 = vrot.slane %v3804, %v3817
        %v3819 = vcombine.low %v1784, %v1848
        %v3820 = vcombine.high %v1784, %v1848
        %v3822 = vunpack.c.l.s4 1983009808
        %v3823 = vunpack.c.0.s8 %v3822
        %v3824 = vlaneseq
        %v3825 = vshrl.u32 %v3824, 7
        %v3826 = vsub.s32 %v3823, %v3825
        %v3827 = vrot.slane %v3819, %v3826
        %v3829 = vunpack.c.l.s4 1983009808
        %v3830 = vunpack.c.0.s8 %v3829
        %v3831 = vlaneseq
        %v3832 = vshrl.u32 %v3831, 7
        %v3833 = vsub.s32 %v3830, %v3832
        %v3834 = vrot.slane %v3820, %v3833
        %v3835 = vcombine.low %v3779, %v3795
        %v3836 = vcombine.high %v3779, %v3795
        %v3838 = vunpack.c.l.s4 1934713408
        %v3839 = vunpack.c.0.s8 %v3838
        %v3840 = vlaneseq
        %v3841 = vshrl.u32 %v3840, 7
        %v3842 = vsub.s32 %v3839, %v3841
        %v3843 = vrot.slane %v3835, %v3842
        %v3845 = vunpack.c.l.s4 1934713408
        %v3846 = vunpack.c.0.s8 %v3845
        %v3847 = vlaneseq
        %v3848 = vshrl.u32 %v3847, 7
        %v3849 = vsub.s32 %v3846, %v3848
        %v3850 = vrot.slane %v3836, %v3849
        %v3851 = vcombine.low %v3786, %v3802
        %v3852 = vcombine.high %v3786, %v3802
        %v3854 = vunpack.c.l.s4 1934713408
        %v3855 = vunpack.c.0.s8 %v3854
        %v3856 = vlaneseq
        %v3857 = vshrl.u32 %v3856, 7
        %v3858 = vsub.s32 %v3855, %v3857
        %v3859 = vrot.slane %v3851, %v3858
        %v3861 = vunpack.c.l.s4 1934713408
        %v3862 = vunpack.c.0.s8 %v3861
        %v3863 = vlaneseq
        %v3864 = vshrl.u32 %v3863, 7
        %v3865 = vsub.s32 %v3862, %v3864
        %v3866 = vrot.slane %v3852, %v3865
        %v3867 = vcombine.low %v3811, %v3827
        %v3868 = vcombine.high %v3811, %v3827
        %v3870 = vunpack.c.l.s4 1934713408
        %v3871 = vunpack.c.0.s8 %v3870
        %v3872 = vlaneseq
        %v3873 = vshrl.u32 %v3872, 7
        %v3874 = vsub.s32 %v3871, %v3873
        %v3875 = vrot.slane %v3867, %v3874
        %v3877 = vunpack.c.l.s4 1934713408
        %v3878 = vunpack.c.0.s8 %v3877
        %v3879 = vlaneseq
        %v3880 = vshrl.u32 %v3879, 7
        %v3881 = vsub.s32 %v3878, %v3880
        %v3882 = vrot.slane %v3868, %v3881
        %v3883 = vcombine.low %v3818, %v3834
        %v3884 = vcombine.high %v3818, %v3834
        %v3886 = vunpack.c.l.s4 1934713408
        %v3887 = vunpack.c.0.s8 %v3886
        %v3888 = vlaneseq
        %v3889 = vshrl.u32 %v3888, 7
        %v3890 = vsub.s32 %v3887, %v3889
        %v3891 = vrot.slane %v3883, %v3890
        %v3893 = vunpack.c.l.s4 1934713408
        %v3894 = vunpack.c.0.s8 %v3893
        %v3895 = vlaneseq
        %v3896 = vshrl.u32 %v3895, 7
        %v3897 = vsub.s32 %v3894, %v3896
        %v3898 = vrot.slane %v3884, %v3897
        %v3899 = vcombine.low %v3843, %v3875
        %v3900 = vcombine.high %v3843, %v3875
        %v3901 = vcombine.low %v3850, %v3882
        %v3902 = vcombine.high %v3850, %v3882
        %v3903 = vcombine.low %v3859, %v3891
        %v3904 = vcombine.high %v3859, %v3891
        %v3905 = vcombine.low %v3866, %v3898
        %v3906 = vcombine.high %v3866, %v3898
        %v3907 = vcombine.low %v1381, %v1383
        %v3908 = vcombine.high %v1381, %v1383
        %v3910 = vunpack.c.l.s4 1983009808
        %v3911 = vunpack.c.0.s8 %v3910
        %v3912 = vlaneseq
        %v3913 = vshrl.u32 %v3912, 7
        %v3914 = vsub.s32 %v3911, %v3913
        %v3915 = vrot.slane %v3907, %v3914
        %v3917 = vunpack.c.l.s4 1983009808
        %v3918 = vunpack.c.0.s8 %v3917
        %v3919 = vlaneseq
        %v3920 = vshrl.u32 %v3919, 7
        %v3921 = vsub.s32 %v3918, %v3920
        %v3922 = vrot.slane %v3908, %v3921
        %v3923 = vcombine.low %v1658, %v1722
        %v3924 = vcombine.high %v1658, %v1722
        %v3926 = vunpack.c.l.s4 1983009808
        %v3927 = vunpack.c.0.s8 %v3926
        %v3928 = vlaneseq
        %v3929 = vshrl.u32 %v3928, 7
        %v3930 = vsub.s32 %v3927, %v3929
        %v3931 = vrot.slane %v3923, %v3930
        %v3933 = vunpack.c.l.s4 1983009808
        %v3934 = vunpack.c.0.s8 %v3933
        %v3935 = vlaneseq
        %v3936 = vshrl.u32 %v3935, 7
        %v3937 = vsub.s32 %v3934, %v3936
        %v3938 = vrot.slane %v3924, %v3937
        %v3939 = vcombine.low %v1607, %v1609
        %v3940 = vcombine.high %v1607, %v1609
        %v3942 = vunpack.c.l.s4 1983009808
        %v3943 = vunpack.c.0.s8 %v3942
        %v3944 = vlaneseq
        %v3945 = vshrl.u32 %v3944, 7
        %v3946 = vsub.s32 %v3943, %v3945
        %v3947 = vrot.slane %v3939, %v3946
        %v3949 = vunpack.c.l.s4 1983009808
        %v3950 = vunpack.c.0.s8 %v3949
        %v3951 = vlaneseq
        %v3952 = vshrl.u32 %v3951, 7
        %v3953 = vsub.s32 %v3950, %v3952
        %v3954 = vrot.slane %v3940, %v3953
        %v3955 = vcombine.low %v1786, %v1850
        %v3956 = vcombine.high %v1786, %v1850
        %v3958 = vunpack.c.l.s4 1983009808
        %v3959 = vunpack.c.0.s8 %v3958
        %v3960 = vlaneseq
        %v3961 = vshrl.u32 %v3960, 7
        %v3962 = vsub.s32 %v3959, %v3961
        %v3963 = vrot.slane %v3955, %v3962
        %v3965 = vunpack.c.l.s4 1983009808
        %v3966 = vunpack.c.0.s8 %v3965
        %v3967 = vlaneseq
        %v3968 = vshrl.u32 %v3967, 7
        %v3969 = vsub.s32 %v3966, %v3968
        %v3970 = vrot.slane %v3956, %v3969
        %v3971 = vcombine.low %v3915, %v3931
        %v3972 = vcombine.high %v3915, %v3931
        %v3974 = vunpack.c.l.s4 1934713408
        %v3975 = vunpack.c.0.s8 %v3974
        %v3976 = vlaneseq
        %v3977 = vshrl.u32 %v3976, 7
        %v3978 = vsub.s32 %v3975, %v3977
        %v3979 = vrot.slane %v3971, %v3978
        %v3981 = vunpack.c.l.s4 1934713408
        %v3982 = vunpack.c.0.s8 %v3981
        %v3983 = vlaneseq
        %v3984 = vshrl.u32 %v3983, 7
        %v3985 = vsub.s32 %v3982, %v3984
        %v3986 = vrot.slane %v3972, %v3985
        %v3987 = vcombine.low %v3922, %v3938
        %v3988 = vcombine.high %v3922, %v3938
        %v3990 = vunpack.c.l.s4 1934713408
        %v3991 = vunpack.c.0.s8 %v3990
        %v3992 = vlaneseq
        %v3993 = vshrl.u32 %v3992, 7
        %v3994 = vsub.s32 %v3991, %v3993
        %v3995 = vrot.slane %v3987, %v3994
        %v3997 = vunpack.c.l.s4 1934713408
        %v3998 = vunpack.c.0.s8 %v3997
        %v3999 = vlaneseq
        %v4000 = vshrl.u32 %v3999, 7
        %v4001 = vsub.s32 %v3998, %v4000
        %v4002 = vrot.slane %v3988, %v4001
        %v4003 = vcombine.low %v3947, %v3963
        %v4004 = vcombine.high %v3947, %v3963
        %v4006 = vunpack.c.l.s4 1934713408
        %v4007 = vunpack.c.0.s8 %v4006
        %v4008 = vlaneseq
        %v4009 = vshrl.u32 %v4008, 7
        %v4010 = vsub.s32 %v4007, %v4009
        %v4011 = vrot.slane %v4003, %v4010
        %v4013 = vunpack.c.l.s4 1934713408
        %v4014 = vunpack.c.0.s8 %v4013
        %v4015 = vlaneseq
        %v4016 = vshrl.u32 %v4015, 7
        %v4017 = vsub.s32 %v4014, %v4016
        %v4018 = vrot.slane %v4004, %v4017
        %v4019 = vcombine.low %v3954, %v3970
        %v4020 = vcombine.high %v3954, %v3970
        %v4022 = vunpack.c.l.s4 1934713408
        %v4023 = vunpack.c.0.s8 %v4022
        %v4024 = vlaneseq
        %v4025 = vshrl.u32 %v4024, 7
        %v4026 = vsub.s32 %v4023, %v4025
        %v4027 = vrot.slane %v4019, %v4026
        %v4029 = vunpack.c.l.s4 1934713408
        %v4030 = vunpack.c.0.s8 %v4029
        %v4031 = vlaneseq
        %v4032 = vshrl.u32 %v4031, 7
        %v4033 = vsub.s32 %v4030, %v4032
        %v4034 = vrot.slane %v4020, %v4033
        %v4035 = vcombine.low %v3979, %v4011
        %v4036 = vcombine.high %v3979, %v4011
        %v4037 = vcombine.low %v3986, %v4018
        %v4038 = vcombine.high %v3986, %v4018
        %v4039 = vcombine.low %v3995, %v4027
        %v4040 = vcombine.high %v3995, %v4027
        %v4041 = vcombine.low %v4002, %v4034
        %v4042 = vcombine.high %v4002, %v4034
        %vm4043 = vcmask 523264
        %v4044 = vsel %vm4043, %v1995, 0.0
        %4045 = vadd.xlane.f32.xlu0 %v4044
        %v4046 = vpop.xlane.xlu0 %4045
        %v4047 = vsel %vm4043, %v1996, 0.0
        %4048 = vadd.xlane.f32.xlu0 %v4047
        %v4049 = vpop.xlane.xlu0 %4048
        %v4050 = vsel %vm4043, %v1997, 0.0
        %4051 = vadd.xlane.f32.xlu0 %v4050
        %v4052 = vpop.xlane.xlu0 %4051
        %v4053 = vsel %vm4043, %v1998, 0.0
        %4054 = vadd.xlane.f32.xlu0 %v4053
        %v4055 = vpop.xlane.xlu0 %4054
        %v4056 = vsel %vm4043, %v1999, 0.0
        %4057 = vadd.xlane.f32.xlu0 %v4056
        %v4058 = vpop.xlane.xlu0 %4057
        %v4059 = vsel %vm4043, %v2000, 0.0
        %4060 = vadd.xlane.f32.xlu0 %v4059
        %v4061 = vpop.xlane.xlu0 %4060
        %v4062 = vsel %vm4043, %v2001, 0.0
        %4063 = vadd.xlane.f32.xlu0 %v4062
        %v4064 = vpop.xlane.xlu0 %4063
        %v4065 = vsel %vm4043, %v2002, 0.0
        %4066 = vadd.xlane.f32.xlu0 %v4065
        %v4067 = vpop.xlane.xlu0 %4066
        %v4068 = vsel %vm4043, %v2131, 0.0
        %4069 = vadd.xlane.f32.xlu0 %v4068
        %v4070 = vpop.xlane.xlu0 %4069
        %v4071 = vsel %vm4043, %v2132, 0.0
        %4072 = vadd.xlane.f32.xlu0 %v4071
        %v4073 = vpop.xlane.xlu0 %4072
        %v4074 = vsel %vm4043, %v2133, 0.0
        %4075 = vadd.xlane.f32.xlu0 %v4074
        %v4076 = vpop.xlane.xlu0 %4075
        %v4077 = vsel %vm4043, %v2134, 0.0
        %4078 = vadd.xlane.f32.xlu0 %v4077
        %v4079 = vpop.xlane.xlu0 %4078
        %v4080 = vsel %vm4043, %v2135, 0.0
        %4081 = vadd.xlane.f32.xlu0 %v4080
        %v4082 = vpop.xlane.xlu0 %4081
        %v4083 = vsel %vm4043, %v2136, 0.0
        %4084 = vadd.xlane.f32.xlu0 %v4083
        %v4085 = vpop.xlane.xlu0 %4084
        %v4086 = vsel %vm4043, %v2137, 0.0
        %4087 = vadd.xlane.f32.xlu0 %v4086
        %v4088 = vpop.xlane.xlu0 %4087
        %v4089 = vsel %vm4043, %v2138, 0.0
        %4090 = vadd.xlane.f32.xlu0 %v4089
        %v4091 = vpop.xlane.xlu0 %4090
        %v4092 = vsel %vm4043, %v2267, 0.0
        %4093 = vadd.xlane.f32.xlu0 %v4092
        %v4094 = vpop.xlane.xlu0 %4093
        %v4095 = vsel %vm4043, %v2268, 0.0
        %4096 = vadd.xlane.f32.xlu0 %v4095
        %v4097 = vpop.xlane.xlu0 %4096
        %v4098 = vsel %vm4043, %v2269, 0.0
        %4099 = vadd.xlane.f32.xlu0 %v4098
        %v4100 = vpop.xlane.xlu0 %4099
        %v4101 = vsel %vm4043, %v2270, 0.0
        %4102 = vadd.xlane.f32.xlu0 %v4101
        %v4103 = vpop.xlane.xlu0 %4102
        %v4104 = vsel %vm4043, %v2271, 0.0
        %4105 = vadd.xlane.f32.xlu0 %v4104
        %v4106 = vpop.xlane.xlu0 %4105
        %v4107 = vsel %vm4043, %v2272, 0.0
        %4108 = vadd.xlane.f32.xlu0 %v4107
        %v4109 = vpop.xlane.xlu0 %4108
        %v4110 = vsel %vm4043, %v2273, 0.0
        %4111 = vadd.xlane.f32.xlu0 %v4110
        %v4112 = vpop.xlane.xlu0 %4111
        %v4113 = vsel %vm4043, %v2274, 0.0
        %4114 = vadd.xlane.f32.xlu0 %v4113
        %v4115 = vpop.xlane.xlu0 %4114
        %v4116 = vsel %vm4043, %v2403, 0.0
        %4117 = vadd.xlane.f32.xlu0 %v4116
        %v4118 = vpop.xlane.xlu0 %4117
        %v4119 = vsel %vm4043, %v2404, 0.0
        %4120 = vadd.xlane.f32.xlu0 %v4119
        %v4121 = vpop.xlane.xlu0 %4120
        %v4122 = vsel %vm4043, %v2405, 0.0
        %4123 = vadd.xlane.f32.xlu0 %v4122
        %v4124 = vpop.xlane.xlu0 %4123
        %v4125 = vsel %vm4043, %v2406, 0.0
        %4126 = vadd.xlane.f32.xlu0 %v4125
        %v4127 = vpop.xlane.xlu0 %4126
        %v4128 = vsel %vm4043, %v2407, 0.0
        %4129 = vadd.xlane.f32.xlu0 %v4128
        %v4130 = vpop.xlane.xlu0 %4129
        %v4131 = vsel %vm4043, %v2408, 0.0
        %4132 = vadd.xlane.f32.xlu0 %v4131
        %v4133 = vpop.xlane.xlu0 %4132
        %v4134 = vsel %vm4043, %v2409, 0.0
        %4135 = vadd.xlane.f32.xlu0 %v4134
        %v4136 = vpop.xlane.xlu0 %4135
        %v4137 = vsel %vm4043, %v2410, 0.0
        %4138 = vadd.xlane.f32.xlu0 %v4137
        %v4139 = vpop.xlane.xlu0 %4138
        %v4140 = vsel %vm4043, %v2539, 0.0
        %4141 = vadd.xlane.f32.xlu0 %v4140
        %v4142 = vpop.xlane.xlu0 %4141
        %v4143 = vsel %vm4043, %v2540, 0.0
        %4144 = vadd.xlane.f32.xlu0 %v4143
        %v4145 = vpop.xlane.xlu0 %4144
        %v4146 = vsel %vm4043, %v2541, 0.0
        %4147 = vadd.xlane.f32.xlu0 %v4146
        %v4148 = vpop.xlane.xlu0 %4147
        %v4149 = vsel %vm4043, %v2542, 0.0
        %4150 = vadd.xlane.f32.xlu0 %v4149
        %v4151 = vpop.xlane.xlu0 %4150
        %v4152 = vsel %vm4043, %v2543, 0.0
        %4153 = vadd.xlane.f32.xlu0 %v4152
        %v4154 = vpop.xlane.xlu0 %4153
        %v4155 = vsel %vm4043, %v2544, 0.0
        %4156 = vadd.xlane.f32.xlu0 %v4155
        %v4157 = vpop.xlane.xlu0 %4156
        %v4158 = vsel %vm4043, %v2545, 0.0
        %4159 = vadd.xlane.f32.xlu0 %v4158
        %v4160 = vpop.xlane.xlu0 %4159
        %v4161 = vsel %vm4043, %v2546, 0.0
        %4162 = vadd.xlane.f32.xlu0 %v4161
        %v4163 = vpop.xlane.xlu0 %4162
        %v4164 = vsel %vm4043, %v2675, 0.0
        %4165 = vadd.xlane.f32.xlu0 %v4164
        %v4166 = vpop.xlane.xlu0 %4165
        %v4167 = vsel %vm4043, %v2676, 0.0
        %4168 = vadd.xlane.f32.xlu0 %v4167
        %v4169 = vpop.xlane.xlu0 %4168
        %v4170 = vsel %vm4043, %v2677, 0.0
        %4171 = vadd.xlane.f32.xlu0 %v4170
        %v4172 = vpop.xlane.xlu0 %4171
        %v4173 = vsel %vm4043, %v2678, 0.0
        %4174 = vadd.xlane.f32.xlu0 %v4173
        %v4175 = vpop.xlane.xlu0 %4174
        %v4176 = vsel %vm4043, %v2679, 0.0
        %4177 = vadd.xlane.f32.xlu0 %v4176
        %v4178 = vpop.xlane.xlu0 %4177
        %v4179 = vsel %vm4043, %v2680, 0.0
        %4180 = vadd.xlane.f32.xlu0 %v4179
        %v4181 = vpop.xlane.xlu0 %4180
        %v4182 = vsel %vm4043, %v2681, 0.0
        %4183 = vadd.xlane.f32.xlu0 %v4182
        %v4184 = vpop.xlane.xlu0 %4183
        %v4185 = vsel %vm4043, %v2682, 0.0
        %4186 = vadd.xlane.f32.xlu0 %v4185
        %v4187 = vpop.xlane.xlu0 %4186
        %v4188 = vsel %vm4043, %v2811, 0.0
        %4189 = vadd.xlane.f32.xlu0 %v4188
        %v4190 = vpop.xlane.xlu0 %4189
        %v4191 = vsel %vm4043, %v2812, 0.0
        %4192 = vadd.xlane.f32.xlu0 %v4191
        %v4193 = vpop.xlane.xlu0 %4192
        %v4194 = vsel %vm4043, %v2813, 0.0
        %4195 = vadd.xlane.f32.xlu0 %v4194
        %v4196 = vpop.xlane.xlu0 %4195
        %v4197 = vsel %vm4043, %v2814, 0.0
        %4198 = vadd.xlane.f32.xlu0 %v4197
        %v4199 = vpop.xlane.xlu0 %4198
        %v4200 = vsel %vm4043, %v2815, 0.0
        %4201 = vadd.xlane.f32.xlu0 %v4200
        %v4202 = vpop.xlane.xlu0 %4201
        %v4203 = vsel %vm4043, %v2816, 0.0
        %4204 = vadd.xlane.f32.xlu0 %v4203
        %v4205 = vpop.xlane.xlu0 %4204
        %v4206 = vsel %vm4043, %v2817, 0.0
        %4207 = vadd.xlane.f32.xlu0 %v4206
        %v4208 = vpop.xlane.xlu0 %4207
        %v4209 = vsel %vm4043, %v2818, 0.0
        %4210 = vadd.xlane.f32.xlu0 %v4209
        %v4211 = vpop.xlane.xlu0 %4210
        %v4212 = vsel %vm4043, %v2947, 0.0
        %4213 = vadd.xlane.f32.xlu0 %v4212
        %v4214 = vpop.xlane.xlu0 %4213
        %v4215 = vsel %vm4043, %v2948, 0.0
        %4216 = vadd.xlane.f32.xlu0 %v4215
        %v4217 = vpop.xlane.xlu0 %4216
        %v4218 = vsel %vm4043, %v2949, 0.0
        %4219 = vadd.xlane.f32.xlu0 %v4218
        %v4220 = vpop.xlane.xlu0 %4219
        %v4221 = vsel %vm4043, %v2950, 0.0
        %4222 = vadd.xlane.f32.xlu0 %v4221
        %v4223 = vpop.xlane.xlu0 %4222
        %v4224 = vsel %vm4043, %v2951, 0.0
        %4225 = vadd.xlane.f32.xlu0 %v4224
        %v4226 = vpop.xlane.xlu0 %4225
        %v4227 = vsel %vm4043, %v2952, 0.0
        %4228 = vadd.xlane.f32.xlu0 %v4227
        %v4229 = vpop.xlane.xlu0 %4228
        %v4230 = vsel %vm4043, %v2953, 0.0
        %4231 = vadd.xlane.f32.xlu0 %v4230
        %v4232 = vpop.xlane.xlu0 %4231
        %v4233 = vsel %vm4043, %v2954, 0.0
        %4234 = vadd.xlane.f32.xlu0 %v4233
        %v4235 = vpop.xlane.xlu0 %4234
        %v4236 = vsel %vm4043, %v3083, 0.0
        %4237 = vadd.xlane.f32.xlu0 %v4236
        %v4238 = vpop.xlane.xlu0 %4237
        %v4239 = vsel %vm4043, %v3084, 0.0
        %4240 = vadd.xlane.f32.xlu0 %v4239
        %v4241 = vpop.xlane.xlu0 %4240
        %v4242 = vsel %vm4043, %v3085, 0.0
        %4243 = vadd.xlane.f32.xlu0 %v4242
        %v4244 = vpop.xlane.xlu0 %4243
        %v4245 = vsel %vm4043, %v3086, 0.0
        %4246 = vadd.xlane.f32.xlu0 %v4245
        %v4247 = vpop.xlane.xlu0 %4246
        %v4248 = vsel %vm4043, %v3087, 0.0
        %4249 = vadd.xlane.f32.xlu0 %v4248
        %v4250 = vpop.xlane.xlu0 %4249
        %v4251 = vsel %vm4043, %v3088, 0.0
        %4252 = vadd.xlane.f32.xlu0 %v4251
        %v4253 = vpop.xlane.xlu0 %4252
        %v4254 = vsel %vm4043, %v3089, 0.0
        %4255 = vadd.xlane.f32.xlu0 %v4254
        %v4256 = vpop.xlane.xlu0 %4255
        %v4257 = vsel %vm4043, %v3090, 0.0
        %4258 = vadd.xlane.f32.xlu0 %v4257
        %v4259 = vpop.xlane.xlu0 %4258
        %v4260 = vsel %vm4043, %v3219, 0.0
        %4261 = vadd.xlane.f32.xlu0 %v4260
        %v4262 = vpop.xlane.xlu0 %4261
        %v4263 = vsel %vm4043, %v3220, 0.0
        %4264 = vadd.xlane.f32.xlu0 %v4263
        %v4265 = vpop.xlane.xlu0 %4264
        %v4266 = vsel %vm4043, %v3221, 0.0
        %4267 = vadd.xlane.f32.xlu0 %v4266
        %v4268 = vpop.xlane.xlu0 %4267
        %v4269 = vsel %vm4043, %v3222, 0.0
        %4270 = vadd.xlane.f32.xlu0 %v4269
        %v4271 = vpop.xlane.xlu0 %4270
        %v4272 = vsel %vm4043, %v3223, 0.0
        %4273 = vadd.xlane.f32.xlu0 %v4272
        %v4274 = vpop.xlane.xlu0 %4273
        %v4275 = vsel %vm4043, %v3224, 0.0
        %4276 = vadd.xlane.f32.xlu0 %v4275
        %v4277 = vpop.xlane.xlu0 %4276
        %v4278 = vsel %vm4043, %v3225, 0.0
        %4279 = vadd.xlane.f32.xlu0 %v4278
        %v4280 = vpop.xlane.xlu0 %4279
        %v4281 = vsel %vm4043, %v3226, 0.0
        %4282 = vadd.xlane.f32.xlu0 %v4281
        %v4283 = vpop.xlane.xlu0 %4282
        %v4284 = vsel %vm4043, %v3355, 0.0
        %4285 = vadd.xlane.f32.xlu0 %v4284
        %v4286 = vpop.xlane.xlu0 %4285
        %v4287 = vsel %vm4043, %v3356, 0.0
        %4288 = vadd.xlane.f32.xlu0 %v4287
        %v4289 = vpop.xlane.xlu0 %4288
        %v4290 = vsel %vm4043, %v3357, 0.0
        %4291 = vadd.xlane.f32.xlu0 %v4290
        %v4292 = vpop.xlane.xlu0 %4291
        %v4293 = vsel %vm4043, %v3358, 0.0
        %4294 = vadd.xlane.f32.xlu0 %v4293
        %v4295 = vpop.xlane.xlu0 %4294
        %v4296 = vsel %vm4043, %v3359, 0.0
        %4297 = vadd.xlane.f32.xlu0 %v4296
        %v4298 = vpop.xlane.xlu0 %4297
        %v4299 = vsel %vm4043, %v3360, 0.0
        %4300 = vadd.xlane.f32.xlu0 %v4299
        %v4301 = vpop.xlane.xlu0 %4300
        %v4302 = vsel %vm4043, %v3361, 0.0
        %4303 = vadd.xlane.f32.xlu0 %v4302
        %v4304 = vpop.xlane.xlu0 %4303
        %v4305 = vsel %vm4043, %v3362, 0.0
        %4306 = vadd.xlane.f32.xlu0 %v4305
        %v4307 = vpop.xlane.xlu0 %4306
        %v4308 = vsel %vm4043, %v3491, 0.0
        %4309 = vadd.xlane.f32.xlu0 %v4308
        %v4310 = vpop.xlane.xlu0 %4309
        %v4311 = vsel %vm4043, %v3492, 0.0
        %4312 = vadd.xlane.f32.xlu0 %v4311
        %v4313 = vpop.xlane.xlu0 %4312
        %v4314 = vsel %vm4043, %v3493, 0.0
        %4315 = vadd.xlane.f32.xlu0 %v4314
        %v4316 = vpop.xlane.xlu0 %4315
        %v4317 = vsel %vm4043, %v3494, 0.0
        %4318 = vadd.xlane.f32.xlu0 %v4317
        %v4319 = vpop.xlane.xlu0 %4318
        %v4320 = vsel %vm4043, %v3495, 0.0
        %4321 = vadd.xlane.f32.xlu0 %v4320
        %v4322 = vpop.xlane.xlu0 %4321
        %v4323 = vsel %vm4043, %v3496, 0.0
        %4324 = vadd.xlane.f32.xlu0 %v4323
        %v4325 = vpop.xlane.xlu0 %4324
        %v4326 = vsel %vm4043, %v3497, 0.0
        %4327 = vadd.xlane.f32.xlu0 %v4326
        %v4328 = vpop.xlane.xlu0 %4327
        %v4329 = vsel %vm4043, %v3498, 0.0
        %4330 = vadd.xlane.f32.xlu0 %v4329
        %v4331 = vpop.xlane.xlu0 %4330
        %v4332 = vsel %vm4043, %v3627, 0.0
        %4333 = vadd.xlane.f32.xlu0 %v4332
        %v4334 = vpop.xlane.xlu0 %4333
        %v4335 = vsel %vm4043, %v3628, 0.0
        %4336 = vadd.xlane.f32.xlu0 %v4335
        %v4337 = vpop.xlane.xlu0 %4336
        %v4338 = vsel %vm4043, %v3629, 0.0
        %4339 = vadd.xlane.f32.xlu0 %v4338
        %v4340 = vpop.xlane.xlu0 %4339
        %v4341 = vsel %vm4043, %v3630, 0.0
        %4342 = vadd.xlane.f32.xlu0 %v4341
        %v4343 = vpop.xlane.xlu0 %4342
        %v4344 = vsel %vm4043, %v3631, 0.0
        %4345 = vadd.xlane.f32.xlu0 %v4344
        %v4346 = vpop.xlane.xlu0 %4345
        %v4347 = vsel %vm4043, %v3632, 0.0
        %4348 = vadd.xlane.f32.xlu0 %v4347
        %v4349 = vpop.xlane.xlu0 %4348
        %v4350 = vsel %vm4043, %v3633, 0.0
        %4351 = vadd.xlane.f32.xlu0 %v4350
        %v4352 = vpop.xlane.xlu0 %4351
        %v4353 = vsel %vm4043, %v3634, 0.0
        %4354 = vadd.xlane.f32.xlu0 %v4353
        %v4355 = vpop.xlane.xlu0 %4354
        %v4356 = vsel %vm4043, %v3763, 0.0
        %4357 = vadd.xlane.f32.xlu0 %v4356
        %v4358 = vpop.xlane.xlu0 %4357
        %v4359 = vsel %vm4043, %v3764, 0.0
        %4360 = vadd.xlane.f32.xlu0 %v4359
        %v4361 = vpop.xlane.xlu0 %4360
        %v4362 = vsel %vm4043, %v3765, 0.0
        %4363 = vadd.xlane.f32.xlu0 %v4362
        %v4364 = vpop.xlane.xlu0 %4363
        %v4365 = vsel %vm4043, %v3766, 0.0
        %4366 = vadd.xlane.f32.xlu0 %v4365
        %v4367 = vpop.xlane.xlu0 %4366
        %v4368 = vsel %vm4043, %v3767, 0.0
        %4369 = vadd.xlane.f32.xlu0 %v4368
        %v4370 = vpop.xlane.xlu0 %4369
        %v4371 = vsel %vm4043, %v3768, 0.0
        %4372 = vadd.xlane.f32.xlu0 %v4371
        %v4373 = vpop.xlane.xlu0 %4372
        %v4374 = vsel %vm4043, %v3769, 0.0
        %4375 = vadd.xlane.f32.xlu0 %v4374
        %v4376 = vpop.xlane.xlu0 %4375
        %v4377 = vsel %vm4043, %v3770, 0.0
        %4378 = vadd.xlane.f32.xlu0 %v4377
        %v4379 = vpop.xlane.xlu0 %4378
        %v4380 = vsel %vm4043, %v3899, 0.0
        %4381 = vadd.xlane.f32.xlu0 %v4380
        %v4382 = vpop.xlane.xlu0 %4381
        %v4383 = vsel %vm4043, %v3900, 0.0
        %4384 = vadd.xlane.f32.xlu0 %v4383
        %v4385 = vpop.xlane.xlu0 %4384
        %v4386 = vsel %vm4043, %v3901, 0.0
        %4387 = vadd.xlane.f32.xlu0 %v4386
        %v4388 = vpop.xlane.xlu0 %4387
        %v4389 = vsel %vm4043, %v3902, 0.0
        %4390 = vadd.xlane.f32.xlu0 %v4389
        %v4391 = vpop.xlane.xlu0 %4390
        %v4392 = vsel %vm4043, %v3903, 0.0
        %4393 = vadd.xlane.f32.xlu0 %v4392
        %v4394 = vpop.xlane.xlu0 %4393
        %v4395 = vsel %vm4043, %v3904, 0.0
        %4396 = vadd.xlane.f32.xlu0 %v4395
        %v4397 = vpop.xlane.xlu0 %4396
        %v4398 = vsel %vm4043, %v3905, 0.0
        %4399 = vadd.xlane.f32.xlu0 %v4398
        %v4400 = vpop.xlane.xlu0 %4399
        %v4401 = vsel %vm4043, %v3906, 0.0
        %4402 = vadd.xlane.f32.xlu0 %v4401
        %v4403 = vpop.xlane.xlu0 %4402
        %v4404 = vsel %vm4043, %v4035, 0.0
        %4405 = vadd.xlane.f32.xlu0 %v4404
        %v4406 = vpop.xlane.xlu0 %4405
        %v4407 = vsel %vm4043, %v4036, 0.0
        %4408 = vadd.xlane.f32.xlu0 %v4407
        %v4409 = vpop.xlane.xlu0 %4408
        %v4410 = vsel %vm4043, %v4037, 0.0
        %4411 = vadd.xlane.f32.xlu0 %v4410
        %v4412 = vpop.xlane.xlu0 %4411
        %v4413 = vsel %vm4043, %v4038, 0.0
        %4414 = vadd.xlane.f32.xlu0 %v4413
        %v4415 = vpop.xlane.xlu0 %4414
        %v4416 = vsel %vm4043, %v4039, 0.0
        %4417 = vadd.xlane.f32.xlu0 %v4416
        %v4418 = vpop.xlane.xlu0 %4417
        %v4419 = vsel %vm4043, %v4040, 0.0
        %4420 = vadd.xlane.f32.xlu0 %v4419
        %v4421 = vpop.xlane.xlu0 %4420
        %v4422 = vsel %vm4043, %v4041, 0.0
        %4423 = vadd.xlane.f32.xlu0 %v4422
        %v4424 = vpop.xlane.xlu0 %4423
        %v4425 = vsel %vm4043, %v4042, 0.0
        %4426 = vadd.xlane.f32.xlu0 %v4425
        %v4427 = vpop.xlane.xlu0 %4426
        %v4428 = vrcp.pop 64.0
        %v4429 = vmul.f32 %v4046, %v4428
        %v4430 = vmul.f32 %v4049, %v4428
        %v4431 = vmul.f32 %v4052, %v4428
        %v4432 = vmul.f32 %v4055, %v4428
        %v4433 = vmul.f32 %v4058, %v4428
        %v4434 = vmul.f32 %v4061, %v4428
        %v4435 = vmul.f32 %v4064, %v4428
        %v4436 = vmul.f32 %v4067, %v4428
        %v4437 = vmul.f32 %v4070, %v4428
        %v4438 = vmul.f32 %v4073, %v4428
        %v4439 = vmul.f32 %v4076, %v4428
        %v4440 = vmul.f32 %v4079, %v4428
        %v4441 = vmul.f32 %v4082, %v4428
        %v4442 = vmul.f32 %v4085, %v4428
        %v4443 = vmul.f32 %v4088, %v4428
        %v4444 = vmul.f32 %v4091, %v4428
        %v4445 = vmul.f32 %v4094, %v4428
        %v4446 = vmul.f32 %v4097, %v4428
        %v4447 = vmul.f32 %v4100, %v4428
        %v4448 = vmul.f32 %v4103, %v4428
        %v4449 = vmul.f32 %v4106, %v4428
        %v4450 = vmul.f32 %v4109, %v4428
        %v4451 = vmul.f32 %v4112, %v4428
        %v4452 = vmul.f32 %v4115, %v4428
        %v4453 = vmul.f32 %v4118, %v4428
        %v4454 = vmul.f32 %v4121, %v4428
        %v4455 = vmul.f32 %v4124, %v4428
        %v4456 = vmul.f32 %v4127, %v4428
        %v4457 = vmul.f32 %v4130, %v4428
        %v4458 = vmul.f32 %v4133, %v4428
        %v4459 = vmul.f32 %v4136, %v4428
        %v4460 = vmul.f32 %v4139, %v4428
        %v4461 = vmul.f32 %v4142, %v4428
        %v4462 = vmul.f32 %v4145, %v4428
        %v4463 = vmul.f32 %v4148, %v4428
        %v4464 = vmul.f32 %v4151, %v4428
        %v4465 = vmul.f32 %v4154, %v4428
        %v4466 = vmul.f32 %v4157, %v4428
        %v4467 = vmul.f32 %v4160, %v4428
        %v4468 = vmul.f32 %v4163, %v4428
        %v4469 = vmul.f32 %v4166, %v4428
        %v4470 = vmul.f32 %v4169, %v4428
        %v4471 = vmul.f32 %v4172, %v4428
        %v4472 = vmul.f32 %v4175, %v4428
        %v4473 = vmul.f32 %v4178, %v4428
        %v4474 = vmul.f32 %v4181, %v4428
        %v4475 = vmul.f32 %v4184, %v4428
        %v4476 = vmul.f32 %v4187, %v4428
        %v4477 = vmul.f32 %v4190, %v4428
        %v4478 = vmul.f32 %v4193, %v4428
        %v4479 = vmul.f32 %v4196, %v4428
        %v4480 = vmul.f32 %v4199, %v4428
        %v4481 = vmul.f32 %v4202, %v4428
        %v4482 = vmul.f32 %v4205, %v4428
        %v4483 = vmul.f32 %v4208, %v4428
        %v4484 = vmul.f32 %v4211, %v4428
        %v4485 = vmul.f32 %v4214, %v4428
        %v4486 = vmul.f32 %v4217, %v4428
        %v4487 = vmul.f32 %v4220, %v4428
        %v4488 = vmul.f32 %v4223, %v4428
        %v4489 = vmul.f32 %v4226, %v4428
        %v4490 = vmul.f32 %v4229, %v4428
        %v4491 = vmul.f32 %v4232, %v4428
        %v4492 = vmul.f32 %v4235, %v4428
        %v4493 = vmul.f32 %v4238, %v4428
        %v4494 = vmul.f32 %v4241, %v4428
        %v4495 = vmul.f32 %v4244, %v4428
        %v4496 = vmul.f32 %v4247, %v4428
        %v4497 = vmul.f32 %v4250, %v4428
        %v4498 = vmul.f32 %v4253, %v4428
        %v4499 = vmul.f32 %v4256, %v4428
        %v4500 = vmul.f32 %v4259, %v4428
        %v4501 = vmul.f32 %v4262, %v4428
        %v4502 = vmul.f32 %v4265, %v4428
        %v4503 = vmul.f32 %v4268, %v4428
        %v4504 = vmul.f32 %v4271, %v4428
        %v4505 = vmul.f32 %v4274, %v4428
        %v4506 = vmul.f32 %v4277, %v4428
        %v4507 = vmul.f32 %v4280, %v4428
        %v4508 = vmul.f32 %v4283, %v4428
        %v4509 = vmul.f32 %v4286, %v4428
        %v4510 = vmul.f32 %v4289, %v4428
        %v4511 = vmul.f32 %v4292, %v4428
        %v4512 = vmul.f32 %v4295, %v4428
        %v4513 = vmul.f32 %v4298, %v4428
        %v4514 = vmul.f32 %v4301, %v4428
        %v4515 = vmul.f32 %v4304, %v4428
        %v4516 = vmul.f32 %v4307, %v4428
        %v4517 = vmul.f32 %v4310, %v4428
        %v4518 = vmul.f32 %v4313, %v4428
        %v4519 = vmul.f32 %v4316, %v4428
        %v4520 = vmul.f32 %v4319, %v4428
        %v4521 = vmul.f32 %v4322, %v4428
        %v4522 = vmul.f32 %v4325, %v4428
        %v4523 = vmul.f32 %v4328, %v4428
        %v4524 = vmul.f32 %v4331, %v4428
        %v4525 = vmul.f32 %v4334, %v4428
        %v4526 = vmul.f32 %v4337, %v4428
        %v4527 = vmul.f32 %v4340, %v4428
        %v4528 = vmul.f32 %v4343, %v4428
        %v4529 = vmul.f32 %v4346, %v4428
        %v4530 = vmul.f32 %v4349, %v4428
        %v4531 = vmul.f32 %v4352, %v4428
        %v4532 = vmul.f32 %v4355, %v4428
        %v4533 = vmul.f32 %v4358, %v4428
        %v4534 = vmul.f32 %v4361, %v4428
        %v4535 = vmul.f32 %v4364, %v4428
        %v4536 = vmul.f32 %v4367, %v4428
        %v4537 = vmul.f32 %v4370, %v4428
        %v4538 = vmul.f32 %v4373, %v4428
        %v4539 = vmul.f32 %v4376, %v4428
        %v4540 = vmul.f32 %v4379, %v4428
        %v4541 = vmul.f32 %v4382, %v4428
        %v4542 = vmul.f32 %v4385, %v4428
        %v4543 = vmul.f32 %v4388, %v4428
        %v4544 = vmul.f32 %v4391, %v4428
        %v4545 = vmul.f32 %v4394, %v4428
        %v4546 = vmul.f32 %v4397, %v4428
        %v4547 = vmul.f32 %v4400, %v4428
        %v4548 = vmul.f32 %v4403, %v4428
        %v4549 = vmul.f32 %v4406, %v4428
        %v4550 = vmul.f32 %v4409, %v4428
        %v4551 = vmul.f32 %v4412, %v4428
        %v4552 = vmul.f32 %v4415, %v4428
        %v4553 = vmul.f32 %v4418, %v4428
        %v4554 = vmul.f32 %v4421, %v4428
        %v4555 = vmul.f32 %v4424, %v4428
        %v4556 = vmul.f32 %v4427, %v4428
        %v4557 = vmul.f32 %v1995, %v1995
        %v4558 = vmul.f32 %v1996, %v1996
        %v4559 = vmul.f32 %v1997, %v1997
        %v4560 = vmul.f32 %v1998, %v1998
        %v4561 = vmul.f32 %v1999, %v1999
        %v4562 = vmul.f32 %v2000, %v2000
        %v4563 = vmul.f32 %v2001, %v2001
        %v4564 = vmul.f32 %v2002, %v2002
        %v4565 = vmul.f32 %v2131, %v2131
        %v4566 = vmul.f32 %v2132, %v2132
        %v4567 = vmul.f32 %v2133, %v2133
        %v4568 = vmul.f32 %v2134, %v2134
        %v4569 = vmul.f32 %v2135, %v2135
        %v4570 = vmul.f32 %v2136, %v2136
        %v4571 = vmul.f32 %v2137, %v2137
        %v4572 = vmul.f32 %v2138, %v2138
        %v4573 = vmul.f32 %v2267, %v2267
        %v4574 = vmul.f32 %v2268, %v2268
        %v4575 = vmul.f32 %v2269, %v2269
        %v4576 = vmul.f32 %v2270, %v2270
        %v4577 = vmul.f32 %v2271, %v2271
        %v4578 = vmul.f32 %v2272, %v2272
        %v4579 = vmul.f32 %v2273, %v2273
        %v4580 = vmul.f32 %v2274, %v2274
        %v4581 = vmul.f32 %v2403, %v2403
        %v4582 = vmul.f32 %v2404, %v2404
        %v4583 = vmul.f32 %v2405, %v2405
        %v4584 = vmul.f32 %v2406, %v2406
        %v4585 = vmul.f32 %v2407, %v2407
        %v4586 = vmul.f32 %v2408, %v2408
        %v4587 = vmul.f32 %v2409, %v2409
        %v4588 = vmul.f32 %v2410, %v2410
        %v4589 = vmul.f32 %v2539, %v2539
        %v4590 = vmul.f32 %v2540, %v2540
        %v4591 = vmul.f32 %v2541, %v2541
        %v4592 = vmul.f32 %v2542, %v2542
        %v4593 = vmul.f32 %v2543, %v2543
        %v4594 = vmul.f32 %v2544, %v2544
        %v4595 = vmul.f32 %v2545, %v2545
        %v4596 = vmul.f32 %v2546, %v2546
        %v4597 = vmul.f32 %v2675, %v2675
        %v4598 = vmul.f32 %v2676, %v2676
        %v4599 = vmul.f32 %v2677, %v2677
        %v4600 = vmul.f32 %v2678, %v2678
        %v4601 = vmul.f32 %v2679, %v2679
        %v4602 = vmul.f32 %v2680, %v2680
        %v4603 = vmul.f32 %v2681, %v2681
        %v4604 = vmul.f32 %v2682, %v2682
        %v4605 = vmul.f32 %v2811, %v2811
        %v4606 = vmul.f32 %v2812, %v2812
        %v4607 = vmul.f32 %v2813, %v2813
        %v4608 = vmul.f32 %v2814, %v2814
        %v4609 = vmul.f32 %v2815, %v2815
        %v4610 = vmul.f32 %v2816, %v2816
        %v4611 = vmul.f32 %v2817, %v2817
        %v4612 = vmul.f32 %v2818, %v2818
        %v4613 = vmul.f32 %v2947, %v2947
        %v4614 = vmul.f32 %v2948, %v2948
        %v4615 = vmul.f32 %v2949, %v2949
        %v4616 = vmul.f32 %v2950, %v2950
        %v4617 = vmul.f32 %v2951, %v2951
        %v4618 = vmul.f32 %v2952, %v2952
        %v4619 = vmul.f32 %v2953, %v2953
        %v4620 = vmul.f32 %v2954, %v2954
        %v4621 = vmul.f32 %v3083, %v3083
        %v4622 = vmul.f32 %v3084, %v3084
        %v4623 = vmul.f32 %v3085, %v3085
        %v4624 = vmul.f32 %v3086, %v3086
        %v4625 = vmul.f32 %v3087, %v3087
        %v4626 = vmul.f32 %v3088, %v3088
        %v4627 = vmul.f32 %v3089, %v3089
        %v4628 = vmul.f32 %v3090, %v3090
        %v4629 = vmul.f32 %v3219, %v3219
        %v4630 = vmul.f32 %v3220, %v3220
        %v4631 = vmul.f32 %v3221, %v3221
        %v4632 = vmul.f32 %v3222, %v3222
        %v4633 = vmul.f32 %v3223, %v3223
        %v4634 = vmul.f32 %v3224, %v3224
        %v4635 = vmul.f32 %v3225, %v3225
        %v4636 = vmul.f32 %v3226, %v3226
        %v4637 = vmul.f32 %v3355, %v3355
        %v4638 = vmul.f32 %v3356, %v3356
        %v4639 = vmul.f32 %v3357, %v3357
        %v4640 = vmul.f32 %v3358, %v3358
        %v4641 = vmul.f32 %v3359, %v3359
        %v4642 = vmul.f32 %v3360, %v3360
        %v4643 = vmul.f32 %v3361, %v3361
        %v4644 = vmul.f32 %v3362, %v3362
        %v4645 = vmul.f32 %v3491, %v3491
        %v4646 = vmul.f32 %v3492, %v3492
        %v4647 = vmul.f32 %v3493, %v3493
        %v4648 = vmul.f32 %v3494, %v3494
        %v4649 = vmul.f32 %v3495, %v3495
        %v4650 = vmul.f32 %v3496, %v3496
        %v4651 = vmul.f32 %v3497, %v3497
        %v4652 = vmul.f32 %v3498, %v3498
        %v4653 = vmul.f32 %v3627, %v3627
        %v4654 = vmul.f32 %v3628, %v3628
        %v4655 = vmul.f32 %v3629, %v3629
        %v4656 = vmul.f32 %v3630, %v3630
        %v4657 = vmul.f32 %v3631, %v3631
        %v4658 = vmul.f32 %v3632, %v3632
        %v4659 = vmul.f32 %v3633, %v3633
        %v4660 = vmul.f32 %v3634, %v3634
        %v4661 = vmul.f32 %v3763, %v3763
        %v4662 = vmul.f32 %v3764, %v3764
        %v4663 = vmul.f32 %v3765, %v3765
        %v4664 = vmul.f32 %v3766, %v3766
        %v4665 = vmul.f32 %v3767, %v3767
        %v4666 = vmul.f32 %v3768, %v3768
        %v4667 = vmul.f32 %v3769, %v3769
        %v4668 = vmul.f32 %v3770, %v3770
        %v4669 = vmul.f32 %v3899, %v3899
        %v4670 = vmul.f32 %v3900, %v3900
        %v4671 = vmul.f32 %v3901, %v3901
        %v4672 = vmul.f32 %v3902, %v3902
        %v4673 = vmul.f32 %v3903, %v3903
        %v4674 = vmul.f32 %v3904, %v3904
        %v4675 = vmul.f32 %v3905, %v3905
        %v4676 = vmul.f32 %v3906, %v3906
        %v4677 = vmul.f32 %v4035, %v4035
        %v4678 = vmul.f32 %v4036, %v4036
        %v4679 = vmul.f32 %v4037, %v4037
        %v4680 = vmul.f32 %v4038, %v4038
        %v4681 = vmul.f32 %v4039, %v4039
        %v4682 = vmul.f32 %v4040, %v4040
        %v4683 = vmul.f32 %v4041, %v4041
        %v4684 = vmul.f32 %v4042, %v4042
        %v4685 = vsel %vm4043, %v4557, 0.0
        %4686 = vadd.xlane.f32.xlu0 %v4685
        %v4687 = vpop.xlane.xlu0 %4686
        %v4688 = vsel %vm4043, %v4558, 0.0
        %4689 = vadd.xlane.f32.xlu0 %v4688
        %v4690 = vpop.xlane.xlu0 %4689
        %v4691 = vsel %vm4043, %v4559, 0.0
        %4692 = vadd.xlane.f32.xlu0 %v4691
        %v4693 = vpop.xlane.xlu0 %4692
        %v4694 = vsel %vm4043, %v4560, 0.0
        %4695 = vadd.xlane.f32.xlu0 %v4694
        %v4696 = vpop.xlane.xlu0 %4695
        %v4697 = vsel %vm4043, %v4561, 0.0
        %4698 = vadd.xlane.f32.xlu0 %v4697
        %v4699 = vpop.xlane.xlu0 %4698
        %v4700 = vsel %vm4043, %v4562, 0.0
        %4701 = vadd.xlane.f32.xlu0 %v4700
        %v4702 = vpop.xlane.xlu0 %4701
        %v4703 = vsel %vm4043, %v4563, 0.0
        %4704 = vadd.xlane.f32.xlu0 %v4703
        %v4705 = vpop.xlane.xlu0 %4704
        %v4706 = vsel %vm4043, %v4564, 0.0
        %4707 = vadd.xlane.f32.xlu0 %v4706
        %v4708 = vpop.xlane.xlu0 %4707
        %v4709 = vsel %vm4043, %v4565, 0.0
        %4710 = vadd.xlane.f32.xlu0 %v4709
        %v4711 = vpop.xlane.xlu0 %4710
        %v4712 = vsel %vm4043, %v4566, 0.0
        %4713 = vadd.xlane.f32.xlu0 %v4712
        %v4714 = vpop.xlane.xlu0 %4713
        %v4715 = vsel %vm4043, %v4567, 0.0
        %4716 = vadd.xlane.f32.xlu0 %v4715
        %v4717 = vpop.xlane.xlu0 %4716
        %v4718 = vsel %vm4043, %v4568, 0.0
        %4719 = vadd.xlane.f32.xlu0 %v4718
        %v4720 = vpop.xlane.xlu0 %4719
        %v4721 = vsel %vm4043, %v4569, 0.0
        %4722 = vadd.xlane.f32.xlu0 %v4721
        %v4723 = vpop.xlane.xlu0 %4722
        %v4724 = vsel %vm4043, %v4570, 0.0
        %4725 = vadd.xlane.f32.xlu0 %v4724
        %v4726 = vpop.xlane.xlu0 %4725
        %v4727 = vsel %vm4043, %v4571, 0.0
        %4728 = vadd.xlane.f32.xlu0 %v4727
        %v4729 = vpop.xlane.xlu0 %4728
        %v4730 = vsel %vm4043, %v4572, 0.0
        %4731 = vadd.xlane.f32.xlu0 %v4730
        %v4732 = vpop.xlane.xlu0 %4731
        %v4733 = vsel %vm4043, %v4573, 0.0
        %4734 = vadd.xlane.f32.xlu0 %v4733
        %v4735 = vpop.xlane.xlu0 %4734
        %v4736 = vsel %vm4043, %v4574, 0.0
        %4737 = vadd.xlane.f32.xlu0 %v4736
        %v4738 = vpop.xlane.xlu0 %4737
        %v4739 = vsel %vm4043, %v4575, 0.0
        %4740 = vadd.xlane.f32.xlu0 %v4739
        %v4741 = vpop.xlane.xlu0 %4740
        %v4742 = vsel %vm4043, %v4576, 0.0
        %4743 = vadd.xlane.f32.xlu0 %v4742
        %v4744 = vpop.xlane.xlu0 %4743
        %v4745 = vsel %vm4043, %v4577, 0.0
        %4746 = vadd.xlane.f32.xlu0 %v4745
        %v4747 = vpop.xlane.xlu0 %4746
        %v4748 = vsel %vm4043, %v4578, 0.0
        %4749 = vadd.xlane.f32.xlu0 %v4748
        %v4750 = vpop.xlane.xlu0 %4749
        %v4751 = vsel %vm4043, %v4579, 0.0
        %4752 = vadd.xlane.f32.xlu0 %v4751
        %v4753 = vpop.xlane.xlu0 %4752
        %v4754 = vsel %vm4043, %v4580, 0.0
        %4755 = vadd.xlane.f32.xlu0 %v4754
        %v4756 = vpop.xlane.xlu0 %4755
        %v4757 = vsel %vm4043, %v4581, 0.0
        %4758 = vadd.xlane.f32.xlu0 %v4757
        %v4759 = vpop.xlane.xlu0 %4758
        %v4760 = vsel %vm4043, %v4582, 0.0
        %4761 = vadd.xlane.f32.xlu0 %v4760
        %v4762 = vpop.xlane.xlu0 %4761
        %v4763 = vsel %vm4043, %v4583, 0.0
        %4764 = vadd.xlane.f32.xlu0 %v4763
        %v4765 = vpop.xlane.xlu0 %4764
        %v4766 = vsel %vm4043, %v4584, 0.0
        %4767 = vadd.xlane.f32.xlu0 %v4766
        %v4768 = vpop.xlane.xlu0 %4767
        %v4769 = vsel %vm4043, %v4585, 0.0
        %4770 = vadd.xlane.f32.xlu0 %v4769
        %v4771 = vpop.xlane.xlu0 %4770
        %v4772 = vsel %vm4043, %v4586, 0.0
        %4773 = vadd.xlane.f32.xlu0 %v4772
        %v4774 = vpop.xlane.xlu0 %4773
        %v4775 = vsel %vm4043, %v4587, 0.0
        %4776 = vadd.xlane.f32.xlu0 %v4775
        %v4777 = vpop.xlane.xlu0 %4776
        %v4778 = vsel %vm4043, %v4588, 0.0
        %4779 = vadd.xlane.f32.xlu0 %v4778
        %v4780 = vpop.xlane.xlu0 %4779
        %v4781 = vsel %vm4043, %v4589, 0.0
        %4782 = vadd.xlane.f32.xlu0 %v4781
        %v4783 = vpop.xlane.xlu0 %4782
        %v4784 = vsel %vm4043, %v4590, 0.0
        %4785 = vadd.xlane.f32.xlu0 %v4784
        %v4786 = vpop.xlane.xlu0 %4785
        %v4787 = vsel %vm4043, %v4591, 0.0
        %4788 = vadd.xlane.f32.xlu0 %v4787
        %v4789 = vpop.xlane.xlu0 %4788
        %v4790 = vsel %vm4043, %v4592, 0.0
        %4791 = vadd.xlane.f32.xlu0 %v4790
        %v4792 = vpop.xlane.xlu0 %4791
        %v4793 = vsel %vm4043, %v4593, 0.0
        %4794 = vadd.xlane.f32.xlu0 %v4793
        %v4795 = vpop.xlane.xlu0 %4794
        %v4796 = vsel %vm4043, %v4594, 0.0
        %4797 = vadd.xlane.f32.xlu0 %v4796
        %v4798 = vpop.xlane.xlu0 %4797
        %v4799 = vsel %vm4043, %v4595, 0.0
        %4800 = vadd.xlane.f32.xlu0 %v4799
        %v4801 = vpop.xlane.xlu0 %4800
        %v4802 = vsel %vm4043, %v4596, 0.0
        %4803 = vadd.xlane.f32.xlu0 %v4802
        %v4804 = vpop.xlane.xlu0 %4803
        %v4805 = vsel %vm4043, %v4597, 0.0
        %4806 = vadd.xlane.f32.xlu0 %v4805
        %v4807 = vpop.xlane.xlu0 %4806
        %v4808 = vsel %vm4043, %v4598, 0.0
        %4809 = vadd.xlane.f32.xlu0 %v4808
        %v4810 = vpop.xlane.xlu0 %4809
        %v4811 = vsel %vm4043, %v4599, 0.0
        %4812 = vadd.xlane.f32.xlu0 %v4811
        %v4813 = vpop.xlane.xlu0 %4812
        %v4814 = vsel %vm4043, %v4600, 0.0
        %4815 = vadd.xlane.f32.xlu0 %v4814
        %v4816 = vpop.xlane.xlu0 %4815
        %v4817 = vsel %vm4043, %v4601, 0.0
        %4818 = vadd.xlane.f32.xlu0 %v4817
        %v4819 = vpop.xlane.xlu0 %4818
        %v4820 = vsel %vm4043, %v4602, 0.0
        %4821 = vadd.xlane.f32.xlu0 %v4820
        %v4822 = vpop.xlane.xlu0 %4821
        %v4823 = vsel %vm4043, %v4603, 0.0
        %4824 = vadd.xlane.f32.xlu0 %v4823
        %v4825 = vpop.xlane.xlu0 %4824
        %v4826 = vsel %vm4043, %v4604, 0.0
        %4827 = vadd.xlane.f32.xlu0 %v4826
        %v4828 = vpop.xlane.xlu0 %4827
        %v4829 = vsel %vm4043, %v4605, 0.0
        %4830 = vadd.xlane.f32.xlu0 %v4829
        %v4831 = vpop.xlane.xlu0 %4830
        %v4832 = vsel %vm4043, %v4606, 0.0
        %4833 = vadd.xlane.f32.xlu0 %v4832
        %v4834 = vpop.xlane.xlu0 %4833
        %v4835 = vsel %vm4043, %v4607, 0.0
        %4836 = vadd.xlane.f32.xlu0 %v4835
        %v4837 = vpop.xlane.xlu0 %4836
        %v4838 = vsel %vm4043, %v4608, 0.0
        %4839 = vadd.xlane.f32.xlu0 %v4838
        %v4840 = vpop.xlane.xlu0 %4839
        %v4841 = vsel %vm4043, %v4609, 0.0
        %4842 = vadd.xlane.f32.xlu0 %v4841
        %v4843 = vpop.xlane.xlu0 %4842
        %v4844 = vsel %vm4043, %v4610, 0.0
        %4845 = vadd.xlane.f32.xlu0 %v4844
        %v4846 = vpop.xlane.xlu0 %4845
        %v4847 = vsel %vm4043, %v4611, 0.0
        %4848 = vadd.xlane.f32.xlu0 %v4847
        %v4849 = vpop.xlane.xlu0 %4848
        %v4850 = vsel %vm4043, %v4612, 0.0
        %4851 = vadd.xlane.f32.xlu0 %v4850
        %v4852 = vpop.xlane.xlu0 %4851
        %v4853 = vsel %vm4043, %v4613, 0.0
        %4854 = vadd.xlane.f32.xlu0 %v4853
        %v4855 = vpop.xlane.xlu0 %4854
        %v4856 = vsel %vm4043, %v4614, 0.0
        %4857 = vadd.xlane.f32.xlu0 %v4856
        %v4858 = vpop.xlane.xlu0 %4857
        %v4859 = vsel %vm4043, %v4615, 0.0
        %4860 = vadd.xlane.f32.xlu0 %v4859
        %v4861 = vpop.xlane.xlu0 %4860
        %v4862 = vsel %vm4043, %v4616, 0.0
        %4863 = vadd.xlane.f32.xlu0 %v4862
        %v4864 = vpop.xlane.xlu0 %4863
        %v4865 = vsel %vm4043, %v4617, 0.0
        %4866 = vadd.xlane.f32.xlu0 %v4865
        %v4867 = vpop.xlane.xlu0 %4866
        %v4868 = vsel %vm4043, %v4618, 0.0
        %4869 = vadd.xlane.f32.xlu0 %v4868
        %v4870 = vpop.xlane.xlu0 %4869
        %v4871 = vsel %vm4043, %v4619, 0.0
        %4872 = vadd.xlane.f32.xlu0 %v4871
        %v4873 = vpop.xlane.xlu0 %4872
        %v4874 = vsel %vm4043, %v4620, 0.0
        %4875 = vadd.xlane.f32.xlu0 %v4874
        %v4876 = vpop.xlane.xlu0 %4875
        %v4877 = vsel %vm4043, %v4621, 0.0
        %4878 = vadd.xlane.f32.xlu0 %v4877
        %v4879 = vpop.xlane.xlu0 %4878
        %v4880 = vsel %vm4043, %v4622, 0.0
        %4881 = vadd.xlane.f32.xlu0 %v4880
        %v4882 = vpop.xlane.xlu0 %4881
        %v4883 = vsel %vm4043, %v4623, 0.0
        %4884 = vadd.xlane.f32.xlu0 %v4883
        %v4885 = vpop.xlane.xlu0 %4884
        %v4886 = vsel %vm4043, %v4624, 0.0
        %4887 = vadd.xlane.f32.xlu0 %v4886
        %v4888 = vpop.xlane.xlu0 %4887
        %v4889 = vsel %vm4043, %v4625, 0.0
        %4890 = vadd.xlane.f32.xlu0 %v4889
        %v4891 = vpop.xlane.xlu0 %4890
        %v4892 = vsel %vm4043, %v4626, 0.0
        %4893 = vadd.xlane.f32.xlu0 %v4892
        %v4894 = vpop.xlane.xlu0 %4893
        %v4895 = vsel %vm4043, %v4627, 0.0
        %4896 = vadd.xlane.f32.xlu0 %v4895
        %v4897 = vpop.xlane.xlu0 %4896
        %v4898 = vsel %vm4043, %v4628, 0.0
        %4899 = vadd.xlane.f32.xlu0 %v4898
        %v4900 = vpop.xlane.xlu0 %4899
        %v4901 = vsel %vm4043, %v4629, 0.0
        %4902 = vadd.xlane.f32.xlu0 %v4901
        %v4903 = vpop.xlane.xlu0 %4902
        %v4904 = vsel %vm4043, %v4630, 0.0
        %4905 = vadd.xlane.f32.xlu0 %v4904
        %v4906 = vpop.xlane.xlu0 %4905
        %v4907 = vsel %vm4043, %v4631, 0.0
        %4908 = vadd.xlane.f32.xlu0 %v4907
        %v4909 = vpop.xlane.xlu0 %4908
        %v4910 = vsel %vm4043, %v4632, 0.0
        %4911 = vadd.xlane.f32.xlu0 %v4910
        %v4912 = vpop.xlane.xlu0 %4911
        %v4913 = vsel %vm4043, %v4633, 0.0
        %4914 = vadd.xlane.f32.xlu0 %v4913
        %v4915 = vpop.xlane.xlu0 %4914
        %v4916 = vsel %vm4043, %v4634, 0.0
        %4917 = vadd.xlane.f32.xlu0 %v4916
        %v4918 = vpop.xlane.xlu0 %4917
        %v4919 = vsel %vm4043, %v4635, 0.0
        %4920 = vadd.xlane.f32.xlu0 %v4919
        %v4921 = vpop.xlane.xlu0 %4920
        %v4922 = vsel %vm4043, %v4636, 0.0
        %4923 = vadd.xlane.f32.xlu0 %v4922
        %v4924 = vpop.xlane.xlu0 %4923
        %v4925 = vsel %vm4043, %v4637, 0.0
        %4926 = vadd.xlane.f32.xlu0 %v4925
        %v4927 = vpop.xlane.xlu0 %4926
        %v4928 = vsel %vm4043, %v4638, 0.0
        %4929 = vadd.xlane.f32.xlu0 %v4928
        %v4930 = vpop.xlane.xlu0 %4929
        %v4931 = vsel %vm4043, %v4639, 0.0
        %4932 = vadd.xlane.f32.xlu0 %v4931
        %v4933 = vpop.xlane.xlu0 %4932
        %v4934 = vsel %vm4043, %v4640, 0.0
        %4935 = vadd.xlane.f32.xlu0 %v4934
        %v4936 = vpop.xlane.xlu0 %4935
        %v4937 = vsel %vm4043, %v4641, 0.0
        %4938 = vadd.xlane.f32.xlu0 %v4937
        %v4939 = vpop.xlane.xlu0 %4938
        %v4940 = vsel %vm4043, %v4642, 0.0
        %4941 = vadd.xlane.f32.xlu0 %v4940
        %v4942 = vpop.xlane.xlu0 %4941
        %v4943 = vsel %vm4043, %v4643, 0.0
        %4944 = vadd.xlane.f32.xlu0 %v4943
        %v4945 = vpop.xlane.xlu0 %4944
        %v4946 = vsel %vm4043, %v4644, 0.0
        %4947 = vadd.xlane.f32.xlu0 %v4946
        %v4948 = vpop.xlane.xlu0 %4947
        %v4949 = vsel %vm4043, %v4645, 0.0
        %4950 = vadd.xlane.f32.xlu0 %v4949
        %v4951 = vpop.xlane.xlu0 %4950
        %v4952 = vsel %vm4043, %v4646, 0.0
        %4953 = vadd.xlane.f32.xlu0 %v4952
        %v4954 = vpop.xlane.xlu0 %4953
        %v4955 = vsel %vm4043, %v4647, 0.0
        %4956 = vadd.xlane.f32.xlu0 %v4955
        %v4957 = vpop.xlane.xlu0 %4956
        %v4958 = vsel %vm4043, %v4648, 0.0
        %4959 = vadd.xlane.f32.xlu0 %v4958
        %v4960 = vpop.xlane.xlu0 %4959
        %v4961 = vsel %vm4043, %v4649, 0.0
        %4962 = vadd.xlane.f32.xlu0 %v4961
        %v4963 = vpop.xlane.xlu0 %4962
        %v4964 = vsel %vm4043, %v4650, 0.0
        %4965 = vadd.xlane.f32.xlu0 %v4964
        %v4966 = vpop.xlane.xlu0 %4965
        %v4967 = vsel %vm4043, %v4651, 0.0
        %4968 = vadd.xlane.f32.xlu0 %v4967
        %v4969 = vpop.xlane.xlu0 %4968
        %v4970 = vsel %vm4043, %v4652, 0.0
        %4971 = vadd.xlane.f32.xlu0 %v4970
        %v4972 = vpop.xlane.xlu0 %4971
        %v4973 = vsel %vm4043, %v4653, 0.0
        %4974 = vadd.xlane.f32.xlu0 %v4973
        %v4975 = vpop.xlane.xlu0 %4974
        %v4976 = vsel %vm4043, %v4654, 0.0
        %4977 = vadd.xlane.f32.xlu0 %v4976
        %v4978 = vpop.xlane.xlu0 %4977
        %v4979 = vsel %vm4043, %v4655, 0.0
        %4980 = vadd.xlane.f32.xlu0 %v4979
        %v4981 = vpop.xlane.xlu0 %4980
        %v4982 = vsel %vm4043, %v4656, 0.0
        %4983 = vadd.xlane.f32.xlu0 %v4982
        %v4984 = vpop.xlane.xlu0 %4983
        %v4985 = vsel %vm4043, %v4657, 0.0
        %4986 = vadd.xlane.f32.xlu0 %v4985
        %v4987 = vpop.xlane.xlu0 %4986
        %v4988 = vsel %vm4043, %v4658, 0.0
        %4989 = vadd.xlane.f32.xlu0 %v4988
        %v4990 = vpop.xlane.xlu0 %4989
        %v4991 = vsel %vm4043, %v4659, 0.0
        %4992 = vadd.xlane.f32.xlu0 %v4991
        %v4993 = vpop.xlane.xlu0 %4992
        %v4994 = vsel %vm4043, %v4660, 0.0
        %4995 = vadd.xlane.f32.xlu0 %v4994
        %v4996 = vpop.xlane.xlu0 %4995
        %v4997 = vsel %vm4043, %v4661, 0.0
        %4998 = vadd.xlane.f32.xlu0 %v4997
        %v4999 = vpop.xlane.xlu0 %4998
        %v5000 = vsel %vm4043, %v4662, 0.0
        %5001 = vadd.xlane.f32.xlu0 %v5000
        %v5002 = vpop.xlane.xlu0 %5001
        %v5003 = vsel %vm4043, %v4663, 0.0
        %5004 = vadd.xlane.f32.xlu0 %v5003
        %v5005 = vpop.xlane.xlu0 %5004
        %v5006 = vsel %vm4043, %v4664, 0.0
        %5007 = vadd.xlane.f32.xlu0 %v5006
        %v5008 = vpop.xlane.xlu0 %5007
        %v5009 = vsel %vm4043, %v4665, 0.0
        %5010 = vadd.xlane.f32.xlu0 %v5009
        %v5011 = vpop.xlane.xlu0 %5010
        %v5012 = vsel %vm4043, %v4666, 0.0
        %5013 = vadd.xlane.f32.xlu0 %v5012
        %v5014 = vpop.xlane.xlu0 %5013
        %v5015 = vsel %vm4043, %v4667, 0.0
        %5016 = vadd.xlane.f32.xlu0 %v5015
        %v5017 = vpop.xlane.xlu0 %5016
        %v5018 = vsel %vm4043, %v4668, 0.0
        %5019 = vadd.xlane.f32.xlu0 %v5018
        %v5020 = vpop.xlane.xlu0 %5019
        %v5021 = vsel %vm4043, %v4669, 0.0
        %5022 = vadd.xlane.f32.xlu0 %v5021
        %v5023 = vpop.xlane.xlu0 %5022
        %v5024 = vsel %vm4043, %v4670, 0.0
        %5025 = vadd.xlane.f32.xlu0 %v5024
        %v5026 = vpop.xlane.xlu0 %5025
        %v5027 = vsel %vm4043, %v4671, 0.0
        %5028 = vadd.xlane.f32.xlu0 %v5027
        %v5029 = vpop.xlane.xlu0 %5028
        %v5030 = vsel %vm4043, %v4672, 0.0
        %5031 = vadd.xlane.f32.xlu0 %v5030
        %v5032 = vpop.xlane.xlu0 %5031
        %v5033 = vsel %vm4043, %v4673, 0.0
        %5034 = vadd.xlane.f32.xlu0 %v5033
        %v5035 = vpop.xlane.xlu0 %5034
        %v5036 = vsel %vm4043, %v4674, 0.0
        %5037 = vadd.xlane.f32.xlu0 %v5036
        %v5038 = vpop.xlane.xlu0 %5037
        %v5039 = vsel %vm4043, %v4675, 0.0
        %5040 = vadd.xlane.f32.xlu0 %v5039
        %v5041 = vpop.xlane.xlu0 %5040
        %v5042 = vsel %vm4043, %v4676, 0.0
        %5043 = vadd.xlane.f32.xlu0 %v5042
        %v5044 = vpop.xlane.xlu0 %5043
        %v5045 = vsel %vm4043, %v4677, 0.0
        %5046 = vadd.xlane.f32.xlu0 %v5045
        %v5047 = vpop.xlane.xlu0 %5046
        %v5048 = vsel %vm4043, %v4678, 0.0
        %5049 = vadd.xlane.f32.xlu0 %v5048
        %v5050 = vpop.xlane.xlu0 %5049
        %v5051 = vsel %vm4043, %v4679, 0.0
        %5052 = vadd.xlane.f32.xlu0 %v5051
        %v5053 = vpop.xlane.xlu0 %5052
        %v5054 = vsel %vm4043, %v4680, 0.0
        %5055 = vadd.xlane.f32.xlu0 %v5054
        %v5056 = vpop.xlane.xlu0 %5055
        %v5057 = vsel %vm4043, %v4681, 0.0
        %5058 = vadd.xlane.f32.xlu0 %v5057
        %v5059 = vpop.xlane.xlu0 %5058
        %v5060 = vsel %vm4043, %v4682, 0.0
        %5061 = vadd.xlane.f32.xlu0 %v5060
        %v5062 = vpop.xlane.xlu0 %5061
        %v5063 = vsel %vm4043, %v4683, 0.0
        %5064 = vadd.xlane.f32.xlu0 %v5063
        %v5065 = vpop.xlane.xlu0 %5064
        %v5066 = vsel %vm4043, %v4684, 0.0
        %5067 = vadd.xlane.f32.xlu0 %v5066
        %v5068 = vpop.xlane.xlu0 %5067
        %v5069 = vmul.f32 %v4687, %v4428
        %v5070 = vmul.f32 %v4690, %v4428
        %v5071 = vmul.f32 %v4693, %v4428
        %v5072 = vmul.f32 %v4696, %v4428
        %v5073 = vmul.f32 %v4699, %v4428
        %v5074 = vmul.f32 %v4702, %v4428
        %v5075 = vmul.f32 %v4705, %v4428
        %v5076 = vmul.f32 %v4708, %v4428
        %v5077 = vmul.f32 %v4711, %v4428
        %v5078 = vmul.f32 %v4714, %v4428
        %v5079 = vmul.f32 %v4717, %v4428
        %v5080 = vmul.f32 %v4720, %v4428
        %v5081 = vmul.f32 %v4723, %v4428
        %v5082 = vmul.f32 %v4726, %v4428
        %v5083 = vmul.f32 %v4729, %v4428
        %v5084 = vmul.f32 %v4732, %v4428
        %v5085 = vmul.f32 %v4735, %v4428
        %v5086 = vmul.f32 %v4738, %v4428
        %v5087 = vmul.f32 %v4741, %v4428
        %v5088 = vmul.f32 %v4744, %v4428
        %v5089 = vmul.f32 %v4747, %v4428
        %v5090 = vmul.f32 %v4750, %v4428
        %v5091 = vmul.f32 %v4753, %v4428
        %v5092 = vmul.f32 %v4756, %v4428
        %v5093 = vmul.f32 %v4759, %v4428
        %v5094 = vmul.f32 %v4762, %v4428
        %v5095 = vmul.f32 %v4765, %v4428
        %v5096 = vmul.f32 %v4768, %v4428
        %v5097 = vmul.f32 %v4771, %v4428
        %v5098 = vmul.f32 %v4774, %v4428
        %v5099 = vmul.f32 %v4777, %v4428
        %v5100 = vmul.f32 %v4780, %v4428
        %v5101 = vmul.f32 %v4783, %v4428
        %v5102 = vmul.f32 %v4786, %v4428
        %v5103 = vmul.f32 %v4789, %v4428
        %v5104 = vmul.f32 %v4792, %v4428
        %v5105 = vmul.f32 %v4795, %v4428
        %v5106 = vmul.f32 %v4798, %v4428
        %v5107 = vmul.f32 %v4801, %v4428
        %v5108 = vmul.f32 %v4804, %v4428
        %v5109 = vmul.f32 %v4807, %v4428
        %v5110 = vmul.f32 %v4810, %v4428
        %v5111 = vmul.f32 %v4813, %v4428
        %v5112 = vmul.f32 %v4816, %v4428
        %v5113 = vmul.f32 %v4819, %v4428
        %v5114 = vmul.f32 %v4822, %v4428
        %v5115 = vmul.f32 %v4825, %v4428
        %v5116 = vmul.f32 %v4828, %v4428
        %v5117 = vmul.f32 %v4831, %v4428
        %v5118 = vmul.f32 %v4834, %v4428
        %v5119 = vmul.f32 %v4837, %v4428
        %v5120 = vmul.f32 %v4840, %v4428
        %v5121 = vmul.f32 %v4843, %v4428
        %v5122 = vmul.f32 %v4846, %v4428
        %v5123 = vmul.f32 %v4849, %v4428
        %v5124 = vmul.f32 %v4852, %v4428
        %v5125 = vmul.f32 %v4855, %v4428
        %v5126 = vmul.f32 %v4858, %v4428
        %v5127 = vmul.f32 %v4861, %v4428
        %v5128 = vmul.f32 %v4864, %v4428
        %v5129 = vmul.f32 %v4867, %v4428
        %v5130 = vmul.f32 %v4870, %v4428
        %v5131 = vmul.f32 %v4873, %v4428
        %v5132 = vmul.f32 %v4876, %v4428
        %v5133 = vmul.f32 %v4879, %v4428
        %v5134 = vmul.f32 %v4882, %v4428
        %v5135 = vmul.f32 %v4885, %v4428
        %v5136 = vmul.f32 %v4888, %v4428
        %v5137 = vmul.f32 %v4891, %v4428
        %v5138 = vmul.f32 %v4894, %v4428
        %v5139 = vmul.f32 %v4897, %v4428
        %v5140 = vmul.f32 %v4900, %v4428
        %v5141 = vmul.f32 %v4903, %v4428
        %v5142 = vmul.f32 %v4906, %v4428
        %v5143 = vmul.f32 %v4909, %v4428
        %v5144 = vmul.f32 %v4912, %v4428
        %v5145 = vmul.f32 %v4915, %v4428
        %v5146 = vmul.f32 %v4918, %v4428
        %v5147 = vmul.f32 %v4921, %v4428
        %v5148 = vmul.f32 %v4924, %v4428
        %v5149 = vmul.f32 %v4927, %v4428
        %v5150 = vmul.f32 %v4930, %v4428
        %v5151 = vmul.f32 %v4933, %v4428
        %v5152 = vmul.f32 %v4936, %v4428
        %v5153 = vmul.f32 %v4939, %v4428
        %v5154 = vmul.f32 %v4942, %v4428
        %v5155 = vmul.f32 %v4945, %v4428
        %v5156 = vmul.f32 %v4948, %v4428
        %v5157 = vmul.f32 %v4951, %v4428
        %v5158 = vmul.f32 %v4954, %v4428
        %v5159 = vmul.f32 %v4957, %v4428
        %v5160 = vmul.f32 %v4960, %v4428
        %v5161 = vmul.f32 %v4963, %v4428
        %v5162 = vmul.f32 %v4966, %v4428
        %v5163 = vmul.f32 %v4969, %v4428
        %v5164 = vmul.f32 %v4972, %v4428
        %v5165 = vmul.f32 %v4975, %v4428
        %v5166 = vmul.f32 %v4978, %v4428
        %v5167 = vmul.f32 %v4981, %v4428
        %v5168 = vmul.f32 %v4984, %v4428
        %v5169 = vmul.f32 %v4987, %v4428
        %v5170 = vmul.f32 %v4990, %v4428
        %v5171 = vmul.f32 %v4993, %v4428
        %v5172 = vmul.f32 %v4996, %v4428
        %v5173 = vmul.f32 %v4999, %v4428
        %v5174 = vmul.f32 %v5002, %v4428
        %v5175 = vmul.f32 %v5005, %v4428
        %v5176 = vmul.f32 %v5008, %v4428
        %v5177 = vmul.f32 %v5011, %v4428
        %v5178 = vmul.f32 %v5014, %v4428
        %v5179 = vmul.f32 %v5017, %v4428
        %v5180 = vmul.f32 %v5020, %v4428
        %v5181 = vmul.f32 %v5023, %v4428
        %v5182 = vmul.f32 %v5026, %v4428
        %v5183 = vmul.f32 %v5029, %v4428
        %v5184 = vmul.f32 %v5032, %v4428
        %v5185 = vmul.f32 %v5035, %v4428
        %v5186 = vmul.f32 %v5038, %v4428
        %v5187 = vmul.f32 %v5041, %v4428
        %v5188 = vmul.f32 %v5044, %v4428
        %v5189 = vmul.f32 %v5047, %v4428
        %v5190 = vmul.f32 %v5050, %v4428
        %v5191 = vmul.f32 %v5053, %v4428
        %v5192 = vmul.f32 %v5056, %v4428
        %v5193 = vmul.f32 %v5059, %v4428
        %v5194 = vmul.f32 %v5062, %v4428
        %v5195 = vmul.f32 %v5065, %v4428
        %v5196 = vmul.f32 %v5068, %v4428
        %v5197 = vmul.f32 %v4429, %v4429
        %v5198 = vmul.f32 %v4430, %v4430
        %v5199 = vmul.f32 %v4431, %v4431
        %v5200 = vmul.f32 %v4432, %v4432
        %v5201 = vmul.f32 %v4433, %v4433
        %v5202 = vmul.f32 %v4434, %v4434
        %v5203 = vmul.f32 %v4435, %v4435
        %v5204 = vmul.f32 %v4436, %v4436
        %v5205 = vmul.f32 %v4437, %v4437
        %v5206 = vmul.f32 %v4438, %v4438
        %v5207 = vmul.f32 %v4439, %v4439
        %v5208 = vmul.f32 %v4440, %v4440
        %v5209 = vmul.f32 %v4441, %v4441
        %v5210 = vmul.f32 %v4442, %v4442
        %v5211 = vmul.f32 %v4443, %v4443
        %v5212 = vmul.f32 %v4444, %v4444
        %v5213 = vmul.f32 %v4445, %v4445
        %v5214 = vmul.f32 %v4446, %v4446
        %v5215 = vmul.f32 %v4447, %v4447
        %v5216 = vmul.f32 %v4448, %v4448
        %v5217 = vmul.f32 %v4449, %v4449
        %v5218 = vmul.f32 %v4450, %v4450
        %v5219 = vmul.f32 %v4451, %v4451
        %v5220 = vmul.f32 %v4452, %v4452
        %v5221 = vmul.f32 %v4453, %v4453
        %v5222 = vmul.f32 %v4454, %v4454
        %v5223 = vmul.f32 %v4455, %v4455
        %v5224 = vmul.f32 %v4456, %v4456
        %v5225 = vmul.f32 %v4457, %v4457
        %v5226 = vmul.f32 %v4458, %v4458
        %v5227 = vmul.f32 %v4459, %v4459
        %v5228 = vmul.f32 %v4460, %v4460
        %v5229 = vmul.f32 %v4461, %v4461
        %v5230 = vmul.f32 %v4462, %v4462
        %v5231 = vmul.f32 %v4463, %v4463
        %v5232 = vmul.f32 %v4464, %v4464
        %v5233 = vmul.f32 %v4465, %v4465
        %v5234 = vmul.f32 %v4466, %v4466
        %v5235 = vmul.f32 %v4467, %v4467
        %v5236 = vmul.f32 %v4468, %v4468
        %v5237 = vmul.f32 %v4469, %v4469
        %v5238 = vmul.f32 %v4470, %v4470
        %v5239 = vmul.f32 %v4471, %v4471
        %v5240 = vmul.f32 %v4472, %v4472
        %v5241 = vmul.f32 %v4473, %v4473
        %v5242 = vmul.f32 %v4474, %v4474
        %v5243 = vmul.f32 %v4475, %v4475
        %v5244 = vmul.f32 %v4476, %v4476
        %v5245 = vmul.f32 %v4477, %v4477
        %v5246 = vmul.f32 %v4478, %v4478
        %v5247 = vmul.f32 %v4479, %v4479
        %v5248 = vmul.f32 %v4480, %v4480
        %v5249 = vmul.f32 %v4481, %v4481
        %v5250 = vmul.f32 %v4482, %v4482
        %v5251 = vmul.f32 %v4483, %v4483
        %v5252 = vmul.f32 %v4484, %v4484
        %v5253 = vmul.f32 %v4485, %v4485
        %v5254 = vmul.f32 %v4486, %v4486
        %v5255 = vmul.f32 %v4487, %v4487
        %v5256 = vmul.f32 %v4488, %v4488
        %v5257 = vmul.f32 %v4489, %v4489
        %v5258 = vmul.f32 %v4490, %v4490
        %v5259 = vmul.f32 %v4491, %v4491
        %v5260 = vmul.f32 %v4492, %v4492
        %v5261 = vmul.f32 %v4493, %v4493
        %v5262 = vmul.f32 %v4494, %v4494
        %v5263 = vmul.f32 %v4495, %v4495
        %v5264 = vmul.f32 %v4496, %v4496
        %v5265 = vmul.f32 %v4497, %v4497
        %v5266 = vmul.f32 %v4498, %v4498
        %v5267 = vmul.f32 %v4499, %v4499
        %v5268 = vmul.f32 %v4500, %v4500
        %v5269 = vmul.f32 %v4501, %v4501
        %v5270 = vmul.f32 %v4502, %v4502
        %v5271 = vmul.f32 %v4503, %v4503
        %v5272 = vmul.f32 %v4504, %v4504
        %v5273 = vmul.f32 %v4505, %v4505
        %v5274 = vmul.f32 %v4506, %v4506
        %v5275 = vmul.f32 %v4507, %v4507
        %v5276 = vmul.f32 %v4508, %v4508
        %v5277 = vmul.f32 %v4509, %v4509
        %v5278 = vmul.f32 %v4510, %v4510
        %v5279 = vmul.f32 %v4511, %v4511
        %v5280 = vmul.f32 %v4512, %v4512
        %v5281 = vmul.f32 %v4513, %v4513
        %v5282 = vmul.f32 %v4514, %v4514
        %v5283 = vmul.f32 %v4515, %v4515
        %v5284 = vmul.f32 %v4516, %v4516
        %v5285 = vmul.f32 %v4517, %v4517
        %v5286 = vmul.f32 %v4518, %v4518
        %v5287 = vmul.f32 %v4519, %v4519
        %v5288 = vmul.f32 %v4520, %v4520
        %v5289 = vmul.f32 %v4521, %v4521
        %v5290 = vmul.f32 %v4522, %v4522
        %v5291 = vmul.f32 %v4523, %v4523
        %v5292 = vmul.f32 %v4524, %v4524
        %v5293 = vmul.f32 %v4525, %v4525
        %v5294 = vmul.f32 %v4526, %v4526
        %v5295 = vmul.f32 %v4527, %v4527
        %v5296 = vmul.f32 %v4528, %v4528
        %v5297 = vmul.f32 %v4529, %v4529
        %v5298 = vmul.f32 %v4530, %v4530
        %v5299 = vmul.f32 %v4531, %v4531
        %v5300 = vmul.f32 %v4532, %v4532
        %v5301 = vmul.f32 %v4533, %v4533
        %v5302 = vmul.f32 %v4534, %v4534
        %v5303 = vmul.f32 %v4535, %v4535
        %v5304 = vmul.f32 %v4536, %v4536
        %v5305 = vmul.f32 %v4537, %v4537
        %v5306 = vmul.f32 %v4538, %v4538
        %v5307 = vmul.f32 %v4539, %v4539
        %v5308 = vmul.f32 %v4540, %v4540
        %v5309 = vmul.f32 %v4541, %v4541
        %v5310 = vmul.f32 %v4542, %v4542
        %v5311 = vmul.f32 %v4543, %v4543
        %v5312 = vmul.f32 %v4544, %v4544
        %v5313 = vmul.f32 %v4545, %v4545
        %v5314 = vmul.f32 %v4546, %v4546
        %v5315 = vmul.f32 %v4547, %v4547
        %v5316 = vmul.f32 %v4548, %v4548
        %v5317 = vmul.f32 %v4549, %v4549
        %v5318 = vmul.f32 %v4550, %v4550
        %v5319 = vmul.f32 %v4551, %v4551
        %v5320 = vmul.f32 %v4552, %v4552
        %v5321 = vmul.f32 %v4553, %v4553
        %v5322 = vmul.f32 %v4554, %v4554
        %v5323 = vmul.f32 %v4555, %v4555
        %v5324 = vmul.f32 %v4556, %v4556
        %v5325 = vsub.f32 %v5069, %v5197
        %v5326 = vsub.f32 %v5070, %v5198
        %v5327 = vsub.f32 %v5071, %v5199
        %v5328 = vsub.f32 %v5072, %v5200
        %v5329 = vsub.f32 %v5073, %v5201
        %v5330 = vsub.f32 %v5074, %v5202
        %v5331 = vsub.f32 %v5075, %v5203
        %v5332 = vsub.f32 %v5076, %v5204
        %v5333 = vsub.f32 %v5077, %v5205
        %v5334 = vsub.f32 %v5078, %v5206
        %v5335 = vsub.f32 %v5079, %v5207
        %v5336 = vsub.f32 %v5080, %v5208
        %v5337 = vsub.f32 %v5081, %v5209
        %v5338 = vsub.f32 %v5082, %v5210
        %v5339 = vsub.f32 %v5083, %v5211
        %v5340 = vsub.f32 %v5084, %v5212
        %v5341 = vsub.f32 %v5085, %v5213
        %v5342 = vsub.f32 %v5086, %v5214
        %v5343 = vsub.f32 %v5087, %v5215
        %v5344 = vsub.f32 %v5088, %v5216
        %v5345 = vsub.f32 %v5089, %v5217
        %v5346 = vsub.f32 %v5090, %v5218
        %v5347 = vsub.f32 %v5091, %v5219
        %v5348 = vsub.f32 %v5092, %v5220
        %v5349 = vsub.f32 %v5093, %v5221
        %v5350 = vsub.f32 %v5094, %v5222
        %v5351 = vsub.f32 %v5095, %v5223
        %v5352 = vsub.f32 %v5096, %v5224
        %v5353 = vsub.f32 %v5097, %v5225
        %v5354 = vsub.f32 %v5098, %v5226
        %v5355 = vsub.f32 %v5099, %v5227
        %v5356 = vsub.f32 %v5100, %v5228
        %v5357 = vsub.f32 %v5101, %v5229
        %v5358 = vsub.f32 %v5102, %v5230
        %v5359 = vsub.f32 %v5103, %v5231
        %v5360 = vsub.f32 %v5104, %v5232
        %v5361 = vsub.f32 %v5105, %v5233
        %v5362 = vsub.f32 %v5106, %v5234
        %v5363 = vsub.f32 %v5107, %v5235
        %v5364 = vsub.f32 %v5108, %v5236
        %v5365 = vsub.f32 %v5109, %v5237
        %v5366 = vsub.f32 %v5110, %v5238
        %v5367 = vsub.f32 %v5111, %v5239
        %v5368 = vsub.f32 %v5112, %v5240
        %v5369 = vsub.f32 %v5113, %v5241
        %v5370 = vsub.f32 %v5114, %v5242
        %v5371 = vsub.f32 %v5115, %v5243
        %v5372 = vsub.f32 %v5116, %v5244
        %v5373 = vsub.f32 %v5117, %v5245
        %v5374 = vsub.f32 %v5118, %v5246
        %v5375 = vsub.f32 %v5119, %v5247
        %v5376 = vsub.f32 %v5120, %v5248
        %v5377 = vsub.f32 %v5121, %v5249
        %v5378 = vsub.f32 %v5122, %v5250
        %v5379 = vsub.f32 %v5123, %v5251
        %v5380 = vsub.f32 %v5124, %v5252
        %v5381 = vsub.f32 %v5125, %v5253
        %v5382 = vsub.f32 %v5126, %v5254
        %v5383 = vsub.f32 %v5127, %v5255
        %v5384 = vsub.f32 %v5128, %v5256
        %v5385 = vsub.f32 %v5129, %v5257
        %v5386 = vsub.f32 %v5130, %v5258
        %v5387 = vsub.f32 %v5131, %v5259
        %v5388 = vsub.f32 %v5132, %v5260
        %v5389 = vsub.f32 %v5133, %v5261
        %v5390 = vsub.f32 %v5134, %v5262
        %v5391 = vsub.f32 %v5135, %v5263
        %v5392 = vsub.f32 %v5136, %v5264
        %v5393 = vsub.f32 %v5137, %v5265
        %v5394 = vsub.f32 %v5138, %v5266
        %v5395 = vsub.f32 %v5139, %v5267
        %v5396 = vsub.f32 %v5140, %v5268
        %v5397 = vsub.f32 %v5141, %v5269
        %v5398 = vsub.f32 %v5142, %v5270
        %v5399 = vsub.f32 %v5143, %v5271
        %v5400 = vsub.f32 %v5144, %v5272
        %v5401 = vsub.f32 %v5145, %v5273
        %v5402 = vsub.f32 %v5146, %v5274
        %v5403 = vsub.f32 %v5147, %v5275
        %v5404 = vsub.f32 %v5148, %v5276
        %v5405 = vsub.f32 %v5149, %v5277
        %v5406 = vsub.f32 %v5150, %v5278
        %v5407 = vsub.f32 %v5151, %v5279
        %v5408 = vsub.f32 %v5152, %v5280
        %v5409 = vsub.f32 %v5153, %v5281
        %v5410 = vsub.f32 %v5154, %v5282
        %v5411 = vsub.f32 %v5155, %v5283
        %v5412 = vsub.f32 %v5156, %v5284
        %v5413 = vsub.f32 %v5157, %v5285
        %v5414 = vsub.f32 %v5158, %v5286
        %v5415 = vsub.f32 %v5159, %v5287
        %v5416 = vsub.f32 %v5160, %v5288
        %v5417 = vsub.f32 %v5161, %v5289
        %v5418 = vsub.f32 %v5162, %v5290
        %v5419 = vsub.f32 %v5163, %v5291
        %v5420 = vsub.f32 %v5164, %v5292
        %v5421 = vsub.f32 %v5165, %v5293
        %v5422 = vsub.f32 %v5166, %v5294
        %v5423 = vsub.f32 %v5167, %v5295
        %v5424 = vsub.f32 %v5168, %v5296
        %v5425 = vsub.f32 %v5169, %v5297
        %v5426 = vsub.f32 %v5170, %v5298
        %v5427 = vsub.f32 %v5171, %v5299
        %v5428 = vsub.f32 %v5172, %v5300
        %v5429 = vsub.f32 %v5173, %v5301
        %v5430 = vsub.f32 %v5174, %v5302
        %v5431 = vsub.f32 %v5175, %v5303
        %v5432 = vsub.f32 %v5176, %v5304
        %v5433 = vsub.f32 %v5177, %v5305
        %v5434 = vsub.f32 %v5178, %v5306
        %v5435 = vsub.f32 %v5179, %v5307
        %v5436 = vsub.f32 %v5180, %v5308
        %v5437 = vsub.f32 %v5181, %v5309
        %v5438 = vsub.f32 %v5182, %v5310
        %v5439 = vsub.f32 %v5183, %v5311
        %v5440 = vsub.f32 %v5184, %v5312
        %v5441 = vsub.f32 %v5185, %v5313
        %v5442 = vsub.f32 %v5186, %v5314
        %v5443 = vsub.f32 %v5187, %v5315
        %v5444 = vsub.f32 %v5188, %v5316
        %v5445 = vsub.f32 %v5189, %v5317
        %v5446 = vsub.f32 %v5190, %v5318
        %v5447 = vsub.f32 %v5191, %v5319
        %v5448 = vsub.f32 %v5192, %v5320
        %v5449 = vsub.f32 %v5193, %v5321
        %v5450 = vsub.f32 %v5194, %v5322
        %v5451 = vsub.f32 %v5195, %v5323
        %v5452 = vsub.f32 %v5196, %v5324
        %v5453 = vmax.f32 %v5325, 0.0
        %v5454 = vmax.f32 %v5326, 0.0
        %v5455 = vmax.f32 %v5327, 0.0
        %v5456 = vmax.f32 %v5328, 0.0
        %v5457 = vmax.f32 %v5329, 0.0
        %v5458 = vmax.f32 %v5330, 0.0
        %v5459 = vmax.f32 %v5331, 0.0
        %v5460 = vmax.f32 %v5332, 0.0
        %v5461 = vmax.f32 %v5333, 0.0
        %v5462 = vmax.f32 %v5334, 0.0
        %v5463 = vmax.f32 %v5335, 0.0
        %v5464 = vmax.f32 %v5336, 0.0
        %v5465 = vmax.f32 %v5337, 0.0
        %v5466 = vmax.f32 %v5338, 0.0
        %v5467 = vmax.f32 %v5339, 0.0
        %v5468 = vmax.f32 %v5340, 0.0
        %v5469 = vmax.f32 %v5341, 0.0
        %v5470 = vmax.f32 %v5342, 0.0
        %v5471 = vmax.f32 %v5343, 0.0
        %v5472 = vmax.f32 %v5344, 0.0
        %v5473 = vmax.f32 %v5345, 0.0
        %v5474 = vmax.f32 %v5346, 0.0
        %v5475 = vmax.f32 %v5347, 0.0
        %v5476 = vmax.f32 %v5348, 0.0
        %v5477 = vmax.f32 %v5349, 0.0
        %v5478 = vmax.f32 %v5350, 0.0
        %v5479 = vmax.f32 %v5351, 0.0
        %v5480 = vmax.f32 %v5352, 0.0
        %v5481 = vmax.f32 %v5353, 0.0
        %v5482 = vmax.f32 %v5354, 0.0
        %v5483 = vmax.f32 %v5355, 0.0
        %v5484 = vmax.f32 %v5356, 0.0
        %v5485 = vmax.f32 %v5357, 0.0
        %v5486 = vmax.f32 %v5358, 0.0
        %v5487 = vmax.f32 %v5359, 0.0
        %v5488 = vmax.f32 %v5360, 0.0
        %v5489 = vmax.f32 %v5361, 0.0
        %v5490 = vmax.f32 %v5362, 0.0
        %v5491 = vmax.f32 %v5363, 0.0
        %v5492 = vmax.f32 %v5364, 0.0
        %v5493 = vmax.f32 %v5365, 0.0
        %v5494 = vmax.f32 %v5366, 0.0
        %v5495 = vmax.f32 %v5367, 0.0
        %v5496 = vmax.f32 %v5368, 0.0
        %v5497 = vmax.f32 %v5369, 0.0
        %v5498 = vmax.f32 %v5370, 0.0
        %v5499 = vmax.f32 %v5371, 0.0
        %v5500 = vmax.f32 %v5372, 0.0
        %v5501 = vmax.f32 %v5373, 0.0
        %v5502 = vmax.f32 %v5374, 0.0
        %v5503 = vmax.f32 %v5375, 0.0
        %v5504 = vmax.f32 %v5376, 0.0
        %v5505 = vmax.f32 %v5377, 0.0
        %v5506 = vmax.f32 %v5378, 0.0
        %v5507 = vmax.f32 %v5379, 0.0
        %v5508 = vmax.f32 %v5380, 0.0
        %v5509 = vmax.f32 %v5381, 0.0
        %v5510 = vmax.f32 %v5382, 0.0
        %v5511 = vmax.f32 %v5383, 0.0
        %v5512 = vmax.f32 %v5384, 0.0
        %v5513 = vmax.f32 %v5385, 0.0
        %v5514 = vmax.f32 %v5386, 0.0
        %v5515 = vmax.f32 %v5387, 0.0
        %v5516 = vmax.f32 %v5388, 0.0
        %v5517 = vmax.f32 %v5389, 0.0
        %v5518 = vmax.f32 %v5390, 0.0
        %v5519 = vmax.f32 %v5391, 0.0
        %v5520 = vmax.f32 %v5392, 0.0
        %v5521 = vmax.f32 %v5393, 0.0
        %v5522 = vmax.f32 %v5394, 0.0
        %v5523 = vmax.f32 %v5395, 0.0
        %v5524 = vmax.f32 %v5396, 0.0
        %v5525 = vmax.f32 %v5397, 0.0
        %v5526 = vmax.f32 %v5398, 0.0
        %v5527 = vmax.f32 %v5399, 0.0
        %v5528 = vmax.f32 %v5400, 0.0
        %v5529 = vmax.f32 %v5401, 0.0
        %v5530 = vmax.f32 %v5402, 0.0
        %v5531 = vmax.f32 %v5403, 0.0
        %v5532 = vmax.f32 %v5404, 0.0
        %v5533 = vmax.f32 %v5405, 0.0
        %v5534 = vmax.f32 %v5406, 0.0
        %v5535 = vmax.f32 %v5407, 0.0
        %v5536 = vmax.f32 %v5408, 0.0
        %v5537 = vmax.f32 %v5409, 0.0
        %v5538 = vmax.f32 %v5410, 0.0
        %v5539 = vmax.f32 %v5411, 0.0
        %v5540 = vmax.f32 %v5412, 0.0
        %v5541 = vmax.f32 %v5413, 0.0
        %v5542 = vmax.f32 %v5414, 0.0
        %v5543 = vmax.f32 %v5415, 0.0
        %v5544 = vmax.f32 %v5416, 0.0
        %v5545 = vmax.f32 %v5417, 0.0
        %v5546 = vmax.f32 %v5418, 0.0
        %v5547 = vmax.f32 %v5419, 0.0
        %v5548 = vmax.f32 %v5420, 0.0
        %v5549 = vmax.f32 %v5421, 0.0
        %v5550 = vmax.f32 %v5422, 0.0
        %v5551 = vmax.f32 %v5423, 0.0
        %v5552 = vmax.f32 %v5424, 0.0
        %v5553 = vmax.f32 %v5425, 0.0
        %v5554 = vmax.f32 %v5426, 0.0
        %v5555 = vmax.f32 %v5427, 0.0
        %v5556 = vmax.f32 %v5428, 0.0
        %v5557 = vmax.f32 %v5429, 0.0
        %v5558 = vmax.f32 %v5430, 0.0
        %v5559 = vmax.f32 %v5431, 0.0
        %v5560 = vmax.f32 %v5432, 0.0
        %v5561 = vmax.f32 %v5433, 0.0
        %v5562 = vmax.f32 %v5434, 0.0
        %v5563 = vmax.f32 %v5435, 0.0
        %v5564 = vmax.f32 %v5436, 0.0
        %v5565 = vmax.f32 %v5437, 0.0
        %v5566 = vmax.f32 %v5438, 0.0
        %v5567 = vmax.f32 %v5439, 0.0
        %v5568 = vmax.f32 %v5440, 0.0
        %v5569 = vmax.f32 %v5441, 0.0
        %v5570 = vmax.f32 %v5442, 0.0
        %v5571 = vmax.f32 %v5443, 0.0
        %v5572 = vmax.f32 %v5444, 0.0
        %v5573 = vmax.f32 %v5445, 0.0
        %v5574 = vmax.f32 %v5446, 0.0
        %v5575 = vmax.f32 %v5447, 0.0
        %v5576 = vmax.f32 %v5448, 0.0
        %v5577 = vmax.f32 %v5449, 0.0
        %v5578 = vmax.f32 %v5450, 0.0
        %v5579 = vmax.f32 %v5451, 0.0
        %v5580 = vmax.f32 %v5452, 0.0
        %v5581 = vadd.f32 %v5453, 1e-05
        %v5582 = vadd.f32 %v5454, 1e-05
        %v5583 = vadd.f32 %v5455, 1e-05
        %v5584 = vadd.f32 %v5456, 1e-05
        %v5585 = vadd.f32 %v5457, 1e-05
        %v5586 = vadd.f32 %v5458, 1e-05
        %v5587 = vadd.f32 %v5459, 1e-05
        %v5588 = vadd.f32 %v5460, 1e-05
        %v5589 = vadd.f32 %v5461, 1e-05
        %v5590 = vadd.f32 %v5462, 1e-05
        %v5591 = vadd.f32 %v5463, 1e-05
        %v5592 = vadd.f32 %v5464, 1e-05
        %v5593 = vadd.f32 %v5465, 1e-05
        %v5594 = vadd.f32 %v5466, 1e-05
        %v5595 = vadd.f32 %v5467, 1e-05
        %v5596 = vadd.f32 %v5468, 1e-05
        %v5597 = vadd.f32 %v5469, 1e-05
        %v5598 = vadd.f32 %v5470, 1e-05
        %v5599 = vadd.f32 %v5471, 1e-05
        %v5600 = vadd.f32 %v5472, 1e-05
        %v5601 = vadd.f32 %v5473, 1e-05
        %v5602 = vadd.f32 %v5474, 1e-05
        %v5603 = vadd.f32 %v5475, 1e-05
        %v5604 = vadd.f32 %v5476, 1e-05
        %v5605 = vadd.f32 %v5477, 1e-05
        %v5606 = vadd.f32 %v5478, 1e-05
        %v5607 = vadd.f32 %v5479, 1e-05
        %v5608 = vadd.f32 %v5480, 1e-05
        %v5609 = vadd.f32 %v5481, 1e-05
        %v5610 = vadd.f32 %v5482, 1e-05
        %v5611 = vadd.f32 %v5483, 1e-05
        %v5612 = vadd.f32 %v5484, 1e-05
        %v5613 = vadd.f32 %v5485, 1e-05
        %v5614 = vadd.f32 %v5486, 1e-05
        %v5615 = vadd.f32 %v5487, 1e-05
        %v5616 = vadd.f32 %v5488, 1e-05
        %v5617 = vadd.f32 %v5489, 1e-05
        %v5618 = vadd.f32 %v5490, 1e-05
        %v5619 = vadd.f32 %v5491, 1e-05
        %v5620 = vadd.f32 %v5492, 1e-05
        %v5621 = vadd.f32 %v5493, 1e-05
        %v5622 = vadd.f32 %v5494, 1e-05
        %v5623 = vadd.f32 %v5495, 1e-05
        %v5624 = vadd.f32 %v5496, 1e-05
        %v5625 = vadd.f32 %v5497, 1e-05
        %v5626 = vadd.f32 %v5498, 1e-05
        %v5627 = vadd.f32 %v5499, 1e-05
        %v5628 = vadd.f32 %v5500, 1e-05
        %v5629 = vadd.f32 %v5501, 1e-05
        %v5630 = vadd.f32 %v5502, 1e-05
        %v5631 = vadd.f32 %v5503, 1e-05
        %v5632 = vadd.f32 %v5504, 1e-05
        %v5633 = vadd.f32 %v5505, 1e-05
        %v5634 = vadd.f32 %v5506, 1e-05
        %v5635 = vadd.f32 %v5507, 1e-05
        %v5636 = vadd.f32 %v5508, 1e-05
        %v5637 = vadd.f32 %v5509, 1e-05
        %v5638 = vadd.f32 %v5510, 1e-05
        %v5639 = vadd.f32 %v5511, 1e-05
        %v5640 = vadd.f32 %v5512, 1e-05
        %v5641 = vadd.f32 %v5513, 1e-05
        %v5642 = vadd.f32 %v5514, 1e-05
        %v5643 = vadd.f32 %v5515, 1e-05
        %v5644 = vadd.f32 %v5516, 1e-05
        %v5645 = vadd.f32 %v5517, 1e-05
        %v5646 = vadd.f32 %v5518, 1e-05
        %v5647 = vadd.f32 %v5519, 1e-05
        %v5648 = vadd.f32 %v5520, 1e-05
        %v5649 = vadd.f32 %v5521, 1e-05
        %v5650 = vadd.f32 %v5522, 1e-05
        %v5651 = vadd.f32 %v5523, 1e-05
        %v5652 = vadd.f32 %v5524, 1e-05
        %v5653 = vadd.f32 %v5525, 1e-05
        %v5654 = vadd.f32 %v5526, 1e-05
        %v5655 = vadd.f32 %v5527, 1e-05
        %v5656 = vadd.f32 %v5528, 1e-05
        %v5657 = vadd.f32 %v5529, 1e-05
        %v5658 = vadd.f32 %v5530, 1e-05
        %v5659 = vadd.f32 %v5531, 1e-05
        %v5660 = vadd.f32 %v5532, 1e-05
        %v5661 = vadd.f32 %v5533, 1e-05
        %v5662 = vadd.f32 %v5534, 1e-05
        %v5663 = vadd.f32 %v5535, 1e-05
        %v5664 = vadd.f32 %v5536, 1e-05
        %v5665 = vadd.f32 %v5537, 1e-05
        %v5666 = vadd.f32 %v5538, 1e-05
        %v5667 = vadd.f32 %v5539, 1e-05
        %v5668 = vadd.f32 %v5540, 1e-05
        %v5669 = vadd.f32 %v5541, 1e-05
        %v5670 = vadd.f32 %v5542, 1e-05
        %v5671 = vadd.f32 %v5543, 1e-05
        %v5672 = vadd.f32 %v5544, 1e-05
        %v5673 = vadd.f32 %v5545, 1e-05
        %v5674 = vadd.f32 %v5546, 1e-05
        %v5675 = vadd.f32 %v5547, 1e-05
        %v5676 = vadd.f32 %v5548, 1e-05
        %v5677 = vadd.f32 %v5549, 1e-05
        %v5678 = vadd.f32 %v5550, 1e-05
        %v5679 = vadd.f32 %v5551, 1e-05
        %v5680 = vadd.f32 %v5552, 1e-05
        %v5681 = vadd.f32 %v5553, 1e-05
        %v5682 = vadd.f32 %v5554, 1e-05
        %v5683 = vadd.f32 %v5555, 1e-05
        %v5684 = vadd.f32 %v5556, 1e-05
        %v5685 = vadd.f32 %v5557, 1e-05
        %v5686 = vadd.f32 %v5558, 1e-05
        %v5687 = vadd.f32 %v5559, 1e-05
        %v5688 = vadd.f32 %v5560, 1e-05
        %v5689 = vadd.f32 %v5561, 1e-05
        %v5690 = vadd.f32 %v5562, 1e-05
        %v5691 = vadd.f32 %v5563, 1e-05
        %v5692 = vadd.f32 %v5564, 1e-05
        %v5693 = vadd.f32 %v5565, 1e-05
        %v5694 = vadd.f32 %v5566, 1e-05
        %v5695 = vadd.f32 %v5567, 1e-05
        %v5696 = vadd.f32 %v5568, 1e-05
        %v5697 = vadd.f32 %v5569, 1e-05
        %v5698 = vadd.f32 %v5570, 1e-05
        %v5699 = vadd.f32 %v5571, 1e-05
        %v5700 = vadd.f32 %v5572, 1e-05
        %v5701 = vadd.f32 %v5573, 1e-05
        %v5702 = vadd.f32 %v5574, 1e-05
        %v5703 = vadd.f32 %v5575, 1e-05
        %v5704 = vadd.f32 %v5576, 1e-05
        %v5705 = vadd.f32 %v5577, 1e-05
        %v5706 = vadd.f32 %v5578, 1e-05
        %v5707 = vadd.f32 %v5579, 1e-05
        %v5708 = vadd.f32 %v5580, 1e-05
        %v5709 = vrsqrt.pop %v5581
        %v5710 = vrsqrt.pop %v5582
        %v5711 = vrsqrt.pop %v5583
        %v5712 = vrsqrt.pop %v5584
        %v5713 = vrsqrt.pop %v5585
        %v5714 = vrsqrt.pop %v5586
        %v5715 = vrsqrt.pop %v5587
        %v5716 = vrsqrt.pop %v5588
        %v5717 = vrsqrt.pop %v5589
        %v5718 = vrsqrt.pop %v5590
        %v5719 = vrsqrt.pop %v5591
        %v5720 = vrsqrt.pop %v5592
        %v5721 = vrsqrt.pop %v5593
        %v5722 = vrsqrt.pop %v5594
        %v5723 = vrsqrt.pop %v5595
        %v5724 = vrsqrt.pop %v5596
        %v5725 = vrsqrt.pop %v5597
        %v5726 = vrsqrt.pop %v5598
        %v5727 = vrsqrt.pop %v5599
        %v5728 = vrsqrt.pop %v5600
        %v5729 = vrsqrt.pop %v5601
        %v5730 = vrsqrt.pop %v5602
        %v5731 = vrsqrt.pop %v5603
        %v5732 = vrsqrt.pop %v5604
        %v5733 = vrsqrt.pop %v5605
        %v5734 = vrsqrt.pop %v5606
        %v5735 = vrsqrt.pop %v5607
        %v5736 = vrsqrt.pop %v5608
        %v5737 = vrsqrt.pop %v5609
        %v5738 = vrsqrt.pop %v5610
        %v5739 = vrsqrt.pop %v5611
        %v5740 = vrsqrt.pop %v5612
        %v5741 = vrsqrt.pop %v5613
        %v5742 = vrsqrt.pop %v5614
        %v5743 = vrsqrt.pop %v5615
        %v5744 = vrsqrt.pop %v5616
        %v5745 = vrsqrt.pop %v5617
        %v5746 = vrsqrt.pop %v5618
        %v5747 = vrsqrt.pop %v5619
        %v5748 = vrsqrt.pop %v5620
        %v5749 = vrsqrt.pop %v5621
        %v5750 = vrsqrt.pop %v5622
        %v5751 = vrsqrt.pop %v5623
        %v5752 = vrsqrt.pop %v5624
        %v5753 = vrsqrt.pop %v5625
        %v5754 = vrsqrt.pop %v5626
        %v5755 = vrsqrt.pop %v5627
        %v5756 = vrsqrt.pop %v5628
        %v5757 = vrsqrt.pop %v5629
        %v5758 = vrsqrt.pop %v5630
        %v5759 = vrsqrt.pop %v5631
        %v5760 = vrsqrt.pop %v5632
        %v5761 = vrsqrt.pop %v5633
        %v5762 = vrsqrt.pop %v5634
        %v5763 = vrsqrt.pop %v5635
        %v5764 = vrsqrt.pop %v5636
        %v5765 = vrsqrt.pop %v5637
        %v5766 = vrsqrt.pop %v5638
        %v5767 = vrsqrt.pop %v5639
        %v5768 = vrsqrt.pop %v5640
        %v5769 = vrsqrt.pop %v5641
        %v5770 = vrsqrt.pop %v5642
        %v5771 = vrsqrt.pop %v5643
        %v5772 = vrsqrt.pop %v5644
        %v5773 = vrsqrt.pop %v5645
        %v5774 = vrsqrt.pop %v5646
        %v5775 = vrsqrt.pop %v5647
        %v5776 = vrsqrt.pop %v5648
        %v5777 = vrsqrt.pop %v5649
        %v5778 = vrsqrt.pop %v5650
        %v5779 = vrsqrt.pop %v5651
        %v5780 = vrsqrt.pop %v5652
        %v5781 = vrsqrt.pop %v5653
        %v5782 = vrsqrt.pop %v5654
        %v5783 = vrsqrt.pop %v5655
        %v5784 = vrsqrt.pop %v5656
        %v5785 = vrsqrt.pop %v5657
        %v5786 = vrsqrt.pop %v5658
        %v5787 = vrsqrt.pop %v5659
        %v5788 = vrsqrt.pop %v5660
        %v5789 = vrsqrt.pop %v5661
        %v5790 = vrsqrt.pop %v5662
        %v5791 = vrsqrt.pop %v5663
        %v5792 = vrsqrt.pop %v5664
        %v5793 = vrsqrt.pop %v5665
        %v5794 = vrsqrt.pop %v5666
        %v5795 = vrsqrt.pop %v5667
        %v5796 = vrsqrt.pop %v5668
        %v5797 = vrsqrt.pop %v5669
        %v5798 = vrsqrt.pop %v5670
        %v5799 = vrsqrt.pop %v5671
        %v5800 = vrsqrt.pop %v5672
        %v5801 = vrsqrt.pop %v5673
        %v5802 = vrsqrt.pop %v5674
        %v5803 = vrsqrt.pop %v5675
        %v5804 = vrsqrt.pop %v5676
        %v5805 = vrsqrt.pop %v5677
        %v5806 = vrsqrt.pop %v5678
        %v5807 = vrsqrt.pop %v5679
        %v5808 = vrsqrt.pop %v5680
        %v5809 = vrsqrt.pop %v5681
        %v5810 = vrsqrt.pop %v5682
        %v5811 = vrsqrt.pop %v5683
        %v5812 = vrsqrt.pop %v5684
        %v5813 = vrsqrt.pop %v5685
        %v5814 = vrsqrt.pop %v5686
        %v5815 = vrsqrt.pop %v5687
        %v5816 = vrsqrt.pop %v5688
        %v5817 = vrsqrt.pop %v5689
        %v5818 = vrsqrt.pop %v5690
        %v5819 = vrsqrt.pop %v5691
        %v5820 = vrsqrt.pop %v5692
        %v5821 = vrsqrt.pop %v5693
        %v5822 = vrsqrt.pop %v5694
        %v5823 = vrsqrt.pop %v5695
        %v5824 = vrsqrt.pop %v5696
        %v5825 = vrsqrt.pop %v5697
        %v5826 = vrsqrt.pop %v5698
        %v5827 = vrsqrt.pop %v5699
        %v5828 = vrsqrt.pop %v5700
        %v5829 = vrsqrt.pop %v5701
        %v5830 = vrsqrt.pop %v5702
        %v5831 = vrsqrt.pop %v5703
        %v5832 = vrsqrt.pop %v5704
        %v5833 = vrsqrt.pop %v5705
        %v5834 = vrsqrt.pop %v5706
        %v5835 = vrsqrt.pop %v5707
        %v5836 = vrsqrt.pop %v5708
        %v5837 = vsub.f32 %v1995, %v4429
        %v5838 = vsub.f32 %v1996, %v4430
        %v5839 = vsub.f32 %v1997, %v4431
        %v5840 = vsub.f32 %v1998, %v4432
        %v5841 = vsub.f32 %v1999, %v4433
        %v5842 = vsub.f32 %v2000, %v4434
        %v5843 = vsub.f32 %v2001, %v4435
        %v5844 = vsub.f32 %v2002, %v4436
        %v5845 = vsub.f32 %v2131, %v4437
        %v5846 = vsub.f32 %v2132, %v4438
        %v5847 = vsub.f32 %v2133, %v4439
        %v5848 = vsub.f32 %v2134, %v4440
        %v5849 = vsub.f32 %v2135, %v4441
        %v5850 = vsub.f32 %v2136, %v4442
        %v5851 = vsub.f32 %v2137, %v4443
        %v5852 = vsub.f32 %v2138, %v4444
        %v5853 = vsub.f32 %v2267, %v4445
        %v5854 = vsub.f32 %v2268, %v4446
        %v5855 = vsub.f32 %v2269, %v4447
        %v5856 = vsub.f32 %v2270, %v4448
        %v5857 = vsub.f32 %v2271, %v4449
        %v5858 = vsub.f32 %v2272, %v4450
        %v5859 = vsub.f32 %v2273, %v4451
        %v5860 = vsub.f32 %v2274, %v4452
        %v5861 = vsub.f32 %v2403, %v4453
        %v5862 = vsub.f32 %v2404, %v4454
        %v5863 = vsub.f32 %v2405, %v4455
        %v5864 = vsub.f32 %v2406, %v4456
        %v5865 = vsub.f32 %v2407, %v4457
        %v5866 = vsub.f32 %v2408, %v4458
        %v5867 = vsub.f32 %v2409, %v4459
        %v5868 = vsub.f32 %v2410, %v4460
        %v5869 = vsub.f32 %v2539, %v4461
        %v5870 = vsub.f32 %v2540, %v4462
        %v5871 = vsub.f32 %v2541, %v4463
        %v5872 = vsub.f32 %v2542, %v4464
        %v5873 = vsub.f32 %v2543, %v4465
        %v5874 = vsub.f32 %v2544, %v4466
        %v5875 = vsub.f32 %v2545, %v4467
        %v5876 = vsub.f32 %v2546, %v4468
        %v5877 = vsub.f32 %v2675, %v4469
        %v5878 = vsub.f32 %v2676, %v4470
        %v5879 = vsub.f32 %v2677, %v4471
        %v5880 = vsub.f32 %v2678, %v4472
        %v5881 = vsub.f32 %v2679, %v4473
        %v5882 = vsub.f32 %v2680, %v4474
        %v5883 = vsub.f32 %v2681, %v4475
        %v5884 = vsub.f32 %v2682, %v4476
        %v5885 = vsub.f32 %v2811, %v4477
        %v5886 = vsub.f32 %v2812, %v4478
        %v5887 = vsub.f32 %v2813, %v4479
        %v5888 = vsub.f32 %v2814, %v4480
        %v5889 = vsub.f32 %v2815, %v4481
        %v5890 = vsub.f32 %v2816, %v4482
        %v5891 = vsub.f32 %v2817, %v4483
        %v5892 = vsub.f32 %v2818, %v4484
        %v5893 = vsub.f32 %v2947, %v4485
        %v5894 = vsub.f32 %v2948, %v4486
        %v5895 = vsub.f32 %v2949, %v4487
        %v5896 = vsub.f32 %v2950, %v4488
        %v5897 = vsub.f32 %v2951, %v4489
        %v5898 = vsub.f32 %v2952, %v4490
        %v5899 = vsub.f32 %v2953, %v4491
        %v5900 = vsub.f32 %v2954, %v4492
        %v5901 = vsub.f32 %v3083, %v4493
        %v5902 = vsub.f32 %v3084, %v4494
        %v5903 = vsub.f32 %v3085, %v4495
        %v5904 = vsub.f32 %v3086, %v4496
        %v5905 = vsub.f32 %v3087, %v4497
        %v5906 = vsub.f32 %v3088, %v4498
        %v5907 = vsub.f32 %v3089, %v4499
        %v5908 = vsub.f32 %v3090, %v4500
        %v5909 = vsub.f32 %v3219, %v4501
        %v5910 = vsub.f32 %v3220, %v4502
        %v5911 = vsub.f32 %v3221, %v4503
        %v5912 = vsub.f32 %v3222, %v4504
        %v5913 = vsub.f32 %v3223, %v4505
        %v5914 = vsub.f32 %v3224, %v4506
        %v5915 = vsub.f32 %v3225, %v4507
        %v5916 = vsub.f32 %v3226, %v4508
        %v5917 = vsub.f32 %v3355, %v4509
        %v5918 = vsub.f32 %v3356, %v4510
        %v5919 = vsub.f32 %v3357, %v4511
        %v5920 = vsub.f32 %v3358, %v4512
        %v5921 = vsub.f32 %v3359, %v4513
        %v5922 = vsub.f32 %v3360, %v4514
        %v5923 = vsub.f32 %v3361, %v4515
        %v5924 = vsub.f32 %v3362, %v4516
        %v5925 = vsub.f32 %v3491, %v4517
        %v5926 = vsub.f32 %v3492, %v4518
        %v5927 = vsub.f32 %v3493, %v4519
        %v5928 = vsub.f32 %v3494, %v4520
        %v5929 = vsub.f32 %v3495, %v4521
        %v5930 = vsub.f32 %v3496, %v4522
        %v5931 = vsub.f32 %v3497, %v4523
        %v5932 = vsub.f32 %v3498, %v4524
        %v5933 = vsub.f32 %v3627, %v4525
        %v5934 = vsub.f32 %v3628, %v4526
        %v5935 = vsub.f32 %v3629, %v4527
        %v5936 = vsub.f32 %v3630, %v4528
        %v5937 = vsub.f32 %v3631, %v4529
        %v5938 = vsub.f32 %v3632, %v4530
        %v5939 = vsub.f32 %v3633, %v4531
        %v5940 = vsub.f32 %v3634, %v4532
        %v5941 = vsub.f32 %v3763, %v4533
        %v5942 = vsub.f32 %v3764, %v4534
        %v5943 = vsub.f32 %v3765, %v4535
        %v5944 = vsub.f32 %v3766, %v4536
        %v5945 = vsub.f32 %v3767, %v4537
        %v5946 = vsub.f32 %v3768, %v4538
        %v5947 = vsub.f32 %v3769, %v4539
        %v5948 = vsub.f32 %v3770, %v4540
        %v5949 = vsub.f32 %v3899, %v4541
        %v5950 = vsub.f32 %v3900, %v4542
        %v5951 = vsub.f32 %v3901, %v4543
        %v5952 = vsub.f32 %v3902, %v4544
        %v5953 = vsub.f32 %v3903, %v4545
        %v5954 = vsub.f32 %v3904, %v4546
        %v5955 = vsub.f32 %v3905, %v4547
        %v5956 = vsub.f32 %v3906, %v4548
        %v5957 = vsub.f32 %v4035, %v4549
        %v5958 = vsub.f32 %v4036, %v4550
        %v5959 = vsub.f32 %v4037, %v4551
        %v5960 = vsub.f32 %v4038, %v4552
        %v5961 = vsub.f32 %v4039, %v4553
        %v5962 = vsub.f32 %v4040, %v4554
        %v5963 = vsub.f32 %v4041, %v4555
        %v5964 = vsub.f32 %v4042, %v4556
        %v5965 = vmul.f32 %v5837, %v5709
        %v5966 = vmul.f32 %v5838, %v5710
        %v5967 = vmul.f32 %v5839, %v5711
        %v5968 = vmul.f32 %v5840, %v5712
        %v5969 = vmul.f32 %v5841, %v5713
        %v5970 = vmul.f32 %v5842, %v5714
        %v5971 = vmul.f32 %v5843, %v5715
        %v5972 = vmul.f32 %v5844, %v5716
        %v5973 = vmul.f32 %v5845, %v5717
        %v5974 = vmul.f32 %v5846, %v5718
        %v5975 = vmul.f32 %v5847, %v5719
        %v5976 = vmul.f32 %v5848, %v5720
        %v5977 = vmul.f32 %v5849, %v5721
        %v5978 = vmul.f32 %v5850, %v5722
        %v5979 = vmul.f32 %v5851, %v5723
        %v5980 = vmul.f32 %v5852, %v5724
        %v5981 = vmul.f32 %v5853, %v5725
        %v5982 = vmul.f32 %v5854, %v5726
        %v5983 = vmul.f32 %v5855, %v5727
        %v5984 = vmul.f32 %v5856, %v5728
        %v5985 = vmul.f32 %v5857, %v5729
        %v5986 = vmul.f32 %v5858, %v5730
        %v5987 = vmul.f32 %v5859, %v5731
        %v5988 = vmul.f32 %v5860, %v5732
        %v5989 = vmul.f32 %v5861, %v5733
        %v5990 = vmul.f32 %v5862, %v5734
        %v5991 = vmul.f32 %v5863, %v5735
        %v5992 = vmul.f32 %v5864, %v5736
        %v5993 = vmul.f32 %v5865, %v5737
        %v5994 = vmul.f32 %v5866, %v5738
        %v5995 = vmul.f32 %v5867, %v5739
        %v5996 = vmul.f32 %v5868, %v5740
        %v5997 = vmul.f32 %v5869, %v5741
        %v5998 = vmul.f32 %v5870, %v5742
        %v5999 = vmul.f32 %v5871, %v5743
        %v6000 = vmul.f32 %v5872, %v5744
        %v6001 = vmul.f32 %v5873, %v5745
        %v6002 = vmul.f32 %v5874, %v5746
        %v6003 = vmul.f32 %v5875, %v5747
        %v6004 = vmul.f32 %v5876, %v5748
        %v6005 = vmul.f32 %v5877, %v5749
        %v6006 = vmul.f32 %v5878, %v5750
        %v6007 = vmul.f32 %v5879, %v5751
        %v6008 = vmul.f32 %v5880, %v5752
        %v6009 = vmul.f32 %v5881, %v5753
        %v6010 = vmul.f32 %v5882, %v5754
        %v6011 = vmul.f32 %v5883, %v5755
        %v6012 = vmul.f32 %v5884, %v5756
        %v6013 = vmul.f32 %v5885, %v5757
        %v6014 = vmul.f32 %v5886, %v5758
        %v6015 = vmul.f32 %v5887, %v5759
        %v6016 = vmul.f32 %v5888, %v5760
        %v6017 = vmul.f32 %v5889, %v5761
        %v6018 = vmul.f32 %v5890, %v5762
        %v6019 = vmul.f32 %v5891, %v5763
        %v6020 = vmul.f32 %v5892, %v5764
        %v6021 = vmul.f32 %v5893, %v5765
        %v6022 = vmul.f32 %v5894, %v5766
        %v6023 = vmul.f32 %v5895, %v5767
        %v6024 = vmul.f32 %v5896, %v5768
        %v6025 = vmul.f32 %v5897, %v5769
        %v6026 = vmul.f32 %v5898, %v5770
        %v6027 = vmul.f32 %v5899, %v5771
        %v6028 = vmul.f32 %v5900, %v5772
        %v6029 = vmul.f32 %v5901, %v5773
        %v6030 = vmul.f32 %v5902, %v5774
        %v6031 = vmul.f32 %v5903, %v5775
        %v6032 = vmul.f32 %v5904, %v5776
        %v6033 = vmul.f32 %v5905, %v5777
        %v6034 = vmul.f32 %v5906, %v5778
        %v6035 = vmul.f32 %v5907, %v5779
        %v6036 = vmul.f32 %v5908, %v5780
        %v6037 = vmul.f32 %v5909, %v5781
        %v6038 = vmul.f32 %v5910, %v5782
        %v6039 = vmul.f32 %v5911, %v5783
        %v6040 = vmul.f32 %v5912, %v5784
        %v6041 = vmul.f32 %v5913, %v5785
        %v6042 = vmul.f32 %v5914, %v5786
        %v6043 = vmul.f32 %v5915, %v5787
        %v6044 = vmul.f32 %v5916, %v5788
        %v6045 = vmul.f32 %v5917, %v5789
        %v6046 = vmul.f32 %v5918, %v5790
        %v6047 = vmul.f32 %v5919, %v5791
        %v6048 = vmul.f32 %v5920, %v5792
        %v6049 = vmul.f32 %v5921, %v5793
        %v6050 = vmul.f32 %v5922, %v5794
        %v6051 = vmul.f32 %v5923, %v5795
        %v6052 = vmul.f32 %v5924, %v5796
        %v6053 = vmul.f32 %v5925, %v5797
        %v6054 = vmul.f32 %v5926, %v5798
        %v6055 = vmul.f32 %v5927, %v5799
        %v6056 = vmul.f32 %v5928, %v5800
        %v6057 = vmul.f32 %v5929, %v5801
        %v6058 = vmul.f32 %v5930, %v5802
        %v6059 = vmul.f32 %v5931, %v5803
        %v6060 = vmul.f32 %v5932, %v5804
        %v6061 = vmul.f32 %v5933, %v5805
        %v6062 = vmul.f32 %v5934, %v5806
        %v6063 = vmul.f32 %v5935, %v5807
        %v6064 = vmul.f32 %v5936, %v5808
        %v6065 = vmul.f32 %v5937, %v5809
        %v6066 = vmul.f32 %v5938, %v5810
        %v6067 = vmul.f32 %v5939, %v5811
        %v6068 = vmul.f32 %v5940, %v5812
        %v6069 = vmul.f32 %v5941, %v5813
        %v6070 = vmul.f32 %v5942, %v5814
        %v6071 = vmul.f32 %v5943, %v5815
        %v6072 = vmul.f32 %v5944, %v5816
        %v6073 = vmul.f32 %v5945, %v5817
        %v6074 = vmul.f32 %v5946, %v5818
        %v6075 = vmul.f32 %v5947, %v5819
        %v6076 = vmul.f32 %v5948, %v5820
        %v6077 = vmul.f32 %v5949, %v5821
        %v6078 = vmul.f32 %v5950, %v5822
        %v6079 = vmul.f32 %v5951, %v5823
        %v6080 = vmul.f32 %v5952, %v5824
        %v6081 = vmul.f32 %v5953, %v5825
        %v6082 = vmul.f32 %v5954, %v5826
        %v6083 = vmul.f32 %v5955, %v5827
        %v6084 = vmul.f32 %v5956, %v5828
        %v6085 = vmul.f32 %v5957, %v5829
        %v6086 = vmul.f32 %v5958, %v5830
        %v6087 = vmul.f32 %v5959, %v5831
        %v6088 = vmul.f32 %v5960, %v5832
        %v6089 = vmul.f32 %v5961, %v5833
        %v6090 = vmul.f32 %v5962, %v5834
        %v6091 = vmul.f32 %v5963, %v5835
        %v6092 = vmul.f32 %v5964, %v5836
        %v6093 = vcombine.low %v5965, %v5967
        %v6094 = vcombine.high %v5965, %v5967
        %v6096 = vunpack.c.l.s4 1983009808
        %v6097 = vunpack.c.0.s8 %v6096
        %v6098 = vlaneseq
        %v6099 = vshrl.u32 %v6098, 7
        %v6100 = vsub.s32 %v6097, %v6099
        %v6101 = vrot.slane %v6093, %v6100
        %v6103 = vunpack.c.l.s4 1983009808
        %v6104 = vunpack.c.0.s8 %v6103
        %v6105 = vlaneseq
        %v6106 = vshrl.u32 %v6105, 7
        %v6107 = vsub.s32 %v6104, %v6106
        %v6108 = vrot.slane %v6094, %v6107
        %v6109 = vcombine.low %v5966, %v5968
        %v6110 = vcombine.high %v5966, %v5968
        %v6112 = vunpack.c.l.s4 1983009808
        %v6113 = vunpack.c.0.s8 %v6112
        %v6114 = vlaneseq
        %v6115 = vshrl.u32 %v6114, 7
        %v6116 = vsub.s32 %v6113, %v6115
        %v6117 = vrot.slane %v6109, %v6116
        %v6119 = vunpack.c.l.s4 1983009808
        %v6120 = vunpack.c.0.s8 %v6119
        %v6121 = vlaneseq
        %v6122 = vshrl.u32 %v6121, 7
        %v6123 = vsub.s32 %v6120, %v6122
        %v6124 = vrot.slane %v6110, %v6123
        %v6125 = vcombine.low %v5969, %v5971
        %v6126 = vcombine.high %v5969, %v5971
        %v6128 = vunpack.c.l.s4 1983009808
        %v6129 = vunpack.c.0.s8 %v6128
        %v6130 = vlaneseq
        %v6131 = vshrl.u32 %v6130, 7
        %v6132 = vsub.s32 %v6129, %v6131
        %v6133 = vrot.slane %v6125, %v6132
        %v6135 = vunpack.c.l.s4 1983009808
        %v6136 = vunpack.c.0.s8 %v6135
        %v6137 = vlaneseq
        %v6138 = vshrl.u32 %v6137, 7
        %v6139 = vsub.s32 %v6136, %v6138
        %v6140 = vrot.slane %v6126, %v6139
        %v6141 = vcombine.low %v5970, %v5972
        %v6142 = vcombine.high %v5970, %v5972
        %v6144 = vunpack.c.l.s4 1983009808
        %v6145 = vunpack.c.0.s8 %v6144
        %v6146 = vlaneseq
        %v6147 = vshrl.u32 %v6146, 7
        %v6148 = vsub.s32 %v6145, %v6147
        %v6149 = vrot.slane %v6141, %v6148
        %v6151 = vunpack.c.l.s4 1983009808
        %v6152 = vunpack.c.0.s8 %v6151
        %v6153 = vlaneseq
        %v6154 = vshrl.u32 %v6153, 7
        %v6155 = vsub.s32 %v6152, %v6154
        %v6156 = vrot.slane %v6142, %v6155
        %v6157 = vcombine.low %v6101, %v6117
        %v6158 = vcombine.high %v6101, %v6117
        %v6160 = vunpack.c.l.s4 1934713408
        %v6161 = vunpack.c.0.s8 %v6160
        %v6162 = vlaneseq
        %v6163 = vshrl.u32 %v6162, 7
        %v6164 = vsub.s32 %v6161, %v6163
        %v6165 = vrot.slane %v6157, %v6164
        %v6167 = vunpack.c.l.s4 1934713408
        %v6168 = vunpack.c.0.s8 %v6167
        %v6169 = vlaneseq
        %v6170 = vshrl.u32 %v6169, 7
        %v6171 = vsub.s32 %v6168, %v6170
        %v6172 = vrot.slane %v6158, %v6171
        %v6173 = vcombine.low %v6108, %v6124
        %v6174 = vcombine.high %v6108, %v6124
        %v6176 = vunpack.c.l.s4 1934713408
        %v6177 = vunpack.c.0.s8 %v6176
        %v6178 = vlaneseq
        %v6179 = vshrl.u32 %v6178, 7
        %v6180 = vsub.s32 %v6177, %v6179
        %v6181 = vrot.slane %v6173, %v6180
        %v6183 = vunpack.c.l.s4 1934713408
        %v6184 = vunpack.c.0.s8 %v6183
        %v6185 = vlaneseq
        %v6186 = vshrl.u32 %v6185, 7
        %v6187 = vsub.s32 %v6184, %v6186
        %v6188 = vrot.slane %v6174, %v6187
        %v6189 = vcombine.low %v6133, %v6149
        %v6190 = vcombine.high %v6133, %v6149
        %v6192 = vunpack.c.l.s4 1934713408
        %v6193 = vunpack.c.0.s8 %v6192
        %v6194 = vlaneseq
        %v6195 = vshrl.u32 %v6194, 7
        %v6196 = vsub.s32 %v6193, %v6195
        %v6197 = vrot.slane %v6189, %v6196
        %v6199 = vunpack.c.l.s4 1934713408
        %v6200 = vunpack.c.0.s8 %v6199
        %v6201 = vlaneseq
        %v6202 = vshrl.u32 %v6201, 7
        %v6203 = vsub.s32 %v6200, %v6202
        %v6204 = vrot.slane %v6190, %v6203
        %v6205 = vcombine.low %v6140, %v6156
        %v6206 = vcombine.high %v6140, %v6156
        %v6208 = vunpack.c.l.s4 1934713408
        %v6209 = vunpack.c.0.s8 %v6208
        %v6210 = vlaneseq
        %v6211 = vshrl.u32 %v6210, 7
        %v6212 = vsub.s32 %v6209, %v6211
        %v6213 = vrot.slane %v6205, %v6212
        %v6215 = vunpack.c.l.s4 1934713408
        %v6216 = vunpack.c.0.s8 %v6215
        %v6217 = vlaneseq
        %v6218 = vshrl.u32 %v6217, 7
        %v6219 = vsub.s32 %v6216, %v6218
        %v6220 = vrot.slane %v6206, %v6219
        %v6221 = vcombine.low %v6165, %v6197
        %v6222 = vcombine.high %v6165, %v6197
        %v6223 = vcombine.low %v6172, %v6204
        %v6224 = vcombine.high %v6172, %v6204
        %v6225 = vcombine.low %v6181, %v6213
        %v6226 = vcombine.high %v6181, %v6213
        %v6227 = vcombine.low %v6188, %v6220
        %v6228 = vcombine.high %v6188, %v6220
        %v6229 = vcombine.low %v5973, %v5975
        %v6230 = vcombine.high %v5973, %v5975
        %v6232 = vunpack.c.l.s4 1983009808
        %v6233 = vunpack.c.0.s8 %v6232
        %v6234 = vlaneseq
        %v6235 = vshrl.u32 %v6234, 7
        %v6236 = vsub.s32 %v6233, %v6235
        %v6237 = vrot.slane %v6229, %v6236
        %v6239 = vunpack.c.l.s4 1983009808
        %v6240 = vunpack.c.0.s8 %v6239
        %v6241 = vlaneseq
        %v6242 = vshrl.u32 %v6241, 7
        %v6243 = vsub.s32 %v6240, %v6242
        %v6244 = vrot.slane %v6230, %v6243
        %v6245 = vcombine.low %v5974, %v5976
        %v6246 = vcombine.high %v5974, %v5976
        %v6248 = vunpack.c.l.s4 1983009808
        %v6249 = vunpack.c.0.s8 %v6248
        %v6250 = vlaneseq
        %v6251 = vshrl.u32 %v6250, 7
        %v6252 = vsub.s32 %v6249, %v6251
        %v6253 = vrot.slane %v6245, %v6252
        %v6255 = vunpack.c.l.s4 1983009808
        %v6256 = vunpack.c.0.s8 %v6255
        %v6257 = vlaneseq
        %v6258 = vshrl.u32 %v6257, 7
        %v6259 = vsub.s32 %v6256, %v6258
        %v6260 = vrot.slane %v6246, %v6259
        %v6261 = vcombine.low %v5977, %v5979
        %v6262 = vcombine.high %v5977, %v5979
        %v6264 = vunpack.c.l.s4 1983009808
        %v6265 = vunpack.c.0.s8 %v6264
        %v6266 = vlaneseq
        %v6267 = vshrl.u32 %v6266, 7
        %v6268 = vsub.s32 %v6265, %v6267
        %v6269 = vrot.slane %v6261, %v6268
        %v6271 = vunpack.c.l.s4 1983009808
        %v6272 = vunpack.c.0.s8 %v6271
        %v6273 = vlaneseq
        %v6274 = vshrl.u32 %v6273, 7
        %v6275 = vsub.s32 %v6272, %v6274
        %v6276 = vrot.slane %v6262, %v6275
        %v6277 = vcombine.low %v5978, %v5980
        %v6278 = vcombine.high %v5978, %v5980
        %v6280 = vunpack.c.l.s4 1983009808
        %v6281 = vunpack.c.0.s8 %v6280
        %v6282 = vlaneseq
        %v6283 = vshrl.u32 %v6282, 7
        %v6284 = vsub.s32 %v6281, %v6283
        %v6285 = vrot.slane %v6277, %v6284
        %v6287 = vunpack.c.l.s4 1983009808
        %v6288 = vunpack.c.0.s8 %v6287
        %v6289 = vlaneseq
        %v6290 = vshrl.u32 %v6289, 7
        %v6291 = vsub.s32 %v6288, %v6290
        %v6292 = vrot.slane %v6278, %v6291
        %v6293 = vcombine.low %v6237, %v6253
        %v6294 = vcombine.high %v6237, %v6253
        %v6296 = vunpack.c.l.s4 1934713408
        %v6297 = vunpack.c.0.s8 %v6296
        %v6298 = vlaneseq
        %v6299 = vshrl.u32 %v6298, 7
        %v6300 = vsub.s32 %v6297, %v6299
        %v6301 = vrot.slane %v6293, %v6300
        %v6303 = vunpack.c.l.s4 1934713408
        %v6304 = vunpack.c.0.s8 %v6303
        %v6305 = vlaneseq
        %v6306 = vshrl.u32 %v6305, 7
        %v6307 = vsub.s32 %v6304, %v6306
        %v6308 = vrot.slane %v6294, %v6307
        %v6309 = vcombine.low %v6244, %v6260
        %v6310 = vcombine.high %v6244, %v6260
        %v6312 = vunpack.c.l.s4 1934713408
        %v6313 = vunpack.c.0.s8 %v6312
        %v6314 = vlaneseq
        %v6315 = vshrl.u32 %v6314, 7
        %v6316 = vsub.s32 %v6313, %v6315
        %v6317 = vrot.slane %v6309, %v6316
        %v6319 = vunpack.c.l.s4 1934713408
        %v6320 = vunpack.c.0.s8 %v6319
        %v6321 = vlaneseq
        %v6322 = vshrl.u32 %v6321, 7
        %v6323 = vsub.s32 %v6320, %v6322
        %v6324 = vrot.slane %v6310, %v6323
        %v6325 = vcombine.low %v6269, %v6285
        %v6326 = vcombine.high %v6269, %v6285
        %v6328 = vunpack.c.l.s4 1934713408
        %v6329 = vunpack.c.0.s8 %v6328
        %v6330 = vlaneseq
        %v6331 = vshrl.u32 %v6330, 7
        %v6332 = vsub.s32 %v6329, %v6331
        %v6333 = vrot.slane %v6325, %v6332
        %v6335 = vunpack.c.l.s4 1934713408
        %v6336 = vunpack.c.0.s8 %v6335
        %v6337 = vlaneseq
        %v6338 = vshrl.u32 %v6337, 7
        %v6339 = vsub.s32 %v6336, %v6338
        %v6340 = vrot.slane %v6326, %v6339
        %v6341 = vcombine.low %v6276, %v6292
        %v6342 = vcombine.high %v6276, %v6292
        %v6344 = vunpack.c.l.s4 1934713408
        %v6345 = vunpack.c.0.s8 %v6344
        %v6346 = vlaneseq
        %v6347 = vshrl.u32 %v6346, 7
        %v6348 = vsub.s32 %v6345, %v6347
        %v6349 = vrot.slane %v6341, %v6348
        %v6351 = vunpack.c.l.s4 1934713408
        %v6352 = vunpack.c.0.s8 %v6351
        %v6353 = vlaneseq
        %v6354 = vshrl.u32 %v6353, 7
        %v6355 = vsub.s32 %v6352, %v6354
        %v6356 = vrot.slane %v6342, %v6355
        %v6357 = vcombine.low %v6301, %v6333
        %v6358 = vcombine.high %v6301, %v6333
        %v6359 = vcombine.low %v6308, %v6340
        %v6360 = vcombine.high %v6308, %v6340
        %v6361 = vcombine.low %v6317, %v6349
        %v6362 = vcombine.high %v6317, %v6349
        %v6363 = vcombine.low %v6324, %v6356
        %v6364 = vcombine.high %v6324, %v6356
        %v6365 = vcombine.low %v5981, %v5983
        %v6366 = vcombine.high %v5981, %v5983
        %v6368 = vunpack.c.l.s4 1983009808
        %v6369 = vunpack.c.0.s8 %v6368
        %v6370 = vlaneseq
        %v6371 = vshrl.u32 %v6370, 7
        %v6372 = vsub.s32 %v6369, %v6371
        %v6373 = vrot.slane %v6365, %v6372
        %v6375 = vunpack.c.l.s4 1983009808
        %v6376 = vunpack.c.0.s8 %v6375
        %v6377 = vlaneseq
        %v6378 = vshrl.u32 %v6377, 7
        %v6379 = vsub.s32 %v6376, %v6378
        %v6380 = vrot.slane %v6366, %v6379
        %v6381 = vcombine.low %v5982, %v5984
        %v6382 = vcombine.high %v5982, %v5984
        %v6384 = vunpack.c.l.s4 1983009808
        %v6385 = vunpack.c.0.s8 %v6384
        %v6386 = vlaneseq
        %v6387 = vshrl.u32 %v6386, 7
        %v6388 = vsub.s32 %v6385, %v6387
        %v6389 = vrot.slane %v6381, %v6388
        %v6391 = vunpack.c.l.s4 1983009808
        %v6392 = vunpack.c.0.s8 %v6391
        %v6393 = vlaneseq
        %v6394 = vshrl.u32 %v6393, 7
        %v6395 = vsub.s32 %v6392, %v6394
        %v6396 = vrot.slane %v6382, %v6395
        %v6397 = vcombine.low %v5985, %v5987
        %v6398 = vcombine.high %v5985, %v5987
        %v6400 = vunpack.c.l.s4 1983009808
        %v6401 = vunpack.c.0.s8 %v6400
        %v6402 = vlaneseq
        %v6403 = vshrl.u32 %v6402, 7
        %v6404 = vsub.s32 %v6401, %v6403
        %v6405 = vrot.slane %v6397, %v6404
        %v6407 = vunpack.c.l.s4 1983009808
        %v6408 = vunpack.c.0.s8 %v6407
        %v6409 = vlaneseq
        %v6410 = vshrl.u32 %v6409, 7
        %v6411 = vsub.s32 %v6408, %v6410
        %v6412 = vrot.slane %v6398, %v6411
        %v6413 = vcombine.low %v5986, %v5988
        %v6414 = vcombine.high %v5986, %v5988
        %v6416 = vunpack.c.l.s4 1983009808
        %v6417 = vunpack.c.0.s8 %v6416
        %v6418 = vlaneseq
        %v6419 = vshrl.u32 %v6418, 7
        %v6420 = vsub.s32 %v6417, %v6419
        %v6421 = vrot.slane %v6413, %v6420
        %v6423 = vunpack.c.l.s4 1983009808
        %v6424 = vunpack.c.0.s8 %v6423
        %v6425 = vlaneseq
        %v6426 = vshrl.u32 %v6425, 7
        %v6427 = vsub.s32 %v6424, %v6426
        %v6428 = vrot.slane %v6414, %v6427
        %v6429 = vcombine.low %v6373, %v6389
        %v6430 = vcombine.high %v6373, %v6389
        %v6432 = vunpack.c.l.s4 1934713408
        %v6433 = vunpack.c.0.s8 %v6432
        %v6434 = vlaneseq
        %v6435 = vshrl.u32 %v6434, 7
        %v6436 = vsub.s32 %v6433, %v6435
        %v6437 = vrot.slane %v6429, %v6436
        %v6439 = vunpack.c.l.s4 1934713408
        %v6440 = vunpack.c.0.s8 %v6439
        %v6441 = vlaneseq
        %v6442 = vshrl.u32 %v6441, 7
        %v6443 = vsub.s32 %v6440, %v6442
        %v6444 = vrot.slane %v6430, %v6443
        %v6445 = vcombine.low %v6380, %v6396
        %v6446 = vcombine.high %v6380, %v6396
        %v6448 = vunpack.c.l.s4 1934713408
        %v6449 = vunpack.c.0.s8 %v6448
        %v6450 = vlaneseq
        %v6451 = vshrl.u32 %v6450, 7
        %v6452 = vsub.s32 %v6449, %v6451
        %v6453 = vrot.slane %v6445, %v6452
        %v6455 = vunpack.c.l.s4 1934713408
        %v6456 = vunpack.c.0.s8 %v6455
        %v6457 = vlaneseq
        %v6458 = vshrl.u32 %v6457, 7
        %v6459 = vsub.s32 %v6456, %v6458
        %v6460 = vrot.slane %v6446, %v6459
        %v6461 = vcombine.low %v6405, %v6421
        %v6462 = vcombine.high %v6405, %v6421
        %v6464 = vunpack.c.l.s4 1934713408
        %v6465 = vunpack.c.0.s8 %v6464
        %v6466 = vlaneseq
        %v6467 = vshrl.u32 %v6466, 7
        %v6468 = vsub.s32 %v6465, %v6467
        %v6469 = vrot.slane %v6461, %v6468
        %v6471 = vunpack.c.l.s4 1934713408
        %v6472 = vunpack.c.0.s8 %v6471
        %v6473 = vlaneseq
        %v6474 = vshrl.u32 %v6473, 7
        %v6475 = vsub.s32 %v6472, %v6474
        %v6476 = vrot.slane %v6462, %v6475
        %v6477 = vcombine.low %v6412, %v6428
        %v6478 = vcombine.high %v6412, %v6428
        %v6480 = vunpack.c.l.s4 1934713408
        %v6481 = vunpack.c.0.s8 %v6480
        %v6482 = vlaneseq
        %v6483 = vshrl.u32 %v6482, 7
        %v6484 = vsub.s32 %v6481, %v6483
        %v6485 = vrot.slane %v6477, %v6484
        %v6487 = vunpack.c.l.s4 1934713408
        %v6488 = vunpack.c.0.s8 %v6487
        %v6489 = vlaneseq
        %v6490 = vshrl.u32 %v6489, 7
        %v6491 = vsub.s32 %v6488, %v6490
        %v6492 = vrot.slane %v6478, %v6491
        %v6493 = vcombine.low %v6437, %v6469
        %v6494 = vcombine.high %v6437, %v6469
        %v6495 = vcombine.low %v6444, %v6476
        %v6496 = vcombine.high %v6444, %v6476
        %v6497 = vcombine.low %v6453, %v6485
        %v6498 = vcombine.high %v6453, %v6485
        %v6499 = vcombine.low %v6460, %v6492
        %v6500 = vcombine.high %v6460, %v6492
        %v6501 = vcombine.low %v5989, %v5991
        %v6502 = vcombine.high %v5989, %v5991
        %v6504 = vunpack.c.l.s4 1983009808
        %v6505 = vunpack.c.0.s8 %v6504
        %v6506 = vlaneseq
        %v6507 = vshrl.u32 %v6506, 7
        %v6508 = vsub.s32 %v6505, %v6507
        %v6509 = vrot.slane %v6501, %v6508
        %v6511 = vunpack.c.l.s4 1983009808
        %v6512 = vunpack.c.0.s8 %v6511
        %v6513 = vlaneseq
        %v6514 = vshrl.u32 %v6513, 7
        %v6515 = vsub.s32 %v6512, %v6514
        %v6516 = vrot.slane %v6502, %v6515
        %v6517 = vcombine.low %v5990, %v5992
        %v6518 = vcombine.high %v5990, %v5992
        %v6520 = vunpack.c.l.s4 1983009808
        %v6521 = vunpack.c.0.s8 %v6520
        %v6522 = vlaneseq
        %v6523 = vshrl.u32 %v6522, 7
        %v6524 = vsub.s32 %v6521, %v6523
        %v6525 = vrot.slane %v6517, %v6524
        %v6527 = vunpack.c.l.s4 1983009808
        %v6528 = vunpack.c.0.s8 %v6527
        %v6529 = vlaneseq
        %v6530 = vshrl.u32 %v6529, 7
        %v6531 = vsub.s32 %v6528, %v6530
        %v6532 = vrot.slane %v6518, %v6531
        %v6533 = vcombine.low %v5993, %v5995
        %v6534 = vcombine.high %v5993, %v5995
        %v6536 = vunpack.c.l.s4 1983009808
        %v6537 = vunpack.c.0.s8 %v6536
        %v6538 = vlaneseq
        %v6539 = vshrl.u32 %v6538, 7
        %v6540 = vsub.s32 %v6537, %v6539
        %v6541 = vrot.slane %v6533, %v6540
        %v6543 = vunpack.c.l.s4 1983009808
        %v6544 = vunpack.c.0.s8 %v6543
        %v6545 = vlaneseq
        %v6546 = vshrl.u32 %v6545, 7
        %v6547 = vsub.s32 %v6544, %v6546
        %v6548 = vrot.slane %v6534, %v6547
        %v6549 = vcombine.low %v5994, %v5996
        %v6550 = vcombine.high %v5994, %v5996
        %v6552 = vunpack.c.l.s4 1983009808
        %v6553 = vunpack.c.0.s8 %v6552
        %v6554 = vlaneseq
        %v6555 = vshrl.u32 %v6554, 7
        %v6556 = vsub.s32 %v6553, %v6555
        %v6557 = vrot.slane %v6549, %v6556
        %v6559 = vunpack.c.l.s4 1983009808
        %v6560 = vunpack.c.0.s8 %v6559
        %v6561 = vlaneseq
        %v6562 = vshrl.u32 %v6561, 7
        %v6563 = vsub.s32 %v6560, %v6562
        %v6564 = vrot.slane %v6550, %v6563
        %v6565 = vcombine.low %v6509, %v6525
        %v6566 = vcombine.high %v6509, %v6525
        %v6568 = vunpack.c.l.s4 1934713408
        %v6569 = vunpack.c.0.s8 %v6568
        %v6570 = vlaneseq
        %v6571 = vshrl.u32 %v6570, 7
        %v6572 = vsub.s32 %v6569, %v6571
        %v6573 = vrot.slane %v6565, %v6572
        %v6575 = vunpack.c.l.s4 1934713408
        %v6576 = vunpack.c.0.s8 %v6575
        %v6577 = vlaneseq
        %v6578 = vshrl.u32 %v6577, 7
        %v6579 = vsub.s32 %v6576, %v6578
        %v6580 = vrot.slane %v6566, %v6579
        %v6581 = vcombine.low %v6516, %v6532
        %v6582 = vcombine.high %v6516, %v6532
        %v6584 = vunpack.c.l.s4 1934713408
        %v6585 = vunpack.c.0.s8 %v6584
        %v6586 = vlaneseq
        %v6587 = vshrl.u32 %v6586, 7
        %v6588 = vsub.s32 %v6585, %v6587
        %v6589 = vrot.slane %v6581, %v6588
        %v6591 = vunpack.c.l.s4 1934713408
        %v6592 = vunpack.c.0.s8 %v6591
        %v6593 = vlaneseq
        %v6594 = vshrl.u32 %v6593, 7
        %v6595 = vsub.s32 %v6592, %v6594
        %v6596 = vrot.slane %v6582, %v6595
        %v6597 = vcombine.low %v6541, %v6557
        %v6598 = vcombine.high %v6541, %v6557
        %v6600 = vunpack.c.l.s4 1934713408
        %v6601 = vunpack.c.0.s8 %v6600
        %v6602 = vlaneseq
        %v6603 = vshrl.u32 %v6602, 7
        %v6604 = vsub.s32 %v6601, %v6603
        %v6605 = vrot.slane %v6597, %v6604
        %v6607 = vunpack.c.l.s4 1934713408
        %v6608 = vunpack.c.0.s8 %v6607
        %v6609 = vlaneseq
        %v6610 = vshrl.u32 %v6609, 7
        %v6611 = vsub.s32 %v6608, %v6610
        %v6612 = vrot.slane %v6598, %v6611
        %v6613 = vcombine.low %v6548, %v6564
        %v6614 = vcombine.high %v6548, %v6564
        %v6616 = vunpack.c.l.s4 1934713408
        %v6617 = vunpack.c.0.s8 %v6616
        %v6618 = vlaneseq
        %v6619 = vshrl.u32 %v6618, 7
        %v6620 = vsub.s32 %v6617, %v6619
        %v6621 = vrot.slane %v6613, %v6620
        %v6623 = vunpack.c.l.s4 1934713408
        %v6624 = vunpack.c.0.s8 %v6623
        %v6625 = vlaneseq
        %v6626 = vshrl.u32 %v6625, 7
        %v6627 = vsub.s32 %v6624, %v6626
        %v6628 = vrot.slane %v6614, %v6627
        %v6629 = vcombine.low %v6573, %v6605
        %v6630 = vcombine.high %v6573, %v6605
        %v6631 = vcombine.low %v6580, %v6612
        %v6632 = vcombine.high %v6580, %v6612
        %v6633 = vcombine.low %v6589, %v6621
        %v6634 = vcombine.high %v6589, %v6621
        %v6635 = vcombine.low %v6596, %v6628
        %v6636 = vcombine.high %v6596, %v6628
        %v6637 = vcombine.low %v5997, %v5999
        %v6638 = vcombine.high %v5997, %v5999
        %v6640 = vunpack.c.l.s4 1983009808
        %v6641 = vunpack.c.0.s8 %v6640
        %v6642 = vlaneseq
        %v6643 = vshrl.u32 %v6642, 7
        %v6644 = vsub.s32 %v6641, %v6643
        %v6645 = vrot.slane %v6637, %v6644
        %v6647 = vunpack.c.l.s4 1983009808
        %v6648 = vunpack.c.0.s8 %v6647
        %v6649 = vlaneseq
        %v6650 = vshrl.u32 %v6649, 7
        %v6651 = vsub.s32 %v6648, %v6650
        %v6652 = vrot.slane %v6638, %v6651
        %v6653 = vcombine.low %v5998, %v6000
        %v6654 = vcombine.high %v5998, %v6000
        %v6656 = vunpack.c.l.s4 1983009808
        %v6657 = vunpack.c.0.s8 %v6656
        %v6658 = vlaneseq
        %v6659 = vshrl.u32 %v6658, 7
        %v6660 = vsub.s32 %v6657, %v6659
        %v6661 = vrot.slane %v6653, %v6660
        %v6663 = vunpack.c.l.s4 1983009808
        %v6664 = vunpack.c.0.s8 %v6663
        %v6665 = vlaneseq
        %v6666 = vshrl.u32 %v6665, 7
        %v6667 = vsub.s32 %v6664, %v6666
        %v6668 = vrot.slane %v6654, %v6667
        %v6669 = vcombine.low %v6001, %v6003
        %v6670 = vcombine.high %v6001, %v6003
        %v6672 = vunpack.c.l.s4 1983009808
        %v6673 = vunpack.c.0.s8 %v6672
        %v6674 = vlaneseq
        %v6675 = vshrl.u32 %v6674, 7
        %v6676 = vsub.s32 %v6673, %v6675
        %v6677 = vrot.slane %v6669, %v6676
        %v6679 = vunpack.c.l.s4 1983009808
        %v6680 = vunpack.c.0.s8 %v6679
        %v6681 = vlaneseq
        %v6682 = vshrl.u32 %v6681, 7
        %v6683 = vsub.s32 %v6680, %v6682
        %v6684 = vrot.slane %v6670, %v6683
        %v6685 = vcombine.low %v6002, %v6004
        %v6686 = vcombine.high %v6002, %v6004
        %v6688 = vunpack.c.l.s4 1983009808
        %v6689 = vunpack.c.0.s8 %v6688
        %v6690 = vlaneseq
        %v6691 = vshrl.u32 %v6690, 7
        %v6692 = vsub.s32 %v6689, %v6691
        %v6693 = vrot.slane %v6685, %v6692
        %v6695 = vunpack.c.l.s4 1983009808
        %v6696 = vunpack.c.0.s8 %v6695
        %v6697 = vlaneseq
        %v6698 = vshrl.u32 %v6697, 7
        %v6699 = vsub.s32 %v6696, %v6698
        %v6700 = vrot.slane %v6686, %v6699
        %v6701 = vcombine.low %v6645, %v6661
        %v6702 = vcombine.high %v6645, %v6661
        %v6704 = vunpack.c.l.s4 1934713408
        %v6705 = vunpack.c.0.s8 %v6704
        %v6706 = vlaneseq
        %v6707 = vshrl.u32 %v6706, 7
        %v6708 = vsub.s32 %v6705, %v6707
        %v6709 = vrot.slane %v6701, %v6708
        %v6711 = vunpack.c.l.s4 1934713408
        %v6712 = vunpack.c.0.s8 %v6711
        %v6713 = vlaneseq
        %v6714 = vshrl.u32 %v6713, 7
        %v6715 = vsub.s32 %v6712, %v6714
        %v6716 = vrot.slane %v6702, %v6715
        %v6717 = vcombine.low %v6652, %v6668
        %v6718 = vcombine.high %v6652, %v6668
        %v6720 = vunpack.c.l.s4 1934713408
        %v6721 = vunpack.c.0.s8 %v6720
        %v6722 = vlaneseq
        %v6723 = vshrl.u32 %v6722, 7
        %v6724 = vsub.s32 %v6721, %v6723
        %v6725 = vrot.slane %v6717, %v6724
        %v6727 = vunpack.c.l.s4 1934713408
        %v6728 = vunpack.c.0.s8 %v6727
        %v6729 = vlaneseq
        %v6730 = vshrl.u32 %v6729, 7
        %v6731 = vsub.s32 %v6728, %v6730
        %v6732 = vrot.slane %v6718, %v6731
        %v6733 = vcombine.low %v6677, %v6693
        %v6734 = vcombine.high %v6677, %v6693
        %v6736 = vunpack.c.l.s4 1934713408
        %v6737 = vunpack.c.0.s8 %v6736
        %v6738 = vlaneseq
        %v6739 = vshrl.u32 %v6738, 7
        %v6740 = vsub.s32 %v6737, %v6739
        %v6741 = vrot.slane %v6733, %v6740
        %v6743 = vunpack.c.l.s4 1934713408
        %v6744 = vunpack.c.0.s8 %v6743
        %v6745 = vlaneseq
        %v6746 = vshrl.u32 %v6745, 7
        %v6747 = vsub.s32 %v6744, %v6746
        %v6748 = vrot.slane %v6734, %v6747
        %v6749 = vcombine.low %v6684, %v6700
        %v6750 = vcombine.high %v6684, %v6700
        %v6752 = vunpack.c.l.s4 1934713408
        %v6753 = vunpack.c.0.s8 %v6752
        %v6754 = vlaneseq
        %v6755 = vshrl.u32 %v6754, 7
        %v6756 = vsub.s32 %v6753, %v6755
        %v6757 = vrot.slane %v6749, %v6756
        %v6759 = vunpack.c.l.s4 1934713408
        %v6760 = vunpack.c.0.s8 %v6759
        %v6761 = vlaneseq
        %v6762 = vshrl.u32 %v6761, 7
        %v6763 = vsub.s32 %v6760, %v6762
        %v6764 = vrot.slane %v6750, %v6763
        %v6765 = vcombine.low %v6709, %v6741
        %v6766 = vcombine.high %v6709, %v6741
        %v6767 = vcombine.low %v6716, %v6748
        %v6768 = vcombine.high %v6716, %v6748
        %v6769 = vcombine.low %v6725, %v6757
        %v6770 = vcombine.high %v6725, %v6757
        %v6771 = vcombine.low %v6732, %v6764
        %v6772 = vcombine.high %v6732, %v6764
        %v6773 = vcombine.low %v6005, %v6007
        %v6774 = vcombine.high %v6005, %v6007
        %v6776 = vunpack.c.l.s4 1983009808
        %v6777 = vunpack.c.0.s8 %v6776
        %v6778 = vlaneseq
        %v6779 = vshrl.u32 %v6778, 7
        %v6780 = vsub.s32 %v6777, %v6779
        %v6781 = vrot.slane %v6773, %v6780
        %v6783 = vunpack.c.l.s4 1983009808
        %v6784 = vunpack.c.0.s8 %v6783
        %v6785 = vlaneseq
        %v6786 = vshrl.u32 %v6785, 7
        %v6787 = vsub.s32 %v6784, %v6786
        %v6788 = vrot.slane %v6774, %v6787
        %v6789 = vcombine.low %v6006, %v6008
        %v6790 = vcombine.high %v6006, %v6008
        %v6792 = vunpack.c.l.s4 1983009808
        %v6793 = vunpack.c.0.s8 %v6792
        %v6794 = vlaneseq
        %v6795 = vshrl.u32 %v6794, 7
        %v6796 = vsub.s32 %v6793, %v6795
        %v6797 = vrot.slane %v6789, %v6796
        %v6799 = vunpack.c.l.s4 1983009808
        %v6800 = vunpack.c.0.s8 %v6799
        %v6801 = vlaneseq
        %v6802 = vshrl.u32 %v6801, 7
        %v6803 = vsub.s32 %v6800, %v6802
        %v6804 = vrot.slane %v6790, %v6803
        %v6805 = vcombine.low %v6009, %v6011
        %v6806 = vcombine.high %v6009, %v6011
        %v6808 = vunpack.c.l.s4 1983009808
        %v6809 = vunpack.c.0.s8 %v6808
        %v6810 = vlaneseq
        %v6811 = vshrl.u32 %v6810, 7
        %v6812 = vsub.s32 %v6809, %v6811
        %v6813 = vrot.slane %v6805, %v6812
        %v6815 = vunpack.c.l.s4 1983009808
        %v6816 = vunpack.c.0.s8 %v6815
        %v6817 = vlaneseq
        %v6818 = vshrl.u32 %v6817, 7
        %v6819 = vsub.s32 %v6816, %v6818
        %v6820 = vrot.slane %v6806, %v6819
        %v6821 = vcombine.low %v6010, %v6012
        %v6822 = vcombine.high %v6010, %v6012
        %v6824 = vunpack.c.l.s4 1983009808
        %v6825 = vunpack.c.0.s8 %v6824
        %v6826 = vlaneseq
        %v6827 = vshrl.u32 %v6826, 7
        %v6828 = vsub.s32 %v6825, %v6827
        %v6829 = vrot.slane %v6821, %v6828
        %v6831 = vunpack.c.l.s4 1983009808
        %v6832 = vunpack.c.0.s8 %v6831
        %v6833 = vlaneseq
        %v6834 = vshrl.u32 %v6833, 7
        %v6835 = vsub.s32 %v6832, %v6834
        %v6836 = vrot.slane %v6822, %v6835
        %v6837 = vcombine.low %v6781, %v6797
        %v6838 = vcombine.high %v6781, %v6797
        %v6840 = vunpack.c.l.s4 1934713408
        %v6841 = vunpack.c.0.s8 %v6840
        %v6842 = vlaneseq
        %v6843 = vshrl.u32 %v6842, 7
        %v6844 = vsub.s32 %v6841, %v6843
        %v6845 = vrot.slane %v6837, %v6844
        %v6847 = vunpack.c.l.s4 1934713408
        %v6848 = vunpack.c.0.s8 %v6847
        %v6849 = vlaneseq
        %v6850 = vshrl.u32 %v6849, 7
        %v6851 = vsub.s32 %v6848, %v6850
        %v6852 = vrot.slane %v6838, %v6851
        %v6853 = vcombine.low %v6788, %v6804
        %v6854 = vcombine.high %v6788, %v6804
        %v6856 = vunpack.c.l.s4 1934713408
        %v6857 = vunpack.c.0.s8 %v6856
        %v6858 = vlaneseq
        %v6859 = vshrl.u32 %v6858, 7
        %v6860 = vsub.s32 %v6857, %v6859
        %v6861 = vrot.slane %v6853, %v6860
        %v6863 = vunpack.c.l.s4 1934713408
        %v6864 = vunpack.c.0.s8 %v6863
        %v6865 = vlaneseq
        %v6866 = vshrl.u32 %v6865, 7
        %v6867 = vsub.s32 %v6864, %v6866
        %v6868 = vrot.slane %v6854, %v6867
        %v6869 = vcombine.low %v6813, %v6829
        %v6870 = vcombine.high %v6813, %v6829
        %v6872 = vunpack.c.l.s4 1934713408
        %v6873 = vunpack.c.0.s8 %v6872
        %v6874 = vlaneseq
        %v6875 = vshrl.u32 %v6874, 7
        %v6876 = vsub.s32 %v6873, %v6875
        %v6877 = vrot.slane %v6869, %v6876
        %v6879 = vunpack.c.l.s4 1934713408
        %v6880 = vunpack.c.0.s8 %v6879
        %v6881 = vlaneseq
        %v6882 = vshrl.u32 %v6881, 7
        %v6883 = vsub.s32 %v6880, %v6882
        %v6884 = vrot.slane %v6870, %v6883
        %v6885 = vcombine.low %v6820, %v6836
        %v6886 = vcombine.high %v6820, %v6836
        %v6888 = vunpack.c.l.s4 1934713408
        %v6889 = vunpack.c.0.s8 %v6888
        %v6890 = vlaneseq
        %v6891 = vshrl.u32 %v6890, 7
        %v6892 = vsub.s32 %v6889, %v6891
        %v6893 = vrot.slane %v6885, %v6892
        %v6895 = vunpack.c.l.s4 1934713408
        %v6896 = vunpack.c.0.s8 %v6895
        %v6897 = vlaneseq
        %v6898 = vshrl.u32 %v6897, 7
        %v6899 = vsub.s32 %v6896, %v6898
        %v6900 = vrot.slane %v6886, %v6899
        %v6901 = vcombine.low %v6845, %v6877
        %v6902 = vcombine.high %v6845, %v6877
        %v6903 = vcombine.low %v6852, %v6884
        %v6904 = vcombine.high %v6852, %v6884
        %v6905 = vcombine.low %v6861, %v6893
        %v6906 = vcombine.high %v6861, %v6893
        %v6907 = vcombine.low %v6868, %v6900
        %v6908 = vcombine.high %v6868, %v6900
        %v6909 = vcombine.low %v6013, %v6015
        %v6910 = vcombine.high %v6013, %v6015
        %v6912 = vunpack.c.l.s4 1983009808
        %v6913 = vunpack.c.0.s8 %v6912
        %v6914 = vlaneseq
        %v6915 = vshrl.u32 %v6914, 7
        %v6916 = vsub.s32 %v6913, %v6915
        %v6917 = vrot.slane %v6909, %v6916
        %v6919 = vunpack.c.l.s4 1983009808
        %v6920 = vunpack.c.0.s8 %v6919
        %v6921 = vlaneseq
        %v6922 = vshrl.u32 %v6921, 7
        %v6923 = vsub.s32 %v6920, %v6922
        %v6924 = vrot.slane %v6910, %v6923
        %v6925 = vcombine.low %v6014, %v6016
        %v6926 = vcombine.high %v6014, %v6016
        %v6928 = vunpack.c.l.s4 1983009808
        %v6929 = vunpack.c.0.s8 %v6928
        %v6930 = vlaneseq
        %v6931 = vshrl.u32 %v6930, 7
        %v6932 = vsub.s32 %v6929, %v6931
        %v6933 = vrot.slane %v6925, %v6932
        %v6935 = vunpack.c.l.s4 1983009808
        %v6936 = vunpack.c.0.s8 %v6935
        %v6937 = vlaneseq
        %v6938 = vshrl.u32 %v6937, 7
        %v6939 = vsub.s32 %v6936, %v6938
        %v6940 = vrot.slane %v6926, %v6939
        %v6941 = vcombine.low %v6017, %v6019
        %v6942 = vcombine.high %v6017, %v6019
        %v6944 = vunpack.c.l.s4 1983009808
        %v6945 = vunpack.c.0.s8 %v6944
        %v6946 = vlaneseq
        %v6947 = vshrl.u32 %v6946, 7
        %v6948 = vsub.s32 %v6945, %v6947
        %v6949 = vrot.slane %v6941, %v6948
        %v6951 = vunpack.c.l.s4 1983009808
        %v6952 = vunpack.c.0.s8 %v6951
        %v6953 = vlaneseq
        %v6954 = vshrl.u32 %v6953, 7
        %v6955 = vsub.s32 %v6952, %v6954
        %v6956 = vrot.slane %v6942, %v6955
        %v6957 = vcombine.low %v6018, %v6020
        %v6958 = vcombine.high %v6018, %v6020
        %v6960 = vunpack.c.l.s4 1983009808
        %v6961 = vunpack.c.0.s8 %v6960
        %v6962 = vlaneseq
        %v6963 = vshrl.u32 %v6962, 7
        %v6964 = vsub.s32 %v6961, %v6963
        %v6965 = vrot.slane %v6957, %v6964
        %v6967 = vunpack.c.l.s4 1983009808
        %v6968 = vunpack.c.0.s8 %v6967
        %v6969 = vlaneseq
        %v6970 = vshrl.u32 %v6969, 7
        %v6971 = vsub.s32 %v6968, %v6970
        %v6972 = vrot.slane %v6958, %v6971
        %v6973 = vcombine.low %v6917, %v6933
        %v6974 = vcombine.high %v6917, %v6933
        %v6976 = vunpack.c.l.s4 1934713408
        %v6977 = vunpack.c.0.s8 %v6976
        %v6978 = vlaneseq
        %v6979 = vshrl.u32 %v6978, 7
        %v6980 = vsub.s32 %v6977, %v6979
        %v6981 = vrot.slane %v6973, %v6980
        %v6983 = vunpack.c.l.s4 1934713408
        %v6984 = vunpack.c.0.s8 %v6983
        %v6985 = vlaneseq
        %v6986 = vshrl.u32 %v6985, 7
        %v6987 = vsub.s32 %v6984, %v6986
        %v6988 = vrot.slane %v6974, %v6987
        %v6989 = vcombine.low %v6924, %v6940
        %v6990 = vcombine.high %v6924, %v6940
        %v6992 = vunpack.c.l.s4 1934713408
        %v6993 = vunpack.c.0.s8 %v6992
        %v6994 = vlaneseq
        %v6995 = vshrl.u32 %v6994, 7
        %v6996 = vsub.s32 %v6993, %v6995
        %v6997 = vrot.slane %v6989, %v6996
        %v6999 = vunpack.c.l.s4 1934713408
        %v7000 = vunpack.c.0.s8 %v6999
        %v7001 = vlaneseq
        %v7002 = vshrl.u32 %v7001, 7
        %v7003 = vsub.s32 %v7000, %v7002
        %v7004 = vrot.slane %v6990, %v7003
        %v7005 = vcombine.low %v6949, %v6965
        %v7006 = vcombine.high %v6949, %v6965
        %v7008 = vunpack.c.l.s4 1934713408
        %v7009 = vunpack.c.0.s8 %v7008
        %v7010 = vlaneseq
        %v7011 = vshrl.u32 %v7010, 7
        %v7012 = vsub.s32 %v7009, %v7011
        %v7013 = vrot.slane %v7005, %v7012
        %v7015 = vunpack.c.l.s4 1934713408
        %v7016 = vunpack.c.0.s8 %v7015
        %v7017 = vlaneseq
        %v7018 = vshrl.u32 %v7017, 7
        %v7019 = vsub.s32 %v7016, %v7018
        %v7020 = vrot.slane %v7006, %v7019
        %v7021 = vcombine.low %v6956, %v6972
        %v7022 = vcombine.high %v6956, %v6972
        %v7024 = vunpack.c.l.s4 1934713408
        %v7025 = vunpack.c.0.s8 %v7024
        %v7026 = vlaneseq
        %v7027 = vshrl.u32 %v7026, 7
        %v7028 = vsub.s32 %v7025, %v7027
        %v7029 = vrot.slane %v7021, %v7028
        %v7031 = vunpack.c.l.s4 1934713408
        %v7032 = vunpack.c.0.s8 %v7031
        %v7033 = vlaneseq
        %v7034 = vshrl.u32 %v7033, 7
        %v7035 = vsub.s32 %v7032, %v7034
        %v7036 = vrot.slane %v7022, %v7035
        %v7037 = vcombine.low %v6981, %v7013
        %v7038 = vcombine.high %v6981, %v7013
        %v7039 = vcombine.low %v6988, %v7020
        %v7040 = vcombine.high %v6988, %v7020
        %v7041 = vcombine.low %v6997, %v7029
        %v7042 = vcombine.high %v6997, %v7029
        %v7043 = vcombine.low %v7004, %v7036
        %v7044 = vcombine.high %v7004, %v7036
        %v7045 = vcombine.low %v6021, %v6023
        %v7046 = vcombine.high %v6021, %v6023
        %v7048 = vunpack.c.l.s4 1983009808
        %v7049 = vunpack.c.0.s8 %v7048
        %v7050 = vlaneseq
        %v7051 = vshrl.u32 %v7050, 7
        %v7052 = vsub.s32 %v7049, %v7051
        %v7053 = vrot.slane %v7045, %v7052
        %v7055 = vunpack.c.l.s4 1983009808
        %v7056 = vunpack.c.0.s8 %v7055
        %v7057 = vlaneseq
        %v7058 = vshrl.u32 %v7057, 7
        %v7059 = vsub.s32 %v7056, %v7058
        %v7060 = vrot.slane %v7046, %v7059
        %v7061 = vcombine.low %v6022, %v6024
        %v7062 = vcombine.high %v6022, %v6024
        %v7064 = vunpack.c.l.s4 1983009808
        %v7065 = vunpack.c.0.s8 %v7064
        %v7066 = vlaneseq
        %v7067 = vshrl.u32 %v7066, 7
        %v7068 = vsub.s32 %v7065, %v7067
        %v7069 = vrot.slane %v7061, %v7068
        %v7071 = vunpack.c.l.s4 1983009808
        %v7072 = vunpack.c.0.s8 %v7071
        %v7073 = vlaneseq
        %v7074 = vshrl.u32 %v7073, 7
        %v7075 = vsub.s32 %v7072, %v7074
        %v7076 = vrot.slane %v7062, %v7075
        %v7077 = vcombine.low %v6025, %v6027
        %v7078 = vcombine.high %v6025, %v6027
        %v7080 = vunpack.c.l.s4 1983009808
        %v7081 = vunpack.c.0.s8 %v7080
        %v7082 = vlaneseq
        %v7083 = vshrl.u32 %v7082, 7
        %v7084 = vsub.s32 %v7081, %v7083
        %v7085 = vrot.slane %v7077, %v7084
        %v7087 = vunpack.c.l.s4 1983009808
        %v7088 = vunpack.c.0.s8 %v7087
        %v7089 = vlaneseq
        %v7090 = vshrl.u32 %v7089, 7
        %v7091 = vsub.s32 %v7088, %v7090
        %v7092 = vrot.slane %v7078, %v7091
        %v7093 = vcombine.low %v6026, %v6028
        %v7094 = vcombine.high %v6026, %v6028
        %v7096 = vunpack.c.l.s4 1983009808
        %v7097 = vunpack.c.0.s8 %v7096
        %v7098 = vlaneseq
        %v7099 = vshrl.u32 %v7098, 7
        %v7100 = vsub.s32 %v7097, %v7099
        %v7101 = vrot.slane %v7093, %v7100
        %v7103 = vunpack.c.l.s4 1983009808
        %v7104 = vunpack.c.0.s8 %v7103
        %v7105 = vlaneseq
        %v7106 = vshrl.u32 %v7105, 7
        %v7107 = vsub.s32 %v7104, %v7106
        %v7108 = vrot.slane %v7094, %v7107
        %v7109 = vcombine.low %v7053, %v7069
        %v7110 = vcombine.high %v7053, %v7069
        %v7112 = vunpack.c.l.s4 1934713408
        %v7113 = vunpack.c.0.s8 %v7112
        %v7114 = vlaneseq
        %v7115 = vshrl.u32 %v7114, 7
        %v7116 = vsub.s32 %v7113, %v7115
        %v7117 = vrot.slane %v7109, %v7116
        %v7119 = vunpack.c.l.s4 1934713408
        %v7120 = vunpack.c.0.s8 %v7119
        %v7121 = vlaneseq
        %v7122 = vshrl.u32 %v7121, 7
        %v7123 = vsub.s32 %v7120, %v7122
        %v7124 = vrot.slane %v7110, %v7123
        %v7125 = vcombine.low %v7060, %v7076
        %v7126 = vcombine.high %v7060, %v7076
        %v7128 = vunpack.c.l.s4 1934713408
        %v7129 = vunpack.c.0.s8 %v7128
        %v7130 = vlaneseq
        %v7131 = vshrl.u32 %v7130, 7
        %v7132 = vsub.s32 %v7129, %v7131
        %v7133 = vrot.slane %v7125, %v7132
        %v7135 = vunpack.c.l.s4 1934713408
        %v7136 = vunpack.c.0.s8 %v7135
        %v7137 = vlaneseq
        %v7138 = vshrl.u32 %v7137, 7
        %v7139 = vsub.s32 %v7136, %v7138
        %v7140 = vrot.slane %v7126, %v7139
        %v7141 = vcombine.low %v7085, %v7101
        %v7142 = vcombine.high %v7085, %v7101
        %v7144 = vunpack.c.l.s4 1934713408
        %v7145 = vunpack.c.0.s8 %v7144
        %v7146 = vlaneseq
        %v7147 = vshrl.u32 %v7146, 7
        %v7148 = vsub.s32 %v7145, %v7147
        %v7149 = vrot.slane %v7141, %v7148
        %v7151 = vunpack.c.l.s4 1934713408
        %v7152 = vunpack.c.0.s8 %v7151
        %v7153 = vlaneseq
        %v7154 = vshrl.u32 %v7153, 7
        %v7155 = vsub.s32 %v7152, %v7154
        %v7156 = vrot.slane %v7142, %v7155
        %v7157 = vcombine.low %v7092, %v7108
        %v7158 = vcombine.high %v7092, %v7108
        %v7160 = vunpack.c.l.s4 1934713408
        %v7161 = vunpack.c.0.s8 %v7160
        %v7162 = vlaneseq
        %v7163 = vshrl.u32 %v7162, 7
        %v7164 = vsub.s32 %v7161, %v7163
        %v7165 = vrot.slane %v7157, %v7164
        %v7167 = vunpack.c.l.s4 1934713408
        %v7168 = vunpack.c.0.s8 %v7167
        %v7169 = vlaneseq
        %v7170 = vshrl.u32 %v7169, 7
        %v7171 = vsub.s32 %v7168, %v7170
        %v7172 = vrot.slane %v7158, %v7171
        %v7173 = vcombine.low %v7117, %v7149
        %v7174 = vcombine.high %v7117, %v7149
        %v7175 = vcombine.low %v7124, %v7156
        %v7176 = vcombine.high %v7124, %v7156
        %v7177 = vcombine.low %v7133, %v7165
        %v7178 = vcombine.high %v7133, %v7165
        %v7179 = vcombine.low %v7140, %v7172
        %v7180 = vcombine.high %v7140, %v7172
        %v7181 = vcombine.low %v6029, %v6031
        %v7182 = vcombine.high %v6029, %v6031
        %v7184 = vunpack.c.l.s4 1983009808
        %v7185 = vunpack.c.0.s8 %v7184
        %v7186 = vlaneseq
        %v7187 = vshrl.u32 %v7186, 7
        %v7188 = vsub.s32 %v7185, %v7187
        %v7189 = vrot.slane %v7181, %v7188
        %v7191 = vunpack.c.l.s4 1983009808
        %v7192 = vunpack.c.0.s8 %v7191
        %v7193 = vlaneseq
        %v7194 = vshrl.u32 %v7193, 7
        %v7195 = vsub.s32 %v7192, %v7194
        %v7196 = vrot.slane %v7182, %v7195
        %v7197 = vcombine.low %v6030, %v6032
        %v7198 = vcombine.high %v6030, %v6032
        %v7200 = vunpack.c.l.s4 1983009808
        %v7201 = vunpack.c.0.s8 %v7200
        %v7202 = vlaneseq
        %v7203 = vshrl.u32 %v7202, 7
        %v7204 = vsub.s32 %v7201, %v7203
        %v7205 = vrot.slane %v7197, %v7204
        %v7207 = vunpack.c.l.s4 1983009808
        %v7208 = vunpack.c.0.s8 %v7207
        %v7209 = vlaneseq
        %v7210 = vshrl.u32 %v7209, 7
        %v7211 = vsub.s32 %v7208, %v7210
        %v7212 = vrot.slane %v7198, %v7211
        %v7213 = vcombine.low %v6033, %v6035
        %v7214 = vcombine.high %v6033, %v6035
        %v7216 = vunpack.c.l.s4 1983009808
        %v7217 = vunpack.c.0.s8 %v7216
        %v7218 = vlaneseq
        %v7219 = vshrl.u32 %v7218, 7
        %v7220 = vsub.s32 %v7217, %v7219
        %v7221 = vrot.slane %v7213, %v7220
        %v7223 = vunpack.c.l.s4 1983009808
        %v7224 = vunpack.c.0.s8 %v7223
        %v7225 = vlaneseq
        %v7226 = vshrl.u32 %v7225, 7
        %v7227 = vsub.s32 %v7224, %v7226
        %v7228 = vrot.slane %v7214, %v7227
        %v7229 = vcombine.low %v6034, %v6036
        %v7230 = vcombine.high %v6034, %v6036
        %v7232 = vunpack.c.l.s4 1983009808
        %v7233 = vunpack.c.0.s8 %v7232
        %v7234 = vlaneseq
        %v7235 = vshrl.u32 %v7234, 7
        %v7236 = vsub.s32 %v7233, %v7235
        %v7237 = vrot.slane %v7229, %v7236
        %v7239 = vunpack.c.l.s4 1983009808
        %v7240 = vunpack.c.0.s8 %v7239
        %v7241 = vlaneseq
        %v7242 = vshrl.u32 %v7241, 7
        %v7243 = vsub.s32 %v7240, %v7242
        %v7244 = vrot.slane %v7230, %v7243
        %v7245 = vcombine.low %v7189, %v7205
        %v7246 = vcombine.high %v7189, %v7205
        %v7248 = vunpack.c.l.s4 1934713408
        %v7249 = vunpack.c.0.s8 %v7248
        %v7250 = vlaneseq
        %v7251 = vshrl.u32 %v7250, 7
        %v7252 = vsub.s32 %v7249, %v7251
        %v7253 = vrot.slane %v7245, %v7252
        %v7255 = vunpack.c.l.s4 1934713408
        %v7256 = vunpack.c.0.s8 %v7255
        %v7257 = vlaneseq
        %v7258 = vshrl.u32 %v7257, 7
        %v7259 = vsub.s32 %v7256, %v7258
        %v7260 = vrot.slane %v7246, %v7259
        %v7261 = vcombine.low %v7196, %v7212
        %v7262 = vcombine.high %v7196, %v7212
        %v7264 = vunpack.c.l.s4 1934713408
        %v7265 = vunpack.c.0.s8 %v7264
        %v7266 = vlaneseq
        %v7267 = vshrl.u32 %v7266, 7
        %v7268 = vsub.s32 %v7265, %v7267
        %v7269 = vrot.slane %v7261, %v7268
        %v7271 = vunpack.c.l.s4 1934713408
        %v7272 = vunpack.c.0.s8 %v7271
        %v7273 = vlaneseq
        %v7274 = vshrl.u32 %v7273, 7
        %v7275 = vsub.s32 %v7272, %v7274
        %v7276 = vrot.slane %v7262, %v7275
        %v7277 = vcombine.low %v7221, %v7237
        %v7278 = vcombine.high %v7221, %v7237
        %v7280 = vunpack.c.l.s4 1934713408
        %v7281 = vunpack.c.0.s8 %v7280
        %v7282 = vlaneseq
        %v7283 = vshrl.u32 %v7282, 7
        %v7284 = vsub.s32 %v7281, %v7283
        %v7285 = vrot.slane %v7277, %v7284
        %v7287 = vunpack.c.l.s4 1934713408
        %v7288 = vunpack.c.0.s8 %v7287
        %v7289 = vlaneseq
        %v7290 = vshrl.u32 %v7289, 7
        %v7291 = vsub.s32 %v7288, %v7290
        %v7292 = vrot.slane %v7278, %v7291
        %v7293 = vcombine.low %v7228, %v7244
        %v7294 = vcombine.high %v7228, %v7244
        %v7296 = vunpack.c.l.s4 1934713408
        %v7297 = vunpack.c.0.s8 %v7296
        %v7298 = vlaneseq
        %v7299 = vshrl.u32 %v7298, 7
        %v7300 = vsub.s32 %v7297, %v7299
        %v7301 = vrot.slane %v7293, %v7300
        %v7303 = vunpack.c.l.s4 1934713408
        %v7304 = vunpack.c.0.s8 %v7303
        %v7305 = vlaneseq
        %v7306 = vshrl.u32 %v7305, 7
        %v7307 = vsub.s32 %v7304, %v7306
        %v7308 = vrot.slane %v7294, %v7307
        %v7309 = vcombine.low %v7253, %v7285
        %v7310 = vcombine.high %v7253, %v7285
        %v7311 = vcombine.low %v7260, %v7292
        %v7312 = vcombine.high %v7260, %v7292
        %v7313 = vcombine.low %v7269, %v7301
        %v7314 = vcombine.high %v7269, %v7301
        %v7315 = vcombine.low %v7276, %v7308
        %v7316 = vcombine.high %v7276, %v7308
        %v7317 = vcombine.low %v6037, %v6039
        %v7318 = vcombine.high %v6037, %v6039
        %v7320 = vunpack.c.l.s4 1983009808
        %v7321 = vunpack.c.0.s8 %v7320
        %v7322 = vlaneseq
        %v7323 = vshrl.u32 %v7322, 7
        %v7324 = vsub.s32 %v7321, %v7323
        %v7325 = vrot.slane %v7317, %v7324
        %v7327 = vunpack.c.l.s4 1983009808
        %v7328 = vunpack.c.0.s8 %v7327
        %v7329 = vlaneseq
        %v7330 = vshrl.u32 %v7329, 7
        %v7331 = vsub.s32 %v7328, %v7330
        %v7332 = vrot.slane %v7318, %v7331
        %v7333 = vcombine.low %v6038, %v6040
        %v7334 = vcombine.high %v6038, %v6040
        %v7336 = vunpack.c.l.s4 1983009808
        %v7337 = vunpack.c.0.s8 %v7336
        %v7338 = vlaneseq
        %v7339 = vshrl.u32 %v7338, 7
        %v7340 = vsub.s32 %v7337, %v7339
        %v7341 = vrot.slane %v7333, %v7340
        %v7343 = vunpack.c.l.s4 1983009808
        %v7344 = vunpack.c.0.s8 %v7343
        %v7345 = vlaneseq
        %v7346 = vshrl.u32 %v7345, 7
        %v7347 = vsub.s32 %v7344, %v7346
        %v7348 = vrot.slane %v7334, %v7347
        %v7349 = vcombine.low %v6041, %v6043
        %v7350 = vcombine.high %v6041, %v6043
        %v7352 = vunpack.c.l.s4 1983009808
        %v7353 = vunpack.c.0.s8 %v7352
        %v7354 = vlaneseq
        %v7355 = vshrl.u32 %v7354, 7
        %v7356 = vsub.s32 %v7353, %v7355
        %v7357 = vrot.slane %v7349, %v7356
        %v7359 = vunpack.c.l.s4 1983009808
        %v7360 = vunpack.c.0.s8 %v7359
        %v7361 = vlaneseq
        %v7362 = vshrl.u32 %v7361, 7
        %v7363 = vsub.s32 %v7360, %v7362
        %v7364 = vrot.slane %v7350, %v7363
        %v7365 = vcombine.low %v6042, %v6044
        %v7366 = vcombine.high %v6042, %v6044
        %v7368 = vunpack.c.l.s4 1983009808
        %v7369 = vunpack.c.0.s8 %v7368
        %v7370 = vlaneseq
        %v7371 = vshrl.u32 %v7370, 7
        %v7372 = vsub.s32 %v7369, %v7371
        %v7373 = vrot.slane %v7365, %v7372
        %v7375 = vunpack.c.l.s4 1983009808
        %v7376 = vunpack.c.0.s8 %v7375
        %v7377 = vlaneseq
        %v7378 = vshrl.u32 %v7377, 7
        %v7379 = vsub.s32 %v7376, %v7378
        %v7380 = vrot.slane %v7366, %v7379
        %v7381 = vcombine.low %v7325, %v7341
        %v7382 = vcombine.high %v7325, %v7341
        %v7384 = vunpack.c.l.s4 1934713408
        %v7385 = vunpack.c.0.s8 %v7384
        %v7386 = vlaneseq
        %v7387 = vshrl.u32 %v7386, 7
        %v7388 = vsub.s32 %v7385, %v7387
        %v7389 = vrot.slane %v7381, %v7388
        %v7391 = vunpack.c.l.s4 1934713408
        %v7392 = vunpack.c.0.s8 %v7391
        %v7393 = vlaneseq
        %v7394 = vshrl.u32 %v7393, 7
        %v7395 = vsub.s32 %v7392, %v7394
        %v7396 = vrot.slane %v7382, %v7395
        %v7397 = vcombine.low %v7332, %v7348
        %v7398 = vcombine.high %v7332, %v7348
        %v7400 = vunpack.c.l.s4 1934713408
        %v7401 = vunpack.c.0.s8 %v7400
        %v7402 = vlaneseq
        %v7403 = vshrl.u32 %v7402, 7
        %v7404 = vsub.s32 %v7401, %v7403
        %v7405 = vrot.slane %v7397, %v7404
        %v7407 = vunpack.c.l.s4 1934713408
        %v7408 = vunpack.c.0.s8 %v7407
        %v7409 = vlaneseq
        %v7410 = vshrl.u32 %v7409, 7
        %v7411 = vsub.s32 %v7408, %v7410
        %v7412 = vrot.slane %v7398, %v7411
        %v7413 = vcombine.low %v7357, %v7373
        %v7414 = vcombine.high %v7357, %v7373
        %v7416 = vunpack.c.l.s4 1934713408
        %v7417 = vunpack.c.0.s8 %v7416
        %v7418 = vlaneseq
        %v7419 = vshrl.u32 %v7418, 7
        %v7420 = vsub.s32 %v7417, %v7419
        %v7421 = vrot.slane %v7413, %v7420
        %v7423 = vunpack.c.l.s4 1934713408
        %v7424 = vunpack.c.0.s8 %v7423
        %v7425 = vlaneseq
        %v7426 = vshrl.u32 %v7425, 7
        %v7427 = vsub.s32 %v7424, %v7426
        %v7428 = vrot.slane %v7414, %v7427
        %v7429 = vcombine.low %v7364, %v7380
        %v7430 = vcombine.high %v7364, %v7380
        %v7432 = vunpack.c.l.s4 1934713408
        %v7433 = vunpack.c.0.s8 %v7432
        %v7434 = vlaneseq
        %v7435 = vshrl.u32 %v7434, 7
        %v7436 = vsub.s32 %v7433, %v7435
        %v7437 = vrot.slane %v7429, %v7436
        %v7439 = vunpack.c.l.s4 1934713408
        %v7440 = vunpack.c.0.s8 %v7439
        %v7441 = vlaneseq
        %v7442 = vshrl.u32 %v7441, 7
        %v7443 = vsub.s32 %v7440, %v7442
        %v7444 = vrot.slane %v7430, %v7443
        %v7445 = vcombine.low %v7389, %v7421
        %v7446 = vcombine.high %v7389, %v7421
        %v7447 = vcombine.low %v7396, %v7428
        %v7448 = vcombine.high %v7396, %v7428
        %v7449 = vcombine.low %v7405, %v7437
        %v7450 = vcombine.high %v7405, %v7437
        %v7451 = vcombine.low %v7412, %v7444
        %v7452 = vcombine.high %v7412, %v7444
        %v7453 = vcombine.low %v6045, %v6047
        %v7454 = vcombine.high %v6045, %v6047
        %v7456 = vunpack.c.l.s4 1983009808
        %v7457 = vunpack.c.0.s8 %v7456
        %v7458 = vlaneseq
        %v7459 = vshrl.u32 %v7458, 7
        %v7460 = vsub.s32 %v7457, %v7459
        %v7461 = vrot.slane %v7453, %v7460
        %v7463 = vunpack.c.l.s4 1983009808
        %v7464 = vunpack.c.0.s8 %v7463
        %v7465 = vlaneseq
        %v7466 = vshrl.u32 %v7465, 7
        %v7467 = vsub.s32 %v7464, %v7466
        %v7468 = vrot.slane %v7454, %v7467
        %v7469 = vcombine.low %v6046, %v6048
        %v7470 = vcombine.high %v6046, %v6048
        %v7472 = vunpack.c.l.s4 1983009808
        %v7473 = vunpack.c.0.s8 %v7472
        %v7474 = vlaneseq
        %v7475 = vshrl.u32 %v7474, 7
        %v7476 = vsub.s32 %v7473, %v7475
        %v7477 = vrot.slane %v7469, %v7476
        %v7479 = vunpack.c.l.s4 1983009808
        %v7480 = vunpack.c.0.s8 %v7479
        %v7481 = vlaneseq
        %v7482 = vshrl.u32 %v7481, 7
        %v7483 = vsub.s32 %v7480, %v7482
        %v7484 = vrot.slane %v7470, %v7483
        %v7485 = vcombine.low %v6049, %v6051
        %v7486 = vcombine.high %v6049, %v6051
        %v7488 = vunpack.c.l.s4 1983009808
        %v7489 = vunpack.c.0.s8 %v7488
        %v7490 = vlaneseq
        %v7491 = vshrl.u32 %v7490, 7
        %v7492 = vsub.s32 %v7489, %v7491
        %v7493 = vrot.slane %v7485, %v7492
        %v7495 = vunpack.c.l.s4 1983009808
        %v7496 = vunpack.c.0.s8 %v7495
        %v7497 = vlaneseq
        %v7498 = vshrl.u32 %v7497, 7
        %v7499 = vsub.s32 %v7496, %v7498
        %v7500 = vrot.slane %v7486, %v7499
        %v7501 = vcombine.low %v6050, %v6052
        %v7502 = vcombine.high %v6050, %v6052
        %v7504 = vunpack.c.l.s4 1983009808
        %v7505 = vunpack.c.0.s8 %v7504
        %v7506 = vlaneseq
        %v7507 = vshrl.u32 %v7506, 7
        %v7508 = vsub.s32 %v7505, %v7507
        %v7509 = vrot.slane %v7501, %v7508
        %v7511 = vunpack.c.l.s4 1983009808
        %v7512 = vunpack.c.0.s8 %v7511
        %v7513 = vlaneseq
        %v7514 = vshrl.u32 %v7513, 7
        %v7515 = vsub.s32 %v7512, %v7514
        %v7516 = vrot.slane %v7502, %v7515
        %v7517 = vcombine.low %v7461, %v7477
        %v7518 = vcombine.high %v7461, %v7477
        %v7520 = vunpack.c.l.s4 1934713408
        %v7521 = vunpack.c.0.s8 %v7520
        %v7522 = vlaneseq
        %v7523 = vshrl.u32 %v7522, 7
        %v7524 = vsub.s32 %v7521, %v7523
        %v7525 = vrot.slane %v7517, %v7524
        %v7527 = vunpack.c.l.s4 1934713408
        %v7528 = vunpack.c.0.s8 %v7527
        %v7529 = vlaneseq
        %v7530 = vshrl.u32 %v7529, 7
        %v7531 = vsub.s32 %v7528, %v7530
        %v7532 = vrot.slane %v7518, %v7531
        %v7533 = vcombine.low %v7468, %v7484
        %v7534 = vcombine.high %v7468, %v7484
        %v7536 = vunpack.c.l.s4 1934713408
        %v7537 = vunpack.c.0.s8 %v7536
        %v7538 = vlaneseq
        %v7539 = vshrl.u32 %v7538, 7
        %v7540 = vsub.s32 %v7537, %v7539
        %v7541 = vrot.slane %v7533, %v7540
        %v7543 = vunpack.c.l.s4 1934713408
        %v7544 = vunpack.c.0.s8 %v7543
        %v7545 = vlaneseq
        %v7546 = vshrl.u32 %v7545, 7
        %v7547 = vsub.s32 %v7544, %v7546
        %v7548 = vrot.slane %v7534, %v7547
        %v7549 = vcombine.low %v7493, %v7509
        %v7550 = vcombine.high %v7493, %v7509
        %v7552 = vunpack.c.l.s4 1934713408
        %v7553 = vunpack.c.0.s8 %v7552
        %v7554 = vlaneseq
        %v7555 = vshrl.u32 %v7554, 7
        %v7556 = vsub.s32 %v7553, %v7555
        %v7557 = vrot.slane %v7549, %v7556
        %v7559 = vunpack.c.l.s4 1934713408
        %v7560 = vunpack.c.0.s8 %v7559
        %v7561 = vlaneseq
        %v7562 = vshrl.u32 %v7561, 7
        %v7563 = vsub.s32 %v7560, %v7562
        %v7564 = vrot.slane %v7550, %v7563
        %v7565 = vcombine.low %v7500, %v7516
        %v7566 = vcombine.high %v7500, %v7516
        %v7568 = vunpack.c.l.s4 1934713408
        %v7569 = vunpack.c.0.s8 %v7568
        %v7570 = vlaneseq
        %v7571 = vshrl.u32 %v7570, 7
        %v7572 = vsub.s32 %v7569, %v7571
        %v7573 = vrot.slane %v7565, %v7572
        %v7575 = vunpack.c.l.s4 1934713408
        %v7576 = vunpack.c.0.s8 %v7575
        %v7577 = vlaneseq
        %v7578 = vshrl.u32 %v7577, 7
        %v7579 = vsub.s32 %v7576, %v7578
        %v7580 = vrot.slane %v7566, %v7579
        %v7581 = vcombine.low %v7525, %v7557
        %v7582 = vcombine.high %v7525, %v7557
        %v7583 = vcombine.low %v7532, %v7564
        %v7584 = vcombine.high %v7532, %v7564
        %v7585 = vcombine.low %v7541, %v7573
        %v7586 = vcombine.high %v7541, %v7573
        %v7587 = vcombine.low %v7548, %v7580
        %v7588 = vcombine.high %v7548, %v7580
        %v7589 = vcombine.low %v6053, %v6055
        %v7590 = vcombine.high %v6053, %v6055
        %v7592 = vunpack.c.l.s4 1983009808
        %v7593 = vunpack.c.0.s8 %v7592
        %v7594 = vlaneseq
        %v7595 = vshrl.u32 %v7594, 7
        %v7596 = vsub.s32 %v7593, %v7595
        %v7597 = vrot.slane %v7589, %v7596
        %v7599 = vunpack.c.l.s4 1983009808
        %v7600 = vunpack.c.0.s8 %v7599
        %v7601 = vlaneseq
        %v7602 = vshrl.u32 %v7601, 7
        %v7603 = vsub.s32 %v7600, %v7602
        %v7604 = vrot.slane %v7590, %v7603
        %v7605 = vcombine.low %v6054, %v6056
        %v7606 = vcombine.high %v6054, %v6056
        %v7608 = vunpack.c.l.s4 1983009808
        %v7609 = vunpack.c.0.s8 %v7608
        %v7610 = vlaneseq
        %v7611 = vshrl.u32 %v7610, 7
        %v7612 = vsub.s32 %v7609, %v7611
        %v7613 = vrot.slane %v7605, %v7612
        %v7615 = vunpack.c.l.s4 1983009808
        %v7616 = vunpack.c.0.s8 %v7615
        %v7617 = vlaneseq
        %v7618 = vshrl.u32 %v7617, 7
        %v7619 = vsub.s32 %v7616, %v7618
        %v7620 = vrot.slane %v7606, %v7619
        %v7621 = vcombine.low %v6057, %v6059
        %v7622 = vcombine.high %v6057, %v6059
        %v7624 = vunpack.c.l.s4 1983009808
        %v7625 = vunpack.c.0.s8 %v7624
        %v7626 = vlaneseq
        %v7627 = vshrl.u32 %v7626, 7
        %v7628 = vsub.s32 %v7625, %v7627
        %v7629 = vrot.slane %v7621, %v7628
        %v7631 = vunpack.c.l.s4 1983009808
        %v7632 = vunpack.c.0.s8 %v7631
        %v7633 = vlaneseq
        %v7634 = vshrl.u32 %v7633, 7
        %v7635 = vsub.s32 %v7632, %v7634
        %v7636 = vrot.slane %v7622, %v7635
        %v7637 = vcombine.low %v6058, %v6060
        %v7638 = vcombine.high %v6058, %v6060
        %v7640 = vunpack.c.l.s4 1983009808
        %v7641 = vunpack.c.0.s8 %v7640
        %v7642 = vlaneseq
        %v7643 = vshrl.u32 %v7642, 7
        %v7644 = vsub.s32 %v7641, %v7643
        %v7645 = vrot.slane %v7637, %v7644
        %v7647 = vunpack.c.l.s4 1983009808
        %v7648 = vunpack.c.0.s8 %v7647
        %v7649 = vlaneseq
        %v7650 = vshrl.u32 %v7649, 7
        %v7651 = vsub.s32 %v7648, %v7650
        %v7652 = vrot.slane %v7638, %v7651
        %v7653 = vcombine.low %v7597, %v7613
        %v7654 = vcombine.high %v7597, %v7613
        %v7656 = vunpack.c.l.s4 1934713408
        %v7657 = vunpack.c.0.s8 %v7656
        %v7658 = vlaneseq
        %v7659 = vshrl.u32 %v7658, 7
        %v7660 = vsub.s32 %v7657, %v7659
        %v7661 = vrot.slane %v7653, %v7660
        %v7663 = vunpack.c.l.s4 1934713408
        %v7664 = vunpack.c.0.s8 %v7663
        %v7665 = vlaneseq
        %v7666 = vshrl.u32 %v7665, 7
        %v7667 = vsub.s32 %v7664, %v7666
        %v7668 = vrot.slane %v7654, %v7667
        %v7669 = vcombine.low %v7604, %v7620
        %v7670 = vcombine.high %v7604, %v7620
        %v7672 = vunpack.c.l.s4 1934713408
        %v7673 = vunpack.c.0.s8 %v7672
        %v7674 = vlaneseq
        %v7675 = vshrl.u32 %v7674, 7
        %v7676 = vsub.s32 %v7673, %v7675
        %v7677 = vrot.slane %v7669, %v7676
        %v7679 = vunpack.c.l.s4 1934713408
        %v7680 = vunpack.c.0.s8 %v7679
        %v7681 = vlaneseq
        %v7682 = vshrl.u32 %v7681, 7
        %v7683 = vsub.s32 %v7680, %v7682
        %v7684 = vrot.slane %v7670, %v7683
        %v7685 = vcombine.low %v7629, %v7645
        %v7686 = vcombine.high %v7629, %v7645
        %v7688 = vunpack.c.l.s4 1934713408
        %v7689 = vunpack.c.0.s8 %v7688
        %v7690 = vlaneseq
        %v7691 = vshrl.u32 %v7690, 7
        %v7692 = vsub.s32 %v7689, %v7691
        %v7693 = vrot.slane %v7685, %v7692
        %v7695 = vunpack.c.l.s4 1934713408
        %v7696 = vunpack.c.0.s8 %v7695
        %v7697 = vlaneseq
        %v7698 = vshrl.u32 %v7697, 7
        %v7699 = vsub.s32 %v7696, %v7698
        %v7700 = vrot.slane %v7686, %v7699
        %v7701 = vcombine.low %v7636, %v7652
        %v7702 = vcombine.high %v7636, %v7652
        %v7704 = vunpack.c.l.s4 1934713408
        %v7705 = vunpack.c.0.s8 %v7704
        %v7706 = vlaneseq
        %v7707 = vshrl.u32 %v7706, 7
        %v7708 = vsub.s32 %v7705, %v7707
        %v7709 = vrot.slane %v7701, %v7708
        %v7711 = vunpack.c.l.s4 1934713408
        %v7712 = vunpack.c.0.s8 %v7711
        %v7713 = vlaneseq
        %v7714 = vshrl.u32 %v7713, 7
        %v7715 = vsub.s32 %v7712, %v7714
        %v7716 = vrot.slane %v7702, %v7715
        %v7717 = vcombine.low %v7661, %v7693
        %v7718 = vcombine.high %v7661, %v7693
        %v7719 = vcombine.low %v7668, %v7700
        %v7720 = vcombine.high %v7668, %v7700
        %v7721 = vcombine.low %v7677, %v7709
        %v7722 = vcombine.high %v7677, %v7709
        %v7723 = vcombine.low %v7684, %v7716
        %v7724 = vcombine.high %v7684, %v7716
        %v7725 = vcombine.low %v6061, %v6063
        %v7726 = vcombine.high %v6061, %v6063
        %v7728 = vunpack.c.l.s4 1983009808
        %v7729 = vunpack.c.0.s8 %v7728
        %v7730 = vlaneseq
        %v7731 = vshrl.u32 %v7730, 7
        %v7732 = vsub.s32 %v7729, %v7731
        %v7733 = vrot.slane %v7725, %v7732
        %v7735 = vunpack.c.l.s4 1983009808
        %v7736 = vunpack.c.0.s8 %v7735
        %v7737 = vlaneseq
        %v7738 = vshrl.u32 %v7737, 7
        %v7739 = vsub.s32 %v7736, %v7738
        %v7740 = vrot.slane %v7726, %v7739
        %v7741 = vcombine.low %v6062, %v6064
        %v7742 = vcombine.high %v6062, %v6064
        %v7744 = vunpack.c.l.s4 1983009808
        %v7745 = vunpack.c.0.s8 %v7744
        %v7746 = vlaneseq
        %v7747 = vshrl.u32 %v7746, 7
        %v7748 = vsub.s32 %v7745, %v7747
        %v7749 = vrot.slane %v7741, %v7748
        %v7751 = vunpack.c.l.s4 1983009808
        %v7752 = vunpack.c.0.s8 %v7751
        %v7753 = vlaneseq
        %v7754 = vshrl.u32 %v7753, 7
        %v7755 = vsub.s32 %v7752, %v7754
        %v7756 = vrot.slane %v7742, %v7755
        %v7757 = vcombine.low %v6065, %v6067
        %v7758 = vcombine.high %v6065, %v6067
        %v7760 = vunpack.c.l.s4 1983009808
        %v7761 = vunpack.c.0.s8 %v7760
        %v7762 = vlaneseq
        %v7763 = vshrl.u32 %v7762, 7
        %v7764 = vsub.s32 %v7761, %v7763
        %v7765 = vrot.slane %v7757, %v7764
        %v7767 = vunpack.c.l.s4 1983009808
        %v7768 = vunpack.c.0.s8 %v7767
        %v7769 = vlaneseq
        %v7770 = vshrl.u32 %v7769, 7
        %v7771 = vsub.s32 %v7768, %v7770
        %v7772 = vrot.slane %v7758, %v7771
        %v7773 = vcombine.low %v6066, %v6068
        %v7774 = vcombine.high %v6066, %v6068
        %v7776 = vunpack.c.l.s4 1983009808
        %v7777 = vunpack.c.0.s8 %v7776
        %v7778 = vlaneseq
        %v7779 = vshrl.u32 %v7778, 7
        %v7780 = vsub.s32 %v7777, %v7779
        %v7781 = vrot.slane %v7773, %v7780
        %v7783 = vunpack.c.l.s4 1983009808
        %v7784 = vunpack.c.0.s8 %v7783
        %v7785 = vlaneseq
        %v7786 = vshrl.u32 %v7785, 7
        %v7787 = vsub.s32 %v7784, %v7786
        %v7788 = vrot.slane %v7774, %v7787
        %v7789 = vcombine.low %v7733, %v7749
        %v7790 = vcombine.high %v7733, %v7749
        %v7792 = vunpack.c.l.s4 1934713408
        %v7793 = vunpack.c.0.s8 %v7792
        %v7794 = vlaneseq
        %v7795 = vshrl.u32 %v7794, 7
        %v7796 = vsub.s32 %v7793, %v7795
        %v7797 = vrot.slane %v7789, %v7796
        %v7799 = vunpack.c.l.s4 1934713408
        %v7800 = vunpack.c.0.s8 %v7799
        %v7801 = vlaneseq
        %v7802 = vshrl.u32 %v7801, 7
        %v7803 = vsub.s32 %v7800, %v7802
        %v7804 = vrot.slane %v7790, %v7803
        %v7805 = vcombine.low %v7740, %v7756
        %v7806 = vcombine.high %v7740, %v7756
        %v7808 = vunpack.c.l.s4 1934713408
        %v7809 = vunpack.c.0.s8 %v7808
        %v7810 = vlaneseq
        %v7811 = vshrl.u32 %v7810, 7
        %v7812 = vsub.s32 %v7809, %v7811
        %v7813 = vrot.slane %v7805, %v7812
        %v7815 = vunpack.c.l.s4 1934713408
        %v7816 = vunpack.c.0.s8 %v7815
        %v7817 = vlaneseq
        %v7818 = vshrl.u32 %v7817, 7
        %v7819 = vsub.s32 %v7816, %v7818
        %v7820 = vrot.slane %v7806, %v7819
        %v7821 = vcombine.low %v7765, %v7781
        %v7822 = vcombine.high %v7765, %v7781
        %v7824 = vunpack.c.l.s4 1934713408
        %v7825 = vunpack.c.0.s8 %v7824
        %v7826 = vlaneseq
        %v7827 = vshrl.u32 %v7826, 7
        %v7828 = vsub.s32 %v7825, %v7827
        %v7829 = vrot.slane %v7821, %v7828
        %v7831 = vunpack.c.l.s4 1934713408
        %v7832 = vunpack.c.0.s8 %v7831
        %v7833 = vlaneseq
        %v7834 = vshrl.u32 %v7833, 7
        %v7835 = vsub.s32 %v7832, %v7834
        %v7836 = vrot.slane %v7822, %v7835
        %v7837 = vcombine.low %v7772, %v7788
        %v7838 = vcombine.high %v7772, %v7788
        %v7840 = vunpack.c.l.s4 1934713408
        %v7841 = vunpack.c.0.s8 %v7840
        %v7842 = vlaneseq
        %v7843 = vshrl.u32 %v7842, 7
        %v7844 = vsub.s32 %v7841, %v7843
        %v7845 = vrot.slane %v7837, %v7844
        %v7847 = vunpack.c.l.s4 1934713408
        %v7848 = vunpack.c.0.s8 %v7847
        %v7849 = vlaneseq
        %v7850 = vshrl.u32 %v7849, 7
        %v7851 = vsub.s32 %v7848, %v7850
        %v7852 = vrot.slane %v7838, %v7851
        %v7853 = vcombine.low %v7797, %v7829
        %v7854 = vcombine.high %v7797, %v7829
        %v7855 = vcombine.low %v7804, %v7836
        %v7856 = vcombine.high %v7804, %v7836
        %v7857 = vcombine.low %v7813, %v7845
        %v7858 = vcombine.high %v7813, %v7845
        %v7859 = vcombine.low %v7820, %v7852
        %v7860 = vcombine.high %v7820, %v7852
        %v7861 = vcombine.low %v6069, %v6071
        %v7862 = vcombine.high %v6069, %v6071
        %v7864 = vunpack.c.l.s4 1983009808
        %v7865 = vunpack.c.0.s8 %v7864
        %v7866 = vlaneseq
        %v7867 = vshrl.u32 %v7866, 7
        %v7868 = vsub.s32 %v7865, %v7867
        %v7869 = vrot.slane %v7861, %v7868
        %v7871 = vunpack.c.l.s4 1983009808
        %v7872 = vunpack.c.0.s8 %v7871
        %v7873 = vlaneseq
        %v7874 = vshrl.u32 %v7873, 7
        %v7875 = vsub.s32 %v7872, %v7874
        %v7876 = vrot.slane %v7862, %v7875
        %v7877 = vcombine.low %v6070, %v6072
        %v7878 = vcombine.high %v6070, %v6072
        %v7880 = vunpack.c.l.s4 1983009808
        %v7881 = vunpack.c.0.s8 %v7880
        %v7882 = vlaneseq
        %v7883 = vshrl.u32 %v7882, 7
        %v7884 = vsub.s32 %v7881, %v7883
        %v7885 = vrot.slane %v7877, %v7884
        %v7887 = vunpack.c.l.s4 1983009808
        %v7888 = vunpack.c.0.s8 %v7887
        %v7889 = vlaneseq
        %v7890 = vshrl.u32 %v7889, 7
        %v7891 = vsub.s32 %v7888, %v7890
        %v7892 = vrot.slane %v7878, %v7891
        %v7893 = vcombine.low %v6073, %v6075
        %v7894 = vcombine.high %v6073, %v6075
        %v7896 = vunpack.c.l.s4 1983009808
        %v7897 = vunpack.c.0.s8 %v7896
        %v7898 = vlaneseq
        %v7899 = vshrl.u32 %v7898, 7
        %v7900 = vsub.s32 %v7897, %v7899
        %v7901 = vrot.slane %v7893, %v7900
        %v7903 = vunpack.c.l.s4 1983009808
        %v7904 = vunpack.c.0.s8 %v7903
        %v7905 = vlaneseq
        %v7906 = vshrl.u32 %v7905, 7
        %v7907 = vsub.s32 %v7904, %v7906
        %v7908 = vrot.slane %v7894, %v7907
        %v7909 = vcombine.low %v6074, %v6076
        %v7910 = vcombine.high %v6074, %v6076
        %v7912 = vunpack.c.l.s4 1983009808
        %v7913 = vunpack.c.0.s8 %v7912
        %v7914 = vlaneseq
        %v7915 = vshrl.u32 %v7914, 7
        %v7916 = vsub.s32 %v7913, %v7915
        %v7917 = vrot.slane %v7909, %v7916
        %v7919 = vunpack.c.l.s4 1983009808
        %v7920 = vunpack.c.0.s8 %v7919
        %v7921 = vlaneseq
        %v7922 = vshrl.u32 %v7921, 7
        %v7923 = vsub.s32 %v7920, %v7922
        %v7924 = vrot.slane %v7910, %v7923
        %v7925 = vcombine.low %v7869, %v7885
        %v7926 = vcombine.high %v7869, %v7885
        %v7928 = vunpack.c.l.s4 1934713408
        %v7929 = vunpack.c.0.s8 %v7928
        %v7930 = vlaneseq
        %v7931 = vshrl.u32 %v7930, 7
        %v7932 = vsub.s32 %v7929, %v7931
        %v7933 = vrot.slane %v7925, %v7932
        %v7935 = vunpack.c.l.s4 1934713408
        %v7936 = vunpack.c.0.s8 %v7935
        %v7937 = vlaneseq
        %v7938 = vshrl.u32 %v7937, 7
        %v7939 = vsub.s32 %v7936, %v7938
        %v7940 = vrot.slane %v7926, %v7939
        %v7941 = vcombine.low %v7876, %v7892
        %v7942 = vcombine.high %v7876, %v7892
        %v7944 = vunpack.c.l.s4 1934713408
        %v7945 = vunpack.c.0.s8 %v7944
        %v7946 = vlaneseq
        %v7947 = vshrl.u32 %v7946, 7
        %v7948 = vsub.s32 %v7945, %v7947
        %v7949 = vrot.slane %v7941, %v7948
        %v7951 = vunpack.c.l.s4 1934713408
        %v7952 = vunpack.c.0.s8 %v7951
        %v7953 = vlaneseq
        %v7954 = vshrl.u32 %v7953, 7
        %v7955 = vsub.s32 %v7952, %v7954
        %v7956 = vrot.slane %v7942, %v7955
        %v7957 = vcombine.low %v7901, %v7917
        %v7958 = vcombine.high %v7901, %v7917
        %v7960 = vunpack.c.l.s4 1934713408
        %v7961 = vunpack.c.0.s8 %v7960
        %v7962 = vlaneseq
        %v7963 = vshrl.u32 %v7962, 7
        %v7964 = vsub.s32 %v7961, %v7963
        %v7965 = vrot.slane %v7957, %v7964
        %v7967 = vunpack.c.l.s4 1934713408
        %v7968 = vunpack.c.0.s8 %v7967
        %v7969 = vlaneseq
        %v7970 = vshrl.u32 %v7969, 7
        %v7971 = vsub.s32 %v7968, %v7970
        %v7972 = vrot.slane %v7958, %v7971
        %v7973 = vcombine.low %v7908, %v7924
        %v7974 = vcombine.high %v7908, %v7924
        %v7976 = vunpack.c.l.s4 1934713408
        %v7977 = vunpack.c.0.s8 %v7976
        %v7978 = vlaneseq
        %v7979 = vshrl.u32 %v7978, 7
        %v7980 = vsub.s32 %v7977, %v7979
        %v7981 = vrot.slane %v7973, %v7980
        %v7983 = vunpack.c.l.s4 1934713408
        %v7984 = vunpack.c.0.s8 %v7983
        %v7985 = vlaneseq
        %v7986 = vshrl.u32 %v7985, 7
        %v7987 = vsub.s32 %v7984, %v7986
        %v7988 = vrot.slane %v7974, %v7987
        %v7989 = vcombine.low %v7933, %v7965
        %v7990 = vcombine.high %v7933, %v7965
        %v7991 = vcombine.low %v7940, %v7972
        %v7992 = vcombine.high %v7940, %v7972
        %v7993 = vcombine.low %v7949, %v7981
        %v7994 = vcombine.high %v7949, %v7981
        %v7995 = vcombine.low %v7956, %v7988
        %v7996 = vcombine.high %v7956, %v7988
        %v7997 = vcombine.low %v6077, %v6079
        %v7998 = vcombine.high %v6077, %v6079
        %v8000 = vunpack.c.l.s4 1983009808
        %v8001 = vunpack.c.0.s8 %v8000
        %v8002 = vlaneseq
        %v8003 = vshrl.u32 %v8002, 7
        %v8004 = vsub.s32 %v8001, %v8003
        %v8005 = vrot.slane %v7997, %v8004
        %v8007 = vunpack.c.l.s4 1983009808
        %v8008 = vunpack.c.0.s8 %v8007
        %v8009 = vlaneseq
        %v8010 = vshrl.u32 %v8009, 7
        %v8011 = vsub.s32 %v8008, %v8010
        %v8012 = vrot.slane %v7998, %v8011
        %v8013 = vcombine.low %v6078, %v6080
        %v8014 = vcombine.high %v6078, %v6080
        %v8016 = vunpack.c.l.s4 1983009808
        %v8017 = vunpack.c.0.s8 %v8016
        %v8018 = vlaneseq
        %v8019 = vshrl.u32 %v8018, 7
        %v8020 = vsub.s32 %v8017, %v8019
        %v8021 = vrot.slane %v8013, %v8020
        %v8023 = vunpack.c.l.s4 1983009808
        %v8024 = vunpack.c.0.s8 %v8023
        %v8025 = vlaneseq
        %v8026 = vshrl.u32 %v8025, 7
        %v8027 = vsub.s32 %v8024, %v8026
        %v8028 = vrot.slane %v8014, %v8027
        %v8029 = vcombine.low %v6081, %v6083
        %v8030 = vcombine.high %v6081, %v6083
        %v8032 = vunpack.c.l.s4 1983009808
        %v8033 = vunpack.c.0.s8 %v8032
        %v8034 = vlaneseq
        %v8035 = vshrl.u32 %v8034, 7
        %v8036 = vsub.s32 %v8033, %v8035
        %v8037 = vrot.slane %v8029, %v8036
        %v8039 = vunpack.c.l.s4 1983009808
        %v8040 = vunpack.c.0.s8 %v8039
        %v8041 = vlaneseq
        %v8042 = vshrl.u32 %v8041, 7
        %v8043 = vsub.s32 %v8040, %v8042
        %v8044 = vrot.slane %v8030, %v8043
        %v8045 = vcombine.low %v6082, %v6084
        %v8046 = vcombine.high %v6082, %v6084
        %v8048 = vunpack.c.l.s4 1983009808
        %v8049 = vunpack.c.0.s8 %v8048
        %v8050 = vlaneseq
        %v8051 = vshrl.u32 %v8050, 7
        %v8052 = vsub.s32 %v8049, %v8051
        %v8053 = vrot.slane %v8045, %v8052
        %v8055 = vunpack.c.l.s4 1983009808
        %v8056 = vunpack.c.0.s8 %v8055
        %v8057 = vlaneseq
        %v8058 = vshrl.u32 %v8057, 7
        %v8059 = vsub.s32 %v8056, %v8058
        %v8060 = vrot.slane %v8046, %v8059
        %v8061 = vcombine.low %v8005, %v8021
        %v8062 = vcombine.high %v8005, %v8021
        %v8064 = vunpack.c.l.s4 1934713408
        %v8065 = vunpack.c.0.s8 %v8064
        %v8066 = vlaneseq
        %v8067 = vshrl.u32 %v8066, 7
        %v8068 = vsub.s32 %v8065, %v8067
        %v8069 = vrot.slane %v8061, %v8068
        %v8071 = vunpack.c.l.s4 1934713408
        %v8072 = vunpack.c.0.s8 %v8071
        %v8073 = vlaneseq
        %v8074 = vshrl.u32 %v8073, 7
        %v8075 = vsub.s32 %v8072, %v8074
        %v8076 = vrot.slane %v8062, %v8075
        %v8077 = vcombine.low %v8012, %v8028
        %v8078 = vcombine.high %v8012, %v8028
        %v8080 = vunpack.c.l.s4 1934713408
        %v8081 = vunpack.c.0.s8 %v8080
        %v8082 = vlaneseq
        %v8083 = vshrl.u32 %v8082, 7
        %v8084 = vsub.s32 %v8081, %v8083
        %v8085 = vrot.slane %v8077, %v8084
        %v8087 = vunpack.c.l.s4 1934713408
        %v8088 = vunpack.c.0.s8 %v8087
        %v8089 = vlaneseq
        %v8090 = vshrl.u32 %v8089, 7
        %v8091 = vsub.s32 %v8088, %v8090
        %v8092 = vrot.slane %v8078, %v8091
        %v8093 = vcombine.low %v8037, %v8053
        %v8094 = vcombine.high %v8037, %v8053
        %v8096 = vunpack.c.l.s4 1934713408
        %v8097 = vunpack.c.0.s8 %v8096
        %v8098 = vlaneseq
        %v8099 = vshrl.u32 %v8098, 7
        %v8100 = vsub.s32 %v8097, %v8099
        %v8101 = vrot.slane %v8093, %v8100
        %v8103 = vunpack.c.l.s4 1934713408
        %v8104 = vunpack.c.0.s8 %v8103
        %v8105 = vlaneseq
        %v8106 = vshrl.u32 %v8105, 7
        %v8107 = vsub.s32 %v8104, %v8106
        %v8108 = vrot.slane %v8094, %v8107
        %v8109 = vcombine.low %v8044, %v8060
        %v8110 = vcombine.high %v8044, %v8060
        %v8112 = vunpack.c.l.s4 1934713408
        %v8113 = vunpack.c.0.s8 %v8112
        %v8114 = vlaneseq
        %v8115 = vshrl.u32 %v8114, 7
        %v8116 = vsub.s32 %v8113, %v8115
        %v8117 = vrot.slane %v8109, %v8116
        %v8119 = vunpack.c.l.s4 1934713408
        %v8120 = vunpack.c.0.s8 %v8119
        %v8121 = vlaneseq
        %v8122 = vshrl.u32 %v8121, 7
        %v8123 = vsub.s32 %v8120, %v8122
        %v8124 = vrot.slane %v8110, %v8123
        %v8125 = vcombine.low %v8069, %v8101
        %v8126 = vcombine.high %v8069, %v8101
        %v8127 = vcombine.low %v8076, %v8108
        %v8128 = vcombine.high %v8076, %v8108
        %v8129 = vcombine.low %v8085, %v8117
        %v8130 = vcombine.high %v8085, %v8117
        %v8131 = vcombine.low %v8092, %v8124
        %v8132 = vcombine.high %v8092, %v8124
        %v8133 = vcombine.low %v6085, %v6087
        %v8134 = vcombine.high %v6085, %v6087
        %v8136 = vunpack.c.l.s4 1983009808
        %v8137 = vunpack.c.0.s8 %v8136
        %v8138 = vlaneseq
        %v8139 = vshrl.u32 %v8138, 7
        %v8140 = vsub.s32 %v8137, %v8139
        %v8141 = vrot.slane %v8133, %v8140
        %v8143 = vunpack.c.l.s4 1983009808
        %v8144 = vunpack.c.0.s8 %v8143
        %v8145 = vlaneseq
        %v8146 = vshrl.u32 %v8145, 7
        %v8147 = vsub.s32 %v8144, %v8146
        %v8148 = vrot.slane %v8134, %v8147
        %v8149 = vcombine.low %v6086, %v6088
        %v8150 = vcombine.high %v6086, %v6088
        %v8152 = vunpack.c.l.s4 1983009808
        %v8153 = vunpack.c.0.s8 %v8152
        %v8154 = vlaneseq
        %v8155 = vshrl.u32 %v8154, 7
        %v8156 = vsub.s32 %v8153, %v8155
        %v8157 = vrot.slane %v8149, %v8156
        %v8159 = vunpack.c.l.s4 1983009808
        %v8160 = vunpack.c.0.s8 %v8159
        %v8161 = vlaneseq
        %v8162 = vshrl.u32 %v8161, 7
        %v8163 = vsub.s32 %v8160, %v8162
        %v8164 = vrot.slane %v8150, %v8163
        %v8165 = vcombine.low %v6089, %v6091
        %v8166 = vcombine.high %v6089, %v6091
        %v8168 = vunpack.c.l.s4 1983009808
        %v8169 = vunpack.c.0.s8 %v8168
        %v8170 = vlaneseq
        %v8171 = vshrl.u32 %v8170, 7
        %v8172 = vsub.s32 %v8169, %v8171
        %v8173 = vrot.slane %v8165, %v8172
        %v8175 = vunpack.c.l.s4 1983009808
        %v8176 = vunpack.c.0.s8 %v8175
        %v8177 = vlaneseq
        %v8178 = vshrl.u32 %v8177, 7
        %v8179 = vsub.s32 %v8176, %v8178
        %v8180 = vrot.slane %v8166, %v8179
        %v8181 = vcombine.low %v6090, %v6092
        %v8182 = vcombine.high %v6090, %v6092
        %v8184 = vunpack.c.l.s4 1983009808
        %v8185 = vunpack.c.0.s8 %v8184
        %v8186 = vlaneseq
        %v8187 = vshrl.u32 %v8186, 7
        %v8188 = vsub.s32 %v8185, %v8187
        %v8189 = vrot.slane %v8181, %v8188
        %v8191 = vunpack.c.l.s4 1983009808
        %v8192 = vunpack.c.0.s8 %v8191
        %v8193 = vlaneseq
        %v8194 = vshrl.u32 %v8193, 7
        %v8195 = vsub.s32 %v8192, %v8194
        %v8196 = vrot.slane %v8182, %v8195
        %v8197 = vcombine.low %v8141, %v8157
        %v8198 = vcombine.high %v8141, %v8157
        %v8200 = vunpack.c.l.s4 1934713408
        %v8201 = vunpack.c.0.s8 %v8200
        %v8202 = vlaneseq
        %v8203 = vshrl.u32 %v8202, 7
        %v8204 = vsub.s32 %v8201, %v8203
        %v8205 = vrot.slane %v8197, %v8204
        %v8207 = vunpack.c.l.s4 1934713408
        %v8208 = vunpack.c.0.s8 %v8207
        %v8209 = vlaneseq
        %v8210 = vshrl.u32 %v8209, 7
        %v8211 = vsub.s32 %v8208, %v8210
        %v8212 = vrot.slane %v8198, %v8211
        %v8213 = vcombine.low %v8148, %v8164
        %v8214 = vcombine.high %v8148, %v8164
        %v8216 = vunpack.c.l.s4 1934713408
        %v8217 = vunpack.c.0.s8 %v8216
        %v8218 = vlaneseq
        %v8219 = vshrl.u32 %v8218, 7
        %v8220 = vsub.s32 %v8217, %v8219
        %v8221 = vrot.slane %v8213, %v8220
        %v8223 = vunpack.c.l.s4 1934713408
        %v8224 = vunpack.c.0.s8 %v8223
        %v8225 = vlaneseq
        %v8226 = vshrl.u32 %v8225, 7
        %v8227 = vsub.s32 %v8224, %v8226
        %v8228 = vrot.slane %v8214, %v8227
        %v8229 = vcombine.low %v8173, %v8189
        %v8230 = vcombine.high %v8173, %v8189
        %v8232 = vunpack.c.l.s4 1934713408
        %v8233 = vunpack.c.0.s8 %v8232
        %v8234 = vlaneseq
        %v8235 = vshrl.u32 %v8234, 7
        %v8236 = vsub.s32 %v8233, %v8235
        %v8237 = vrot.slane %v8229, %v8236
        %v8239 = vunpack.c.l.s4 1934713408
        %v8240 = vunpack.c.0.s8 %v8239
        %v8241 = vlaneseq
        %v8242 = vshrl.u32 %v8241, 7
        %v8243 = vsub.s32 %v8240, %v8242
        %v8244 = vrot.slane %v8230, %v8243
        %v8245 = vcombine.low %v8180, %v8196
        %v8246 = vcombine.high %v8180, %v8196
        %v8248 = vunpack.c.l.s4 1934713408
        %v8249 = vunpack.c.0.s8 %v8248
        %v8250 = vlaneseq
        %v8251 = vshrl.u32 %v8250, 7
        %v8252 = vsub.s32 %v8249, %v8251
        %v8253 = vrot.slane %v8245, %v8252
        %v8255 = vunpack.c.l.s4 1934713408
        %v8256 = vunpack.c.0.s8 %v8255
        %v8257 = vlaneseq
        %v8258 = vshrl.u32 %v8257, 7
        %v8259 = vsub.s32 %v8256, %v8258
        %v8260 = vrot.slane %v8246, %v8259
        %v8261 = vcombine.low %v8205, %v8237
        %v8262 = vcombine.high %v8205, %v8237
        %v8263 = vcombine.low %v8212, %v8244
        %v8264 = vcombine.high %v8212, %v8244
        %v8265 = vcombine.low %v8221, %v8253
        %v8266 = vcombine.high %v8221, %v8253
        %v8267 = vcombine.low %v8228, %v8260
        %v8268 = vcombine.high %v8228, %v8260
        %8285 = vrot.lane.b32.xlu0 %v6222, 64
        %v8286 = vpop.permute.xlu0 %8285
        %8287 = vrot.lane.b32.xlu0 %v6358, 64
        %v8288 = vpop.permute.xlu0 %8287
        %8289 = vrot.lane.b32.xlu0 %v6494, 64
        %v8290 = vpop.permute.xlu0 %8289
        %8291 = vrot.lane.b32.xlu0 %v6630, 64
        %v8292 = vpop.permute.xlu0 %8291
        %8293 = vrot.lane.b32.xlu0 %v6766, 64
        %v8294 = vpop.permute.xlu0 %8293
        %8295 = vrot.lane.b32.xlu0 %v6902, 64
        %v8296 = vpop.permute.xlu0 %8295
        %8297 = vrot.lane.b32.xlu0 %v7038, 64
        %v8298 = vpop.permute.xlu0 %8297
        %8299 = vrot.lane.b32.xlu0 %v7174, 64
        %v8300 = vpop.permute.xlu0 %8299
        %8301 = vrot.lane.b32.xlu0 %v7310, 64
        %v8302 = vpop.permute.xlu0 %8301
        %8303 = vrot.lane.b32.xlu0 %v7446, 64
        %v8304 = vpop.permute.xlu0 %8303
        %8305 = vrot.lane.b32.xlu0 %v7582, 64
        %v8306 = vpop.permute.xlu0 %8305
        %8307 = vrot.lane.b32.xlu0 %v7718, 64
        %v8308 = vpop.permute.xlu0 %8307
        %8309 = vrot.lane.b32.xlu0 %v7854, 64
        %v8310 = vpop.permute.xlu0 %8309
        %8311 = vrot.lane.b32.xlu0 %v7990, 64
        %v8312 = vpop.permute.xlu0 %8311
        %8313 = vrot.lane.b32.xlu0 %v8126, 64
        %v8314 = vpop.permute.xlu0 %8313
        %8315 = vrot.lane.b32.xlu0 %v8262, 64
        %v8316 = vpop.permute.xlu0 %8315
        %8349 = vrot.lane.b32.xlu0 %v6224, 64
        %v8350 = vpop.permute.xlu0 %8349
        %8351 = vrot.lane.b32.xlu0 %v6360, 64
        %v8352 = vpop.permute.xlu0 %8351
        %8353 = vrot.lane.b32.xlu0 %v6496, 64
        %v8354 = vpop.permute.xlu0 %8353
        %8355 = vrot.lane.b32.xlu0 %v6632, 64
        %v8356 = vpop.permute.xlu0 %8355
        %8357 = vrot.lane.b32.xlu0 %v6768, 64
        %v8358 = vpop.permute.xlu0 %8357
        %8359 = vrot.lane.b32.xlu0 %v6904, 64
        %v8360 = vpop.permute.xlu0 %8359
        %8361 = vrot.lane.b32.xlu0 %v7040, 64
        %v8362 = vpop.permute.xlu0 %8361
        %8363 = vrot.lane.b32.xlu0 %v7176, 64
        %v8364 = vpop.permute.xlu0 %8363
        %8365 = vrot.lane.b32.xlu0 %v7312, 64
        %v8366 = vpop.permute.xlu0 %8365
        %8367 = vrot.lane.b32.xlu0 %v7448, 64
        %v8368 = vpop.permute.xlu0 %8367
        %8369 = vrot.lane.b32.xlu0 %v7584, 64
        %v8370 = vpop.permute.xlu0 %8369
        %8371 = vrot.lane.b32.xlu0 %v7720, 64
        %v8372 = vpop.permute.xlu0 %8371
        %8373 = vrot.lane.b32.xlu0 %v7856, 64
        %v8374 = vpop.permute.xlu0 %8373
        %8375 = vrot.lane.b32.xlu0 %v7992, 64
        %v8376 = vpop.permute.xlu0 %8375
        %8377 = vrot.lane.b32.xlu0 %v8128, 64
        %v8378 = vpop.permute.xlu0 %8377
        %8379 = vrot.lane.b32.xlu0 %v8264, 64
        %v8380 = vpop.permute.xlu0 %8379
        %8413 = vrot.lane.b32.xlu0 %v6226, 64
        %v8414 = vpop.permute.xlu0 %8413
        %8415 = vrot.lane.b32.xlu0 %v6362, 64
        %v8416 = vpop.permute.xlu0 %8415
        %8417 = vrot.lane.b32.xlu0 %v6498, 64
        %v8418 = vpop.permute.xlu0 %8417
        %8419 = vrot.lane.b32.xlu0 %v6634, 64
        %v8420 = vpop.permute.xlu0 %8419
        %8421 = vrot.lane.b32.xlu0 %v6770, 64
        %v8422 = vpop.permute.xlu0 %8421
        %8423 = vrot.lane.b32.xlu0 %v6906, 64
        %v8424 = vpop.permute.xlu0 %8423
        %8425 = vrot.lane.b32.xlu0 %v7042, 64
        %v8426 = vpop.permute.xlu0 %8425
        %8427 = vrot.lane.b32.xlu0 %v7178, 64
        %v8428 = vpop.permute.xlu0 %8427
        %8429 = vrot.lane.b32.xlu0 %v7314, 64
        %v8430 = vpop.permute.xlu0 %8429
        %8431 = vrot.lane.b32.xlu0 %v7450, 64
        %v8432 = vpop.permute.xlu0 %8431
        %8433 = vrot.lane.b32.xlu0 %v7586, 64
        %v8434 = vpop.permute.xlu0 %8433
        %8435 = vrot.lane.b32.xlu0 %v7722, 64
        %v8436 = vpop.permute.xlu0 %8435
        %8437 = vrot.lane.b32.xlu0 %v7858, 64
        %v8438 = vpop.permute.xlu0 %8437
        %8439 = vrot.lane.b32.xlu0 %v7994, 64
        %v8440 = vpop.permute.xlu0 %8439
        %8441 = vrot.lane.b32.xlu0 %v8130, 64
        %v8442 = vpop.permute.xlu0 %8441
        %8443 = vrot.lane.b32.xlu0 %v8266, 64
        %v8444 = vpop.permute.xlu0 %8443
        %8477 = vrot.lane.b32.xlu0 %v6228, 64
        %v8478 = vpop.permute.xlu0 %8477
        %8479 = vrot.lane.b32.xlu0 %v6364, 64
        %v8480 = vpop.permute.xlu0 %8479
        %8481 = vrot.lane.b32.xlu0 %v6500, 64
        %v8482 = vpop.permute.xlu0 %8481
        %8483 = vrot.lane.b32.xlu0 %v6636, 64
        %v8484 = vpop.permute.xlu0 %8483
        %8485 = vrot.lane.b32.xlu0 %v6772, 64
        %v8486 = vpop.permute.xlu0 %8485
        %8487 = vrot.lane.b32.xlu0 %v6908, 64
        %v8488 = vpop.permute.xlu0 %8487
        %8489 = vrot.lane.b32.xlu0 %v7044, 64
        %v8490 = vpop.permute.xlu0 %8489
        %8491 = vrot.lane.b32.xlu0 %v7180, 64
        %v8492 = vpop.permute.xlu0 %8491
        %8493 = vrot.lane.b32.xlu0 %v7316, 64
        %v8494 = vpop.permute.xlu0 %8493
        %8495 = vrot.lane.b32.xlu0 %v7452, 64
        %v8496 = vpop.permute.xlu0 %8495
        %8497 = vrot.lane.b32.xlu0 %v7588, 64
        %v8498 = vpop.permute.xlu0 %8497
        %8499 = vrot.lane.b32.xlu0 %v7724, 64
        %v8500 = vpop.permute.xlu0 %8499
        %8501 = vrot.lane.b32.xlu0 %v7860, 64
        %v8502 = vpop.permute.xlu0 %8501
        %8503 = vrot.lane.b32.xlu0 %v7996, 64
        %v8504 = vpop.permute.xlu0 %8503
        %8505 = vrot.lane.b32.xlu0 %v8132, 64
        %v8506 = vpop.permute.xlu0 %8505
        %8507 = vrot.lane.b32.xlu0 %v8268, 64
        %v8508 = vpop.permute.xlu0 %8507
        %v8525 = vsel %vm4043, %v6221, %v8286
        %v8526 = vsel %vm4043, %v6357, %v8288
        %v8527 = vsel %vm4043, %v6493, %v8290
        %v8528 = vsel %vm4043, %v6629, %v8292
        %v8529 = vsel %vm4043, %v6765, %v8294
        %v8530 = vsel %vm4043, %v6901, %v8296
        %v8531 = vsel %vm4043, %v7037, %v8298
        %v8532 = vsel %vm4043, %v7173, %v8300
        %v8533 = vsel %vm4043, %v7309, %v8302
        %v8534 = vsel %vm4043, %v7445, %v8304
        %v8535 = vsel %vm4043, %v7581, %v8306
        %v8536 = vsel %vm4043, %v7717, %v8308
        %v8537 = vsel %vm4043, %v7853, %v8310
        %v8538 = vsel %vm4043, %v7989, %v8312
        %v8539 = vsel %vm4043, %v8125, %v8314
        %v8540 = vsel %vm4043, %v8261, %v8316
        %v8541 = vsel %vm4043, %v6223, %v8350
        %v8542 = vsel %vm4043, %v6359, %v8352
        %v8543 = vsel %vm4043, %v6495, %v8354
        %v8544 = vsel %vm4043, %v6631, %v8356
        %v8545 = vsel %vm4043, %v6767, %v8358
        %v8546 = vsel %vm4043, %v6903, %v8360
        %v8547 = vsel %vm4043, %v7039, %v8362
        %v8548 = vsel %vm4043, %v7175, %v8364
        %v8549 = vsel %vm4043, %v7311, %v8366
        %v8550 = vsel %vm4043, %v7447, %v8368
        %v8551 = vsel %vm4043, %v7583, %v8370
        %v8552 = vsel %vm4043, %v7719, %v8372
        %v8553 = vsel %vm4043, %v7855, %v8374
        %v8554 = vsel %vm4043, %v7991, %v8376
        %v8555 = vsel %vm4043, %v8127, %v8378
        %v8556 = vsel %vm4043, %v8263, %v8380
        %v8557 = vsel %vm4043, %v6225, %v8414
        %v8558 = vsel %vm4043, %v6361, %v8416
        %v8559 = vsel %vm4043, %v6497, %v8418
        %v8560 = vsel %vm4043, %v6633, %v8420
        %v8561 = vsel %vm4043, %v6769, %v8422
        %v8562 = vsel %vm4043, %v6905, %v8424
        %v8563 = vsel %vm4043, %v7041, %v8426
        %v8564 = vsel %vm4043, %v7177, %v8428
        %v8565 = vsel %vm4043, %v7313, %v8430
        %v8566 = vsel %vm4043, %v7449, %v8432
        %v8567 = vsel %vm4043, %v7585, %v8434
        %v8568 = vsel %vm4043, %v7721, %v8436
        %v8569 = vsel %vm4043, %v7857, %v8438
        %v8570 = vsel %vm4043, %v7993, %v8440
        %v8571 = vsel %vm4043, %v8129, %v8442
        %v8572 = vsel %vm4043, %v8265, %v8444
        %v8573 = vsel %vm4043, %v6227, %v8478
        %v8574 = vsel %vm4043, %v6363, %v8480
        %v8575 = vsel %vm4043, %v6499, %v8482
        %v8576 = vsel %vm4043, %v6635, %v8484
        %v8577 = vsel %vm4043, %v6771, %v8486
        %v8578 = vsel %vm4043, %v6907, %v8488
        %v8579 = vsel %vm4043, %v7043, %v8490
        %v8580 = vsel %vm4043, %v7179, %v8492
        %v8581 = vsel %vm4043, %v7315, %v8494
        %v8582 = vsel %vm4043, %v7451, %v8496
        %v8583 = vsel %vm4043, %v7587, %v8498
        %v8584 = vsel %vm4043, %v7723, %v8500
        %v8585 = vsel %vm4043, %v7859, %v8502
        %v8586 = vsel %vm4043, %v7995, %v8504
        %v8587 = vsel %vm4043, %v8131, %v8506
        %v8588 = vsel %vm4043, %v8267, %v8508
        %v8590 = vlaneseq
        %v8591 = vshrl.u32 %v8590, 7
        %v8592 = vsub.s32 0, %v8591
        %v8593 = vrot.slane %v493, %v8592
        %v8594 = vlaneseq
        %v8595 = vshrl.u32 %v8594, 7
        %v8596 = vsub.s32 1, %v8595
        %v8597 = vrot.slane %v493, %v8596
        %v8598 = vlaneseq
        %v8599 = vshrl.u32 %v8598, 7
        %v8600 = vsub.s32 2, %v8599
        %v8601 = vrot.slane %v493, %v8600
        %v8602 = vlaneseq
        %v8603 = vshrl.u32 %v8602, 7
        %v8604 = vsub.s32 3, %v8603
        %v8605 = vrot.slane %v493, %v8604
        %v8610 = vmul.f32 %v8525, %v8593
        %v8611 = vmul.f32 %v8541, %v8597
        %v8612 = vmul.f32 %v8557, %v8601
        %v8613 = vmul.f32 %v8573, %v8605
        %v8614 = vmul.f32 %v8526, %v8593
        %v8615 = vmul.f32 %v8542, %v8597
        %v8616 = vmul.f32 %v8558, %v8601
        %v8617 = vmul.f32 %v8574, %v8605
        %v8618 = vmul.f32 %v8527, %v8593
        %v8619 = vmul.f32 %v8543, %v8597
        %v8620 = vmul.f32 %v8559, %v8601
        %v8621 = vmul.f32 %v8575, %v8605
        %v8622 = vmul.f32 %v8528, %v8593
        %v8623 = vmul.f32 %v8544, %v8597
        %v8624 = vmul.f32 %v8560, %v8601
        %v8625 = vmul.f32 %v8576, %v8605
        %v8626 = vmul.f32 %v8529, %v8593
        %v8627 = vmul.f32 %v8545, %v8597
        %v8628 = vmul.f32 %v8561, %v8601
        %v8629 = vmul.f32 %v8577, %v8605
        %v8630 = vmul.f32 %v8530, %v8593
        %v8631 = vmul.f32 %v8546, %v8597
        %v8632 = vmul.f32 %v8562, %v8601
        %v8633 = vmul.f32 %v8578, %v8605
        %v8634 = vmul.f32 %v8531, %v8593
        %v8635 = vmul.f32 %v8547, %v8597
        %v8636 = vmul.f32 %v8563, %v8601
        %v8637 = vmul.f32 %v8579, %v8605
        %v8638 = vmul.f32 %v8532, %v8593
        %v8639 = vmul.f32 %v8548, %v8597
        %v8640 = vmul.f32 %v8564, %v8601
        %v8641 = vmul.f32 %v8580, %v8605
        %v8642 = vmul.f32 %v8533, %v8593
        %v8643 = vmul.f32 %v8549, %v8597
        %v8644 = vmul.f32 %v8565, %v8601
        %v8645 = vmul.f32 %v8581, %v8605
        %v8646 = vmul.f32 %v8534, %v8593
        %v8647 = vmul.f32 %v8550, %v8597
        %v8648 = vmul.f32 %v8566, %v8601
        %v8649 = vmul.f32 %v8582, %v8605
        %v8650 = vmul.f32 %v8535, %v8593
        %v8651 = vmul.f32 %v8551, %v8597
        %v8652 = vmul.f32 %v8567, %v8601
        %v8653 = vmul.f32 %v8583, %v8605
        %v8654 = vmul.f32 %v8536, %v8593
        %v8655 = vmul.f32 %v8552, %v8597
        %v8656 = vmul.f32 %v8568, %v8601
        %v8657 = vmul.f32 %v8584, %v8605
        %v8658 = vmul.f32 %v8537, %v8593
        %v8659 = vmul.f32 %v8553, %v8597
        %v8660 = vmul.f32 %v8569, %v8601
        %v8661 = vmul.f32 %v8585, %v8605
        %v8662 = vmul.f32 %v8538, %v8593
        %v8663 = vmul.f32 %v8554, %v8597
        %v8664 = vmul.f32 %v8570, %v8601
        %v8665 = vmul.f32 %v8586, %v8605
        %v8666 = vmul.f32 %v8539, %v8593
        %v8667 = vmul.f32 %v8555, %v8597
        %v8668 = vmul.f32 %v8571, %v8601
        %v8669 = vmul.f32 %v8587, %v8605
        %v8670 = vmul.f32 %v8540, %v8593
        %v8671 = vmul.f32 %v8556, %v8597
        %v8672 = vmul.f32 %v8572, %v8601
        %v8673 = vmul.f32 %v8588, %v8605
        %v8675 = vlaneseq
        %v8676 = vshrl.u32 %v8675, 7
        %v8677 = vsub.s32 0, %v8676
        %v8678 = vrot.slane %v495, %v8677
        %v8679 = vlaneseq
        %v8680 = vshrl.u32 %v8679, 7
        %v8681 = vsub.s32 1, %v8680
        %v8682 = vrot.slane %v495, %v8681
        %v8683 = vlaneseq
        %v8684 = vshrl.u32 %v8683, 7
        %v8685 = vsub.s32 2, %v8684
        %v8686 = vrot.slane %v495, %v8685
        %v8687 = vlaneseq
        %v8688 = vshrl.u32 %v8687, 7
        %v8689 = vsub.s32 3, %v8688
        %v8690 = vrot.slane %v495, %v8689
        %v8695 = vadd.f32 %v8610, %v8678
        %v8696 = vadd.f32 %v8611, %v8682
        %v8697 = vadd.f32 %v8612, %v8686
        %v8698 = vadd.f32 %v8613, %v8690
        %v8699 = vadd.f32 %v8614, %v8678
        %v8700 = vadd.f32 %v8615, %v8682
        %v8701 = vadd.f32 %v8616, %v8686
        %v8702 = vadd.f32 %v8617, %v8690
        %v8703 = vadd.f32 %v8618, %v8678
        %v8704 = vadd.f32 %v8619, %v8682
        %v8705 = vadd.f32 %v8620, %v8686
        %v8706 = vadd.f32 %v8621, %v8690
        %v8707 = vadd.f32 %v8622, %v8678
        %v8708 = vadd.f32 %v8623, %v8682
        %v8709 = vadd.f32 %v8624, %v8686
        %v8710 = vadd.f32 %v8625, %v8690
        %v8711 = vadd.f32 %v8626, %v8678
        %v8712 = vadd.f32 %v8627, %v8682
        %v8713 = vadd.f32 %v8628, %v8686
        %v8714 = vadd.f32 %v8629, %v8690
        %v8715 = vadd.f32 %v8630, %v8678
        %v8716 = vadd.f32 %v8631, %v8682
        %v8717 = vadd.f32 %v8632, %v8686
        %v8718 = vadd.f32 %v8633, %v8690
        %v8719 = vadd.f32 %v8634, %v8678
        %v8720 = vadd.f32 %v8635, %v8682
        %v8721 = vadd.f32 %v8636, %v8686
        %v8722 = vadd.f32 %v8637, %v8690
        %v8723 = vadd.f32 %v8638, %v8678
        %v8724 = vadd.f32 %v8639, %v8682
        %v8725 = vadd.f32 %v8640, %v8686
        %v8726 = vadd.f32 %v8641, %v8690
        %v8727 = vadd.f32 %v8642, %v8678
        %v8728 = vadd.f32 %v8643, %v8682
        %v8729 = vadd.f32 %v8644, %v8686
        %v8730 = vadd.f32 %v8645, %v8690
        %v8731 = vadd.f32 %v8646, %v8678
        %v8732 = vadd.f32 %v8647, %v8682
        %v8733 = vadd.f32 %v8648, %v8686
        %v8734 = vadd.f32 %v8649, %v8690
        %v8735 = vadd.f32 %v8650, %v8678
        %v8736 = vadd.f32 %v8651, %v8682
        %v8737 = vadd.f32 %v8652, %v8686
        %v8738 = vadd.f32 %v8653, %v8690
        %v8739 = vadd.f32 %v8654, %v8678
        %v8740 = vadd.f32 %v8655, %v8682
        %v8741 = vadd.f32 %v8656, %v8686
        %v8742 = vadd.f32 %v8657, %v8690
        %v8743 = vadd.f32 %v8658, %v8678
        %v8744 = vadd.f32 %v8659, %v8682
        %v8745 = vadd.f32 %v8660, %v8686
        %v8746 = vadd.f32 %v8661, %v8690
        %v8747 = vadd.f32 %v8662, %v8678
        %v8748 = vadd.f32 %v8663, %v8682
        %v8749 = vadd.f32 %v8664, %v8686
        %v8750 = vadd.f32 %v8665, %v8690
        %v8751 = vadd.f32 %v8666, %v8678
        %v8752 = vadd.f32 %v8667, %v8682
        %v8753 = vadd.f32 %v8668, %v8686
        %v8754 = vadd.f32 %v8669, %v8690
        %v8755 = vadd.f32 %v8670, %v8678
        %v8756 = vadd.f32 %v8671, %v8682
        %v8757 = vadd.f32 %v8672, %v8686
        %v8758 = vadd.f32 %v8673, %v8690
        %v8759 = vxor.u32 %v8695, 2147483648
        %v8760 = vxor.u32 %v8696, 2147483648
        %v8761 = vxor.u32 %v8697, 2147483648
        %v8762 = vxor.u32 %v8698, 2147483648
        %v8763 = vxor.u32 %v8699, 2147483648
        %v8764 = vxor.u32 %v8700, 2147483648
        %v8765 = vxor.u32 %v8701, 2147483648
        %v8766 = vxor.u32 %v8702, 2147483648
        %v8767 = vxor.u32 %v8703, 2147483648
        %v8768 = vxor.u32 %v8704, 2147483648
        %v8769 = vxor.u32 %v8705, 2147483648
        %v8770 = vxor.u32 %v8706, 2147483648
        %v8771 = vxor.u32 %v8707, 2147483648
        %v8772 = vxor.u32 %v8708, 2147483648
        %v8773 = vxor.u32 %v8709, 2147483648
        %v8774 = vxor.u32 %v8710, 2147483648
        %v8775 = vxor.u32 %v8711, 2147483648
        %v8776 = vxor.u32 %v8712, 2147483648
        %v8777 = vxor.u32 %v8713, 2147483648
        %v8778 = vxor.u32 %v8714, 2147483648
        %v8779 = vxor.u32 %v8715, 2147483648
        %v8780 = vxor.u32 %v8716, 2147483648
        %v8781 = vxor.u32 %v8717, 2147483648
        %v8782 = vxor.u32 %v8718, 2147483648
        %v8783 = vxor.u32 %v8719, 2147483648
        %v8784 = vxor.u32 %v8720, 2147483648
        %v8785 = vxor.u32 %v8721, 2147483648
        %v8786 = vxor.u32 %v8722, 2147483648
        %v8787 = vxor.u32 %v8723, 2147483648
        %v8788 = vxor.u32 %v8724, 2147483648
        %v8789 = vxor.u32 %v8725, 2147483648
        %v8790 = vxor.u32 %v8726, 2147483648
        %v8791 = vxor.u32 %v8727, 2147483648
        %v8792 = vxor.u32 %v8728, 2147483648
        %v8793 = vxor.u32 %v8729, 2147483648
        %v8794 = vxor.u32 %v8730, 2147483648
        %v8795 = vxor.u32 %v8731, 2147483648
        %v8796 = vxor.u32 %v8732, 2147483648
        %v8797 = vxor.u32 %v8733, 2147483648
        %v8798 = vxor.u32 %v8734, 2147483648
        %v8799 = vxor.u32 %v8735, 2147483648
        %v8800 = vxor.u32 %v8736, 2147483648
        %v8801 = vxor.u32 %v8737, 2147483648
        %v8802 = vxor.u32 %v8738, 2147483648
        %v8803 = vxor.u32 %v8739, 2147483648
        %v8804 = vxor.u32 %v8740, 2147483648
        %v8805 = vxor.u32 %v8741, 2147483648
        %v8806 = vxor.u32 %v8742, 2147483648
        %v8807 = vxor.u32 %v8743, 2147483648
        %v8808 = vxor.u32 %v8744, 2147483648
        %v8809 = vxor.u32 %v8745, 2147483648
        %v8810 = vxor.u32 %v8746, 2147483648
        %v8811 = vxor.u32 %v8747, 2147483648
        %v8812 = vxor.u32 %v8748, 2147483648
        %v8813 = vxor.u32 %v8749, 2147483648
        %v8814 = vxor.u32 %v8750, 2147483648
        %v8815 = vxor.u32 %v8751, 2147483648
        %v8816 = vxor.u32 %v8752, 2147483648
        %v8817 = vxor.u32 %v8753, 2147483648
        %v8818 = vxor.u32 %v8754, 2147483648
        %v8819 = vxor.u32 %v8755, 2147483648
        %v8820 = vxor.u32 %v8756, 2147483648
        %v8821 = vxor.u32 %v8757, 2147483648
        %v8822 = vxor.u32 %v8758, 2147483648
        %v8823 = vmul.f32 %v8759, 1.442695
        %v8824 = vpow.pop %v8823
        %v8825 = vmul.f32 %v8760, 1.442695
        %v8826 = vpow.pop %v8825
        %v8827 = vmul.f32 %v8761, 1.442695
        %v8828 = vpow.pop %v8827
        %v8829 = vmul.f32 %v8762, 1.442695
        %v8830 = vpow.pop %v8829
        %v8831 = vmul.f32 %v8763, 1.442695
        %v8832 = vpow.pop %v8831
        %v8833 = vmul.f32 %v8764, 1.442695
        %v8834 = vpow.pop %v8833
        %v8835 = vmul.f32 %v8765, 1.442695
        %v8836 = vpow.pop %v8835
        %v8837 = vmul.f32 %v8766, 1.442695
        %v8838 = vpow.pop %v8837
        %v8839 = vmul.f32 %v8767, 1.442695
        %v8840 = vpow.pop %v8839
        %v8841 = vmul.f32 %v8768, 1.442695
        %v8842 = vpow.pop %v8841
        %v8843 = vmul.f32 %v8769, 1.442695
        %v8844 = vpow.pop %v8843
        %v8845 = vmul.f32 %v8770, 1.442695
        %v8846 = vpow.pop %v8845
        %v8847 = vmul.f32 %v8771, 1.442695
        %v8848 = vpow.pop %v8847
        %v8849 = vmul.f32 %v8772, 1.442695
        %v8850 = vpow.pop %v8849
        %v8851 = vmul.f32 %v8773, 1.442695
        %v8852 = vpow.pop %v8851
        %v8853 = vmul.f32 %v8774, 1.442695
        %v8854 = vpow.pop %v8853
        %v8855 = vmul.f32 %v8775, 1.442695
        %v8856 = vpow.pop %v8855
        %v8857 = vmul.f32 %v8776, 1.442695
        %v8858 = vpow.pop %v8857
        %v8859 = vmul.f32 %v8777, 1.442695
        %v8860 = vpow.pop %v8859
        %v8861 = vmul.f32 %v8778, 1.442695
        %v8862 = vpow.pop %v8861
        %v8863 = vmul.f32 %v8779, 1.442695
        %v8864 = vpow.pop %v8863
        %v8865 = vmul.f32 %v8780, 1.442695
        %v8866 = vpow.pop %v8865
        %v8867 = vmul.f32 %v8781, 1.442695
        %v8868 = vpow.pop %v8867
        %v8869 = vmul.f32 %v8782, 1.442695
        %v8870 = vpow.pop %v8869
        %v8871 = vmul.f32 %v8783, 1.442695
        %v8872 = vpow.pop %v8871
        %v8873 = vmul.f32 %v8784, 1.442695
        %v8874 = vpow.pop %v8873
        %v8875 = vmul.f32 %v8785, 1.442695
        %v8876 = vpow.pop %v8875
        %v8877 = vmul.f32 %v8786, 1.442695
        %v8878 = vpow.pop %v8877
        %v8879 = vmul.f32 %v8787, 1.442695
        %v8880 = vpow.pop %v8879
        %v8881 = vmul.f32 %v8788, 1.442695
        %v8882 = vpow.pop %v8881
        %v8883 = vmul.f32 %v8789, 1.442695
        %v8884 = vpow.pop %v8883
        %v8885 = vmul.f32 %v8790, 1.442695
        %v8886 = vpow.pop %v8885
        %v8887 = vmul.f32 %v8791, 1.442695
        %v8888 = vpow.pop %v8887
        %v8889 = vmul.f32 %v8792, 1.442695
        %v8890 = vpow.pop %v8889
        %v8891 = vmul.f32 %v8793, 1.442695
        %v8892 = vpow.pop %v8891
        %v8893 = vmul.f32 %v8794, 1.442695
        %v8894 = vpow.pop %v8893
        %v8895 = vmul.f32 %v8795, 1.442695
        %v8896 = vpow.pop %v8895
        %v8897 = vmul.f32 %v8796, 1.442695
        %v8898 = vpow.pop %v8897
        %v8899 = vmul.f32 %v8797, 1.442695
        %v8900 = vpow.pop %v8899
        %v8901 = vmul.f32 %v8798, 1.442695
        %v8902 = vpow.pop %v8901
        %v8903 = vmul.f32 %v8799, 1.442695
        %v8904 = vpow.pop %v8903
        %v8905 = vmul.f32 %v8800, 1.442695
        %v8906 = vpow.pop %v8905
        %v8907 = vmul.f32 %v8801, 1.442695
        %v8908 = vpow.pop %v8907
        %v8909 = vmul.f32 %v8802, 1.442695
        %v8910 = vpow.pop %v8909
        %v8911 = vmul.f32 %v8803, 1.442695
        %v8912 = vpow.pop %v8911
        %v8913 = vmul.f32 %v8804, 1.442695
        %v8914 = vpow.pop %v8913
        %v8915 = vmul.f32 %v8805, 1.442695
        %v8916 = vpow.pop %v8915
        %v8917 = vmul.f32 %v8806, 1.442695
        %v8918 = vpow.pop %v8917
        %v8919 = vmul.f32 %v8807, 1.442695
        %v8920 = vpow.pop %v8919
        %v8921 = vmul.f32 %v8808, 1.442695
        %v8922 = vpow.pop %v8921
        %v8923 = vmul.f32 %v8809, 1.442695
        %v8924 = vpow.pop %v8923
        %v8925 = vmul.f32 %v8810, 1.442695
        %v8926 = vpow.pop %v8925
        %v8927 = vmul.f32 %v8811, 1.442695
        %v8928 = vpow.pop %v8927
        %v8929 = vmul.f32 %v8812, 1.442695
        %v8930 = vpow.pop %v8929
        %v8931 = vmul.f32 %v8813, 1.442695
        %v8932 = vpow.pop %v8931
        %v8933 = vmul.f32 %v8814, 1.442695
        %v8934 = vpow.pop %v8933
        %v8935 = vmul.f32 %v8815, 1.442695
        %v8936 = vpow.pop %v8935
        %v8937 = vmul.f32 %v8816, 1.442695
        %v8938 = vpow.pop %v8937
        %v8939 = vmul.f32 %v8817, 1.442695
        %v8940 = vpow.pop %v8939
        %v8941 = vmul.f32 %v8818, 1.442695
        %v8942 = vpow.pop %v8941
        %v8943 = vmul.f32 %v8819, 1.442695
        %v8944 = vpow.pop %v8943
        %v8945 = vmul.f32 %v8820, 1.442695
        %v8946 = vpow.pop %v8945
        %v8947 = vmul.f32 %v8821, 1.442695
        %v8948 = vpow.pop %v8947
        %v8949 = vmul.f32 %v8822, 1.442695
        %v8950 = vpow.pop %v8949
        %v8951 = vadd.f32 %v8824, 1.0
        %v8952 = vadd.f32 %v8826, 1.0
        %v8953 = vadd.f32 %v8828, 1.0
        %v8954 = vadd.f32 %v8830, 1.0
        %v8955 = vadd.f32 %v8832, 1.0
        %v8956 = vadd.f32 %v8834, 1.0
        %v8957 = vadd.f32 %v8836, 1.0
        %v8958 = vadd.f32 %v8838, 1.0
        %v8959 = vadd.f32 %v8840, 1.0
        %v8960 = vadd.f32 %v8842, 1.0
        %v8961 = vadd.f32 %v8844, 1.0
        %v8962 = vadd.f32 %v8846, 1.0
        %v8963 = vadd.f32 %v8848, 1.0
        %v8964 = vadd.f32 %v8850, 1.0
        %v8965 = vadd.f32 %v8852, 1.0
        %v8966 = vadd.f32 %v8854, 1.0
        %v8967 = vadd.f32 %v8856, 1.0
        %v8968 = vadd.f32 %v8858, 1.0
        %v8969 = vadd.f32 %v8860, 1.0
        %v8970 = vadd.f32 %v8862, 1.0
        %v8971 = vadd.f32 %v8864, 1.0
        %v8972 = vadd.f32 %v8866, 1.0
        %v8973 = vadd.f32 %v8868, 1.0
        %v8974 = vadd.f32 %v8870, 1.0
        %v8975 = vadd.f32 %v8872, 1.0
        %v8976 = vadd.f32 %v8874, 1.0
        %v8977 = vadd.f32 %v8876, 1.0
        %v8978 = vadd.f32 %v8878, 1.0
        %v8979 = vadd.f32 %v8880, 1.0
        %v8980 = vadd.f32 %v8882, 1.0
        %v8981 = vadd.f32 %v8884, 1.0
        %v8982 = vadd.f32 %v8886, 1.0
        %v8983 = vadd.f32 %v8888, 1.0
        %v8984 = vadd.f32 %v8890, 1.0
        %v8985 = vadd.f32 %v8892, 1.0
        %v8986 = vadd.f32 %v8894, 1.0
        %v8987 = vadd.f32 %v8896, 1.0
        %v8988 = vadd.f32 %v8898, 1.0
        %v8989 = vadd.f32 %v8900, 1.0
        %v8990 = vadd.f32 %v8902, 1.0
        %v8991 = vadd.f32 %v8904, 1.0
        %v8992 = vadd.f32 %v8906, 1.0
        %v8993 = vadd.f32 %v8908, 1.0
        %v8994 = vadd.f32 %v8910, 1.0
        %v8995 = vadd.f32 %v8912, 1.0
        %v8996 = vadd.f32 %v8914, 1.0
        %v8997 = vadd.f32 %v8916, 1.0
        %v8998 = vadd.f32 %v8918, 1.0
        %v8999 = vadd.f32 %v8920, 1.0
        %v9000 = vadd.f32 %v8922, 1.0
        %v9001 = vadd.f32 %v8924, 1.0
        %v9002 = vadd.f32 %v8926, 1.0
        %v9003 = vadd.f32 %v8928, 1.0
        %v9004 = vadd.f32 %v8930, 1.0
        %v9005 = vadd.f32 %v8932, 1.0
        %v9006 = vadd.f32 %v8934, 1.0
        %v9007 = vadd.f32 %v8936, 1.0
        %v9008 = vadd.f32 %v8938, 1.0
        %v9009 = vadd.f32 %v8940, 1.0
        %v9010 = vadd.f32 %v8942, 1.0
        %v9011 = vadd.f32 %v8944, 1.0
        %v9012 = vadd.f32 %v8946, 1.0
        %v9013 = vadd.f32 %v8948, 1.0
        %v9014 = vadd.f32 %v8950, 1.0
        %v9015 = vrcp.pop %v8951
        %v9016 = vmul.f32 1.0, %v9015
        %v9017 = vrcp.pop %v8952
        %v9018 = vmul.f32 1.0, %v9017
        %v9019 = vrcp.pop %v8953
        %v9020 = vmul.f32 1.0, %v9019
        %v9021 = vrcp.pop %v8954
        %v9022 = vmul.f32 1.0, %v9021
        %v9023 = vrcp.pop %v8955
        %v9024 = vmul.f32 1.0, %v9023
        %v9025 = vrcp.pop %v8956
        %v9026 = vmul.f32 1.0, %v9025
        %v9027 = vrcp.pop %v8957
        %v9028 = vmul.f32 1.0, %v9027
        %v9029 = vrcp.pop %v8958
        %v9030 = vmul.f32 1.0, %v9029
        %v9031 = vrcp.pop %v8959
        %v9032 = vmul.f32 1.0, %v9031
        %v9033 = vrcp.pop %v8960
        %v9034 = vmul.f32 1.0, %v9033
        %v9035 = vrcp.pop %v8961
        %v9036 = vmul.f32 1.0, %v9035
        %v9037 = vrcp.pop %v8962
        %v9038 = vmul.f32 1.0, %v9037
        %v9039 = vrcp.pop %v8963
        %v9040 = vmul.f32 1.0, %v9039
        %v9041 = vrcp.pop %v8964
        %v9042 = vmul.f32 1.0, %v9041
        %v9043 = vrcp.pop %v8965
        %v9044 = vmul.f32 1.0, %v9043
        %v9045 = vrcp.pop %v8966
        %v9046 = vmul.f32 1.0, %v9045
        %v9047 = vrcp.pop %v8967
        %v9048 = vmul.f32 1.0, %v9047
        %v9049 = vrcp.pop %v8968
        %v9050 = vmul.f32 1.0, %v9049
        %v9051 = vrcp.pop %v8969
        %v9052 = vmul.f32 1.0, %v9051
        %v9053 = vrcp.pop %v8970
        %v9054 = vmul.f32 1.0, %v9053
        %v9055 = vrcp.pop %v8971
        %v9056 = vmul.f32 1.0, %v9055
        %v9057 = vrcp.pop %v8972
        %v9058 = vmul.f32 1.0, %v9057
        %v9059 = vrcp.pop %v8973
        %v9060 = vmul.f32 1.0, %v9059
        %v9061 = vrcp.pop %v8974
        %v9062 = vmul.f32 1.0, %v9061
        %v9063 = vrcp.pop %v8975
        %v9064 = vmul.f32 1.0, %v9063
        %v9065 = vrcp.pop %v8976
        %v9066 = vmul.f32 1.0, %v9065
        %v9067 = vrcp.pop %v8977
        %v9068 = vmul.f32 1.0, %v9067
        %v9069 = vrcp.pop %v8978
        %v9070 = vmul.f32 1.0, %v9069
        %v9071 = vrcp.pop %v8979
        %v9072 = vmul.f32 1.0, %v9071
        %v9073 = vrcp.pop %v8980
        %v9074 = vmul.f32 1.0, %v9073
        %v9075 = vrcp.pop %v8981
        %v9076 = vmul.f32 1.0, %v9075
        %v9077 = vrcp.pop %v8982
        %v9078 = vmul.f32 1.0, %v9077
        %v9079 = vrcp.pop %v8983
        %v9080 = vmul.f32 1.0, %v9079
        %v9081 = vrcp.pop %v8984
        %v9082 = vmul.f32 1.0, %v9081
        %v9083 = vrcp.pop %v8985
        %v9084 = vmul.f32 1.0, %v9083
        %v9085 = vrcp.pop %v8986
        %v9086 = vmul.f32 1.0, %v9085
        %v9087 = vrcp.pop %v8987
        %v9088 = vmul.f32 1.0, %v9087
        %v9089 = vrcp.pop %v8988
        %v9090 = vmul.f32 1.0, %v9089
        %v9091 = vrcp.pop %v8989
        %v9092 = vmul.f32 1.0, %v9091
        %v9093 = vrcp.pop %v8990
        %v9094 = vmul.f32 1.0, %v9093
        %v9095 = vrcp.pop %v8991
        %v9096 = vmul.f32 1.0, %v9095
        %v9097 = vrcp.pop %v8992
        %v9098 = vmul.f32 1.0, %v9097
        %v9099 = vrcp.pop %v8993
        %v9100 = vmul.f32 1.0, %v9099
        %v9101 = vrcp.pop %v8994
        %v9102 = vmul.f32 1.0, %v9101
        %v9103 = vrcp.pop %v8995
        %v9104 = vmul.f32 1.0, %v9103
        %v9105 = vrcp.pop %v8996
        %v9106 = vmul.f32 1.0, %v9105
        %v9107 = vrcp.pop %v8997
        %v9108 = vmul.f32 1.0, %v9107
        %v9109 = vrcp.pop %v8998
        %v9110 = vmul.f32 1.0, %v9109
        %v9111 = vrcp.pop %v8999
        %v9112 = vmul.f32 1.0, %v9111
        %v9113 = vrcp.pop %v9000
        %v9114 = vmul.f32 1.0, %v9113
        %v9115 = vrcp.pop %v9001
        %v9116 = vmul.f32 1.0, %v9115
        %v9117 = vrcp.pop %v9002
        %v9118 = vmul.f32 1.0, %v9117
        %v9119 = vrcp.pop %v9003
        %v9120 = vmul.f32 1.0, %v9119
        %v9121 = vrcp.pop %v9004
        %v9122 = vmul.f32 1.0, %v9121
        %v9123 = vrcp.pop %v9005
        %v9124 = vmul.f32 1.0, %v9123
        %v9125 = vrcp.pop %v9006
        %v9126 = vmul.f32 1.0, %v9125
        %v9127 = vrcp.pop %v9007
        %v9128 = vmul.f32 1.0, %v9127
        %v9129 = vrcp.pop %v9008
        %v9130 = vmul.f32 1.0, %v9129
        %v9131 = vrcp.pop %v9009
        %v9132 = vmul.f32 1.0, %v9131
        %v9133 = vrcp.pop %v9010
        %v9134 = vmul.f32 1.0, %v9133
        %v9135 = vrcp.pop %v9011
        %v9136 = vmul.f32 1.0, %v9135
        %v9137 = vrcp.pop %v9012
        %v9138 = vmul.f32 1.0, %v9137
        %v9139 = vrcp.pop %v9013
        %v9140 = vmul.f32 1.0, %v9139
        %v9141 = vrcp.pop %v9014
        %v9142 = vmul.f32 1.0, %v9141
        %v9143 = vmul.f32 %v8695, %v9016
        %v9144 = vmul.f32 %v8696, %v9018
        %v9145 = vmul.f32 %v8697, %v9020
        %v9146 = vmul.f32 %v8698, %v9022
        %v9147 = vmul.f32 %v8699, %v9024
        %v9148 = vmul.f32 %v8700, %v9026
        %v9149 = vmul.f32 %v8701, %v9028
        %v9150 = vmul.f32 %v8702, %v9030
        %v9151 = vmul.f32 %v8703, %v9032
        %v9152 = vmul.f32 %v8704, %v9034
        %v9153 = vmul.f32 %v8705, %v9036
        %v9154 = vmul.f32 %v8706, %v9038
        %v9155 = vmul.f32 %v8707, %v9040
        %v9156 = vmul.f32 %v8708, %v9042
        %v9157 = vmul.f32 %v8709, %v9044
        %v9158 = vmul.f32 %v8710, %v9046
        %v9159 = vmul.f32 %v8711, %v9048
        %v9160 = vmul.f32 %v8712, %v9050
        %v9161 = vmul.f32 %v8713, %v9052
        %v9162 = vmul.f32 %v8714, %v9054
        %v9163 = vmul.f32 %v8715, %v9056
        %v9164 = vmul.f32 %v8716, %v9058
        %v9165 = vmul.f32 %v8717, %v9060
        %v9166 = vmul.f32 %v8718, %v9062
        %v9167 = vmul.f32 %v8719, %v9064
        %v9168 = vmul.f32 %v8720, %v9066
        %v9169 = vmul.f32 %v8721, %v9068
        %v9170 = vmul.f32 %v8722, %v9070
        %v9171 = vmul.f32 %v8723, %v9072
        %v9172 = vmul.f32 %v8724, %v9074
        %v9173 = vmul.f32 %v8725, %v9076
        %v9174 = vmul.f32 %v8726, %v9078
        %v9175 = vmul.f32 %v8727, %v9080
        %v9176 = vmul.f32 %v8728, %v9082
        %v9177 = vmul.f32 %v8729, %v9084
        %v9178 = vmul.f32 %v8730, %v9086
        %v9179 = vmul.f32 %v8731, %v9088
        %v9180 = vmul.f32 %v8732, %v9090
        %v9181 = vmul.f32 %v8733, %v9092
        %v9182 = vmul.f32 %v8734, %v9094
        %v9183 = vmul.f32 %v8735, %v9096
        %v9184 = vmul.f32 %v8736, %v9098
        %v9185 = vmul.f32 %v8737, %v9100
        %v9186 = vmul.f32 %v8738, %v9102
        %v9187 = vmul.f32 %v8739, %v9104
        %v9188 = vmul.f32 %v8740, %v9106
        %v9189 = vmul.f32 %v8741, %v9108
        %v9190 = vmul.f32 %v8742, %v9110
        %v9191 = vmul.f32 %v8743, %v9112
        %v9192 = vmul.f32 %v8744, %v9114
        %v9193 = vmul.f32 %v8745, %v9116
        %v9194 = vmul.f32 %v8746, %v9118
        %v9195 = vmul.f32 %v8747, %v9120
        %v9196 = vmul.f32 %v8748, %v9122
        %v9197 = vmul.f32 %v8749, %v9124
        %v9198 = vmul.f32 %v8750, %v9126
        %v9199 = vmul.f32 %v8751, %v9128
        %v9200 = vmul.f32 %v8752, %v9130
        %v9201 = vmul.f32 %v8753, %v9132
        %v9202 = vmul.f32 %v8754, %v9134
        %v9203 = vmul.f32 %v8755, %v9136
        %v9204 = vmul.f32 %v8756, %v9138
        %v9205 = vmul.f32 %v8757, %v9140
        %v9206 = vmul.f32 %v8758, %v9142
        %v9208 = vlaneseq
        %v9209 = vshrl.u32 %v9208, 7
        %v9210 = vsub.s32 0, %v9209
        %v9211 = vrot.slane %v497, %v9210
        %v9212 = vlaneseq
        %v9213 = vshrl.u32 %v9212, 7
        %v9214 = vsub.s32 1, %v9213
        %v9215 = vrot.slane %v497, %v9214
        %v9216 = vlaneseq
        %v9217 = vshrl.u32 %v9216, 7
        %v9218 = vsub.s32 2, %v9217
        %v9219 = vrot.slane %v497, %v9218
        %v9220 = vlaneseq
        %v9221 = vshrl.u32 %v9220, 7
        %v9222 = vsub.s32 3, %v9221
        %v9223 = vrot.slane %v497, %v9222
        %v9228 = vmul.f32 %v9143, %v9211
        %v9229 = vmul.f32 %v9144, %v9215
        %v9230 = vmul.f32 %v9145, %v9219
        %v9231 = vmul.f32 %v9146, %v9223
        %v9232 = vmul.f32 %v9147, %v9211
        %v9233 = vmul.f32 %v9148, %v9215
        %v9234 = vmul.f32 %v9149, %v9219
        %v9235 = vmul.f32 %v9150, %v9223
        %v9236 = vmul.f32 %v9151, %v9211
        %v9237 = vmul.f32 %v9152, %v9215
        %v9238 = vmul.f32 %v9153, %v9219
        %v9239 = vmul.f32 %v9154, %v9223
        %v9240 = vmul.f32 %v9155, %v9211
        %v9241 = vmul.f32 %v9156, %v9215
        %v9242 = vmul.f32 %v9157, %v9219
        %v9243 = vmul.f32 %v9158, %v9223
        %v9244 = vmul.f32 %v9159, %v9211
        %v9245 = vmul.f32 %v9160, %v9215
        %v9246 = vmul.f32 %v9161, %v9219
        %v9247 = vmul.f32 %v9162, %v9223
        %v9248 = vmul.f32 %v9163, %v9211
        %v9249 = vmul.f32 %v9164, %v9215
        %v9250 = vmul.f32 %v9165, %v9219
        %v9251 = vmul.f32 %v9166, %v9223
        %v9252 = vmul.f32 %v9167, %v9211
        %v9253 = vmul.f32 %v9168, %v9215
        %v9254 = vmul.f32 %v9169, %v9219
        %v9255 = vmul.f32 %v9170, %v9223
        %v9256 = vmul.f32 %v9171, %v9211
        %v9257 = vmul.f32 %v9172, %v9215
        %v9258 = vmul.f32 %v9173, %v9219
        %v9259 = vmul.f32 %v9174, %v9223
        %v9260 = vmul.f32 %v9175, %v9211
        %v9261 = vmul.f32 %v9176, %v9215
        %v9262 = vmul.f32 %v9177, %v9219
        %v9263 = vmul.f32 %v9178, %v9223
        %v9264 = vmul.f32 %v9179, %v9211
        %v9265 = vmul.f32 %v9180, %v9215
        %v9266 = vmul.f32 %v9181, %v9219
        %v9267 = vmul.f32 %v9182, %v9223
        %v9268 = vmul.f32 %v9183, %v9211
        %v9269 = vmul.f32 %v9184, %v9215
        %v9270 = vmul.f32 %v9185, %v9219
        %v9271 = vmul.f32 %v9186, %v9223
        %v9272 = vmul.f32 %v9187, %v9211
        %v9273 = vmul.f32 %v9188, %v9215
        %v9274 = vmul.f32 %v9189, %v9219
        %v9275 = vmul.f32 %v9190, %v9223
        %v9276 = vmul.f32 %v9191, %v9211
        %v9277 = vmul.f32 %v9192, %v9215
        %v9278 = vmul.f32 %v9193, %v9219
        %v9279 = vmul.f32 %v9194, %v9223
        %v9280 = vmul.f32 %v9195, %v9211
        %v9281 = vmul.f32 %v9196, %v9215
        %v9282 = vmul.f32 %v9197, %v9219
        %v9283 = vmul.f32 %v9198, %v9223
        %v9284 = vmul.f32 %v9199, %v9211
        %v9285 = vmul.f32 %v9200, %v9215
        %v9286 = vmul.f32 %v9201, %v9219
        %v9287 = vmul.f32 %v9202, %v9223
        %v9288 = vmul.f32 %v9203, %v9211
        %v9289 = vmul.f32 %v9204, %v9215
        %v9290 = vmul.f32 %v9205, %v9219
        %v9291 = vmul.f32 %v9206, %v9223
        %v9292 = vxor.u32 %v9228, 2147483648
        %v9293 = vxor.u32 %v9229, 2147483648
        %v9294 = vxor.u32 %v9230, 2147483648
        %v9295 = vxor.u32 %v9231, 2147483648
        %v9296 = vxor.u32 %v9232, 2147483648
        %v9297 = vxor.u32 %v9233, 2147483648
        %v9298 = vxor.u32 %v9234, 2147483648
        %v9299 = vxor.u32 %v9235, 2147483648
        %v9300 = vxor.u32 %v9236, 2147483648
        %v9301 = vxor.u32 %v9237, 2147483648
        %v9302 = vxor.u32 %v9238, 2147483648
        %v9303 = vxor.u32 %v9239, 2147483648
        %v9304 = vxor.u32 %v9240, 2147483648
        %v9305 = vxor.u32 %v9241, 2147483648
        %v9306 = vxor.u32 %v9242, 2147483648
        %v9307 = vxor.u32 %v9243, 2147483648
        %v9308 = vxor.u32 %v9244, 2147483648
        %v9309 = vxor.u32 %v9245, 2147483648
        %v9310 = vxor.u32 %v9246, 2147483648
        %v9311 = vxor.u32 %v9247, 2147483648
        %v9312 = vxor.u32 %v9248, 2147483648
        %v9313 = vxor.u32 %v9249, 2147483648
        %v9314 = vxor.u32 %v9250, 2147483648
        %v9315 = vxor.u32 %v9251, 2147483648
        %v9316 = vxor.u32 %v9252, 2147483648
        %v9317 = vxor.u32 %v9253, 2147483648
        %v9318 = vxor.u32 %v9254, 2147483648
        %v9319 = vxor.u32 %v9255, 2147483648
        %v9320 = vxor.u32 %v9256, 2147483648
        %v9321 = vxor.u32 %v9257, 2147483648
        %v9322 = vxor.u32 %v9258, 2147483648
        %v9323 = vxor.u32 %v9259, 2147483648
        %v9324 = vxor.u32 %v9260, 2147483648
        %v9325 = vxor.u32 %v9261, 2147483648
        %v9326 = vxor.u32 %v9262, 2147483648
        %v9327 = vxor.u32 %v9263, 2147483648
        %v9328 = vxor.u32 %v9264, 2147483648
        %v9329 = vxor.u32 %v9265, 2147483648
        %v9330 = vxor.u32 %v9266, 2147483648
        %v9331 = vxor.u32 %v9267, 2147483648
        %v9332 = vxor.u32 %v9268, 2147483648
        %v9333 = vxor.u32 %v9269, 2147483648
        %v9334 = vxor.u32 %v9270, 2147483648
        %v9335 = vxor.u32 %v9271, 2147483648
        %v9336 = vxor.u32 %v9272, 2147483648
        %v9337 = vxor.u32 %v9273, 2147483648
        %v9338 = vxor.u32 %v9274, 2147483648
        %v9339 = vxor.u32 %v9275, 2147483648
        %v9340 = vxor.u32 %v9276, 2147483648
        %v9341 = vxor.u32 %v9277, 2147483648
        %v9342 = vxor.u32 %v9278, 2147483648
        %v9343 = vxor.u32 %v9279, 2147483648
        %v9344 = vxor.u32 %v9280, 2147483648
        %v9345 = vxor.u32 %v9281, 2147483648
        %v9346 = vxor.u32 %v9282, 2147483648
        %v9347 = vxor.u32 %v9283, 2147483648
        %v9348 = vxor.u32 %v9284, 2147483648
        %v9349 = vxor.u32 %v9285, 2147483648
        %v9350 = vxor.u32 %v9286, 2147483648
        %v9351 = vxor.u32 %v9287, 2147483648
        %v9352 = vxor.u32 %v9288, 2147483648
        %v9353 = vxor.u32 %v9289, 2147483648
        %v9354 = vxor.u32 %v9290, 2147483648
        %v9355 = vxor.u32 %v9291, 2147483648
        %v9356 = vmul.f32 %v9292, 1.442695
        %v9357 = vpow.pop %v9356
        %v9358 = vmul.f32 %v9293, 1.442695
        %v9359 = vpow.pop %v9358
        %v9360 = vmul.f32 %v9294, 1.442695
        %v9361 = vpow.pop %v9360
        %v9362 = vmul.f32 %v9295, 1.442695
        %v9363 = vpow.pop %v9362
        %v9364 = vmul.f32 %v9296, 1.442695
        %v9365 = vpow.pop %v9364
        %v9366 = vmul.f32 %v9297, 1.442695
        %v9367 = vpow.pop %v9366
        %v9368 = vmul.f32 %v9298, 1.442695
        %v9369 = vpow.pop %v9368
        %v9370 = vmul.f32 %v9299, 1.442695
        %v9371 = vpow.pop %v9370
        %v9372 = vmul.f32 %v9300, 1.442695
        %v9373 = vpow.pop %v9372
        %v9374 = vmul.f32 %v9301, 1.442695
        %v9375 = vpow.pop %v9374
        %v9376 = vmul.f32 %v9302, 1.442695
        %v9377 = vpow.pop %v9376
        %v9378 = vmul.f32 %v9303, 1.442695
        %v9379 = vpow.pop %v9378
        %v9380 = vmul.f32 %v9304, 1.442695
        %v9381 = vpow.pop %v9380
        %v9382 = vmul.f32 %v9305, 1.442695
        %v9383 = vpow.pop %v9382
        %v9384 = vmul.f32 %v9306, 1.442695
        %v9385 = vpow.pop %v9384
        %v9386 = vmul.f32 %v9307, 1.442695
        %v9387 = vpow.pop %v9386
        %v9388 = vmul.f32 %v9308, 1.442695
        %v9389 = vpow.pop %v9388
        %v9390 = vmul.f32 %v9309, 1.442695
        %v9391 = vpow.pop %v9390
        %v9392 = vmul.f32 %v9310, 1.442695
        %v9393 = vpow.pop %v9392
        %v9394 = vmul.f32 %v9311, 1.442695
        %v9395 = vpow.pop %v9394
        %v9396 = vmul.f32 %v9312, 1.442695
        %v9397 = vpow.pop %v9396
        %v9398 = vmul.f32 %v9313, 1.442695
        %v9399 = vpow.pop %v9398
        %v9400 = vmul.f32 %v9314, 1.442695
        %v9401 = vpow.pop %v9400
        %v9402 = vmul.f32 %v9315, 1.442695
        %v9403 = vpow.pop %v9402
        %v9404 = vmul.f32 %v9316, 1.442695
        %v9405 = vpow.pop %v9404
        %v9406 = vmul.f32 %v9317, 1.442695
        %v9407 = vpow.pop %v9406
        %v9408 = vmul.f32 %v9318, 1.442695
        %v9409 = vpow.pop %v9408
        %v9410 = vmul.f32 %v9319, 1.442695
        %v9411 = vpow.pop %v9410
        %v9412 = vmul.f32 %v9320, 1.442695
        %v9413 = vpow.pop %v9412
        %v9414 = vmul.f32 %v9321, 1.442695
        %v9415 = vpow.pop %v9414
        %v9416 = vmul.f32 %v9322, 1.442695
        %v9417 = vpow.pop %v9416
        %v9418 = vmul.f32 %v9323, 1.442695
        %v9419 = vpow.pop %v9418
        %v9420 = vmul.f32 %v9324, 1.442695
        %v9421 = vpow.pop %v9420
        %v9422 = vmul.f32 %v9325, 1.442695
        %v9423 = vpow.pop %v9422
        %v9424 = vmul.f32 %v9326, 1.442695
        %v9425 = vpow.pop %v9424
        %v9426 = vmul.f32 %v9327, 1.442695
        %v9427 = vpow.pop %v9426
        %v9428 = vmul.f32 %v9328, 1.442695
        %v9429 = vpow.pop %v9428
        %v9430 = vmul.f32 %v9329, 1.442695
        %v9431 = vpow.pop %v9430
        %v9432 = vmul.f32 %v9330, 1.442695
        %v9433 = vpow.pop %v9432
        %v9434 = vmul.f32 %v9331, 1.442695
        %v9435 = vpow.pop %v9434
        %v9436 = vmul.f32 %v9332, 1.442695
        %v9437 = vpow.pop %v9436
        %v9438 = vmul.f32 %v9333, 1.442695
        %v9439 = vpow.pop %v9438
        %v9440 = vmul.f32 %v9334, 1.442695
        %v9441 = vpow.pop %v9440
        %v9442 = vmul.f32 %v9335, 1.442695
        %v9443 = vpow.pop %v9442
        %v9444 = vmul.f32 %v9336, 1.442695
        %v9445 = vpow.pop %v9444
        %v9446 = vmul.f32 %v9337, 1.442695
        %v9447 = vpow.pop %v9446
        %v9448 = vmul.f32 %v9338, 1.442695
        %v9449 = vpow.pop %v9448
        %v9450 = vmul.f32 %v9339, 1.442695
        %v9451 = vpow.pop %v9450
        %v9452 = vmul.f32 %v9340, 1.442695
        %v9453 = vpow.pop %v9452
        %v9454 = vmul.f32 %v9341, 1.442695
        %v9455 = vpow.pop %v9454
        %v9456 = vmul.f32 %v9342, 1.442695
        %v9457 = vpow.pop %v9456
        %v9458 = vmul.f32 %v9343, 1.442695
        %v9459 = vpow.pop %v9458
        %v9460 = vmul.f32 %v9344, 1.442695
        %v9461 = vpow.pop %v9460
        %v9462 = vmul.f32 %v9345, 1.442695
        %v9463 = vpow.pop %v9462
        %v9464 = vmul.f32 %v9346, 1.442695
        %v9465 = vpow.pop %v9464
        %v9466 = vmul.f32 %v9347, 1.442695
        %v9467 = vpow.pop %v9466
        %v9468 = vmul.f32 %v9348, 1.442695
        %v9469 = vpow.pop %v9468
        %v9470 = vmul.f32 %v9349, 1.442695
        %v9471 = vpow.pop %v9470
        %v9472 = vmul.f32 %v9350, 1.442695
        %v9473 = vpow.pop %v9472
        %v9474 = vmul.f32 %v9351, 1.442695
        %v9475 = vpow.pop %v9474
        %v9476 = vmul.f32 %v9352, 1.442695
        %v9477 = vpow.pop %v9476
        %v9478 = vmul.f32 %v9353, 1.442695
        %v9479 = vpow.pop %v9478
        %v9480 = vmul.f32 %v9354, 1.442695
        %v9481 = vpow.pop %v9480
        %v9482 = vmul.f32 %v9355, 1.442695
        %v9483 = vpow.pop %v9482
        %v9484 = vadd.f32 %v9357, 1.0
        %v9485 = vadd.f32 %v9359, 1.0
        %v9486 = vadd.f32 %v9361, 1.0
        %v9487 = vadd.f32 %v9363, 1.0
        %v9488 = vadd.f32 %v9365, 1.0
        %v9489 = vadd.f32 %v9367, 1.0
        %v9490 = vadd.f32 %v9369, 1.0
        %v9491 = vadd.f32 %v9371, 1.0
        %v9492 = vadd.f32 %v9373, 1.0
        %v9493 = vadd.f32 %v9375, 1.0
        %v9494 = vadd.f32 %v9377, 1.0
        %v9495 = vadd.f32 %v9379, 1.0
        %v9496 = vadd.f32 %v9381, 1.0
        %v9497 = vadd.f32 %v9383, 1.0
        %v9498 = vadd.f32 %v9385, 1.0
        %v9499 = vadd.f32 %v9387, 1.0
        %v9500 = vadd.f32 %v9389, 1.0
        %v9501 = vadd.f32 %v9391, 1.0
        %v9502 = vadd.f32 %v9393, 1.0
        %v9503 = vadd.f32 %v9395, 1.0
        %v9504 = vadd.f32 %v9397, 1.0
        %v9505 = vadd.f32 %v9399, 1.0
        %v9506 = vadd.f32 %v9401, 1.0
        %v9507 = vadd.f32 %v9403, 1.0
        %v9508 = vadd.f32 %v9405, 1.0
        %v9509 = vadd.f32 %v9407, 1.0
        %v9510 = vadd.f32 %v9409, 1.0
        %v9511 = vadd.f32 %v9411, 1.0
        %v9512 = vadd.f32 %v9413, 1.0
        %v9513 = vadd.f32 %v9415, 1.0
        %v9514 = vadd.f32 %v9417, 1.0
        %v9515 = vadd.f32 %v9419, 1.0
        %v9516 = vadd.f32 %v9421, 1.0
        %v9517 = vadd.f32 %v9423, 1.0
        %v9518 = vadd.f32 %v9425, 1.0
        %v9519 = vadd.f32 %v9427, 1.0
        %v9520 = vadd.f32 %v9429, 1.0
        %v9521 = vadd.f32 %v9431, 1.0
        %v9522 = vadd.f32 %v9433, 1.0
        %v9523 = vadd.f32 %v9435, 1.0
        %v9524 = vadd.f32 %v9437, 1.0
        %v9525 = vadd.f32 %v9439, 1.0
        %v9526 = vadd.f32 %v9441, 1.0
        %v9527 = vadd.f32 %v9443, 1.0
        %v9528 = vadd.f32 %v9445, 1.0
        %v9529 = vadd.f32 %v9447, 1.0
        %v9530 = vadd.f32 %v9449, 1.0
        %v9531 = vadd.f32 %v9451, 1.0
        %v9532 = vadd.f32 %v9453, 1.0
        %v9533 = vadd.f32 %v9455, 1.0
        %v9534 = vadd.f32 %v9457, 1.0
        %v9535 = vadd.f32 %v9459, 1.0
        %v9536 = vadd.f32 %v9461, 1.0
        %v9537 = vadd.f32 %v9463, 1.0
        %v9538 = vadd.f32 %v9465, 1.0
        %v9539 = vadd.f32 %v9467, 1.0
        %v9540 = vadd.f32 %v9469, 1.0
        %v9541 = vadd.f32 %v9471, 1.0
        %v9542 = vadd.f32 %v9473, 1.0
        %v9543 = vadd.f32 %v9475, 1.0
        %v9544 = vadd.f32 %v9477, 1.0
        %v9545 = vadd.f32 %v9479, 1.0
        %v9546 = vadd.f32 %v9481, 1.0
        %v9547 = vadd.f32 %v9483, 1.0
        %v9548 = vrcp.pop %v9484
        %v9549 = vmul.f32 1.0, %v9548
        %v9550 = vrcp.pop %v9485
        %v9551 = vmul.f32 1.0, %v9550
        %v9552 = vrcp.pop %v9486
        %v9553 = vmul.f32 1.0, %v9552
        %v9554 = vrcp.pop %v9487
        %v9555 = vmul.f32 1.0, %v9554
        %v9556 = vrcp.pop %v9488
        %v9557 = vmul.f32 1.0, %v9556
        %v9558 = vrcp.pop %v9489
        %v9559 = vmul.f32 1.0, %v9558
        %v9560 = vrcp.pop %v9490
        %v9561 = vmul.f32 1.0, %v9560
        %v9562 = vrcp.pop %v9491
        %v9563 = vmul.f32 1.0, %v9562
        %v9564 = vrcp.pop %v9492
        %v9565 = vmul.f32 1.0, %v9564
        %v9566 = vrcp.pop %v9493
        %v9567 = vmul.f32 1.0, %v9566
        %v9568 = vrcp.pop %v9494
        %v9569 = vmul.f32 1.0, %v9568
        %v9570 = vrcp.pop %v9495
        %v9571 = vmul.f32 1.0, %v9570
        %v9572 = vrcp.pop %v9496
        %v9573 = vmul.f32 1.0, %v9572
        %v9574 = vrcp.pop %v9497
        %v9575 = vmul.f32 1.0, %v9574
        %v9576 = vrcp.pop %v9498
        %v9577 = vmul.f32 1.0, %v9576
        %v9578 = vrcp.pop %v9499
        %v9579 = vmul.f32 1.0, %v9578
        %v9580 = vrcp.pop %v9500
        %v9581 = vmul.f32 1.0, %v9580
        %v9582 = vrcp.pop %v9501
        %v9583 = vmul.f32 1.0, %v9582
        %v9584 = vrcp.pop %v9502
        %v9585 = vmul.f32 1.0, %v9584
        %v9586 = vrcp.pop %v9503
        %v9587 = vmul.f32 1.0, %v9586
        %v9588 = vrcp.pop %v9504
        %v9589 = vmul.f32 1.0, %v9588
        %v9590 = vrcp.pop %v9505
        %v9591 = vmul.f32 1.0, %v9590
        %v9592 = vrcp.pop %v9506
        %v9593 = vmul.f32 1.0, %v9592
        %v9594 = vrcp.pop %v9507
        %v9595 = vmul.f32 1.0, %v9594
        %v9596 = vrcp.pop %v9508
        %v9597 = vmul.f32 1.0, %v9596
        %v9598 = vrcp.pop %v9509
        %v9599 = vmul.f32 1.0, %v9598
        %v9600 = vrcp.pop %v9510
        %v9601 = vmul.f32 1.0, %v9600
        %v9602 = vrcp.pop %v9511
        %v9603 = vmul.f32 1.0, %v9602
        %v9604 = vrcp.pop %v9512
        %v9605 = vmul.f32 1.0, %v9604
        %v9606 = vrcp.pop %v9513
        %v9607 = vmul.f32 1.0, %v9606
        %v9608 = vrcp.pop %v9514
        %v9609 = vmul.f32 1.0, %v9608
        %v9610 = vrcp.pop %v9515
        %v9611 = vmul.f32 1.0, %v9610
        %v9612 = vrcp.pop %v9516
        %v9613 = vmul.f32 1.0, %v9612
        %v9614 = vrcp.pop %v9517
        %v9615 = vmul.f32 1.0, %v9614
        %v9616 = vrcp.pop %v9518
        %v9617 = vmul.f32 1.0, %v9616
        %v9618 = vrcp.pop %v9519
        %v9619 = vmul.f32 1.0, %v9618
        %v9620 = vrcp.pop %v9520
        %v9621 = vmul.f32 1.0, %v9620
        %v9622 = vrcp.pop %v9521
        %v9623 = vmul.f32 1.0, %v9622
        %v9624 = vrcp.pop %v9522
        %v9625 = vmul.f32 1.0, %v9624
        %v9626 = vrcp.pop %v9523
        %v9627 = vmul.f32 1.0, %v9626
        %v9628 = vrcp.pop %v9524
        %v9629 = vmul.f32 1.0, %v9628
        %v9630 = vrcp.pop %v9525
        %v9631 = vmul.f32 1.0, %v9630
        %v9632 = vrcp.pop %v9526
        %v9633 = vmul.f32 1.0, %v9632
        %v9634 = vrcp.pop %v9527
        %v9635 = vmul.f32 1.0, %v9634
        %v9636 = vrcp.pop %v9528
        %v9637 = vmul.f32 1.0, %v9636
        %v9638 = vrcp.pop %v9529
        %v9639 = vmul.f32 1.0, %v9638
        %v9640 = vrcp.pop %v9530
        %v9641 = vmul.f32 1.0, %v9640
        %v9642 = vrcp.pop %v9531
        %v9643 = vmul.f32 1.0, %v9642
        %v9644 = vrcp.pop %v9532
        %v9645 = vmul.f32 1.0, %v9644
        %v9646 = vrcp.pop %v9533
        %v9647 = vmul.f32 1.0, %v9646
        %v9648 = vrcp.pop %v9534
        %v9649 = vmul.f32 1.0, %v9648
        %v9650 = vrcp.pop %v9535
        %v9651 = vmul.f32 1.0, %v9650
        %v9652 = vrcp.pop %v9536
        %v9653 = vmul.f32 1.0, %v9652
        %v9654 = vrcp.pop %v9537
        %v9655 = vmul.f32 1.0, %v9654
        %v9656 = vrcp.pop %v9538
        %v9657 = vmul.f32 1.0, %v9656
        %v9658 = vrcp.pop %v9539
        %v9659 = vmul.f32 1.0, %v9658
        %v9660 = vrcp.pop %v9540
        %v9661 = vmul.f32 1.0, %v9660
        %v9662 = vrcp.pop %v9541
        %v9663 = vmul.f32 1.0, %v9662
        %v9664 = vrcp.pop %v9542
        %v9665 = vmul.f32 1.0, %v9664
        %v9666 = vrcp.pop %v9543
        %v9667 = vmul.f32 1.0, %v9666
        %v9668 = vrcp.pop %v9544
        %v9669 = vmul.f32 1.0, %v9668
        %v9670 = vrcp.pop %v9545
        %v9671 = vmul.f32 1.0, %v9670
        %v9672 = vrcp.pop %v9546
        %v9673 = vmul.f32 1.0, %v9672
        %v9674 = vrcp.pop %v9547
        %v9675 = vmul.f32 1.0, %v9674
        %v9676 = vmul.f32 %v9228, %v9549
        %v9677 = vmul.f32 %v9229, %v9551
        %v9678 = vmul.f32 %v9230, %v9553
        %v9679 = vmul.f32 %v9231, %v9555
        %v9680 = vmul.f32 %v9232, %v9557
        %v9681 = vmul.f32 %v9233, %v9559
        %v9682 = vmul.f32 %v9234, %v9561
        %v9683 = vmul.f32 %v9235, %v9563
        %v9684 = vmul.f32 %v9236, %v9565
        %v9685 = vmul.f32 %v9237, %v9567
        %v9686 = vmul.f32 %v9238, %v9569
        %v9687 = vmul.f32 %v9239, %v9571
        %v9688 = vmul.f32 %v9240, %v9573
        %v9689 = vmul.f32 %v9241, %v9575
        %v9690 = vmul.f32 %v9242, %v9577
        %v9691 = vmul.f32 %v9243, %v9579
        %v9692 = vmul.f32 %v9244, %v9581
        %v9693 = vmul.f32 %v9245, %v9583
        %v9694 = vmul.f32 %v9246, %v9585
        %v9695 = vmul.f32 %v9247, %v9587
        %v9696 = vmul.f32 %v9248, %v9589
        %v9697 = vmul.f32 %v9249, %v9591
        %v9698 = vmul.f32 %v9250, %v9593
        %v9699 = vmul.f32 %v9251, %v9595
        %v9700 = vmul.f32 %v9252, %v9597
        %v9701 = vmul.f32 %v9253, %v9599
        %v9702 = vmul.f32 %v9254, %v9601
        %v9703 = vmul.f32 %v9255, %v9603
        %v9704 = vmul.f32 %v9256, %v9605
        %v9705 = vmul.f32 %v9257, %v9607
        %v9706 = vmul.f32 %v9258, %v9609
        %v9707 = vmul.f32 %v9259, %v9611
        %v9708 = vmul.f32 %v9260, %v9613
        %v9709 = vmul.f32 %v9261, %v9615
        %v9710 = vmul.f32 %v9262, %v9617
        %v9711 = vmul.f32 %v9263, %v9619
        %v9712 = vmul.f32 %v9264, %v9621
        %v9713 = vmul.f32 %v9265, %v9623
        %v9714 = vmul.f32 %v9266, %v9625
        %v9715 = vmul.f32 %v9267, %v9627
        %v9716 = vmul.f32 %v9268, %v9629
        %v9717 = vmul.f32 %v9269, %v9631
        %v9718 = vmul.f32 %v9270, %v9633
        %v9719 = vmul.f32 %v9271, %v9635
        %v9720 = vmul.f32 %v9272, %v9637
        %v9721 = vmul.f32 %v9273, %v9639
        %v9722 = vmul.f32 %v9274, %v9641
        %v9723 = vmul.f32 %v9275, %v9643
        %v9724 = vmul.f32 %v9276, %v9645
        %v9725 = vmul.f32 %v9277, %v9647
        %v9726 = vmul.f32 %v9278, %v9649
        %v9727 = vmul.f32 %v9279, %v9651
        %v9728 = vmul.f32 %v9280, %v9653
        %v9729 = vmul.f32 %v9281, %v9655
        %v9730 = vmul.f32 %v9282, %v9657
        %v9731 = vmul.f32 %v9283, %v9659
        %v9732 = vmul.f32 %v9284, %v9661
        %v9733 = vmul.f32 %v9285, %v9663
        %v9734 = vmul.f32 %v9286, %v9665
        %v9735 = vmul.f32 %v9287, %v9667
        %v9736 = vmul.f32 %v9288, %v9669
        %v9737 = vmul.f32 %v9289, %v9671
        %v9738 = vmul.f32 %v9290, %v9673
        %v9739 = vmul.f32 %v9291, %v9675
        %9740 = vst [vmem:[%s261] sm:$0xff] %v9676
        %9741 = vst [vmem:[%s261 + $0x8] sm:$0xff] %v9677
        %9742 = vst [vmem:[%s261 + $0x10] sm:$0xff] %v9678
        %9743 = vst [vmem:[%s261 + $0x18] sm:$0xff] %v9679
        %9744 = vst [vmem:[%s261 + $0x20] sm:$0xff] %v9680
        %9745 = vst [vmem:[%s261 + $0x28] sm:$0xff] %v9681
        %9746 = vst [vmem:[%s261 + $0x30] sm:$0xff] %v9682
        %9747 = vst [vmem:[%s261 + $0x38] sm:$0xff] %v9683
        %9748 = vst [vmem:[%s261 + $0x40] sm:$0xff] %v9684
        %9749 = vst [vmem:[%s261 + $0x48] sm:$0xff] %v9685
        %9750 = vst [vmem:[%s261 + $0x50] sm:$0xff] %v9686
        %9751 = vst [vmem:[%s261 + $0x58] sm:$0xff] %v9687
        %9752 = vst [vmem:[%s261 + $0x60] sm:$0xff] %v9688
        %9753 = vst [vmem:[%s261 + $0x68] sm:$0xff] %v9689
        %9754 = vst [vmem:[%s261 + $0x70] sm:$0xff] %v9690
        %9755 = vst [vmem:[%s261 + $0x78] sm:$0xff] %v9691
        %9756 = vst [vmem:[%s261 + $0x80] sm:$0xff] %v9692
        %9757 = vst [vmem:[%s261 + $0x88] sm:$0xff] %v9693
        %9758 = vst [vmem:[%s261 + $0x90] sm:$0xff] %v9694
        %9759 = vst [vmem:[%s261 + $0x98] sm:$0xff] %v9695
        %9760 = vst [vmem:[%s261 + $0xa0] sm:$0xff] %v9696
        %9761 = vst [vmem:[%s261 + $0xa8] sm:$0xff] %v9697
        %9762 = vst [vmem:[%s261 + $0xb0] sm:$0xff] %v9698
        %9763 = vst [vmem:[%s261 + $0xb8] sm:$0xff] %v9699
        %9764 = vst [vmem:[%s261 + $0xc0] sm:$0xff] %v9700
        %9765 = vst [vmem:[%s261 + $0xc8] sm:$0xff] %v9701
        %9766 = vst [vmem:[%s261 + $0xd0] sm:$0xff] %v9702
        %9767 = vst [vmem:[%s261 + $0xd8] sm:$0xff] %v9703
        %9768 = vst [vmem:[%s261 + $0xe0] sm:$0xff] %v9704
        %9769 = vst [vmem:[%s261 + $0xe8] sm:$0xff] %v9705
        %9770 = vst [vmem:[%s261 + $0xf0] sm:$0xff] %v9706
        %9771 = vst [vmem:[%s261 + $0xf8] sm:$0xff] %v9707
        %9772 = vst [vmem:[%s261 + $0x100] sm:$0xff] %v9708
        %9773 = vst [vmem:[%s261 + $0x108] sm:$0xff] %v9709
        %9774 = vst [vmem:[%s261 + $0x110] sm:$0xff] %v9710
        %9775 = vst [vmem:[%s261 + $0x118] sm:$0xff] %v9711
        %9776 = vst [vmem:[%s261 + $0x120] sm:$0xff] %v9712
        %9777 = vst [vmem:[%s261 + $0x128] sm:$0xff] %v9713
        %9778 = vst [vmem:[%s261 + $0x130] sm:$0xff] %v9714
        %9779 = vst [vmem:[%s261 + $0x138] sm:$0xff] %v9715
        %9780 = vst [vmem:[%s261 + $0x140] sm:$0xff] %v9716
        %9781 = vst [vmem:[%s261 + $0x148] sm:$0xff] %v9717
        %9782 = vst [vmem:[%s261 + $0x150] sm:$0xff] %v9718
        %9783 = vst [vmem:[%s261 + $0x158] sm:$0xff] %v9719
        %9784 = vst [vmem:[%s261 + $0x160] sm:$0xff] %v9720
        %9785 = vst [vmem:[%s261 + $0x168] sm:$0xff] %v9721
        %9786 = vst [vmem:[%s261 + $0x170] sm:$0xff] %v9722
        %9787 = vst [vmem:[%s261 + $0x178] sm:$0xff] %v9723
        %9788 = vst [vmem:[%s261 + $0x180] sm:$0xff] %v9724
        %9789 = vst [vmem:[%s261 + $0x188] sm:$0xff] %v9725
        %9790 = vst [vmem:[%s261 + $0x190] sm:$0xff] %v9726
        %9791 = vst [vmem:[%s261 + $0x198] sm:$0xff] %v9727
        %9792 = vst [vmem:[%s261 + $0x1a0] sm:$0xff] %v9728
        %9793 = vst [vmem:[%s261 + $0x1a8] sm:$0xff] %v9729
        %9794 = vst [vmem:[%s261 + $0x1b0] sm:$0xff] %v9730
        %9795 = vst [vmem:[%s261 + $0x1b8] sm:$0xff] %v9731
        %9796 = vst [vmem:[%s261 + $0x1c0] sm:$0xff] %v9732
        %9797 = vst [vmem:[%s261 + $0x1c8] sm:$0xff] %v9733
        %9798 = vst [vmem:[%s261 + $0x1d0] sm:$0xff] %v9734
        %9799 = vst [vmem:[%s261 + $0x1d8] sm:$0xff] %v9735
        %9800 = vst [vmem:[%s261 + $0x1e0] sm:$0xff] %v9736
        %9801 = vst [vmem:[%s261 + $0x1e8] sm:$0xff] %v9737
        %9802 = vst [vmem:[%s261 + $0x1f0] sm:$0xff] %v9738
        %9803 = vst [vmem:[%s261 + $0x1f8] sm:$0xff] %v9739
        %s9804 = sand.u32 %s121, 1
        %s9805 = scalar_lea.sflag [#allocation4], %s9804
        %s9806 = sand.u32 %s121, 1
        %s9807 = smul.addr %s9806, 512
        %s9808 = scalar_lea.vmem [#allocation8], %s9807
        // Predicated region
        $region45: #{fused_gemm_groupnorm_swish.1} parent=31 // pred_check
          %p9809 = pneg %p131
        $region46: #{fused_gemm_groupnorm_swish.1} parent=31 // pred_check_branch
          %9811 = sbr.rel (%p9809) target = $region48
        $region47: #{fused_gemm_groupnorm_swish.1} parent=31 // pred_region
          %s9812 = smul.u32 16, %s25
          %s9813 = smul.u32 4, %s26
          %s9815 = ssub.s32 8192, 8192
          %9816 = vsyncadd %s9805, %s9815
          %s9817 = smul.addr %s9812, 8
          %s9818 = sadd.s32 %s9813, %s9817
          %s9819 = smul.addr %s9818, 128
          %s9820 = scalar_lea.hbm %s3, %s9819
          %s9821 = sshll.u32 %s9808, 4
          %s9822 = int_to_ptr.vmem [resolvable:$true] %s9821
          %9827 = dma.vmem_to_hbm [thread:$0]  %s9822, 8192, %s9820, %s9805, 512, 1024, 32
        $region48: #{fused_gemm_groupnorm_swish.1} parent=31 // pred_fallthru
          _
      $region32: #{fused_gemm_groupnorm_swish.1} parent=5 // pred_fallthru
        _
      %p9828 = scmp.le.s32.totalorder 2, %s16
      // Predicated region
      $region49: #{fused_gemm_groupnorm_swish.1} parent=5 // pred_check
        %p9829 = pneg %p9828
      $region50: #{fused_gemm_groupnorm_swish.1} parent=5 // pred_check_branch
        %9831 = sbr.rel (%p9829) target = $region52
      $region51: #{fused_gemm_groupnorm_swish.1} parent=5 // pred_region
        %s9832 = ssub.s32 %s16, 2
        // Predicated region
        $region53: #{fused_gemm_groupnorm_swish.1} parent=51 // pred_check
          %p9833 = pneg %p137
        $region54: #{fused_gemm_groupnorm_swish.1} parent=51 // pred_check_branch
          %9835 = sbr.rel (%p9833) target = $region56
        $region55: #{fused_gemm_groupnorm_swish.1} parent=51 // pred_region
          %s9836 = sand.u32 %s122, 1
          %s9837 = scalar_lea.sflag [#allocation4], %s9836
          %s9838 = sand.u32 %s122, 1
          %s9839 = smul.addr %s9838, 512
          %s9840 = scalar_lea.vmem [#allocation8], %s9839
          %9841 = dma.done %s9837, 8192
        $region56: #{fused_gemm_groupnorm_swish.1} parent=51 // pred_fallthru
          _
      $region52: #{fused_gemm_groupnorm_swish.1} parent=5 // pred_fallthru
        _
    $region6: #{fused_gemm_groupnorm_swish.1} parent=1 // loop_footer
      %s20 = sadd.s32 1, %s16
    $region7: #{fused_gemm_groupnorm_swish.1} parent=1 // loop_footer_branch
      %15 = sbr.rel target = $region3
    $region8: #{fused_gemm_groupnorm_swish.1} parent=1 // loop_exit
      _
    %9842 = vsyncpa [#allocation3], 1
    %s9843 = scalar_lea.sflag [#allocation3], 1
    %9844 = vsyncpa %s9843, 1
    %9845 = vsyncpa [#allocation6], 1
    %s9846 = scalar_lea.sflag [#allocation6], 1
    %9847 = vsyncpa %s9846, 1
    %9848 = vsyncpa [#allocation4], 1
    %s9849 = scalar_lea.sflag [#allocation4], 1
    %9850 = vsyncpa %s9849, 1

</llo_original>
